<compile_context>
chip_gen: v7x
topology: tpu7x:2x2x1
jax: 0.10.0
libtpu: 0.0.40
codegen_flags: <defaults>
</compile_context>

<pallas_src>
import jax
import jax.numpy as jnp
from jax.experimental import pallas as pl
from jax.experimental.pallas import tpu as pltpu

EPS = 1e-5
NEG = -1e30                    # mask value for padded logit lanes (f32 only!)
NUM_CLASSES = 10
N5_PAD = 128                   # 10 -> 128 lanes for a lane-dense final output
DIMS = [784, 2048, 1024, 512, 256, 10]

# ----------------------------------------------------------------------------
# Packed small-vector layout: biases b1..b5, dequant scales s1..s5,
# BN gamma/beta for layers 2-4.  All widths are multiples of 128, so every
# in-kernel slice is lane-aligned.
# ----------------------------------------------------------------------------
_VEC_LAYOUT = (
    ("b1", 2048), ("s1", 2048),
    ("b2", 1024), ("s2", 1024), ("g2", 1024), ("be2", 1024),
    ("b3", 512),  ("s3", 512),  ("g3", 512),  ("be3", 512),
    ("b4", 256),  ("s4", 256),  ("g4", 256),  ("be4", 256),
    ("b5", N5_PAD), ("s5", N5_PAD),
)
_VEC_OFF = {}
_off = 0
for _name, _w in _VEC_LAYOUT:
    _VEC_OFF[_name] = (_off, _w)
    _off += _w
VEC_TOTAL = _off               # 11520 = 90 * 128


# ----------------------------------------------------------------------------
# Fused kernel: l1+ReLU -> 3x (Linear+BN+ReLU) -> l5 + masked log_softmax
# ----------------------------------------------------------------------------
def _mnist_fused_kernel(x_ref, vec_ref,
                        w1_ref, w2_ref, w3_ref, w4_ref, w5_ref,
                        o_ref):
    def V(name):
        off, width = _VEC_OFF[name]
        return vec_ref[:, off:off + width]          # (1, width) f32, static slice

    def qdot(h, w_ref, sname, bname):
        # int8 values in [-127, 127] are exact in bf16, so the cast path loses
        # nothing; MXU matmul accumulates in f32.  The per-output-channel
        # dequant scale commutes through the contraction, so it is applied to
        # the (B, N) result instead of the (K, N) weight.
        w = w_ref[...].astype(jnp.float32).astype(jnp.bfloat16)
        y = jnp.dot(h.astype(jnp.bfloat16), w,
                    preferred_element_type=jnp.float32)
        return y * V(sname) + V(bname)

    # ---- Layer 1: Linear(784 -> 2048) + ReLU
    h = jnp.maximum(qdot(x_ref[...], w1_ref, "s1", "b1"), 0.0)

    # ---- Layers 2-4: Linear + BatchNorm1d (training-mode batch stats) + ReLU
    for i, w_ref in ((2, w2_ref), (3, w3_ref), (4, w4_ref)):
        y = qdot(h, w_ref, f"s{i}", f"b{i}")
        mean = jnp.mean(y, axis=0, keepdims=True)
        var = jnp.mean((y - mean) * (y - mean), axis=0, keepdims=True)
        y = (y - mean) * jax.lax.rsqrt(var + EPS)
        y = y * V(f"g{i}") + V(f"be{i}")
        h = jnp.maximum(y, 0.0)

    # ---- Layer 5 (padded to 128 lanes): Linear + log_softmax over 10 classes
    y = qdot(h, w5_ref, "s5", "b5")                               # (B, 128) f32
    lane = jax.lax.broadcasted_iota(jnp.int32, y.shape, 1)
    y = jnp.where(lane < NUM_CLASSES, y, NEG)                     # kill padded lanes
    m = jnp.max(y, axis=1, keepdims=True)
    s = y - m
    lse = jnp.log(jnp.sum(jnp.exp(s), axis=1, keepdims=True))
    o_ref[...] = s - lse


# ----------------------------------------------------------------------------
# pallas_call wrapper: no grid (single invocation) -> no double-buffering;
# every operand is a whole-array VMEM block.
# ----------------------------------------------------------------------------
_VMEM_SPEC = pl.BlockSpec(memory_space=pltpu.MemorySpace.VMEM)


@jax.jit
def mnist_forward(x, params):
    B = x.shape[0]
    inputs = (
        x,                       # (B, 784) f32
        params["vec"],           # (1, 11520) f32 packed biases/scales/BN params
        params["w1"], params["w2"], params["w3"], params["w4"], params["w5"],
    )
    out_pad = pl.pallas_call(
        _mnist_fused_kernel,
        out_shape=jax.ShapeDtypeStruct((B, N5_PAD), jnp.float32),
        in_specs=[_VMEM_SPEC] * len(inputs),
        out_specs=_VMEM_SPEC,
        compiler_params=pltpu.CompilerParams(vmem_limit_bytes=32 << 20),
    )(*inputs)
    return out_pad[:, :NUM_CLASSES]                               # (B, 10)


# ----------------------------------------------------------------------------
# Parameter construction: deterministic synthetic init + int8 weight-only
# quantization (per-output-channel abs-max scales).
# ----------------------------------------------------------------------------
def _quantize_per_channel(w):
    amax = jnp.max(jnp.abs(w), axis=0, keepdims=True)
    scale = jnp.maximum(amax, 1e-8) / 127.0
    q = jnp.clip(jnp.round(w / scale), -127, 127).astype(jnp.int8)
    return q, scale.astype(jnp.float32)


def init_params(key):
    params = {}
    vec_parts = {}
    keys = jax.random.split(key, 2 * (len(DIMS) - 1))
    for li in range(len(DIMS) - 1):
        fan_in, fan_out = DIMS[li], DIMS[li + 1]
        wk, bk = keys[2 * li], keys[2 * li + 1]
        w = (jax.random.normal(wk, (fan_in, fan_out), jnp.float32)
             / jnp.sqrt(jnp.float32(fan_in)))
        b = jax.random.normal(bk, (1, fan_out), jnp.float32) * 0.01
        q, s = _quantize_per_channel(w)
        if li == len(DIMS) - 2:          # pad logits 10 -> 128 (masked in kernel)
            q = jnp.pad(q, ((0, 0), (0, N5_PAD - fan_out)))
            s = jnp.pad(s, ((0, 0), (0, N5_PAD - fan_out)), constant_values=1.0)
            b = jnp.pad(b, ((0, 0), (0, N5_PAD - fan_out)))
        params[f"w{li + 1}"] = q                     # int8, (K, N)
        vec_parts[f"b{li + 1}"] = b
        vec_parts[f"s{li + 1}"] = s
    # BatchNorm affine params for the three mid layers (PyTorch init: 1, 0).
    for li, width in zip((2, 3, 4), (1024, 512, 256)):
        vec_parts[f"g{li}"] = jnp.ones((1, width), jnp.float32)
        vec_parts[f"be{li}"] = jnp.zeros((1, width), jnp.float32)
    params["vec"] = jnp.concatenate(
        [vec_parts[name] for name, _ in _VEC_LAYOUT], axis=1)
    assert params["vec"].shape == (1, VEC_TOTAL)
    return params


# ----------------------------------------------------------------------------
# Pure-JAX reference (mirrors the kernel math exactly, for verification)
# ----------------------------------------------------------------------------
def mnist_forward_ref(x, params):
    vec = params["vec"]

    def V(name):
        off, width = _VEC_OFF[name]
        return vec[:, off:off + width]

    def qdot(h, w_i8, sname, bname):
        w = w_i8.astype(jnp.float32).astype(jnp.bfloat16)
        y = jnp.dot(h.astype(jnp.bfloat16), w,
                    preferred_element_type=jnp.float32)
        return y * V(sname) + V(bname)

    h = jnp.maximum(qdot(x, params["w1"], "s1", "b1"), 0.0)
    for i in (2, 3, 4):
        y = qdot(h, params[f"w{i}"], f"s{i}", f"b{i}")
        mean = jnp.mean(y, axis=0, keepdims=True)
        var = jnp.mean((y - mean) * (y - mean), axis=0, keepdims=True)
        y = (y - mean) * jax.lax.rsqrt(var + EPS)
        y = y * V(f"g{i}") + V(f"be{i}")
        h = jnp.maximum(y, 0.0)
    y = qdot(h, params["w5"], "s5", "b5")
    lane = jnp.arange(N5_PAD)[None, :]
    y = jnp.where(lane < NUM_CLASSES, y, NEG)
    m = jnp.max(y, axis=1, keepdims=True)
    s = y - m
    lse = jnp.log(jnp.sum(jnp.exp(s), axis=1, keepdims=True))
    return (s - lse)[:, :NUM_CLASSES]


if __name__ == "__main__":
    key = jax.random.PRNGKey(0)
    xkey, pkey = jax.random.split(key)

    B = 8  # batch is the only free dim; feature dims are fixed by the module
    x = jax.random.normal(xkey, (B, 784), jnp.float32)
    params = init_params(pkey)

    out = jax.block_until_ready(mnist_forward(x, params))

    assert out.shape == (B, NUM_CLASSES)
    assert out.dtype == jnp.float32
    # log_softmax rows must exp-sum to 1
    row_sums = jnp.exp(out).sum(axis=1)
    assert bool(jnp.all(jnp.abs(row_sums - 1.0) < 1e-3))
    # match the pure-JAX reference (same int8-dequant / bf16 / f32 math)
    ref = mnist_forward_ref(x, params)
    assert bool(jnp.allclose(out, ref, atol=5e-2)), "mismatch vs reference"

    print("KERNEL_OK")
</pallas_src>

<mosaic_0001>
module attributes {stable_mosaic.version = 11 : i64} {
  func.func @_mnist_fused_kernel(%arg0: memref<8x784xf32, #tpu.memory_space<vmem>>, %arg1: memref<1x11520xf32, #tpu.memory_space<vmem>>, %arg2: memref<784x2048xi8, #tpu.memory_space<vmem>>, %arg3: memref<2048x1024xi8, #tpu.memory_space<vmem>>, %arg4: memref<1024x512xi8, #tpu.memory_space<vmem>>, %arg5: memref<512x256xi8, #tpu.memory_space<vmem>>, %arg6: memref<256x128xi8, #tpu.memory_space<vmem>>, %arg7: memref<8x128xf32, #tpu.memory_space<vmem>>) attributes {dimension_semantics = [], scalar_prefetch = 0 : i64, scratch_operands = 0 : i64, tpu.core_type = #tpu.core_type<tc>} {
    %c0 = arith.constant 0 : index
    %c0_0 = arith.constant 0 : index
    %0 = vector.load %arg0[%c0, %c0_0] : memref<8x784xf32, #tpu.memory_space<vmem>>, vector<8x784xf32>
    %c0_1 = arith.constant 0 : index
    %c0_2 = arith.constant 0 : index
    %1 = vector.load %arg2[%c0_1, %c0_2] : memref<784x2048xi8, #tpu.memory_space<vmem>>, vector<784x2048xi8>
    %2 = arith.sitofp %1 : vector<784x2048xi8> to vector<784x2048xf32>
    %3 = arith.truncf %2 : vector<784x2048xf32> to vector<784x2048xbf16>
    %4 = arith.truncf %0 : vector<8x784xf32> to vector<8x784xbf16>
    %cst = arith.constant dense<0.000000e+00> : vector<8x2048xf32>
    %5 = tpu.matmul %4, %3, %cst {dimension_numbers = #tpu.dot_dimension_numbers<[1], [0], [0], [1], [0, 0, 1, 1], [], []>} : vector<8x784xbf16>, vector<784x2048xbf16>, vector<8x2048xf32> -> vector<8x2048xf32>
    %c0_3 = arith.constant 0 : index
    %c2048 = arith.constant 2048 : index
    %6 = vector.load %arg1[%c0_3, %c2048] : memref<1x11520xf32, #tpu.memory_space<vmem>>, vector<1x2048xf32>
    %7 = vector.broadcast %6 : vector<1x2048xf32> to vector<8x2048xf32>
    %8 = arith.mulf %5, %7 : vector<8x2048xf32>
    %c0_4 = arith.constant 0 : index
    %c0_5 = arith.constant 0 : index
    %9 = vector.load %arg1[%c0_4, %c0_5] : memref<1x11520xf32, #tpu.memory_space<vmem>>, vector<1x2048xf32>
    %10 = vector.broadcast %9 : vector<1x2048xf32> to vector<8x2048xf32>
    %11 = arith.addf %8, %10 : vector<8x2048xf32>
    %cst_6 = arith.constant 0.000000e+00 : f32
    %12 = vector.broadcast %cst_6 : f32 to vector<8x2048xf32>
    %13 = arith.maximumf %11, %12 : vector<8x2048xf32>
    %c0_7 = arith.constant 0 : index
    %c0_8 = arith.constant 0 : index
    %14 = vector.load %arg3[%c0_7, %c0_8] : memref<2048x1024xi8, #tpu.memory_space<vmem>>, vector<2048x1024xi8>
    %15 = arith.sitofp %14 : vector<2048x1024xi8> to vector<2048x1024xf32>
    %16 = arith.truncf %15 : vector<2048x1024xf32> to vector<2048x1024xbf16>
    %17 = arith.truncf %13 : vector<8x2048xf32> to vector<8x2048xbf16>
    %cst_9 = arith.constant dense<0.000000e+00> : vector<8x1024xf32>
    %18 = tpu.matmul %17, %16, %cst_9 {dimension_numbers = #tpu.dot_dimension_numbers<[1], [0], [0], [1], [0, 0, 1, 1], [], []>} : vector<8x2048xbf16>, vector<2048x1024xbf16>, vector<8x1024xf32> -> vector<8x1024xf32>
    %c0_10 = arith.constant 0 : index
    %c5120 = arith.constant 5120 : index
    %19 = vector.load %arg1[%c0_10, %c5120] : memref<1x11520xf32, #tpu.memory_space<vmem>>, vector<1x1024xf32>
    %20 = vector.broadcast %19 : vector<1x1024xf32> to vector<8x1024xf32>
    %21 = arith.mulf %18, %20 : vector<8x1024xf32>
    %c0_11 = arith.constant 0 : index
    %c4096 = arith.constant 4096 : index
    %22 = vector.load %arg1[%c0_11, %c4096] : memref<1x11520xf32, #tpu.memory_space<vmem>>, vector<1x1024xf32>
    %23 = vector.broadcast %22 : vector<1x1024xf32> to vector<8x1024xf32>
    %24 = arith.addf %21, %23 : vector<8x1024xf32>
    %cst_12 = arith.constant dense<0.000000e+00> : vector<1024xf32>
    %25 = vector.multi_reduction <add>, %24, %cst_12 [0] : vector<8x1024xf32> to vector<1024xf32>
    %26 = vector.shape_cast %25 : vector<1024xf32> to vector<1x1024xf32>
    %cst_13 = arith.constant 8.000000e+00 : f32
    %27 = vector.broadcast %cst_13 : f32 to vector<1x1024xf32>
    %28 = arith.divf %26, %27 : vector<1x1024xf32>
    %29 = vector.broadcast %28 : vector<1x1024xf32> to vector<8x1024xf32>
    %30 = arith.subf %24, %29 : vector<8x1024xf32>
    %31 = vector.broadcast %28 : vector<1x1024xf32> to vector<8x1024xf32>
    %32 = arith.subf %24, %31 : vector<8x1024xf32>
    %33 = arith.mulf %30, %32 : vector<8x1024xf32>
    %cst_14 = arith.constant dense<0.000000e+00> : vector<1024xf32>
    %34 = vector.multi_reduction <add>, %33, %cst_14 [0] : vector<8x1024xf32> to vector<1024xf32>
    %35 = vector.shape_cast %34 : vector<1024xf32> to vector<1x1024xf32>
    %cst_15 = arith.constant 8.000000e+00 : f32
    %36 = vector.broadcast %cst_15 : f32 to vector<1x1024xf32>
    %37 = arith.divf %35, %36 : vector<1x1024xf32>
    %38 = vector.broadcast %28 : vector<1x1024xf32> to vector<8x1024xf32>
    %39 = arith.subf %24, %38 : vector<8x1024xf32>
    %cst_16 = arith.constant 9.99999974E-6 : f32
    %40 = vector.broadcast %cst_16 : f32 to vector<1x1024xf32>
    %41 = arith.addf %37, %40 : vector<1x1024xf32>
    %42 = math.rsqrt %41 : vector<1x1024xf32>
    %43 = vector.broadcast %42 : vector<1x1024xf32> to vector<8x1024xf32>
    %44 = arith.mulf %39, %43 : vector<8x1024xf32>
    %c0_17 = arith.constant 0 : index
    %c6144 = arith.constant 6144 : index
    %45 = vector.load %arg1[%c0_17, %c6144] : memref<1x11520xf32, #tpu.memory_space<vmem>>, vector<1x1024xf32>
    %46 = vector.broadcast %45 : vector<1x1024xf32> to vector<8x1024xf32>
    %47 = arith.mulf %44, %46 : vector<8x1024xf32>
    %c0_18 = arith.constant 0 : index
    %c7168 = arith.constant 7168 : index
    %48 = vector.load %arg1[%c0_18, %c7168] : memref<1x11520xf32, #tpu.memory_space<vmem>>, vector<1x1024xf32>
    %49 = vector.broadcast %48 : vector<1x1024xf32> to vector<8x1024xf32>
    %50 = arith.addf %47, %49 : vector<8x1024xf32>
    %cst_19 = arith.constant 0.000000e+00 : f32
    %51 = vector.broadcast %cst_19 : f32 to vector<8x1024xf32>
    %52 = arith.maximumf %50, %51 : vector<8x1024xf32>
    %c0_20 = arith.constant 0 : index
    %c0_21 = arith.constant 0 : index
    %53 = vector.load %arg4[%c0_20, %c0_21] : memref<1024x512xi8, #tpu.memory_space<vmem>>, vector<1024x512xi8>
    %54 = arith.sitofp %53 : vector<1024x512xi8> to vector<1024x512xf32>
    %55 = arith.truncf %54 : vector<1024x512xf32> to vector<1024x512xbf16>
    %56 = arith.truncf %52 : vector<8x1024xf32> to vector<8x1024xbf16>
    %cst_22 = arith.constant dense<0.000000e+00> : vector<8x512xf32>
    %57 = tpu.matmul %56, %55, %cst_22 {dimension_numbers = #tpu.dot_dimension_numbers<[1], [0], [0], [1], [0, 0, 1, 1], [], []>} : vector<8x1024xbf16>, vector<1024x512xbf16>, vector<8x512xf32> -> vector<8x512xf32>
    %c0_23 = arith.constant 0 : index
    %c8704 = arith.constant 8704 : index
    %58 = vector.load %arg1[%c0_23, %c8704] : memref<1x11520xf32, #tpu.memory_space<vmem>>, vector<1x512xf32>
    %59 = vector.broadcast %58 : vector<1x512xf32> to vector<8x512xf32>
    %60 = arith.mulf %57, %59 : vector<8x512xf32>
    %c0_24 = arith.constant 0 : index
    %c8192 = arith.constant 8192 : index
    %61 = vector.load %arg1[%c0_24, %c8192] : memref<1x11520xf32, #tpu.memory_space<vmem>>, vector<1x512xf32>
    %62 = vector.broadcast %61 : vector<1x512xf32> to vector<8x512xf32>
    %63 = arith.addf %60, %62 : vector<8x512xf32>
    %cst_25 = arith.constant dense<0.000000e+00> : vector<512xf32>
    %64 = vector.multi_reduction <add>, %63, %cst_25 [0] : vector<8x512xf32> to vector<512xf32>
    %65 = vector.shape_cast %64 : vector<512xf32> to vector<1x512xf32>
    %cst_26 = arith.constant 8.000000e+00 : f32
    %66 = vector.broadcast %cst_26 : f32 to vector<1x512xf32>
    %67 = arith.divf %65, %66 : vector<1x512xf32>
    %68 = vector.broadcast %67 : vector<1x512xf32> to vector<8x512xf32>
    %69 = arith.subf %63, %68 : vector<8x512xf32>
    %70 = vector.broadcast %67 : vector<1x512xf32> to vector<8x512xf32>
    %71 = arith.subf %63, %70 : vector<8x512xf32>
    %72 = arith.mulf %69, %71 : vector<8x512xf32>
    %cst_27 = arith.constant dense<0.000000e+00> : vector<512xf32>
    %73 = vector.multi_reduction <add>, %72, %cst_27 [0] : vector<8x512xf32> to vector<512xf32>
    %74 = vector.shape_cast %73 : vector<512xf32> to vector<1x512xf32>
    %cst_28 = arith.constant 8.000000e+00 : f32
    %75 = vector.broadcast %cst_28 : f32 to vector<1x512xf32>
    %76 = arith.divf %74, %75 : vector<1x512xf32>
    %77 = vector.broadcast %67 : vector<1x512xf32> to vector<8x512xf32>
    %78 = arith.subf %63, %77 : vector<8x512xf32>
    %cst_29 = arith.constant 9.99999974E-6 : f32
    %79 = vector.broadcast %cst_29 : f32 to vector<1x512xf32>
    %80 = arith.addf %76, %79 : vector<1x512xf32>
    %81 = math.rsqrt %80 : vector<1x512xf32>
    %82 = vector.broadcast %81 : vector<1x512xf32> to vector<8x512xf32>
    %83 = arith.mulf %78, %82 : vector<8x512xf32>
    %c0_30 = arith.constant 0 : index
    %c9216 = arith.constant 9216 : index
    %84 = vector.load %arg1[%c0_30, %c9216] : memref<1x11520xf32, #tpu.memory_space<vmem>>, vector<1x512xf32>
    %85 = vector.broadcast %84 : vector<1x512xf32> to vector<8x512xf32>
    %86 = arith.mulf %83, %85 : vector<8x512xf32>
    %c0_31 = arith.constant 0 : index
    %c9728 = arith.constant 9728 : index
    %87 = vector.load %arg1[%c0_31, %c9728] : memref<1x11520xf32, #tpu.memory_space<vmem>>, vector<1x512xf32>
    %88 = vector.broadcast %87 : vector<1x512xf32> to vector<8x512xf32>
    %89 = arith.addf %86, %88 : vector<8x512xf32>
    %cst_32 = arith.constant 0.000000e+00 : f32
    %90 = vector.broadcast %cst_32 : f32 to vector<8x512xf32>
    %91 = arith.maximumf %89, %90 : vector<8x512xf32>
    %c0_33 = arith.constant 0 : index
    %c0_34 = arith.constant 0 : index
    %92 = vector.load %arg5[%c0_33, %c0_34] : memref<512x256xi8, #tpu.memory_space<vmem>>, vector<512x256xi8>
    %93 = arith.sitofp %92 : vector<512x256xi8> to vector<512x256xf32>
    %94 = arith.truncf %93 : vector<512x256xf32> to vector<512x256xbf16>
    %95 = arith.truncf %91 : vector<8x512xf32> to vector<8x512xbf16>
    %cst_35 = arith.constant dense<0.000000e+00> : vector<8x256xf32>
    %96 = tpu.matmul %95, %94, %cst_35 {dimension_numbers = #tpu.dot_dimension_numbers<[1], [0], [0], [1], [0, 0, 1, 1], [], []>} : vector<8x512xbf16>, vector<512x256xbf16>, vector<8x256xf32> -> vector<8x256xf32>
    %c0_36 = arith.constant 0 : index
    %c10496 = arith.constant 10496 : index
    %97 = vector.load %arg1[%c0_36, %c10496] : memref<1x11520xf32, #tpu.memory_space<vmem>>, vector<1x256xf32>
    %98 = vector.broadcast %97 : vector<1x256xf32> to vector<8x256xf32>
    %99 = arith.mulf %96, %98 : vector<8x256xf32>
    %c0_37 = arith.constant 0 : index
    %c10240 = arith.constant 10240 : index
    %100 = vector.load %arg1[%c0_37, %c10240] : memref<1x11520xf32, #tpu.memory_space<vmem>>, vector<1x256xf32>
    %101 = vector.broadcast %100 : vector<1x256xf32> to vector<8x256xf32>
    %102 = arith.addf %99, %101 : vector<8x256xf32>
    %cst_38 = arith.constant dense<0.000000e+00> : vector<256xf32>
    %103 = vector.multi_reduction <add>, %102, %cst_38 [0] : vector<8x256xf32> to vector<256xf32>
    %104 = vector.shape_cast %103 : vector<256xf32> to vector<1x256xf32>
    %cst_39 = arith.constant 8.000000e+00 : f32
    %105 = vector.broadcast %cst_39 : f32 to vector<1x256xf32>
    %106 = arith.divf %104, %105 : vector<1x256xf32>
    %107 = vector.broadcast %106 : vector<1x256xf32> to vector<8x256xf32>
    %108 = arith.subf %102, %107 : vector<8x256xf32>
    %109 = vector.broadcast %106 : vector<1x256xf32> to vector<8x256xf32>
    %110 = arith.subf %102, %109 : vector<8x256xf32>
    %111 = arith.mulf %108, %110 : vector<8x256xf32>
    %cst_40 = arith.constant dense<0.000000e+00> : vector<256xf32>
    %112 = vector.multi_reduction <add>, %111, %cst_40 [0] : vector<8x256xf32> to vector<256xf32>
    %113 = vector.shape_cast %112 : vector<256xf32> to vector<1x256xf32>
    %cst_41 = arith.constant 8.000000e+00 : f32
    %114 = vector.broadcast %cst_41 : f32 to vector<1x256xf32>
    %115 = arith.divf %113, %114 : vector<1x256xf32>
    %116 = vector.broadcast %106 : vector<1x256xf32> to vector<8x256xf32>
    %117 = arith.subf %102, %116 : vector<8x256xf32>
    %cst_42 = arith.constant 9.99999974E-6 : f32
    %118 = vector.broadcast %cst_42 : f32 to vector<1x256xf32>
    %119 = arith.addf %115, %118 : vector<1x256xf32>
    %120 = math.rsqrt %119 : vector<1x256xf32>
    %121 = vector.broadcast %120 : vector<1x256xf32> to vector<8x256xf32>
    %122 = arith.mulf %117, %121 : vector<8x256xf32>
    %c0_43 = arith.constant 0 : index
    %c10752 = arith.constant 10752 : index
    %123 = vector.load %arg1[%c0_43, %c10752] : memref<1x11520xf32, #tpu.memory_space<vmem>>, vector<1x256xf32>
    %124 = vector.broadcast %123 : vector<1x256xf32> to vector<8x256xf32>
    %125 = arith.mulf %122, %124 : vector<8x256xf32>
    %c0_44 = arith.constant 0 : index
    %c11008 = arith.constant 11008 : index
    %126 = vector.load %arg1[%c0_44, %c11008] : memref<1x11520xf32, #tpu.memory_space<vmem>>, vector<1x256xf32>
    %127 = vector.broadcast %126 : vector<1x256xf32> to vector<8x256xf32>
    %128 = arith.addf %125, %127 : vector<8x256xf32>
    %cst_45 = arith.constant 0.000000e+00 : f32
    %129 = vector.broadcast %cst_45 : f32 to vector<8x256xf32>
    %130 = arith.maximumf %128, %129 : vector<8x256xf32>
    %c0_46 = arith.constant 0 : index
    %c0_47 = arith.constant 0 : index
    %131 = vector.load %arg6[%c0_46, %c0_47] : memref<256x128xi8, #tpu.memory_space<vmem>>, vector<256x128xi8>
    %132 = arith.sitofp %131 : vector<256x128xi8> to vector<256x128xf32>
    %133 = arith.truncf %132 : vector<256x128xf32> to vector<256x128xbf16>
    %134 = arith.truncf %130 : vector<8x256xf32> to vector<8x256xbf16>
    %cst_48 = arith.constant dense<0.000000e+00> : vector<8x128xf32>
    %135 = tpu.matmul %134, %133, %cst_48 {dimension_numbers = #tpu.dot_dimension_numbers<[1], [0], [0], [1], [0, 0, 1, 1], [], []>} : vector<8x256xbf16>, vector<256x128xbf16>, vector<8x128xf32> -> vector<8x128xf32>
    %c0_49 = arith.constant 0 : index
    %c11392 = arith.constant 11392 : index
    %136 = vector.load %arg1[%c0_49, %c11392] : memref<1x11520xf32, #tpu.memory_space<vmem>>, vector<1x128xf32>
    %137 = vector.broadcast %136 : vector<1x128xf32> to vector<8x128xf32>
    %138 = arith.mulf %135, %137 : vector<8x128xf32>
    %c0_50 = arith.constant 0 : index
    %c11264 = arith.constant 11264 : index
    %139 = vector.load %arg1[%c0_50, %c11264] : memref<1x11520xf32, #tpu.memory_space<vmem>>, vector<1x128xf32>
    %140 = vector.broadcast %139 : vector<1x128xf32> to vector<8x128xf32>
    %141 = arith.addf %138, %140 : vector<8x128xf32>
    %142 = tpu.iota {dimensions = array<i32: 1>} : vector<8x128xi32>
    %c10_i32 = arith.constant 10 : i32
    %143 = vector.broadcast %c10_i32 : i32 to vector<8x128xi32>
    %144 = arith.cmpi slt, %142, %143 : vector<8x128xi32>
    %cst_51 = arith.constant -1.000000e+30 : f32
    %145 = vector.broadcast %cst_51 : f32 to vector<8x128xf32>
    %146 = arith.select %144, %141, %145 : vector<8x128xi1>, vector<8x128xf32>
    %cst_52 = arith.constant dense<0xFF800000> : vector<8xf32>
    %147 = vector.multi_reduction <maximumf>, %146, %cst_52 [1] : vector<8x128xf32> to vector<8xf32>
    %148 = vector.shape_cast %147 : vector<8xf32> to vector<8x1xf32>
    %149 = vector.broadcast %148 : vector<8x1xf32> to vector<8x128xf32>
    %150 = arith.subf %146, %149 : vector<8x128xf32>
    %151 = math.exp %150 : vector<8x128xf32>
    %cst_53 = arith.constant dense<0.000000e+00> : vector<8xf32>
    %152 = vector.multi_reduction <add>, %151, %cst_53 [1] : vector<8x128xf32> to vector<8xf32>
    %153 = vector.shape_cast %152 : vector<8xf32> to vector<8x1xf32>
    %154 = math.log %153 : vector<8x1xf32>
    %155 = vector.broadcast %154 : vector<8x1xf32> to vector<8x128xf32>
    %156 = arith.subf %150, %155 : vector<8x128xf32>
    %c0_54 = arith.constant 0 : index
    %c0_55 = arith.constant 0 : index
    %157 = vector.load %arg7[%c0_54, %c0_55] : memref<8x128xf32, #tpu.memory_space<vmem>>, vector<8x128xf32>
    tpu.vector_store %arg7[%c0_54, %c0_55], %156 {strides = array<i32>} : memref<8x128xf32, #tpu.memory_space<vmem>>, vector<8x128xf32>,
    return
  }
}

</mosaic_0001>

<llo_original>
// kernel: mnist_forward.1
$region0: #{mnist_forward.1}
  #allocation0 [shape = 'u32[]', space=smem, size = 0x4, offset = 0x4, fixed_abs, tag = 'smem constant byte address 0x4 - core index']
  #allocation1 [shape = 'u32[144,128]{1,0:T(1,128)}', space=vmem, size = 0x12000, scoped, tag = 'internal scratch']
  %s0 = inlined_call_operand.hbm [shape: f32[8,784], index: 0, kind: input, shape index: {}]
  %s1 = inlined_call_operand.hbm [shape: f32[1,11520], index: 1, kind: input, shape index: {}]
  %s2 = inlined_call_operand.hbm [shape: s8[784,2048], index: 2, kind: input, shape index: {}]
  %s3 = inlined_call_operand.hbm [shape: s8[2048,1024], index: 3, kind: input, shape index: {}]
  %s4 = inlined_call_operand.hbm [shape: s8[1024,512], index: 4, kind: input, shape index: {}]
  %s5 = inlined_call_operand.hbm [shape: s8[512,256], index: 5, kind: input, shape index: {}]
  %s6 = inlined_call_operand.hbm [shape: s8[256,128], index: 6, kind: input, shape index: {}]
  %s7 = inlined_call_operand.hbm [shape: f32[8,128], index: 7, kind: output, shape index: {}]
  %s8 = sld [smem:[#allocation0]]
  $region66: #{mnist_forward.1} parent=0
    _
  %s10 = ssub.s32 1, %s8
  %s11 = scalar_select 0, %s10, %s8
  $region1: #{mnist_forward.1} parent=0
    #allocation2 [shape = 'u8[28672]{0}', space=vmem, size = 0x7000, scoped, tag = 'input window, operand 0, single buffered']
    #allocation3 [shape = 's32[1]{0}', space=sflag, size = 0x4, scoped, tag = 'scoped memory for mnist_forward.1']
    #allocation4 [shape = 's32[1]{0}', space=sflag, size = 0x4, scoped, tag = 'scoped memory for mnist_forward.1']
    #allocation5 [shape = 'u8[46080]{0}', space=vmem, size = 0xb400, scoped, tag = 'input window, operand 1, single buffered']
    #allocation6 [shape = 's32[1]{0}', space=sflag, size = 0x4, scoped, tag = 'scoped memory for mnist_forward.1']
    #allocation7 [shape = 'u8[1605632]{0}', space=vmem, size = 0x188000, scoped, tag = 'input window, operand 2, single buffered']
    #allocation8 [shape = 'u8[2097152]{0}', space=vmem, size = 0x200000, scoped, tag = 'input window, operand 3, single buffered']
    #allocation9 [shape = 's32[1]{0}', space=sflag, size = 0x4, scoped, tag = 'scoped memory for mnist_forward.1']
    #allocation10 [shape = 'u8[524288]{0}', space=vmem, size = 0x80000, scoped, tag = 'input window, operand 4, single buffered']
    #allocation11 [shape = 'u8[131072]{0}', space=vmem, size = 0x20000, scoped, tag = 'input window, operand 5, single buffered']
    #allocation12 [shape = 's32[1]{0}', space=sflag, size = 0x4, scoped, tag = 'scoped memory for mnist_forward.1']
    #allocation13 [shape = 'u8[32768]{0}', space=vmem, size = 0x8000, scoped, tag = 'input window, operand 6, single buffered']
    #allocation14 [shape = 'u8[4096]{0}', space=vmem, size = 0x1000, scoped, tag = 'output window, operand 0, single buffered']
    %12 = vsyncpa [#allocation3], 0
    %13 = vsyncpa [#allocation6], 0
    %14 = vsyncpa [#allocation9], 0
    %15 = vsyncpa [#allocation12], 0
    %16 = vsyncpa [#allocation4], 0
    // Predicated region
    $region2: #{mnist_forward.1} parent=1 // pred_check
      _
    $region3: #{mnist_forward.1} parent=1 // pred_check_branch
      %18 = sbr.rel (0) target = $region5
    $region4: #{mnist_forward.1} parent=1 // pred_region
      %s20 = ssub.s32 896, 896
      %21 = vsyncadd [#allocation3], %s20
      %s23 = sshll.u32 [#allocation2], 4
      %s24 = int_to_ptr.vmem [resolvable:$true] %s23
      %26 = dma.hbm_to_vmem [thread:$0]  %s0, 896, %s24, [#allocation3]
    $region5: #{mnist_forward.1} parent=1 // pred_fallthru
      _
    // Predicated region
    $region6: #{mnist_forward.1} parent=1 // pred_check
      _
    $region7: #{mnist_forward.1} parent=1 // pred_check_branch
      %28 = sbr.rel (0) target = $region9
    $region8: #{mnist_forward.1} parent=1 // pred_region
      %s30 = ssub.s32 1440, 1440
      %31 = vsyncadd [#allocation6], %s30
      %s33 = sshll.u32 [#allocation5], 4
      %s34 = int_to_ptr.vmem [resolvable:$true] %s33
      %36 = dma.hbm_to_vmem [thread:$0]  %s1, 1440, %s34, [#allocation6]
    $region9: #{mnist_forward.1} parent=1 // pred_fallthru
      _
    // Predicated region
    $region10: #{mnist_forward.1} parent=1 // pred_check
      _
    $region11: #{mnist_forward.1} parent=1 // pred_check_branch
      %38 = sbr.rel (0) target = $region13
    $region12: #{mnist_forward.1} parent=1 // pred_region
      %s40 = ssub.s32 50176, 50176
      %41 = vsyncadd [#allocation6], %s40
      %s42 = sshll.u32 [#allocation7], 4
      %s43 = int_to_ptr.vmem [resolvable:$true] %s42
      %48 = dma.hbm_to_vmem [thread:$0]  %s2, 50176, %s43, [#allocation6], 512, 512, 32
    $region13: #{mnist_forward.1} parent=1 // pred_fallthru
      _
    // Predicated region
    $region14: #{mnist_forward.1} parent=1 // pred_check
      _
    $region15: #{mnist_forward.1} parent=1 // pred_check_branch
      %50 = sbr.rel (0) target = $region17
    $region16: #{mnist_forward.1} parent=1 // pred_region
      %s52 = ssub.s32 65536, 65536
      %53 = vsyncadd [#allocation9], %s52
      %s54 = sshll.u32 [#allocation8], 4
      %s55 = int_to_ptr.vmem [resolvable:$true] %s54
      %60 = dma.hbm_to_vmem [thread:$0]  %s3, 65536, %s55, [#allocation9], 1024, 1024, 64
    $region17: #{mnist_forward.1} parent=1 // pred_fallthru
      _
    // Predicated region
    $region18: #{mnist_forward.1} parent=1 // pred_check
      _
    $region19: #{mnist_forward.1} parent=1 // pred_check_branch
      %62 = sbr.rel (0) target = $region21
    $region20: #{mnist_forward.1} parent=1 // pred_region
      %s64 = ssub.s32 16384, 16384
      %65 = vsyncadd [#allocation9], %s64
      %s66 = sshll.u32 [#allocation10], 4
      %s67 = int_to_ptr.vmem [resolvable:$true] %s66
      %72 = dma.hbm_to_vmem [thread:$0]  %s4, 16384, %s67, [#allocation9], 512, 512, 32
    $region21: #{mnist_forward.1} parent=1 // pred_fallthru
      _
    // Predicated region
    $region22: #{mnist_forward.1} parent=1 // pred_check
      _
    $region23: #{mnist_forward.1} parent=1 // pred_check_branch
      %74 = sbr.rel (0) target = $region25
    $region24: #{mnist_forward.1} parent=1 // pred_region
      %s76 = ssub.s32 4096, 4096
      %77 = vsyncadd [#allocation12], %s76
      %s78 = sshll.u32 [#allocation11], 4
      %s79 = int_to_ptr.vmem [resolvable:$true] %s78
      %84 = dma.hbm_to_vmem [thread:$0]  %s5, 4096, %s79, [#allocation12], 256, 256, 16
    $region25: #{mnist_forward.1} parent=1 // pred_fallthru
      _
    // Predicated region
    $region26: #{mnist_forward.1} parent=1 // pred_check
      _
    $region27: #{mnist_forward.1} parent=1 // pred_check_branch
      %86 = sbr.rel (0) target = $region29
    $region28: #{mnist_forward.1} parent=1 // pred_region
      %s88 = ssub.s32 1024, 1024
      %89 = vsyncadd [#allocation12], %s88
      %s90 = sshll.u32 [#allocation13], 4
      %s91 = int_to_ptr.vmem [resolvable:$true] %s90
      %96 = dma.hbm_to_vmem [thread:$0]  %s6, 1024, %s91, [#allocation12], 128, 128, 8
    $region29: #{mnist_forward.1} parent=1 // pred_fallthru
      _
    // Predicated region
    $region30: #{mnist_forward.1} parent=1 // pred_check
      _
    $region31: #{mnist_forward.1} parent=1 // pred_check_branch
      %98 = sbr.rel (0) target = $region33
    $region32: #{mnist_forward.1} parent=1 // pred_region
      %99 = dma.done [#allocation3], 896
    $region33: #{mnist_forward.1} parent=1 // pred_fallthru
      _
    // Predicated region
    $region34: #{mnist_forward.1} parent=1 // pred_check
      _
    $region35: #{mnist_forward.1} parent=1 // pred_check_branch
      %101 = sbr.rel (0) target = $region37
    $region36: #{mnist_forward.1} parent=1 // pred_region
      %102 = dma.done [#allocation6], 1440
    $region37: #{mnist_forward.1} parent=1 // pred_fallthru
      _
    // Predicated region
    $region38: #{mnist_forward.1} parent=1 // pred_check
      _
    $region39: #{mnist_forward.1} parent=1 // pred_check_branch
      %104 = sbr.rel (0) target = $region41
    $region40: #{mnist_forward.1} parent=1 // pred_region
      %105 = dma.done [#allocation6], 50176
    $region41: #{mnist_forward.1} parent=1 // pred_fallthru
      _
    // Predicated region
    $region42: #{mnist_forward.1} parent=1 // pred_check
      _
    $region43: #{mnist_forward.1} parent=1 // pred_check_branch
      %107 = sbr.rel (0) target = $region45
    $region44: #{mnist_forward.1} parent=1 // pred_region
      %108 = dma.done [#allocation9], 65536
    $region45: #{mnist_forward.1} parent=1 // pred_fallthru
      _
    // Predicated region
    $region46: #{mnist_forward.1} parent=1 // pred_check
      _
    $region47: #{mnist_forward.1} parent=1 // pred_check_branch
      %110 = sbr.rel (0) target = $region49
    $region48: #{mnist_forward.1} parent=1 // pred_region
      %111 = dma.done [#allocation9], 16384
    $region49: #{mnist_forward.1} parent=1 // pred_fallthru
      _
    // Predicated region
    $region50: #{mnist_forward.1} parent=1 // pred_check
      _
    $region51: #{mnist_forward.1} parent=1 // pred_check_branch
      %113 = sbr.rel (0) target = $region53
    $region52: #{mnist_forward.1} parent=1 // pred_region
      %114 = dma.done [#allocation12], 4096
    $region53: #{mnist_forward.1} parent=1 // pred_fallthru
      _
    // Predicated region
    $region54: #{mnist_forward.1} parent=1 // pred_check
      _
    $region55: #{mnist_forward.1} parent=1 // pred_check_branch
      %116 = sbr.rel (0) target = $region57
    $region56: #{mnist_forward.1} parent=1 // pred_region
      %117 = dma.done [#allocation12], 1024
    $region57: #{mnist_forward.1} parent=1 // pred_fallthru
      _
    %v119 = vld [vmem:[#allocation2] sm:$0xff]
    %v120 = vld [vmem:[#allocation2 + $0x8] sm:$0xff]
    %v121 = vld [vmem:[#allocation2 + $0x10] sm:$0xff]
    %v122 = vld [vmem:[#allocation2 + $0x18] sm:$0xff]
    %v123 = vld [vmem:[#allocation2 + $0x20] sm:$0xff]
    %v124 = vld [vmem:[#allocation2 + $0x28] sm:$0xff]
    %v125 = vld [vmem:[#allocation2 + $0x30] sm:$0xff]
    %v126 = vld [vmem:[#allocation7] sm:$0xff]
    %v127 = vld [vmem:[#allocation7 + $0x8] sm:$0xff]
    %v128 = vld [vmem:[#allocation7 + $0x10] sm:$0xff]
    %v129 = vld [vmem:[#allocation7 + $0x18] sm:$0xff]
    %v130 = vld [vmem:[#allocation7 + $0x20] sm:$0xff]
    %v131 = vld [vmem:[#allocation7 + $0x28] sm:$0xff]
    %v132 = vld [vmem:[#allocation7 + $0x30] sm:$0xff]
    %v133 = vld [vmem:[#allocation7 + $0x38] sm:$0xff]
    %v134 = vld [vmem:[#allocation7 + $0x40] sm:$0xff]
    %v135 = vld [vmem:[#allocation7 + $0x48] sm:$0xff]
    %v136 = vld [vmem:[#allocation7 + $0x50] sm:$0xff]
    %v137 = vld [vmem:[#allocation7 + $0x58] sm:$0xff]
    %v138 = vld [vmem:[#allocation7 + $0x60] sm:$0xff]
    %v139 = vld [vmem:[#allocation7 + $0x68] sm:$0xff]
    %v140 = vld [vmem:[#allocation7 + $0x70] sm:$0xff]
    %v141 = vld [vmem:[#allocation7 + $0x78] sm:$0xff]
    %v142 = vld [vmem:[#allocation7 + $0x80] sm:$0xff]
    %v143 = vld [vmem:[#allocation7 + $0x88] sm:$0xff]
    %v144 = vld [vmem:[#allocation7 + $0x90] sm:$0xff]
    %v145 = vld [vmem:[#allocation7 + $0x98] sm:$0xff]
    %v146 = vld [vmem:[#allocation7 + $0xa0] sm:$0xff]
    %v147 = vld [vmem:[#allocation7 + $0xa8] sm:$0xff]
    %v148 = vld [vmem:[#allocation7 + $0xb0] sm:$0xff]
    %v149 = vld [vmem:[#allocation7 + $0xb8] sm:$0xff]
    %v150 = vld [vmem:[#allocation7 + $0xc0] sm:$0xff]
    %v151 = vld [vmem:[#allocation7 + $0xc8] sm:$0xff]
    %v152 = vld [vmem:[#allocation7 + $0xd0] sm:$0xff]
    %v153 = vld [vmem:[#allocation7 + $0xd8] sm:$0xff]
    %v154 = vld [vmem:[#allocation7 + $0xe0] sm:$0xff]
    %v155 = vld [vmem:[#allocation7 + $0xe8] sm:$0xff]
    %v156 = vld [vmem:[#allocation7 + $0xf0] sm:$0xff]
    %v157 = vld [vmem:[#allocation7 + $0xf8] sm:$0xff]
    %v158 = vld [vmem:[#allocation7 + $0x100] sm:$0xff]
    %v159 = vld [vmem:[#allocation7 + $0x108] sm:$0xff]
    %v160 = vld [vmem:[#allocation7 + $0x110] sm:$0xff]
    %v161 = vld [vmem:[#allocation7 + $0x118] sm:$0xff]
    %v162 = vld [vmem:[#allocation7 + $0x120] sm:$0xff]
    %v163 = vld [vmem:[#allocation7 + $0x128] sm:$0xff]
    %v164 = vld [vmem:[#allocation7 + $0x130] sm:$0xff]
    %v165 = vld [vmem:[#allocation7 + $0x138] sm:$0xff]
    %v166 = vld [vmem:[#allocation7 + $0x140] sm:$0xff]
    %v167 = vld [vmem:[#allocation7 + $0x148] sm:$0xff]
    %v168 = vld [vmem:[#allocation7 + $0x150] sm:$0xff]
    %v169 = vld [vmem:[#allocation7 + $0x158] sm:$0xff]
    %v170 = vld [vmem:[#allocation7 + $0x160] sm:$0xff]
    %v171 = vld [vmem:[#allocation7 + $0x168] sm:$0xff]
    %v172 = vld [vmem:[#allocation7 + $0x170] sm:$0xff]
    %v173 = vld [vmem:[#allocation7 + $0x178] sm:$0xff]
    %v174 = vld [vmem:[#allocation7 + $0x180] sm:$0xff]
    %v175 = vld [vmem:[#allocation7 + $0x188] sm:$0xff]
    %v176 = vld [vmem:[#allocation7 + $0x190] sm:$0xff]
    %v177 = vld [vmem:[#allocation7 + $0x198] sm:$0xff]
    %v178 = vld [vmem:[#allocation7 + $0x1a0] sm:$0xff]
    %v179 = vld [vmem:[#allocation7 + $0x1a8] sm:$0xff]
    %v180 = vld [vmem:[#allocation7 + $0x1b0] sm:$0xff]
    %v181 = vld [vmem:[#allocation7 + $0x1b8] sm:$0xff]
    %v182 = vld [vmem:[#allocation7 + $0x1c0] sm:$0xff]
    %v183 = vld [vmem:[#allocation7 + $0x1c8] sm:$0xff]
    %v184 = vld [vmem:[#allocation7 + $0x1d0] sm:$0xff]
    %v185 = vld [vmem:[#allocation7 + $0x1d8] sm:$0xff]
    %v186 = vld [vmem:[#allocation7 + $0x1e0] sm:$0xff]
    %v187 = vld [vmem:[#allocation7 + $0x1e8] sm:$0xff]
    %v188 = vld [vmem:[#allocation7 + $0x1f0] sm:$0xff]
    %v189 = vld [vmem:[#allocation7 + $0x1f8] sm:$0xff]
    %v190 = vld [vmem:[#allocation7 + $0x200] sm:$0xff]
    %v191 = vld [vmem:[#allocation7 + $0x208] sm:$0xff]
    %v192 = vld [vmem:[#allocation7 + $0x210] sm:$0xff]
    %v193 = vld [vmem:[#allocation7 + $0x218] sm:$0xff]
    %v194 = vld [vmem:[#allocation7 + $0x220] sm:$0xff]
    %v195 = vld [vmem:[#allocation7 + $0x228] sm:$0xff]
    %v196 = vld [vmem:[#allocation7 + $0x230] sm:$0xff]
    %v197 = vld [vmem:[#allocation7 + $0x238] sm:$0xff]
    %v198 = vld [vmem:[#allocation7 + $0x240] sm:$0xff]
    %v199 = vld [vmem:[#allocation7 + $0x248] sm:$0xff]
    %v200 = vld [vmem:[#allocation7 + $0x250] sm:$0xff]
    %v201 = vld [vmem:[#allocation7 + $0x258] sm:$0xff]
    %v202 = vld [vmem:[#allocation7 + $0x260] sm:$0xff]
    %v203 = vld [vmem:[#allocation7 + $0x268] sm:$0xff]
    %v204 = vld [vmem:[#allocation7 + $0x270] sm:$0xff]
    %v205 = vld [vmem:[#allocation7 + $0x278] sm:$0xff]
    %v206 = vld [vmem:[#allocation7 + $0x280] sm:$0xff]
    %v207 = vld [vmem:[#allocation7 + $0x288] sm:$0xff]
    %v208 = vld [vmem:[#allocation7 + $0x290] sm:$0xff]
    %v209 = vld [vmem:[#allocation7 + $0x298] sm:$0xff]
    %v210 = vld [vmem:[#allocation7 + $0x2a0] sm:$0xff]
    %v211 = vld [vmem:[#allocation7 + $0x2a8] sm:$0xff]
    %v212 = vld [vmem:[#allocation7 + $0x2b0] sm:$0xff]
    %v213 = vld [vmem:[#allocation7 + $0x2b8] sm:$0xff]
    %v214 = vld [vmem:[#allocation7 + $0x2c0] sm:$0xff]
    %v215 = vld [vmem:[#allocation7 + $0x2c8] sm:$0xff]
    %v216 = vld [vmem:[#allocation7 + $0x2d0] sm:$0xff]
    %v217 = vld [vmem:[#allocation7 + $0x2d8] sm:$0xff]
    %v218 = vld [vmem:[#allocation7 + $0x2e0] sm:$0xff]
    %v219 = vld [vmem:[#allocation7 + $0x2e8] sm:$0xff]
    %v220 = vld [vmem:[#allocation7 + $0x2f0] sm:$0xff]
    %v221 = vld [vmem:[#allocation7 + $0x2f8] sm:$0xff]
    %v222 = vld [vmem:[#allocation7 + $0x300] sm:$0xff]
    %v223 = vld [vmem:[#allocation7 + $0x308] sm:$0xff]
    %v224 = vld [vmem:[#allocation7 + $0x310] sm:$0xff]
    %v225 = vld [vmem:[#allocation7 + $0x318] sm:$0xff]
    %v226 = vld [vmem:[#allocation7 + $0x320] sm:$0xff]
    %v227 = vld [vmem:[#allocation7 + $0x328] sm:$0xff]
    %v228 = vld [vmem:[#allocation7 + $0x330] sm:$0xff]
    %v229 = vld [vmem:[#allocation7 + $0x338] sm:$0xff]
    %v230 = vld [vmem:[#allocation7 + $0x340] sm:$0xff]
    %v231 = vld [vmem:[#allocation7 + $0x348] sm:$0xff]
    %v232 = vld [vmem:[#allocation7 + $0x350] sm:$0xff]
    %v233 = vld [vmem:[#allocation7 + $0x358] sm:$0xff]
    %v234 = vld [vmem:[#allocation7 + $0x360] sm:$0xff]
    %v235 = vld [vmem:[#allocation7 + $0x368] sm:$0xff]
    %v236 = vld [vmem:[#allocation7 + $0x370] sm:$0xff]
    %v237 = vld [vmem:[#allocation7 + $0x378] sm:$0xff]
    %v238 = vld [vmem:[#allocation7 + $0x380] sm:$0xff]
    %v239 = vld [vmem:[#allocation7 + $0x388] sm:$0xff]
    %v240 = vld [vmem:[#allocation7 + $0x390] sm:$0xff]
    %v241 = vld [vmem:[#allocation7 + $0x398] sm:$0xff]
    %v242 = vld [vmem:[#allocation7 + $0x3a0] sm:$0xff]
    %v243 = vld [vmem:[#allocation7 + $0x3a8] sm:$0xff]
    %v244 = vld [vmem:[#allocation7 + $0x3b0] sm:$0xff]
    %v245 = vld [vmem:[#allocation7 + $0x3b8] sm:$0xff]
    %v246 = vld [vmem:[#allocation7 + $0x3c0] sm:$0xff]
    %v247 = vld [vmem:[#allocation7 + $0x3c8] sm:$0xff]
    %v248 = vld [vmem:[#allocation7 + $0x3d0] sm:$0xff]
    %v249 = vld [vmem:[#allocation7 + $0x3d8] sm:$0xff]
    %v250 = vld [vmem:[#allocation7 + $0x3e0] sm:$0xff]
    %v251 = vld [vmem:[#allocation7 + $0x3e8] sm:$0xff]
    %v252 = vld [vmem:[#allocation7 + $0x3f0] sm:$0xff]
    %v253 = vld [vmem:[#allocation7 + $0x3f8] sm:$0xff]
    %v254 = vld [vmem:[#allocation7 + $0x400] sm:$0xff]
    %v255 = vld [vmem:[#allocation7 + $0x408] sm:$0xff]
    %v256 = vld [vmem:[#allocation7 + $0x410] sm:$0xff]
    %v257 = vld [vmem:[#allocation7 + $0x418] sm:$0xff]
    %v258 = vld [vmem:[#allocation7 + $0x420] sm:$0xff]
    %v259 = vld [vmem:[#allocation7 + $0x428] sm:$0xff]
    %v260 = vld [vmem:[#allocation7 + $0x430] sm:$0xff]
    %v261 = vld [vmem:[#allocation7 + $0x438] sm:$0xff]
    %v262 = vld [vmem:[#allocation7 + $0x440] sm:$0xff]
    %v263 = vld [vmem:[#allocation7 + $0x448] sm:$0xff]
    %v264 = vld [vmem:[#allocation7 + $0x450] sm:$0xff]
    %v265 = vld [vmem:[#allocation7 + $0x458] sm:$0xff]
    %v266 = vld [vmem:[#allocation7 + $0x460] sm:$0xff]
    %v267 = vld [vmem:[#allocation7 + $0x468] sm:$0xff]
    %v268 = vld [vmem:[#allocation7 + $0x470] sm:$0xff]
    %v269 = vld [vmem:[#allocation7 + $0x478] sm:$0xff]
    %v270 = vld [vmem:[#allocation7 + $0x480] sm:$0xff]
    %v271 = vld [vmem:[#allocation7 + $0x488] sm:$0xff]
    %v272 = vld [vmem:[#allocation7 + $0x490] sm:$0xff]
    %v273 = vld [vmem:[#allocation7 + $0x498] sm:$0xff]
    %v274 = vld [vmem:[#allocation7 + $0x4a0] sm:$0xff]
    %v275 = vld [vmem:[#allocation7 + $0x4a8] sm:$0xff]
    %v276 = vld [vmem:[#allocation7 + $0x4b0] sm:$0xff]
    %v277 = vld [vmem:[#allocation7 + $0x4b8] sm:$0xff]
    %v278 = vld [vmem:[#allocation7 + $0x4c0] sm:$0xff]
    %v279 = vld [vmem:[#allocation7 + $0x4c8] sm:$0xff]
    %v280 = vld [vmem:[#allocation7 + $0x4d0] sm:$0xff]
    %v281 = vld [vmem:[#allocation7 + $0x4d8] sm:$0xff]
    %v282 = vld [vmem:[#allocation7 + $0x4e0] sm:$0xff]
    %v283 = vld [vmem:[#allocation7 + $0x4e8] sm:$0xff]
    %v284 = vld [vmem:[#allocation7 + $0x4f0] sm:$0xff]
    %v285 = vld [vmem:[#allocation7 + $0x4f8] sm:$0xff]
    %v286 = vld [vmem:[#allocation7 + $0x500] sm:$0xff]
    %v287 = vld [vmem:[#allocation7 + $0x508] sm:$0xff]
    %v288 = vld [vmem:[#allocation7 + $0x510] sm:$0xff]
    %v289 = vld [vmem:[#allocation7 + $0x518] sm:$0xff]
    %v290 = vld [vmem:[#allocation7 + $0x520] sm:$0xff]
    %v291 = vld [vmem:[#allocation7 + $0x528] sm:$0xff]
    %v292 = vld [vmem:[#allocation7 + $0x530] sm:$0xff]
    %v293 = vld [vmem:[#allocation7 + $0x538] sm:$0xff]
    %v294 = vld [vmem:[#allocation7 + $0x540] sm:$0xff]
    %v295 = vld [vmem:[#allocation7 + $0x548] sm:$0xff]
    %v296 = vld [vmem:[#allocation7 + $0x550] sm:$0xff]
    %v297 = vld [vmem:[#allocation7 + $0x558] sm:$0xff]
    %v298 = vld [vmem:[#allocation7 + $0x560] sm:$0xff]
    %v299 = vld [vmem:[#allocation7 + $0x568] sm:$0xff]
    %v300 = vld [vmem:[#allocation7 + $0x570] sm:$0xff]
    %v301 = vld [vmem:[#allocation7 + $0x578] sm:$0xff]
    %v302 = vld [vmem:[#allocation7 + $0x580] sm:$0xff]
    %v303 = vld [vmem:[#allocation7 + $0x588] sm:$0xff]
    %v304 = vld [vmem:[#allocation7 + $0x590] sm:$0xff]
    %v305 = vld [vmem:[#allocation7 + $0x598] sm:$0xff]
    %v306 = vld [vmem:[#allocation7 + $0x5a0] sm:$0xff]
    %v307 = vld [vmem:[#allocation7 + $0x5a8] sm:$0xff]
    %v308 = vld [vmem:[#allocation7 + $0x5b0] sm:$0xff]
    %v309 = vld [vmem:[#allocation7 + $0x5b8] sm:$0xff]
    %v310 = vld [vmem:[#allocation7 + $0x5c0] sm:$0xff]
    %v311 = vld [vmem:[#allocation7 + $0x5c8] sm:$0xff]
    %v312 = vld [vmem:[#allocation7 + $0x5d0] sm:$0xff]
    %v313 = vld [vmem:[#allocation7 + $0x5d8] sm:$0xff]
    %v314 = vld [vmem:[#allocation7 + $0x5e0] sm:$0xff]
    %v315 = vld [vmem:[#allocation7 + $0x5e8] sm:$0xff]
    %v316 = vld [vmem:[#allocation7 + $0x5f0] sm:$0xff]
    %v317 = vld [vmem:[#allocation7 + $0x5f8] sm:$0xff]
    %v318 = vld [vmem:[#allocation7 + $0x600] sm:$0xff]
    %v319 = vld [vmem:[#allocation7 + $0x608] sm:$0xff]
    %v320 = vld [vmem:[#allocation7 + $0x610] sm:$0xff]
    %v321 = vld [vmem:[#allocation7 + $0x618] sm:$0xff]
    %v322 = vld [vmem:[#allocation7 + $0x620] sm:$0xff]
    %v323 = vld [vmem:[#allocation7 + $0x628] sm:$0xff]
    %v324 = vld [vmem:[#allocation7 + $0x630] sm:$0xff]
    %v325 = vld [vmem:[#allocation7 + $0x638] sm:$0xff]
    %v326 = vld [vmem:[#allocation7 + $0x640] sm:$0xff]
    %v327 = vld [vmem:[#allocation7 + $0x648] sm:$0xff]
    %v328 = vld [vmem:[#allocation7 + $0x650] sm:$0xff]
    %v329 = vld [vmem:[#allocation7 + $0x658] sm:$0xff]
    %v330 = vld [vmem:[#allocation7 + $0x660] sm:$0xff]
    %v331 = vld [vmem:[#allocation7 + $0x668] sm:$0xff]
    %v332 = vld [vmem:[#allocation7 + $0x670] sm:$0xff]
    %v333 = vld [vmem:[#allocation7 + $0x678] sm:$0xff]
    %v334 = vld [vmem:[#allocation7 + $0x680] sm:$0xff]
    %v335 = vld [vmem:[#allocation7 + $0x688] sm:$0xff]
    %v336 = vld [vmem:[#allocation7 + $0x690] sm:$0xff]
    %v337 = vld [vmem:[#allocation7 + $0x698] sm:$0xff]
    %v338 = vld [vmem:[#allocation7 + $0x6a0] sm:$0xff]
    %v339 = vld [vmem:[#allocation7 + $0x6a8] sm:$0xff]
    %v340 = vld [vmem:[#allocation7 + $0x6b0] sm:$0xff]
    %v341 = vld [vmem:[#allocation7 + $0x6b8] sm:$0xff]
    %v342 = vld [vmem:[#allocation7 + $0x6c0] sm:$0xff]
    %v343 = vld [vmem:[#allocation7 + $0x6c8] sm:$0xff]
    %v344 = vld [vmem:[#allocation7 + $0x6d0] sm:$0xff]
    %v345 = vld [vmem:[#allocation7 + $0x6d8] sm:$0xff]
    %v346 = vld [vmem:[#allocation7 + $0x6e0] sm:$0xff]
    %v347 = vld [vmem:[#allocation7 + $0x6e8] sm:$0xff]
    %v348 = vld [vmem:[#allocation7 + $0x6f0] sm:$0xff]
    %v349 = vld [vmem:[#allocation7 + $0x6f8] sm:$0xff]
    %v350 = vld [vmem:[#allocation7 + $0x700] sm:$0xff]
    %v351 = vld [vmem:[#allocation7 + $0x708] sm:$0xff]
    %v352 = vld [vmem:[#allocation7 + $0x710] sm:$0xff]
    %v353 = vld [vmem:[#allocation7 + $0x718] sm:$0xff]
    %v354 = vld [vmem:[#allocation7 + $0x720] sm:$0xff]
    %v355 = vld [vmem:[#allocation7 + $0x728] sm:$0xff]
    %v356 = vld [vmem:[#allocation7 + $0x730] sm:$0xff]
    %v357 = vld [vmem:[#allocation7 + $0x738] sm:$0xff]
    %v358 = vld [vmem:[#allocation7 + $0x740] sm:$0xff]
    %v359 = vld [vmem:[#allocation7 + $0x748] sm:$0xff]
    %v360 = vld [vmem:[#allocation7 + $0x750] sm:$0xff]
    %v361 = vld [vmem:[#allocation7 + $0x758] sm:$0xff]
    %v362 = vld [vmem:[#allocation7 + $0x760] sm:$0xff]
    %v363 = vld [vmem:[#allocation7 + $0x768] sm:$0xff]
    %v364 = vld [vmem:[#allocation7 + $0x770] sm:$0xff]
    %v365 = vld [vmem:[#allocation7 + $0x778] sm:$0xff]
    %v366 = vld [vmem:[#allocation7 + $0x780] sm:$0xff]
    %v367 = vld [vmem:[#allocation7 + $0x788] sm:$0xff]
    %v368 = vld [vmem:[#allocation7 + $0x790] sm:$0xff]
    %v369 = vld [vmem:[#allocation7 + $0x798] sm:$0xff]
    %v370 = vld [vmem:[#allocation7 + $0x7a0] sm:$0xff]
    %v371 = vld [vmem:[#allocation7 + $0x7a8] sm:$0xff]
    %v372 = vld [vmem:[#allocation7 + $0x7b0] sm:$0xff]
    %v373 = vld [vmem:[#allocation7 + $0x7b8] sm:$0xff]
    %v374 = vld [vmem:[#allocation7 + $0x7c0] sm:$0xff]
    %v375 = vld [vmem:[#allocation7 + $0x7c8] sm:$0xff]
    %v376 = vld [vmem:[#allocation7 + $0x7d0] sm:$0xff]
    %v377 = vld [vmem:[#allocation7 + $0x7d8] sm:$0xff]
    %v378 = vld [vmem:[#allocation7 + $0x7e0] sm:$0xff]
    %v379 = vld [vmem:[#allocation7 + $0x7e8] sm:$0xff]
    %v380 = vld [vmem:[#allocation7 + $0x7f0] sm:$0xff]
    %v381 = vld [vmem:[#allocation7 + $0x7f8] sm:$0xff]
    %v382 = vld [vmem:[#allocation7 + $0x800] sm:$0xff]
    %v383 = vld [vmem:[#allocation7 + $0x808] sm:$0xff]
    %v384 = vld [vmem:[#allocation7 + $0x810] sm:$0xff]
    %v385 = vld [vmem:[#allocation7 + $0x818] sm:$0xff]
    %v386 = vld [vmem:[#allocation7 + $0x820] sm:$0xff]
    %v387 = vld [vmem:[#allocation7 + $0x828] sm:$0xff]
    %v388 = vld [vmem:[#allocation7 + $0x830] sm:$0xff]
    %v389 = vld [vmem:[#allocation7 + $0x838] sm:$0xff]
    %v390 = vld [vmem:[#allocation7 + $0x840] sm:$0xff]
    %v391 = vld [vmem:[#allocation7 + $0x848] sm:$0xff]
    %v392 = vld [vmem:[#allocation7 + $0x850] sm:$0xff]
    %v393 = vld [vmem:[#allocation7 + $0x858] sm:$0xff]
    %v394 = vld [vmem:[#allocation7 + $0x860] sm:$0xff]
    %v395 = vld [vmem:[#allocation7 + $0x868] sm:$0xff]
    %v396 = vld [vmem:[#allocation7 + $0x870] sm:$0xff]
    %v397 = vld [vmem:[#allocation7 + $0x878] sm:$0xff]
    %v398 = vld [vmem:[#allocation7 + $0x880] sm:$0xff]
    %v399 = vld [vmem:[#allocation7 + $0x888] sm:$0xff]
    %v400 = vld [vmem:[#allocation7 + $0x890] sm:$0xff]
    %v401 = vld [vmem:[#allocation7 + $0x898] sm:$0xff]
    %v402 = vld [vmem:[#allocation7 + $0x8a0] sm:$0xff]
    %v403 = vld [vmem:[#allocation7 + $0x8a8] sm:$0xff]
    %v404 = vld [vmem:[#allocation7 + $0x8b0] sm:$0xff]
    %v405 = vld [vmem:[#allocation7 + $0x8b8] sm:$0xff]
    %v406 = vld [vmem:[#allocation7 + $0x8c0] sm:$0xff]
    %v407 = vld [vmem:[#allocation7 + $0x8c8] sm:$0xff]
    %v408 = vld [vmem:[#allocation7 + $0x8d0] sm:$0xff]
    %v409 = vld [vmem:[#allocation7 + $0x8d8] sm:$0xff]
    %v410 = vld [vmem:[#allocation7 + $0x8e0] sm:$0xff]
    %v411 = vld [vmem:[#allocation7 + $0x8e8] sm:$0xff]
    %v412 = vld [vmem:[#allocation7 + $0x8f0] sm:$0xff]
    %v413 = vld [vmem:[#allocation7 + $0x8f8] sm:$0xff]
    %v414 = vld [vmem:[#allocation7 + $0x900] sm:$0xff]
    %v415 = vld [vmem:[#allocation7 + $0x908] sm:$0xff]
    %v416 = vld [vmem:[#allocation7 + $0x910] sm:$0xff]
    %v417 = vld [vmem:[#allocation7 + $0x918] sm:$0xff]
    %v418 = vld [vmem:[#allocation7 + $0x920] sm:$0xff]
    %v419 = vld [vmem:[#allocation7 + $0x928] sm:$0xff]
    %v420 = vld [vmem:[#allocation7 + $0x930] sm:$0xff]
    %v421 = vld [vmem:[#allocation7 + $0x938] sm:$0xff]
    %v422 = vld [vmem:[#allocation7 + $0x940] sm:$0xff]
    %v423 = vld [vmem:[#allocation7 + $0x948] sm:$0xff]
    %v424 = vld [vmem:[#allocation7 + $0x950] sm:$0xff]
    %v425 = vld [vmem:[#allocation7 + $0x958] sm:$0xff]
    %v426 = vld [vmem:[#allocation7 + $0x960] sm:$0xff]
    %v427 = vld [vmem:[#allocation7 + $0x968] sm:$0xff]
    %v428 = vld [vmem:[#allocation7 + $0x970] sm:$0xff]
    %v429 = vld [vmem:[#allocation7 + $0x978] sm:$0xff]
    %v430 = vld [vmem:[#allocation7 + $0x980] sm:$0xff]
    %v431 = vld [vmem:[#allocation7 + $0x988] sm:$0xff]
    %v432 = vld [vmem:[#allocation7 + $0x990] sm:$0xff]
    %v433 = vld [vmem:[#allocation7 + $0x998] sm:$0xff]
    %v434 = vld [vmem:[#allocation7 + $0x9a0] sm:$0xff]
    %v435 = vld [vmem:[#allocation7 + $0x9a8] sm:$0xff]
    %v436 = vld [vmem:[#allocation7 + $0x9b0] sm:$0xff]
    %v437 = vld [vmem:[#allocation7 + $0x9b8] sm:$0xff]
    %v438 = vld [vmem:[#allocation7 + $0x9c0] sm:$0xff]
    %v439 = vld [vmem:[#allocation7 + $0x9c8] sm:$0xff]
    %v440 = vld [vmem:[#allocation7 + $0x9d0] sm:$0xff]
    %v441 = vld [vmem:[#allocation7 + $0x9d8] sm:$0xff]
    %v442 = vld [vmem:[#allocation7 + $0x9e0] sm:$0xff]
    %v443 = vld [vmem:[#allocation7 + $0x9e8] sm:$0xff]
    %v444 = vld [vmem:[#allocation7 + $0x9f0] sm:$0xff]
    %v445 = vld [vmem:[#allocation7 + $0x9f8] sm:$0xff]
    %v446 = vld [vmem:[#allocation7 + $0xa00] sm:$0xff]
    %v447 = vld [vmem:[#allocation7 + $0xa08] sm:$0xff]
    %v448 = vld [vmem:[#allocation7 + $0xa10] sm:$0xff]
    %v449 = vld [vmem:[#allocation7 + $0xa18] sm:$0xff]
    %v450 = vld [vmem:[#allocation7 + $0xa20] sm:$0xff]
    %v451 = vld [vmem:[#allocation7 + $0xa28] sm:$0xff]
    %v452 = vld [vmem:[#allocation7 + $0xa30] sm:$0xff]
    %v453 = vld [vmem:[#allocation7 + $0xa38] sm:$0xff]
    %v454 = vld [vmem:[#allocation7 + $0xa40] sm:$0xff]
    %v455 = vld [vmem:[#allocation7 + $0xa48] sm:$0xff]
    %v456 = vld [vmem:[#allocation7 + $0xa50] sm:$0xff]
    %v457 = vld [vmem:[#allocation7 + $0xa58] sm:$0xff]
    %v458 = vld [vmem:[#allocation7 + $0xa60] sm:$0xff]
    %v459 = vld [vmem:[#allocation7 + $0xa68] sm:$0xff]
    %v460 = vld [vmem:[#allocation7 + $0xa70] sm:$0xff]
    %v461 = vld [vmem:[#allocation7 + $0xa78] sm:$0xff]
    %v462 = vld [vmem:[#allocation7 + $0xa80] sm:$0xff]
    %v463 = vld [vmem:[#allocation7 + $0xa88] sm:$0xff]
    %v464 = vld [vmem:[#allocation7 + $0xa90] sm:$0xff]
    %v465 = vld [vmem:[#allocation7 + $0xa98] sm:$0xff]
    %v466 = vld [vmem:[#allocation7 + $0xaa0] sm:$0xff]
    %v467 = vld [vmem:[#allocation7 + $0xaa8] sm:$0xff]
    %v468 = vld [vmem:[#allocation7 + $0xab0] sm:$0xff]
    %v469 = vld [vmem:[#allocation7 + $0xab8] sm:$0xff]
    %v470 = vld [vmem:[#allocation7 + $0xac0] sm:$0xff]
    %v471 = vld [vmem:[#allocation7 + $0xac8] sm:$0xff]
    %v472 = vld [vmem:[#allocation7 + $0xad0] sm:$0xff]
    %v473 = vld [vmem:[#allocation7 + $0xad8] sm:$0xff]
    %v474 = vld [vmem:[#allocation7 + $0xae0] sm:$0xff]
    %v475 = vld [vmem:[#allocation7 + $0xae8] sm:$0xff]
    %v476 = vld [vmem:[#allocation7 + $0xaf0] sm:$0xff]
    %v477 = vld [vmem:[#allocation7 + $0xaf8] sm:$0xff]
    %v478 = vld [vmem:[#allocation7 + $0xb00] sm:$0xff]
    %v479 = vld [vmem:[#allocation7 + $0xb08] sm:$0xff]
    %v480 = vld [vmem:[#allocation7 + $0xb10] sm:$0xff]
    %v481 = vld [vmem:[#allocation7 + $0xb18] sm:$0xff]
    %v482 = vld [vmem:[#allocation7 + $0xb20] sm:$0xff]
    %v483 = vld [vmem:[#allocation7 + $0xb28] sm:$0xff]
    %v484 = vld [vmem:[#allocation7 + $0xb30] sm:$0xff]
    %v485 = vld [vmem:[#allocation7 + $0xb38] sm:$0xff]
    %v486 = vld [vmem:[#allocation7 + $0xb40] sm:$0xff]
    %v487 = vld [vmem:[#allocation7 + $0xb48] sm:$0xff]
    %v488 = vld [vmem:[#allocation7 + $0xb50] sm:$0xff]
    %v489 = vld [vmem:[#allocation7 + $0xb58] sm:$0xff]
    %v490 = vld [vmem:[#allocation7 + $0xb60] sm:$0xff]
    %v491 = vld [vmem:[#allocation7 + $0xb68] sm:$0xff]
    %v492 = vld [vmem:[#allocation7 + $0xb70] sm:$0xff]
    %v493 = vld [vmem:[#allocation7 + $0xb78] sm:$0xff]
    %v494 = vld [vmem:[#allocation7 + $0xb80] sm:$0xff]
    %v495 = vld [vmem:[#allocation7 + $0xb88] sm:$0xff]
    %v496 = vld [vmem:[#allocation7 + $0xb90] sm:$0xff]
    %v497 = vld [vmem:[#allocation7 + $0xb98] sm:$0xff]
    %v498 = vld [vmem:[#allocation7 + $0xba0] sm:$0xff]
    %v499 = vld [vmem:[#allocation7 + $0xba8] sm:$0xff]
    %v500 = vld [vmem:[#allocation7 + $0xbb0] sm:$0xff]
    %v501 = vld [vmem:[#allocation7 + $0xbb8] sm:$0xff]
    %v502 = vld [vmem:[#allocation7 + $0xbc0] sm:$0xff]
    %v503 = vld [vmem:[#allocation7 + $0xbc8] sm:$0xff]
    %v504 = vld [vmem:[#allocation7 + $0xbd0] sm:$0xff]
    %v505 = vld [vmem:[#allocation7 + $0xbd8] sm:$0xff]
    %v506 = vld [vmem:[#allocation7 + $0xbe0] sm:$0xff]
    %v507 = vld [vmem:[#allocation7 + $0xbe8] sm:$0xff]
    %v508 = vld [vmem:[#allocation7 + $0xbf0] sm:$0xff]
    %v509 = vld [vmem:[#allocation7 + $0xbf8] sm:$0xff]
    %v510 = vld [vmem:[#allocation7 + $0xc00] sm:$0xff]
    %v511 = vld [vmem:[#allocation7 + $0xc08] sm:$0xff]
    %v512 = vld [vmem:[#allocation7 + $0xc10] sm:$0xff]
    %v513 = vld [vmem:[#allocation7 + $0xc18] sm:$0xff]
    %v514 = vld [vmem:[#allocation7 + $0xc20] sm:$0xff]
    %v515 = vld [vmem:[#allocation7 + $0xc28] sm:$0xff]
    %v516 = vld [vmem:[#allocation7 + $0xc30] sm:$0xff]
    %v517 = vld [vmem:[#allocation7 + $0xc38] sm:$0xff]
    %v518 = vunpack.c.l.s8.bf16 %v126
    %v519 = vunpack.c.h.s8.bf16 %v126
    %v520 = vunpack.c.l.s8.bf16 %v127
    %v521 = vunpack.c.h.s8.bf16 %v127
    %v522 = vunpack.c.l.s8.bf16 %v128
    %v523 = vunpack.c.h.s8.bf16 %v128
    %v524 = vunpack.c.l.s8.bf16 %v129
    %v525 = vunpack.c.h.s8.bf16 %v129
    %v526 = vunpack.c.l.s8.bf16 %v130
    %v527 = vunpack.c.h.s8.bf16 %v130
    %v528 = vunpack.c.l.s8.bf16 %v131
    %v529 = vunpack.c.h.s8.bf16 %v131
    %v530 = vunpack.c.l.s8.bf16 %v132
    %v531 = vunpack.c.h.s8.bf16 %v132
    %v532 = vunpack.c.l.s8.bf16 %v133
    %v533 = vunpack.c.h.s8.bf16 %v133
    %v534 = vunpack.c.l.s8.bf16 %v134
    %v535 = vunpack.c.h.s8.bf16 %v134
    %v536 = vunpack.c.l.s8.bf16 %v135
    %v537 = vunpack.c.h.s8.bf16 %v135
    %v538 = vunpack.c.l.s8.bf16 %v136
    %v539 = vunpack.c.h.s8.bf16 %v136
    %v540 = vunpack.c.l.s8.bf16 %v137
    %v541 = vunpack.c.h.s8.bf16 %v137
    %v542 = vunpack.c.l.s8.bf16 %v138
    %v543 = vunpack.c.h.s8.bf16 %v138
    %v544 = vunpack.c.l.s8.bf16 %v139
    %v545 = vunpack.c.h.s8.bf16 %v139
    %v546 = vunpack.c.l.s8.bf16 %v140
    %v547 = vunpack.c.h.s8.bf16 %v140
    %v548 = vunpack.c.l.s8.bf16 %v141
    %v549 = vunpack.c.h.s8.bf16 %v141
    %v550 = vunpack.c.l.s8.bf16 %v142
    %v551 = vunpack.c.h.s8.bf16 %v142
    %v552 = vunpack.c.l.s8.bf16 %v143
    %v553 = vunpack.c.h.s8.bf16 %v143
    %v554 = vunpack.c.l.s8.bf16 %v144
    %v555 = vunpack.c.h.s8.bf16 %v144
    %v556 = vunpack.c.l.s8.bf16 %v145
    %v557 = vunpack.c.h.s8.bf16 %v145
    %v558 = vunpack.c.l.s8.bf16 %v146
    %v559 = vunpack.c.h.s8.bf16 %v146
    %v560 = vunpack.c.l.s8.bf16 %v147
    %v561 = vunpack.c.h.s8.bf16 %v147
    %v562 = vunpack.c.l.s8.bf16 %v148
    %v563 = vunpack.c.h.s8.bf16 %v148
    %v564 = vunpack.c.l.s8.bf16 %v149
    %v565 = vunpack.c.h.s8.bf16 %v149
    %v566 = vunpack.c.l.s8.bf16 %v150
    %v567 = vunpack.c.h.s8.bf16 %v150
    %v568 = vunpack.c.l.s8.bf16 %v151
    %v569 = vunpack.c.h.s8.bf16 %v151
    %v570 = vunpack.c.l.s8.bf16 %v152
    %v571 = vunpack.c.h.s8.bf16 %v152
    %v572 = vunpack.c.l.s8.bf16 %v153
    %v573 = vunpack.c.h.s8.bf16 %v153
    %v574 = vunpack.c.l.s8.bf16 %v154
    %v575 = vunpack.c.h.s8.bf16 %v154
    %v576 = vunpack.c.l.s8.bf16 %v155
    %v577 = vunpack.c.h.s8.bf16 %v155
    %v578 = vunpack.c.l.s8.bf16 %v156
    %v579 = vunpack.c.h.s8.bf16 %v156
    %v580 = vunpack.c.l.s8.bf16 %v157
    %v581 = vunpack.c.h.s8.bf16 %v157
    %v582 = vunpack.c.l.s8.bf16 %v158
    %v583 = vunpack.c.h.s8.bf16 %v158
    %v584 = vunpack.c.l.s8.bf16 %v159
    %v585 = vunpack.c.h.s8.bf16 %v159
    %v586 = vunpack.c.l.s8.bf16 %v160
    %v587 = vunpack.c.h.s8.bf16 %v160
    %v588 = vunpack.c.l.s8.bf16 %v161
    %v589 = vunpack.c.h.s8.bf16 %v161
    %v590 = vunpack.c.l.s8.bf16 %v162
    %v591 = vunpack.c.h.s8.bf16 %v162
    %v592 = vunpack.c.l.s8.bf16 %v163
    %v593 = vunpack.c.h.s8.bf16 %v163
    %v594 = vunpack.c.l.s8.bf16 %v164
    %v595 = vunpack.c.h.s8.bf16 %v164
    %v596 = vunpack.c.l.s8.bf16 %v165
    %v597 = vunpack.c.h.s8.bf16 %v165
    %v598 = vunpack.c.l.s8.bf16 %v166
    %v599 = vunpack.c.h.s8.bf16 %v166
    %v600 = vunpack.c.l.s8.bf16 %v167
    %v601 = vunpack.c.h.s8.bf16 %v167
    %v602 = vunpack.c.l.s8.bf16 %v168
    %v603 = vunpack.c.h.s8.bf16 %v168
    %v604 = vunpack.c.l.s8.bf16 %v169
    %v605 = vunpack.c.h.s8.bf16 %v169
    %v606 = vunpack.c.l.s8.bf16 %v170
    %v607 = vunpack.c.h.s8.bf16 %v170
    %v608 = vunpack.c.l.s8.bf16 %v171
    %v609 = vunpack.c.h.s8.bf16 %v171
    %v610 = vunpack.c.l.s8.bf16 %v172
    %v611 = vunpack.c.h.s8.bf16 %v172
    %v612 = vunpack.c.l.s8.bf16 %v173
    %v613 = vunpack.c.h.s8.bf16 %v173
    %v614 = vunpack.c.l.s8.bf16 %v174
    %v615 = vunpack.c.h.s8.bf16 %v174
    %v616 = vunpack.c.l.s8.bf16 %v175
    %v617 = vunpack.c.h.s8.bf16 %v175
    %v618 = vunpack.c.l.s8.bf16 %v176
    %v619 = vunpack.c.h.s8.bf16 %v176
    %v620 = vunpack.c.l.s8.bf16 %v177
    %v621 = vunpack.c.h.s8.bf16 %v177
    %v622 = vunpack.c.l.s8.bf16 %v178
    %v623 = vunpack.c.h.s8.bf16 %v178
    %v624 = vunpack.c.l.s8.bf16 %v179
    %v625 = vunpack.c.h.s8.bf16 %v179
    %v626 = vunpack.c.l.s8.bf16 %v180
    %v627 = vunpack.c.h.s8.bf16 %v180
    %v628 = vunpack.c.l.s8.bf16 %v181
    %v629 = vunpack.c.h.s8.bf16 %v181
    %v630 = vunpack.c.l.s8.bf16 %v182
    %v631 = vunpack.c.h.s8.bf16 %v182
    %v632 = vunpack.c.l.s8.bf16 %v183
    %v633 = vunpack.c.h.s8.bf16 %v183
    %v634 = vunpack.c.l.s8.bf16 %v184
    %v635 = vunpack.c.h.s8.bf16 %v184
    %v636 = vunpack.c.l.s8.bf16 %v185
    %v637 = vunpack.c.h.s8.bf16 %v185
    %v638 = vunpack.c.l.s8.bf16 %v186
    %v639 = vunpack.c.h.s8.bf16 %v186
    %v640 = vunpack.c.l.s8.bf16 %v187
    %v641 = vunpack.c.h.s8.bf16 %v187
    %v642 = vunpack.c.l.s8.bf16 %v188
    %v643 = vunpack.c.h.s8.bf16 %v188
    %v644 = vunpack.c.l.s8.bf16 %v189
    %v645 = vunpack.c.h.s8.bf16 %v189
    %v646 = vunpack.c.l.s8.bf16 %v190
    %v647 = vunpack.c.h.s8.bf16 %v190
    %v648 = vunpack.c.l.s8.bf16 %v191
    %v649 = vunpack.c.h.s8.bf16 %v191
    %v650 = vunpack.c.l.s8.bf16 %v192
    %v651 = vunpack.c.h.s8.bf16 %v192
    %v652 = vunpack.c.l.s8.bf16 %v193
    %v653 = vunpack.c.h.s8.bf16 %v193
    %v654 = vunpack.c.l.s8.bf16 %v194
    %v655 = vunpack.c.h.s8.bf16 %v194
    %v656 = vunpack.c.l.s8.bf16 %v195
    %v657 = vunpack.c.h.s8.bf16 %v195
    %v658 = vunpack.c.l.s8.bf16 %v196
    %v659 = vunpack.c.h.s8.bf16 %v196
    %v660 = vunpack.c.l.s8.bf16 %v197
    %v661 = vunpack.c.h.s8.bf16 %v197
    %v662 = vunpack.c.l.s8.bf16 %v198
    %v663 = vunpack.c.h.s8.bf16 %v198
    %v664 = vunpack.c.l.s8.bf16 %v199
    %v665 = vunpack.c.h.s8.bf16 %v199
    %v666 = vunpack.c.l.s8.bf16 %v200
    %v667 = vunpack.c.h.s8.bf16 %v200
    %v668 = vunpack.c.l.s8.bf16 %v201
    %v669 = vunpack.c.h.s8.bf16 %v201
    %v670 = vunpack.c.l.s8.bf16 %v202
    %v671 = vunpack.c.h.s8.bf16 %v202
    %v672 = vunpack.c.l.s8.bf16 %v203
    %v673 = vunpack.c.h.s8.bf16 %v203
    %v674 = vunpack.c.l.s8.bf16 %v204
    %v675 = vunpack.c.h.s8.bf16 %v204
    %v676 = vunpack.c.l.s8.bf16 %v205
    %v677 = vunpack.c.h.s8.bf16 %v205
    %v678 = vunpack.c.l.s8.bf16 %v206
    %v679 = vunpack.c.h.s8.bf16 %v206
    %v680 = vunpack.c.l.s8.bf16 %v207
    %v681 = vunpack.c.h.s8.bf16 %v207
    %v682 = vunpack.c.l.s8.bf16 %v208
    %v683 = vunpack.c.h.s8.bf16 %v208
    %v684 = vunpack.c.l.s8.bf16 %v209
    %v685 = vunpack.c.h.s8.bf16 %v209
    %v686 = vunpack.c.l.s8.bf16 %v210
    %v687 = vunpack.c.h.s8.bf16 %v210
    %v688 = vunpack.c.l.s8.bf16 %v211
    %v689 = vunpack.c.h.s8.bf16 %v211
    %v690 = vunpack.c.l.s8.bf16 %v212
    %v691 = vunpack.c.h.s8.bf16 %v212
    %v692 = vunpack.c.l.s8.bf16 %v213
    %v693 = vunpack.c.h.s8.bf16 %v213
    %v694 = vunpack.c.l.s8.bf16 %v214
    %v695 = vunpack.c.h.s8.bf16 %v214
    %v696 = vunpack.c.l.s8.bf16 %v215
    %v697 = vunpack.c.h.s8.bf16 %v215
    %v698 = vunpack.c.l.s8.bf16 %v216
    %v699 = vunpack.c.h.s8.bf16 %v216
    %v700 = vunpack.c.l.s8.bf16 %v217
    %v701 = vunpack.c.h.s8.bf16 %v217
    %v702 = vunpack.c.l.s8.bf16 %v218
    %v703 = vunpack.c.h.s8.bf16 %v218
    %v704 = vunpack.c.l.s8.bf16 %v219
    %v705 = vunpack.c.h.s8.bf16 %v219
    %v706 = vunpack.c.l.s8.bf16 %v220
    %v707 = vunpack.c.h.s8.bf16 %v220
    %v708 = vunpack.c.l.s8.bf16 %v221
    %v709 = vunpack.c.h.s8.bf16 %v221
    %v710 = vunpack.c.l.s8.bf16 %v222
    %v711 = vunpack.c.h.s8.bf16 %v222
    %v712 = vunpack.c.l.s8.bf16 %v223
    %v713 = vunpack.c.h.s8.bf16 %v223
    %v714 = vunpack.c.l.s8.bf16 %v224
    %v715 = vunpack.c.h.s8.bf16 %v224
    %v716 = vunpack.c.l.s8.bf16 %v225
    %v717 = vunpack.c.h.s8.bf16 %v225
    %v718 = vunpack.c.l.s8.bf16 %v226
    %v719 = vunpack.c.h.s8.bf16 %v226
    %v720 = vunpack.c.l.s8.bf16 %v227
    %v721 = vunpack.c.h.s8.bf16 %v227
    %v722 = vunpack.c.l.s8.bf16 %v228
    %v723 = vunpack.c.h.s8.bf16 %v228
    %v724 = vunpack.c.l.s8.bf16 %v229
    %v725 = vunpack.c.h.s8.bf16 %v229
    %v726 = vunpack.c.l.s8.bf16 %v230
    %v727 = vunpack.c.h.s8.bf16 %v230
    %v728 = vunpack.c.l.s8.bf16 %v231
    %v729 = vunpack.c.h.s8.bf16 %v231
    %v730 = vunpack.c.l.s8.bf16 %v232
    %v731 = vunpack.c.h.s8.bf16 %v232
    %v732 = vunpack.c.l.s8.bf16 %v233
    %v733 = vunpack.c.h.s8.bf16 %v233
    %v734 = vunpack.c.l.s8.bf16 %v234
    %v735 = vunpack.c.h.s8.bf16 %v234
    %v736 = vunpack.c.l.s8.bf16 %v235
    %v737 = vunpack.c.h.s8.bf16 %v235
    %v738 = vunpack.c.l.s8.bf16 %v236
    %v739 = vunpack.c.h.s8.bf16 %v236
    %v740 = vunpack.c.l.s8.bf16 %v237
    %v741 = vunpack.c.h.s8.bf16 %v237
    %v742 = vunpack.c.l.s8.bf16 %v238
    %v743 = vunpack.c.h.s8.bf16 %v238
    %v744 = vunpack.c.l.s8.bf16 %v239
    %v745 = vunpack.c.h.s8.bf16 %v239
    %v746 = vunpack.c.l.s8.bf16 %v240
    %v747 = vunpack.c.h.s8.bf16 %v240
    %v748 = vunpack.c.l.s8.bf16 %v241
    %v749 = vunpack.c.h.s8.bf16 %v241
    %v750 = vunpack.c.l.s8.bf16 %v242
    %v751 = vunpack.c.h.s8.bf16 %v242
    %v752 = vunpack.c.l.s8.bf16 %v243
    %v753 = vunpack.c.h.s8.bf16 %v243
    %v754 = vunpack.c.l.s8.bf16 %v244
    %v755 = vunpack.c.h.s8.bf16 %v244
    %v756 = vunpack.c.l.s8.bf16 %v245
    %v757 = vunpack.c.h.s8.bf16 %v245
    %v758 = vunpack.c.l.s8.bf16 %v246
    %v759 = vunpack.c.h.s8.bf16 %v246
    %v760 = vunpack.c.l.s8.bf16 %v247
    %v761 = vunpack.c.h.s8.bf16 %v247
    %v762 = vunpack.c.l.s8.bf16 %v248
    %v763 = vunpack.c.h.s8.bf16 %v248
    %v764 = vunpack.c.l.s8.bf16 %v249
    %v765 = vunpack.c.h.s8.bf16 %v249
    %v766 = vunpack.c.l.s8.bf16 %v250
    %v767 = vunpack.c.h.s8.bf16 %v250
    %v768 = vunpack.c.l.s8.bf16 %v251
    %v769 = vunpack.c.h.s8.bf16 %v251
    %v770 = vunpack.c.l.s8.bf16 %v252
    %v771 = vunpack.c.h.s8.bf16 %v252
    %v772 = vunpack.c.l.s8.bf16 %v253
    %v773 = vunpack.c.h.s8.bf16 %v253
    %v774 = vunpack.c.l.s8.bf16 %v254
    %v775 = vunpack.c.h.s8.bf16 %v254
    %v776 = vunpack.c.l.s8.bf16 %v255
    %v777 = vunpack.c.h.s8.bf16 %v255
    %v778 = vunpack.c.l.s8.bf16 %v256
    %v779 = vunpack.c.h.s8.bf16 %v256
    %v780 = vunpack.c.l.s8.bf16 %v257
    %v781 = vunpack.c.h.s8.bf16 %v257
    %v782 = vunpack.c.l.s8.bf16 %v258
    %v783 = vunpack.c.h.s8.bf16 %v258
    %v784 = vunpack.c.l.s8.bf16 %v259
    %v785 = vunpack.c.h.s8.bf16 %v259
    %v786 = vunpack.c.l.s8.bf16 %v260
    %v787 = vunpack.c.h.s8.bf16 %v260
    %v788 = vunpack.c.l.s8.bf16 %v261
    %v789 = vunpack.c.h.s8.bf16 %v261
    %v790 = vunpack.c.l.s8.bf16 %v262
    %v791 = vunpack.c.h.s8.bf16 %v262
    %v792 = vunpack.c.l.s8.bf16 %v263
    %v793 = vunpack.c.h.s8.bf16 %v263
    %v794 = vunpack.c.l.s8.bf16 %v264
    %v795 = vunpack.c.h.s8.bf16 %v264
    %v796 = vunpack.c.l.s8.bf16 %v265
    %v797 = vunpack.c.h.s8.bf16 %v265
    %v798 = vunpack.c.l.s8.bf16 %v266
    %v799 = vunpack.c.h.s8.bf16 %v266
    %v800 = vunpack.c.l.s8.bf16 %v267
    %v801 = vunpack.c.h.s8.bf16 %v267
    %v802 = vunpack.c.l.s8.bf16 %v268
    %v803 = vunpack.c.h.s8.bf16 %v268
    %v804 = vunpack.c.l.s8.bf16 %v269
    %v805 = vunpack.c.h.s8.bf16 %v269
    %v806 = vunpack.c.l.s8.bf16 %v270
    %v807 = vunpack.c.h.s8.bf16 %v270
    %v808 = vunpack.c.l.s8.bf16 %v271
    %v809 = vunpack.c.h.s8.bf16 %v271
    %v810 = vunpack.c.l.s8.bf16 %v272
    %v811 = vunpack.c.h.s8.bf16 %v272
    %v812 = vunpack.c.l.s8.bf16 %v273
    %v813 = vunpack.c.h.s8.bf16 %v273
    %v814 = vunpack.c.l.s8.bf16 %v274
    %v815 = vunpack.c.h.s8.bf16 %v274
    %v816 = vunpack.c.l.s8.bf16 %v275
    %v817 = vunpack.c.h.s8.bf16 %v275
    %v818 = vunpack.c.l.s8.bf16 %v276
    %v819 = vunpack.c.h.s8.bf16 %v276
    %v820 = vunpack.c.l.s8.bf16 %v277
    %v821 = vunpack.c.h.s8.bf16 %v277
    %v822 = vunpack.c.l.s8.bf16 %v278
    %v823 = vunpack.c.h.s8.bf16 %v278
    %v824 = vunpack.c.l.s8.bf16 %v279
    %v825 = vunpack.c.h.s8.bf16 %v279
    %v826 = vunpack.c.l.s8.bf16 %v280
    %v827 = vunpack.c.h.s8.bf16 %v280
    %v828 = vunpack.c.l.s8.bf16 %v281
    %v829 = vunpack.c.h.s8.bf16 %v281
    %v830 = vunpack.c.l.s8.bf16 %v282
    %v831 = vunpack.c.h.s8.bf16 %v282
    %v832 = vunpack.c.l.s8.bf16 %v283
    %v833 = vunpack.c.h.s8.bf16 %v283
    %v834 = vunpack.c.l.s8.bf16 %v284
    %v835 = vunpack.c.h.s8.bf16 %v284
    %v836 = vunpack.c.l.s8.bf16 %v285
    %v837 = vunpack.c.h.s8.bf16 %v285
    %v838 = vunpack.c.l.s8.bf16 %v286
    %v839 = vunpack.c.h.s8.bf16 %v286
    %v840 = vunpack.c.l.s8.bf16 %v287
    %v841 = vunpack.c.h.s8.bf16 %v287
    %v842 = vunpack.c.l.s8.bf16 %v288
    %v843 = vunpack.c.h.s8.bf16 %v288
    %v844 = vunpack.c.l.s8.bf16 %v289
    %v845 = vunpack.c.h.s8.bf16 %v289
    %v846 = vunpack.c.l.s8.bf16 %v290
    %v847 = vunpack.c.h.s8.bf16 %v290
    %v848 = vunpack.c.l.s8.bf16 %v291
    %v849 = vunpack.c.h.s8.bf16 %v291
    %v850 = vunpack.c.l.s8.bf16 %v292
    %v851 = vunpack.c.h.s8.bf16 %v292
    %v852 = vunpack.c.l.s8.bf16 %v293
    %v853 = vunpack.c.h.s8.bf16 %v293
    %v854 = vunpack.c.l.s8.bf16 %v294
    %v855 = vunpack.c.h.s8.bf16 %v294
    %v856 = vunpack.c.l.s8.bf16 %v295
    %v857 = vunpack.c.h.s8.bf16 %v295
    %v858 = vunpack.c.l.s8.bf16 %v296
    %v859 = vunpack.c.h.s8.bf16 %v296
    %v860 = vunpack.c.l.s8.bf16 %v297
    %v861 = vunpack.c.h.s8.bf16 %v297
    %v862 = vunpack.c.l.s8.bf16 %v298
    %v863 = vunpack.c.h.s8.bf16 %v298
    %v864 = vunpack.c.l.s8.bf16 %v299
    %v865 = vunpack.c.h.s8.bf16 %v299
    %v866 = vunpack.c.l.s8.bf16 %v300
    %v867 = vunpack.c.h.s8.bf16 %v300
    %v868 = vunpack.c.l.s8.bf16 %v301
    %v869 = vunpack.c.h.s8.bf16 %v301
    %v870 = vunpack.c.l.s8.bf16 %v302
    %v871 = vunpack.c.h.s8.bf16 %v302
    %v872 = vunpack.c.l.s8.bf16 %v303
    %v873 = vunpack.c.h.s8.bf16 %v303
    %v874 = vunpack.c.l.s8.bf16 %v304
    %v875 = vunpack.c.h.s8.bf16 %v304
    %v876 = vunpack.c.l.s8.bf16 %v305
    %v877 = vunpack.c.h.s8.bf16 %v305
    %v878 = vunpack.c.l.s8.bf16 %v306
    %v879 = vunpack.c.h.s8.bf16 %v306
    %v880 = vunpack.c.l.s8.bf16 %v307
    %v881 = vunpack.c.h.s8.bf16 %v307
    %v882 = vunpack.c.l.s8.bf16 %v308
    %v883 = vunpack.c.h.s8.bf16 %v308
    %v884 = vunpack.c.l.s8.bf16 %v309
    %v885 = vunpack.c.h.s8.bf16 %v309
    %v886 = vunpack.c.l.s8.bf16 %v310
    %v887 = vunpack.c.h.s8.bf16 %v310
    %v888 = vunpack.c.l.s8.bf16 %v311
    %v889 = vunpack.c.h.s8.bf16 %v311
    %v890 = vunpack.c.l.s8.bf16 %v312
    %v891 = vunpack.c.h.s8.bf16 %v312
    %v892 = vunpack.c.l.s8.bf16 %v313
    %v893 = vunpack.c.h.s8.bf16 %v313
    %v894 = vunpack.c.l.s8.bf16 %v314
    %v895 = vunpack.c.h.s8.bf16 %v314
    %v896 = vunpack.c.l.s8.bf16 %v315
    %v897 = vunpack.c.h.s8.bf16 %v315
    %v898 = vunpack.c.l.s8.bf16 %v316
    %v899 = vunpack.c.h.s8.bf16 %v316
    %v900 = vunpack.c.l.s8.bf16 %v317
    %v901 = vunpack.c.h.s8.bf16 %v317
    %v902 = vunpack.c.l.s8.bf16 %v318
    %v903 = vunpack.c.h.s8.bf16 %v318
    %v904 = vunpack.c.l.s8.bf16 %v319
    %v905 = vunpack.c.h.s8.bf16 %v319
    %v906 = vunpack.c.l.s8.bf16 %v320
    %v907 = vunpack.c.h.s8.bf16 %v320
    %v908 = vunpack.c.l.s8.bf16 %v321
    %v909 = vunpack.c.h.s8.bf16 %v321
    %v910 = vunpack.c.l.s8.bf16 %v322
    %v911 = vunpack.c.h.s8.bf16 %v322
    %v912 = vunpack.c.l.s8.bf16 %v323
    %v913 = vunpack.c.h.s8.bf16 %v323
    %v914 = vunpack.c.l.s8.bf16 %v324
    %v915 = vunpack.c.h.s8.bf16 %v324
    %v916 = vunpack.c.l.s8.bf16 %v325
    %v917 = vunpack.c.h.s8.bf16 %v325
    %v918 = vunpack.c.l.s8.bf16 %v326
    %v919 = vunpack.c.h.s8.bf16 %v326
    %v920 = vunpack.c.l.s8.bf16 %v327
    %v921 = vunpack.c.h.s8.bf16 %v327
    %v922 = vunpack.c.l.s8.bf16 %v328
    %v923 = vunpack.c.h.s8.bf16 %v328
    %v924 = vunpack.c.l.s8.bf16 %v329
    %v925 = vunpack.c.h.s8.bf16 %v329
    %v926 = vunpack.c.l.s8.bf16 %v330
    %v927 = vunpack.c.h.s8.bf16 %v330
    %v928 = vunpack.c.l.s8.bf16 %v331
    %v929 = vunpack.c.h.s8.bf16 %v331
    %v930 = vunpack.c.l.s8.bf16 %v332
    %v931 = vunpack.c.h.s8.bf16 %v332
    %v932 = vunpack.c.l.s8.bf16 %v333
    %v933 = vunpack.c.h.s8.bf16 %v333
    %v934 = vunpack.c.l.s8.bf16 %v334
    %v935 = vunpack.c.h.s8.bf16 %v334
    %v936 = vunpack.c.l.s8.bf16 %v335
    %v937 = vunpack.c.h.s8.bf16 %v335
    %v938 = vunpack.c.l.s8.bf16 %v336
    %v939 = vunpack.c.h.s8.bf16 %v336
    %v940 = vunpack.c.l.s8.bf16 %v337
    %v941 = vunpack.c.h.s8.bf16 %v337
    %v942 = vunpack.c.l.s8.bf16 %v338
    %v943 = vunpack.c.h.s8.bf16 %v338
    %v944 = vunpack.c.l.s8.bf16 %v339
    %v945 = vunpack.c.h.s8.bf16 %v339
    %v946 = vunpack.c.l.s8.bf16 %v340
    %v947 = vunpack.c.h.s8.bf16 %v340
    %v948 = vunpack.c.l.s8.bf16 %v341
    %v949 = vunpack.c.h.s8.bf16 %v341
    %v950 = vunpack.c.l.s8.bf16 %v342
    %v951 = vunpack.c.h.s8.bf16 %v342
    %v952 = vunpack.c.l.s8.bf16 %v343
    %v953 = vunpack.c.h.s8.bf16 %v343
    %v954 = vunpack.c.l.s8.bf16 %v344
    %v955 = vunpack.c.h.s8.bf16 %v344
    %v956 = vunpack.c.l.s8.bf16 %v345
    %v957 = vunpack.c.h.s8.bf16 %v345
    %v958 = vunpack.c.l.s8.bf16 %v346
    %v959 = vunpack.c.h.s8.bf16 %v346
    %v960 = vunpack.c.l.s8.bf16 %v347
    %v961 = vunpack.c.h.s8.bf16 %v347
    %v962 = vunpack.c.l.s8.bf16 %v348
    %v963 = vunpack.c.h.s8.bf16 %v348
    %v964 = vunpack.c.l.s8.bf16 %v349
    %v965 = vunpack.c.h.s8.bf16 %v349
    %v966 = vunpack.c.l.s8.bf16 %v350
    %v967 = vunpack.c.h.s8.bf16 %v350
    %v968 = vunpack.c.l.s8.bf16 %v351
    %v969 = vunpack.c.h.s8.bf16 %v351
    %v970 = vunpack.c.l.s8.bf16 %v352
    %v971 = vunpack.c.h.s8.bf16 %v352
    %v972 = vunpack.c.l.s8.bf16 %v353
    %v973 = vunpack.c.h.s8.bf16 %v353
    %v974 = vunpack.c.l.s8.bf16 %v354
    %v975 = vunpack.c.h.s8.bf16 %v354
    %v976 = vunpack.c.l.s8.bf16 %v355
    %v977 = vunpack.c.h.s8.bf16 %v355
    %v978 = vunpack.c.l.s8.bf16 %v356
    %v979 = vunpack.c.h.s8.bf16 %v356
    %v980 = vunpack.c.l.s8.bf16 %v357
    %v981 = vunpack.c.h.s8.bf16 %v357
    %v982 = vunpack.c.l.s8.bf16 %v358
    %v983 = vunpack.c.h.s8.bf16 %v358
    %v984 = vunpack.c.l.s8.bf16 %v359
    %v985 = vunpack.c.h.s8.bf16 %v359
    %v986 = vunpack.c.l.s8.bf16 %v360
    %v987 = vunpack.c.h.s8.bf16 %v360
    %v988 = vunpack.c.l.s8.bf16 %v361
    %v989 = vunpack.c.h.s8.bf16 %v361
    %v990 = vunpack.c.l.s8.bf16 %v362
    %v991 = vunpack.c.h.s8.bf16 %v362
    %v992 = vunpack.c.l.s8.bf16 %v363
    %v993 = vunpack.c.h.s8.bf16 %v363
    %v994 = vunpack.c.l.s8.bf16 %v364
    %v995 = vunpack.c.h.s8.bf16 %v364
    %v996 = vunpack.c.l.s8.bf16 %v365
    %v997 = vunpack.c.h.s8.bf16 %v365
    %v998 = vunpack.c.l.s8.bf16 %v366
    %v999 = vunpack.c.h.s8.bf16 %v366
    %v1000 = vunpack.c.l.s8.bf16 %v367
    %v1001 = vunpack.c.h.s8.bf16 %v367
    %v1002 = vunpack.c.l.s8.bf16 %v368
    %v1003 = vunpack.c.h.s8.bf16 %v368
    %v1004 = vunpack.c.l.s8.bf16 %v369
    %v1005 = vunpack.c.h.s8.bf16 %v369
    %v1006 = vunpack.c.l.s8.bf16 %v370
    %v1007 = vunpack.c.h.s8.bf16 %v370
    %v1008 = vunpack.c.l.s8.bf16 %v371
    %v1009 = vunpack.c.h.s8.bf16 %v371
    %v1010 = vunpack.c.l.s8.bf16 %v372
    %v1011 = vunpack.c.h.s8.bf16 %v372
    %v1012 = vunpack.c.l.s8.bf16 %v373
    %v1013 = vunpack.c.h.s8.bf16 %v373
    %v1014 = vunpack.c.l.s8.bf16 %v374
    %v1015 = vunpack.c.h.s8.bf16 %v374
    %v1016 = vunpack.c.l.s8.bf16 %v375
    %v1017 = vunpack.c.h.s8.bf16 %v375
    %v1018 = vunpack.c.l.s8.bf16 %v376
    %v1019 = vunpack.c.h.s8.bf16 %v376
    %v1020 = vunpack.c.l.s8.bf16 %v377
    %v1021 = vunpack.c.h.s8.bf16 %v377
    %v1022 = vunpack.c.l.s8.bf16 %v378
    %v1023 = vunpack.c.h.s8.bf16 %v378
    %v1024 = vunpack.c.l.s8.bf16 %v379
    %v1025 = vunpack.c.h.s8.bf16 %v379
    %v1026 = vunpack.c.l.s8.bf16 %v380
    %v1027 = vunpack.c.h.s8.bf16 %v380
    %v1028 = vunpack.c.l.s8.bf16 %v381
    %v1029 = vunpack.c.h.s8.bf16 %v381
    %v1030 = vunpack.c.l.s8.bf16 %v382
    %v1031 = vunpack.c.h.s8.bf16 %v382
    %v1032 = vunpack.c.l.s8.bf16 %v383
    %v1033 = vunpack.c.h.s8.bf16 %v383
    %v1034 = vunpack.c.l.s8.bf16 %v384
    %v1035 = vunpack.c.h.s8.bf16 %v384
    %v1036 = vunpack.c.l.s8.bf16 %v385
    %v1037 = vunpack.c.h.s8.bf16 %v385
    %v1038 = vunpack.c.l.s8.bf16 %v386
    %v1039 = vunpack.c.h.s8.bf16 %v386
    %v1040 = vunpack.c.l.s8.bf16 %v387
    %v1041 = vunpack.c.h.s8.bf16 %v387
    %v1042 = vunpack.c.l.s8.bf16 %v388
    %v1043 = vunpack.c.h.s8.bf16 %v388
    %v1044 = vunpack.c.l.s8.bf16 %v389
    %v1045 = vunpack.c.h.s8.bf16 %v389
    %v1046 = vunpack.c.l.s8.bf16 %v390
    %v1047 = vunpack.c.h.s8.bf16 %v390
    %v1048 = vunpack.c.l.s8.bf16 %v391
    %v1049 = vunpack.c.h.s8.bf16 %v391
    %v1050 = vunpack.c.l.s8.bf16 %v392
    %v1051 = vunpack.c.h.s8.bf16 %v392
    %v1052 = vunpack.c.l.s8.bf16 %v393
    %v1053 = vunpack.c.h.s8.bf16 %v393
    %v1054 = vunpack.c.l.s8.bf16 %v394
    %v1055 = vunpack.c.h.s8.bf16 %v394
    %v1056 = vunpack.c.l.s8.bf16 %v395
    %v1057 = vunpack.c.h.s8.bf16 %v395
    %v1058 = vunpack.c.l.s8.bf16 %v396
    %v1059 = vunpack.c.h.s8.bf16 %v396
    %v1060 = vunpack.c.l.s8.bf16 %v397
    %v1061 = vunpack.c.h.s8.bf16 %v397
    %v1062 = vunpack.c.l.s8.bf16 %v398
    %v1063 = vunpack.c.h.s8.bf16 %v398
    %v1064 = vunpack.c.l.s8.bf16 %v399
    %v1065 = vunpack.c.h.s8.bf16 %v399
    %v1066 = vunpack.c.l.s8.bf16 %v400
    %v1067 = vunpack.c.h.s8.bf16 %v400
    %v1068 = vunpack.c.l.s8.bf16 %v401
    %v1069 = vunpack.c.h.s8.bf16 %v401
    %v1070 = vunpack.c.l.s8.bf16 %v402
    %v1071 = vunpack.c.h.s8.bf16 %v402
    %v1072 = vunpack.c.l.s8.bf16 %v403
    %v1073 = vunpack.c.h.s8.bf16 %v403
    %v1074 = vunpack.c.l.s8.bf16 %v404
    %v1075 = vunpack.c.h.s8.bf16 %v404
    %v1076 = vunpack.c.l.s8.bf16 %v405
    %v1077 = vunpack.c.h.s8.bf16 %v405
    %v1078 = vunpack.c.l.s8.bf16 %v406
    %v1079 = vunpack.c.h.s8.bf16 %v406
    %v1080 = vunpack.c.l.s8.bf16 %v407
    %v1081 = vunpack.c.h.s8.bf16 %v407
    %v1082 = vunpack.c.l.s8.bf16 %v408
    %v1083 = vunpack.c.h.s8.bf16 %v408
    %v1084 = vunpack.c.l.s8.bf16 %v409
    %v1085 = vunpack.c.h.s8.bf16 %v409
    %v1086 = vunpack.c.l.s8.bf16 %v410
    %v1087 = vunpack.c.h.s8.bf16 %v410
    %v1088 = vunpack.c.l.s8.bf16 %v411
    %v1089 = vunpack.c.h.s8.bf16 %v411
    %v1090 = vunpack.c.l.s8.bf16 %v412
    %v1091 = vunpack.c.h.s8.bf16 %v412
    %v1092 = vunpack.c.l.s8.bf16 %v413
    %v1093 = vunpack.c.h.s8.bf16 %v413
    %v1094 = vunpack.c.l.s8.bf16 %v414
    %v1095 = vunpack.c.h.s8.bf16 %v414
    %v1096 = vunpack.c.l.s8.bf16 %v415
    %v1097 = vunpack.c.h.s8.bf16 %v415
    %v1098 = vunpack.c.l.s8.bf16 %v416
    %v1099 = vunpack.c.h.s8.bf16 %v416
    %v1100 = vunpack.c.l.s8.bf16 %v417
    %v1101 = vunpack.c.h.s8.bf16 %v417
    %v1102 = vunpack.c.l.s8.bf16 %v418
    %v1103 = vunpack.c.h.s8.bf16 %v418
    %v1104 = vunpack.c.l.s8.bf16 %v419
    %v1105 = vunpack.c.h.s8.bf16 %v419
    %v1106 = vunpack.c.l.s8.bf16 %v420
    %v1107 = vunpack.c.h.s8.bf16 %v420
    %v1108 = vunpack.c.l.s8.bf16 %v421
    %v1109 = vunpack.c.h.s8.bf16 %v421
    %v1110 = vunpack.c.l.s8.bf16 %v422
    %v1111 = vunpack.c.h.s8.bf16 %v422
    %v1112 = vunpack.c.l.s8.bf16 %v423
    %v1113 = vunpack.c.h.s8.bf16 %v423
    %v1114 = vunpack.c.l.s8.bf16 %v424
    %v1115 = vunpack.c.h.s8.bf16 %v424
    %v1116 = vunpack.c.l.s8.bf16 %v425
    %v1117 = vunpack.c.h.s8.bf16 %v425
    %v1118 = vunpack.c.l.s8.bf16 %v426
    %v1119 = vunpack.c.h.s8.bf16 %v426
    %v1120 = vunpack.c.l.s8.bf16 %v427
    %v1121 = vunpack.c.h.s8.bf16 %v427
    %v1122 = vunpack.c.l.s8.bf16 %v428
    %v1123 = vunpack.c.h.s8.bf16 %v428
    %v1124 = vunpack.c.l.s8.bf16 %v429
    %v1125 = vunpack.c.h.s8.bf16 %v429
    %v1126 = vunpack.c.l.s8.bf16 %v430
    %v1127 = vunpack.c.h.s8.bf16 %v430
    %v1128 = vunpack.c.l.s8.bf16 %v431
    %v1129 = vunpack.c.h.s8.bf16 %v431
    %v1130 = vunpack.c.l.s8.bf16 %v432
    %v1131 = vunpack.c.h.s8.bf16 %v432
    %v1132 = vunpack.c.l.s8.bf16 %v433
    %v1133 = vunpack.c.h.s8.bf16 %v433
    %v1134 = vunpack.c.l.s8.bf16 %v434
    %v1135 = vunpack.c.h.s8.bf16 %v434
    %v1136 = vunpack.c.l.s8.bf16 %v435
    %v1137 = vunpack.c.h.s8.bf16 %v435
    %v1138 = vunpack.c.l.s8.bf16 %v436
    %v1139 = vunpack.c.h.s8.bf16 %v436
    %v1140 = vunpack.c.l.s8.bf16 %v437
    %v1141 = vunpack.c.h.s8.bf16 %v437
    %v1142 = vunpack.c.l.s8.bf16 %v438
    %v1143 = vunpack.c.h.s8.bf16 %v438
    %v1144 = vunpack.c.l.s8.bf16 %v439
    %v1145 = vunpack.c.h.s8.bf16 %v439
    %v1146 = vunpack.c.l.s8.bf16 %v440
    %v1147 = vunpack.c.h.s8.bf16 %v440
    %v1148 = vunpack.c.l.s8.bf16 %v441
    %v1149 = vunpack.c.h.s8.bf16 %v441
    %v1150 = vunpack.c.l.s8.bf16 %v442
    %v1151 = vunpack.c.h.s8.bf16 %v442
    %v1152 = vunpack.c.l.s8.bf16 %v443
    %v1153 = vunpack.c.h.s8.bf16 %v443
    %v1154 = vunpack.c.l.s8.bf16 %v444
    %v1155 = vunpack.c.h.s8.bf16 %v444
    %v1156 = vunpack.c.l.s8.bf16 %v445
    %v1157 = vunpack.c.h.s8.bf16 %v445
    %v1158 = vunpack.c.l.s8.bf16 %v446
    %v1159 = vunpack.c.h.s8.bf16 %v446
    %v1160 = vunpack.c.l.s8.bf16 %v447
    %v1161 = vunpack.c.h.s8.bf16 %v447
    %v1162 = vunpack.c.l.s8.bf16 %v448
    %v1163 = vunpack.c.h.s8.bf16 %v448
    %v1164 = vunpack.c.l.s8.bf16 %v449
    %v1165 = vunpack.c.h.s8.bf16 %v449
    %v1166 = vunpack.c.l.s8.bf16 %v450
    %v1167 = vunpack.c.h.s8.bf16 %v450
    %v1168 = vunpack.c.l.s8.bf16 %v451
    %v1169 = vunpack.c.h.s8.bf16 %v451
    %v1170 = vunpack.c.l.s8.bf16 %v452
    %v1171 = vunpack.c.h.s8.bf16 %v452
    %v1172 = vunpack.c.l.s8.bf16 %v453
    %v1173 = vunpack.c.h.s8.bf16 %v453
    %v1174 = vunpack.c.l.s8.bf16 %v454
    %v1175 = vunpack.c.h.s8.bf16 %v454
    %v1176 = vunpack.c.l.s8.bf16 %v455
    %v1177 = vunpack.c.h.s8.bf16 %v455
    %v1178 = vunpack.c.l.s8.bf16 %v456
    %v1179 = vunpack.c.h.s8.bf16 %v456
    %v1180 = vunpack.c.l.s8.bf16 %v457
    %v1181 = vunpack.c.h.s8.bf16 %v457
    %v1182 = vunpack.c.l.s8.bf16 %v458
    %v1183 = vunpack.c.h.s8.bf16 %v458
    %v1184 = vunpack.c.l.s8.bf16 %v459
    %v1185 = vunpack.c.h.s8.bf16 %v459
    %v1186 = vunpack.c.l.s8.bf16 %v460
    %v1187 = vunpack.c.h.s8.bf16 %v460
    %v1188 = vunpack.c.l.s8.bf16 %v461
    %v1189 = vunpack.c.h.s8.bf16 %v461
    %v1190 = vunpack.c.l.s8.bf16 %v462
    %v1191 = vunpack.c.h.s8.bf16 %v462
    %v1192 = vunpack.c.l.s8.bf16 %v463
    %v1193 = vunpack.c.h.s8.bf16 %v463
    %v1194 = vunpack.c.l.s8.bf16 %v464
    %v1195 = vunpack.c.h.s8.bf16 %v464
    %v1196 = vunpack.c.l.s8.bf16 %v465
    %v1197 = vunpack.c.h.s8.bf16 %v465
    %v1198 = vunpack.c.l.s8.bf16 %v466
    %v1199 = vunpack.c.h.s8.bf16 %v466
    %v1200 = vunpack.c.l.s8.bf16 %v467
    %v1201 = vunpack.c.h.s8.bf16 %v467
    %v1202 = vunpack.c.l.s8.bf16 %v468
    %v1203 = vunpack.c.h.s8.bf16 %v468
    %v1204 = vunpack.c.l.s8.bf16 %v469
    %v1205 = vunpack.c.h.s8.bf16 %v469
    %v1206 = vunpack.c.l.s8.bf16 %v470
    %v1207 = vunpack.c.h.s8.bf16 %v470
    %v1208 = vunpack.c.l.s8.bf16 %v471
    %v1209 = vunpack.c.h.s8.bf16 %v471
    %v1210 = vunpack.c.l.s8.bf16 %v472
    %v1211 = vunpack.c.h.s8.bf16 %v472
    %v1212 = vunpack.c.l.s8.bf16 %v473
    %v1213 = vunpack.c.h.s8.bf16 %v473
    %v1214 = vunpack.c.l.s8.bf16 %v474
    %v1215 = vunpack.c.h.s8.bf16 %v474
    %v1216 = vunpack.c.l.s8.bf16 %v475
    %v1217 = vunpack.c.h.s8.bf16 %v475
    %v1218 = vunpack.c.l.s8.bf16 %v476
    %v1219 = vunpack.c.h.s8.bf16 %v476
    %v1220 = vunpack.c.l.s8.bf16 %v477
    %v1221 = vunpack.c.h.s8.bf16 %v477
    %v1222 = vunpack.c.l.s8.bf16 %v478
    %v1223 = vunpack.c.h.s8.bf16 %v478
    %v1224 = vunpack.c.l.s8.bf16 %v479
    %v1225 = vunpack.c.h.s8.bf16 %v479
    %v1226 = vunpack.c.l.s8.bf16 %v480
    %v1227 = vunpack.c.h.s8.bf16 %v480
    %v1228 = vunpack.c.l.s8.bf16 %v481
    %v1229 = vunpack.c.h.s8.bf16 %v481
    %v1230 = vunpack.c.l.s8.bf16 %v482
    %v1231 = vunpack.c.h.s8.bf16 %v482
    %v1232 = vunpack.c.l.s8.bf16 %v483
    %v1233 = vunpack.c.h.s8.bf16 %v483
    %v1234 = vunpack.c.l.s8.bf16 %v484
    %v1235 = vunpack.c.h.s8.bf16 %v484
    %v1236 = vunpack.c.l.s8.bf16 %v485
    %v1237 = vunpack.c.h.s8.bf16 %v485
    %v1238 = vunpack.c.l.s8.bf16 %v486
    %v1239 = vunpack.c.h.s8.bf16 %v486
    %v1240 = vunpack.c.l.s8.bf16 %v487
    %v1241 = vunpack.c.h.s8.bf16 %v487
    %v1242 = vunpack.c.l.s8.bf16 %v488
    %v1243 = vunpack.c.h.s8.bf16 %v488
    %v1244 = vunpack.c.l.s8.bf16 %v489
    %v1245 = vunpack.c.h.s8.bf16 %v489
    %v1246 = vunpack.c.l.s8.bf16 %v490
    %v1247 = vunpack.c.h.s8.bf16 %v490
    %v1248 = vunpack.c.l.s8.bf16 %v491
    %v1249 = vunpack.c.h.s8.bf16 %v491
    %v1250 = vunpack.c.l.s8.bf16 %v492
    %v1251 = vunpack.c.h.s8.bf16 %v492
    %v1252 = vunpack.c.l.s8.bf16 %v493
    %v1253 = vunpack.c.h.s8.bf16 %v493
    %v1254 = vunpack.c.l.s8.bf16 %v494
    %v1255 = vunpack.c.h.s8.bf16 %v494
    %v1256 = vunpack.c.l.s8.bf16 %v495
    %v1257 = vunpack.c.h.s8.bf16 %v495
    %v1258 = vunpack.c.l.s8.bf16 %v496
    %v1259 = vunpack.c.h.s8.bf16 %v496
    %v1260 = vunpack.c.l.s8.bf16 %v497
    %v1261 = vunpack.c.h.s8.bf16 %v497
    %v1262 = vunpack.c.l.s8.bf16 %v498
    %v1263 = vunpack.c.h.s8.bf16 %v498
    %v1264 = vunpack.c.l.s8.bf16 %v499
    %v1265 = vunpack.c.h.s8.bf16 %v499
    %v1266 = vunpack.c.l.s8.bf16 %v500
    %v1267 = vunpack.c.h.s8.bf16 %v500
    %v1268 = vunpack.c.l.s8.bf16 %v501
    %v1269 = vunpack.c.h.s8.bf16 %v501
    %v1270 = vunpack.c.l.s8.bf16 %v502
    %v1271 = vunpack.c.h.s8.bf16 %v502
    %v1272 = vunpack.c.l.s8.bf16 %v503
    %v1273 = vunpack.c.h.s8.bf16 %v503
    %v1274 = vunpack.c.l.s8.bf16 %v504
    %v1275 = vunpack.c.h.s8.bf16 %v504
    %v1276 = vunpack.c.l.s8.bf16 %v505
    %v1277 = vunpack.c.h.s8.bf16 %v505
    %v1278 = vunpack.c.l.s8.bf16 %v506
    %v1279 = vunpack.c.h.s8.bf16 %v506
    %v1280 = vunpack.c.l.s8.bf16 %v507
    %v1281 = vunpack.c.h.s8.bf16 %v507
    %v1282 = vunpack.c.l.s8.bf16 %v508
    %v1283 = vunpack.c.h.s8.bf16 %v508
    %v1284 = vunpack.c.l.s8.bf16 %v509
    %v1285 = vunpack.c.h.s8.bf16 %v509
    %v1286 = vunpack.c.l.s8.bf16 %v510
    %v1287 = vunpack.c.h.s8.bf16 %v510
    %v1288 = vunpack.c.l.s8.bf16 %v511
    %v1289 = vunpack.c.h.s8.bf16 %v511
    %v1290 = vunpack.c.l.s8.bf16 %v512
    %v1291 = vunpack.c.h.s8.bf16 %v512
    %v1292 = vunpack.c.l.s8.bf16 %v513
    %v1293 = vunpack.c.h.s8.bf16 %v513
    %v1294 = vunpack.c.l.s8.bf16 %v514
    %v1295 = vunpack.c.h.s8.bf16 %v514
    %v1296 = vunpack.c.l.s8.bf16 %v515
    %v1297 = vunpack.c.h.s8.bf16 %v515
    %v1298 = vunpack.c.l.s8.bf16 %v516
    %v1299 = vunpack.c.h.s8.bf16 %v516
    %v1300 = vunpack.c.l.s8.bf16 %v517
    %v1301 = vunpack.c.h.s8.bf16 %v517
    %v1302 = vpack.c.bf16 %v119, %v119
    %v1303 = vpack.c.bf16 %v120, %v120
    %v1304 = vpack.c.bf16 %v121, %v121
    %v1305 = vpack.c.bf16 %v122, %v122
    %v1306 = vpack.c.bf16 %v123, %v123
    %v1307 = vpack.c.bf16 %v124, %v124
    %v1308 = vpack.c.bf16 %v125, %v125
    %v2093 = vunpack.c.l.b16 %v518
    %v2094 = vunpack.c.h.b16 %v518
    %v2095 = vunpack.c.l.b16 %v519
    %v2096 = vunpack.c.h.b16 %v519
    %v2097 = vunpack.c.l.b16 %v520
    %v2098 = vunpack.c.h.b16 %v520
    %v2099 = vunpack.c.l.b16 %v521
    %v2100 = vunpack.c.h.b16 %v521
    %v2101 = vunpack.c.l.b16 %v522
    %v2102 = vunpack.c.h.b16 %v522
    %v2103 = vunpack.c.l.b16 %v523
    %v2104 = vunpack.c.h.b16 %v523
    %v2105 = vunpack.c.l.b16 %v524
    %v2106 = vunpack.c.h.b16 %v524
    %v2107 = vunpack.c.l.b16 %v525
    %v2108 = vunpack.c.h.b16 %v525
    %v2109 = vunpack.c.l.b16 %v526
    %v2110 = vunpack.c.h.b16 %v526
    %v2111 = vunpack.c.l.b16 %v527
    %v2112 = vunpack.c.h.b16 %v527
    %v2113 = vunpack.c.l.b16 %v528
    %v2114 = vunpack.c.h.b16 %v528
    %v2115 = vunpack.c.l.b16 %v529
    %v2116 = vunpack.c.h.b16 %v529
    %v2117 = vunpack.c.l.b16 %v530
    %v2118 = vunpack.c.h.b16 %v530
    %v2119 = vunpack.c.l.b16 %v531
    %v2120 = vunpack.c.h.b16 %v531
    %v2121 = vunpack.c.l.b16 %v532
    %v2122 = vunpack.c.h.b16 %v532
    %v2123 = vunpack.c.l.b16 %v533
    %v2124 = vunpack.c.h.b16 %v533
    %v2125 = vunpack.c.l.b16 %v534
    %v2126 = vunpack.c.h.b16 %v534
    %v2127 = vunpack.c.l.b16 %v535
    %v2128 = vunpack.c.h.b16 %v535
    %v2129 = vunpack.c.l.b16 %v536
    %v2130 = vunpack.c.h.b16 %v536
    %v2131 = vunpack.c.l.b16 %v537
    %v2132 = vunpack.c.h.b16 %v537
    %v2133 = vunpack.c.l.b16 %v538
    %v2134 = vunpack.c.h.b16 %v538
    %v2135 = vunpack.c.l.b16 %v539
    %v2136 = vunpack.c.h.b16 %v539
    %v2137 = vunpack.c.l.b16 %v540
    %v2138 = vunpack.c.h.b16 %v540
    %v2139 = vunpack.c.l.b16 %v541
    %v2140 = vunpack.c.h.b16 %v541
    %v2141 = vunpack.c.l.b16 %v542
    %v2142 = vunpack.c.h.b16 %v542
    %v2143 = vunpack.c.l.b16 %v543
    %v2144 = vunpack.c.h.b16 %v543
    %v2145 = vunpack.c.l.b16 %v544
    %v2146 = vunpack.c.h.b16 %v544
    %v2147 = vunpack.c.l.b16 %v545
    %v2148 = vunpack.c.h.b16 %v545
    %v2149 = vunpack.c.l.b16 %v546
    %v2150 = vunpack.c.h.b16 %v546
    %v2151 = vunpack.c.l.b16 %v547
    %v2152 = vunpack.c.h.b16 %v547
    %v2153 = vunpack.c.l.b16 %v548
    %v2154 = vunpack.c.h.b16 %v548
    %v2155 = vunpack.c.l.b16 %v549
    %v2156 = vunpack.c.h.b16 %v549
    %v2157 = vunpack.c.l.b16 %v550
    %v2158 = vunpack.c.h.b16 %v550
    %v2159 = vunpack.c.l.b16 %v551
    %v2160 = vunpack.c.h.b16 %v551
    %v2161 = vunpack.c.l.b16 %v552
    %v2162 = vunpack.c.h.b16 %v552
    %v2163 = vunpack.c.l.b16 %v553
    %v2164 = vunpack.c.h.b16 %v553
    %v2165 = vunpack.c.l.b16 %v554
    %v2166 = vunpack.c.h.b16 %v554
    %v2167 = vunpack.c.l.b16 %v555
    %v2168 = vunpack.c.h.b16 %v555
    %v2169 = vunpack.c.l.b16 %v556
    %v2170 = vunpack.c.h.b16 %v556
    %v2171 = vunpack.c.l.b16 %v557
    %v2172 = vunpack.c.h.b16 %v557
    %v2173 = vunpack.c.l.b16 %v558
    %v2174 = vunpack.c.h.b16 %v558
    %v2175 = vunpack.c.l.b16 %v559
    %v2176 = vunpack.c.h.b16 %v559
    %v2177 = vunpack.c.l.b16 %v560
    %v2178 = vunpack.c.h.b16 %v560
    %v2179 = vunpack.c.l.b16 %v561
    %v2180 = vunpack.c.h.b16 %v561
    %v2181 = vunpack.c.l.b16 %v562
    %v2182 = vunpack.c.h.b16 %v562
    %v2183 = vunpack.c.l.b16 %v563
    %v2184 = vunpack.c.h.b16 %v563
    %v2185 = vunpack.c.l.b16 %v564
    %v2186 = vunpack.c.h.b16 %v564
    %v2187 = vunpack.c.l.b16 %v565
    %v2188 = vunpack.c.h.b16 %v565
    %v2189 = vunpack.c.l.b16 %v566
    %v2190 = vunpack.c.h.b16 %v566
    %v2191 = vunpack.c.l.b16 %v567
    %v2192 = vunpack.c.h.b16 %v567
    %v2193 = vunpack.c.l.b16 %v568
    %v2194 = vunpack.c.h.b16 %v568
    %v2195 = vunpack.c.l.b16 %v569
    %v2196 = vunpack.c.h.b16 %v569
    %v2197 = vunpack.c.l.b16 %v570
    %v2198 = vunpack.c.h.b16 %v570
    %v2199 = vunpack.c.l.b16 %v571
    %v2200 = vunpack.c.h.b16 %v571
    %v2201 = vunpack.c.l.b16 %v572
    %v2202 = vunpack.c.h.b16 %v572
    %v2203 = vunpack.c.l.b16 %v573
    %v2204 = vunpack.c.h.b16 %v573
    %v2205 = vunpack.c.l.b16 %v574
    %v2206 = vunpack.c.h.b16 %v574
    %v2207 = vunpack.c.l.b16 %v575
    %v2208 = vunpack.c.h.b16 %v575
    %v2209 = vunpack.c.l.b16 %v576
    %v2210 = vunpack.c.h.b16 %v576
    %v2211 = vunpack.c.l.b16 %v577
    %v2212 = vunpack.c.h.b16 %v577
    %v2213 = vunpack.c.l.b16 %v578
    %v2214 = vunpack.c.h.b16 %v578
    %v2215 = vunpack.c.l.b16 %v579
    %v2216 = vunpack.c.h.b16 %v579
    %v2217 = vunpack.c.l.b16 %v580
    %v2218 = vunpack.c.h.b16 %v580
    %v2219 = vunpack.c.l.b16 %v581
    %v2220 = vunpack.c.h.b16 %v581
    %v2221 = vunpack.c.l.b16 %v582
    %v2222 = vunpack.c.h.b16 %v582
    %v2223 = vunpack.c.l.b16 %v583
    %v2224 = vunpack.c.h.b16 %v583
    %v2225 = vunpack.c.l.b16 %v584
    %v2226 = vunpack.c.h.b16 %v584
    %v2227 = vunpack.c.l.b16 %v585
    %v2228 = vunpack.c.h.b16 %v585
    %v2229 = vunpack.c.l.b16 %v586
    %v2230 = vunpack.c.h.b16 %v586
    %v2231 = vunpack.c.l.b16 %v587
    %v2232 = vunpack.c.h.b16 %v587
    %v2233 = vunpack.c.l.b16 %v588
    %v2234 = vunpack.c.h.b16 %v588
    %v2235 = vunpack.c.l.b16 %v589
    %v2236 = vunpack.c.h.b16 %v589
    %v2237 = vunpack.c.l.b16 %v590
    %v2238 = vunpack.c.h.b16 %v590
    %v2239 = vunpack.c.l.b16 %v591
    %v2240 = vunpack.c.h.b16 %v591
    %v2241 = vunpack.c.l.b16 %v592
    %v2242 = vunpack.c.h.b16 %v592
    %v2243 = vunpack.c.l.b16 %v593
    %v2244 = vunpack.c.h.b16 %v593
    %v2245 = vunpack.c.l.b16 %v594
    %v2246 = vunpack.c.h.b16 %v594
    %v2247 = vunpack.c.l.b16 %v595
    %v2248 = vunpack.c.h.b16 %v595
    %v2249 = vunpack.c.l.b16 %v596
    %v2250 = vunpack.c.h.b16 %v596
    %v2251 = vunpack.c.l.b16 %v597
    %v2252 = vunpack.c.h.b16 %v597
    %v2253 = vunpack.c.l.b16 %v598
    %v2254 = vunpack.c.h.b16 %v598
    %v2255 = vunpack.c.l.b16 %v599
    %v2256 = vunpack.c.h.b16 %v599
    %v2257 = vunpack.c.l.b16 %v600
    %v2258 = vunpack.c.h.b16 %v600
    %v2259 = vunpack.c.l.b16 %v601
    %v2260 = vunpack.c.h.b16 %v601
    %v2261 = vunpack.c.l.b16 %v602
    %v2262 = vunpack.c.h.b16 %v602
    %v2263 = vunpack.c.l.b16 %v603
    %v2264 = vunpack.c.h.b16 %v603
    %v2265 = vunpack.c.l.b16 %v604
    %v2266 = vunpack.c.h.b16 %v604
    %v2267 = vunpack.c.l.b16 %v605
    %v2268 = vunpack.c.h.b16 %v605
    %v2269 = vunpack.c.l.b16 %v606
    %v2270 = vunpack.c.h.b16 %v606
    %v2271 = vunpack.c.l.b16 %v607
    %v2272 = vunpack.c.h.b16 %v607
    %v2273 = vunpack.c.l.b16 %v608
    %v2274 = vunpack.c.h.b16 %v608
    %v2275 = vunpack.c.l.b16 %v609
    %v2276 = vunpack.c.h.b16 %v609
    %v2277 = vunpack.c.l.b16 %v610
    %v2278 = vunpack.c.h.b16 %v610
    %v2279 = vunpack.c.l.b16 %v611
    %v2280 = vunpack.c.h.b16 %v611
    %v2281 = vunpack.c.l.b16 %v612
    %v2282 = vunpack.c.h.b16 %v612
    %v2283 = vunpack.c.l.b16 %v613
    %v2284 = vunpack.c.h.b16 %v613
    %v2285 = vunpack.c.l.b16 %v614
    %v2286 = vunpack.c.h.b16 %v614
    %v2287 = vunpack.c.l.b16 %v615
    %v2288 = vunpack.c.h.b16 %v615
    %v2289 = vunpack.c.l.b16 %v616
    %v2290 = vunpack.c.h.b16 %v616
    %v2291 = vunpack.c.l.b16 %v617
    %v2292 = vunpack.c.h.b16 %v617
    %v2293 = vunpack.c.l.b16 %v618
    %v2294 = vunpack.c.h.b16 %v618
    %v2295 = vunpack.c.l.b16 %v619
    %v2296 = vunpack.c.h.b16 %v619
    %v2297 = vunpack.c.l.b16 %v620
    %v2298 = vunpack.c.h.b16 %v620
    %v2299 = vunpack.c.l.b16 %v621
    %v2300 = vunpack.c.h.b16 %v621
    %v2301 = vunpack.c.l.b16 %v622
    %v2302 = vunpack.c.h.b16 %v622
    %v2303 = vunpack.c.l.b16 %v623
    %v2304 = vunpack.c.h.b16 %v623
    %v2305 = vunpack.c.l.b16 %v624
    %v2306 = vunpack.c.h.b16 %v624
    %v2307 = vunpack.c.l.b16 %v625
    %v2308 = vunpack.c.h.b16 %v625
    %v2309 = vunpack.c.l.b16 %v626
    %v2310 = vunpack.c.h.b16 %v626
    %v2311 = vunpack.c.l.b16 %v627
    %v2312 = vunpack.c.h.b16 %v627
    %v2313 = vunpack.c.l.b16 %v628
    %v2314 = vunpack.c.h.b16 %v628
    %v2315 = vunpack.c.l.b16 %v629
    %v2316 = vunpack.c.h.b16 %v629
    %v2317 = vunpack.c.l.b16 %v630
    %v2318 = vunpack.c.h.b16 %v630
    %v2319 = vunpack.c.l.b16 %v631
    %v2320 = vunpack.c.h.b16 %v631
    %v2321 = vunpack.c.l.b16 %v632
    %v2322 = vunpack.c.h.b16 %v632
    %v2323 = vunpack.c.l.b16 %v633
    %v2324 = vunpack.c.h.b16 %v633
    %v2325 = vunpack.c.l.b16 %v634
    %v2326 = vunpack.c.h.b16 %v634
    %v2327 = vunpack.c.l.b16 %v635
    %v2328 = vunpack.c.h.b16 %v635
    %v2329 = vunpack.c.l.b16 %v636
    %v2330 = vunpack.c.h.b16 %v636
    %v2331 = vunpack.c.l.b16 %v637
    %v2332 = vunpack.c.h.b16 %v637
    %v2333 = vunpack.c.l.b16 %v638
    %v2334 = vunpack.c.h.b16 %v638
    %v2335 = vunpack.c.l.b16 %v639
    %v2336 = vunpack.c.h.b16 %v639
    %v2337 = vunpack.c.l.b16 %v640
    %v2338 = vunpack.c.h.b16 %v640
    %v2339 = vunpack.c.l.b16 %v641
    %v2340 = vunpack.c.h.b16 %v641
    %v2341 = vunpack.c.l.b16 %v642
    %v2342 = vunpack.c.h.b16 %v642
    %v2343 = vunpack.c.l.b16 %v643
    %v2344 = vunpack.c.h.b16 %v643
    %v2345 = vunpack.c.l.b16 %v644
    %v2346 = vunpack.c.h.b16 %v644
    %v2347 = vunpack.c.l.b16 %v645
    %v2348 = vunpack.c.h.b16 %v645
    %v2349 = vunpack.c.l.b16 %v646
    %v2350 = vunpack.c.h.b16 %v646
    %v2351 = vunpack.c.l.b16 %v647
    %v2352 = vunpack.c.h.b16 %v647
    %v2353 = vunpack.c.l.b16 %v648
    %v2354 = vunpack.c.h.b16 %v648
    %v2355 = vunpack.c.l.b16 %v649
    %v2356 = vunpack.c.h.b16 %v649
    %v2357 = vunpack.c.l.b16 %v650
    %v2358 = vunpack.c.h.b16 %v650
    %v2359 = vunpack.c.l.b16 %v651
    %v2360 = vunpack.c.h.b16 %v651
    %v2361 = vunpack.c.l.b16 %v652
    %v2362 = vunpack.c.h.b16 %v652
    %v2363 = vunpack.c.l.b16 %v653
    %v2364 = vunpack.c.h.b16 %v653
    %v2365 = vunpack.c.l.b16 %v654
    %v2366 = vunpack.c.h.b16 %v654
    %v2367 = vunpack.c.l.b16 %v655
    %v2368 = vunpack.c.h.b16 %v655
    %v2369 = vunpack.c.l.b16 %v656
    %v2370 = vunpack.c.h.b16 %v656
    %v2371 = vunpack.c.l.b16 %v657
    %v2372 = vunpack.c.h.b16 %v657
    %v2373 = vunpack.c.l.b16 %v658
    %v2374 = vunpack.c.h.b16 %v658
    %v2375 = vunpack.c.l.b16 %v659
    %v2376 = vunpack.c.h.b16 %v659
    %v2377 = vunpack.c.l.b16 %v660
    %v2378 = vunpack.c.h.b16 %v660
    %v2379 = vunpack.c.l.b16 %v661
    %v2380 = vunpack.c.h.b16 %v661
    %v2381 = vunpack.c.l.b16 %v662
    %v2382 = vunpack.c.h.b16 %v662
    %v2383 = vunpack.c.l.b16 %v663
    %v2384 = vunpack.c.h.b16 %v663
    %v2385 = vunpack.c.l.b16 %v664
    %v2386 = vunpack.c.h.b16 %v664
    %v2387 = vunpack.c.l.b16 %v665
    %v2388 = vunpack.c.h.b16 %v665
    %v2389 = vunpack.c.l.b16 %v666
    %v2390 = vunpack.c.h.b16 %v666
    %v2391 = vunpack.c.l.b16 %v667
    %v2392 = vunpack.c.h.b16 %v667
    %v2393 = vunpack.c.l.b16 %v668
    %v2394 = vunpack.c.h.b16 %v668
    %v2395 = vunpack.c.l.b16 %v669
    %v2396 = vunpack.c.h.b16 %v669
    %v2397 = vunpack.c.l.b16 %v670
    %v2398 = vunpack.c.h.b16 %v670
    %v2399 = vunpack.c.l.b16 %v671
    %v2400 = vunpack.c.h.b16 %v671
    %v2401 = vunpack.c.l.b16 %v672
    %v2402 = vunpack.c.h.b16 %v672
    %v2403 = vunpack.c.l.b16 %v673
    %v2404 = vunpack.c.h.b16 %v673
    %v2405 = vunpack.c.l.b16 %v674
    %v2406 = vunpack.c.h.b16 %v674
    %v2407 = vunpack.c.l.b16 %v675
    %v2408 = vunpack.c.h.b16 %v675
    %v2409 = vunpack.c.l.b16 %v676
    %v2410 = vunpack.c.h.b16 %v676
    %v2411 = vunpack.c.l.b16 %v677
    %v2412 = vunpack.c.h.b16 %v677
    %v2413 = vunpack.c.l.b16 %v678
    %v2414 = vunpack.c.h.b16 %v678
    %v2415 = vunpack.c.l.b16 %v679
    %v2416 = vunpack.c.h.b16 %v679
    %v2417 = vunpack.c.l.b16 %v680
    %v2418 = vunpack.c.h.b16 %v680
    %v2419 = vunpack.c.l.b16 %v681
    %v2420 = vunpack.c.h.b16 %v681
    %v2421 = vunpack.c.l.b16 %v682
    %v2422 = vunpack.c.h.b16 %v682
    %v2423 = vunpack.c.l.b16 %v683
    %v2424 = vunpack.c.h.b16 %v683
    %v2425 = vunpack.c.l.b16 %v684
    %v2426 = vunpack.c.h.b16 %v684
    %v2427 = vunpack.c.l.b16 %v685
    %v2428 = vunpack.c.h.b16 %v685
    %v2429 = vunpack.c.l.b16 %v686
    %v2430 = vunpack.c.h.b16 %v686
    %v2431 = vunpack.c.l.b16 %v687
    %v2432 = vunpack.c.h.b16 %v687
    %v2433 = vunpack.c.l.b16 %v688
    %v2434 = vunpack.c.h.b16 %v688
    %v2435 = vunpack.c.l.b16 %v689
    %v2436 = vunpack.c.h.b16 %v689
    %v2437 = vunpack.c.l.b16 %v690
    %v2438 = vunpack.c.h.b16 %v690
    %v2439 = vunpack.c.l.b16 %v691
    %v2440 = vunpack.c.h.b16 %v691
    %v2441 = vunpack.c.l.b16 %v692
    %v2442 = vunpack.c.h.b16 %v692
    %v2443 = vunpack.c.l.b16 %v693
    %v2444 = vunpack.c.h.b16 %v693
    %v2445 = vunpack.c.l.b16 %v694
    %v2446 = vunpack.c.h.b16 %v694
    %v2447 = vunpack.c.l.b16 %v695
    %v2448 = vunpack.c.h.b16 %v695
    %v2449 = vunpack.c.l.b16 %v696
    %v2450 = vunpack.c.h.b16 %v696
    %v2451 = vunpack.c.l.b16 %v697
    %v2452 = vunpack.c.h.b16 %v697
    %v2453 = vunpack.c.l.b16 %v698
    %v2454 = vunpack.c.h.b16 %v698
    %v2455 = vunpack.c.l.b16 %v699
    %v2456 = vunpack.c.h.b16 %v699
    %v2457 = vunpack.c.l.b16 %v700
    %v2458 = vunpack.c.h.b16 %v700
    %v2459 = vunpack.c.l.b16 %v701
    %v2460 = vunpack.c.h.b16 %v701
    %v2461 = vunpack.c.l.b16 %v702
    %v2462 = vunpack.c.h.b16 %v702
    %v2463 = vunpack.c.l.b16 %v703
    %v2464 = vunpack.c.h.b16 %v703
    %v2465 = vunpack.c.l.b16 %v704
    %v2466 = vunpack.c.h.b16 %v704
    %v2467 = vunpack.c.l.b16 %v705
    %v2468 = vunpack.c.h.b16 %v705
    %v2469 = vunpack.c.l.b16 %v706
    %v2470 = vunpack.c.h.b16 %v706
    %v2471 = vunpack.c.l.b16 %v707
    %v2472 = vunpack.c.h.b16 %v707
    %v2473 = vunpack.c.l.b16 %v708
    %v2474 = vunpack.c.h.b16 %v708
    %v2475 = vunpack.c.l.b16 %v709
    %v2476 = vunpack.c.h.b16 %v709
    %v2477 = vunpack.c.l.b16 %v710
    %v2478 = vunpack.c.h.b16 %v710
    %v2479 = vunpack.c.l.b16 %v711
    %v2480 = vunpack.c.h.b16 %v711
    %v2481 = vunpack.c.l.b16 %v712
    %v2482 = vunpack.c.h.b16 %v712
    %v2483 = vunpack.c.l.b16 %v713
    %v2484 = vunpack.c.h.b16 %v713
    %v2485 = vunpack.c.l.b16 %v714
    %v2486 = vunpack.c.h.b16 %v714
    %v2487 = vunpack.c.l.b16 %v715
    %v2488 = vunpack.c.h.b16 %v715
    %v2489 = vunpack.c.l.b16 %v716
    %v2490 = vunpack.c.h.b16 %v716
    %v2491 = vunpack.c.l.b16 %v717
    %v2492 = vunpack.c.h.b16 %v717
    %v2493 = vunpack.c.l.b16 %v718
    %v2494 = vunpack.c.h.b16 %v718
    %v2495 = vunpack.c.l.b16 %v719
    %v2496 = vunpack.c.h.b16 %v719
    %v2497 = vunpack.c.l.b16 %v720
    %v2498 = vunpack.c.h.b16 %v720
    %v2499 = vunpack.c.l.b16 %v721
    %v2500 = vunpack.c.h.b16 %v721
    %v2501 = vunpack.c.l.b16 %v722
    %v2502 = vunpack.c.h.b16 %v722
    %v2503 = vunpack.c.l.b16 %v723
    %v2504 = vunpack.c.h.b16 %v723
    %v2505 = vunpack.c.l.b16 %v724
    %v2506 = vunpack.c.h.b16 %v724
    %v2507 = vunpack.c.l.b16 %v725
    %v2508 = vunpack.c.h.b16 %v725
    %v2509 = vunpack.c.l.b16 %v726
    %v2510 = vunpack.c.h.b16 %v726
    %v2511 = vunpack.c.l.b16 %v727
    %v2512 = vunpack.c.h.b16 %v727
    %v2513 = vunpack.c.l.b16 %v728
    %v2514 = vunpack.c.h.b16 %v728
    %v2515 = vunpack.c.l.b16 %v729
    %v2516 = vunpack.c.h.b16 %v729
    %v2517 = vunpack.c.l.b16 %v730
    %v2518 = vunpack.c.h.b16 %v730
    %v2519 = vunpack.c.l.b16 %v731
    %v2520 = vunpack.c.h.b16 %v731
    %v2521 = vunpack.c.l.b16 %v732
    %v2522 = vunpack.c.h.b16 %v732
    %v2523 = vunpack.c.l.b16 %v733
    %v2524 = vunpack.c.h.b16 %v733
    %v2525 = vunpack.c.l.b16 %v734
    %v2526 = vunpack.c.h.b16 %v734
    %v2527 = vunpack.c.l.b16 %v735
    %v2528 = vunpack.c.h.b16 %v735
    %v2529 = vunpack.c.l.b16 %v736
    %v2530 = vunpack.c.h.b16 %v736
    %v2531 = vunpack.c.l.b16 %v737
    %v2532 = vunpack.c.h.b16 %v737
    %v2533 = vunpack.c.l.b16 %v738
    %v2534 = vunpack.c.h.b16 %v738
    %v2535 = vunpack.c.l.b16 %v739
    %v2536 = vunpack.c.h.b16 %v739
    %v2537 = vunpack.c.l.b16 %v740
    %v2538 = vunpack.c.h.b16 %v740
    %v2539 = vunpack.c.l.b16 %v741
    %v2540 = vunpack.c.h.b16 %v741
    %v2541 = vunpack.c.l.b16 %v742
    %v2542 = vunpack.c.h.b16 %v742
    %v2543 = vunpack.c.l.b16 %v743
    %v2544 = vunpack.c.h.b16 %v743
    %v2545 = vunpack.c.l.b16 %v744
    %v2546 = vunpack.c.h.b16 %v744
    %v2547 = vunpack.c.l.b16 %v745
    %v2548 = vunpack.c.h.b16 %v745
    %v2549 = vunpack.c.l.b16 %v746
    %v2550 = vunpack.c.h.b16 %v746
    %v2551 = vunpack.c.l.b16 %v747
    %v2552 = vunpack.c.h.b16 %v747
    %v2553 = vunpack.c.l.b16 %v748
    %v2554 = vunpack.c.h.b16 %v748
    %v2555 = vunpack.c.l.b16 %v749
    %v2556 = vunpack.c.h.b16 %v749
    %v2557 = vunpack.c.l.b16 %v750
    %v2558 = vunpack.c.h.b16 %v750
    %v2559 = vunpack.c.l.b16 %v751
    %v2560 = vunpack.c.h.b16 %v751
    %v2561 = vunpack.c.l.b16 %v752
    %v2562 = vunpack.c.h.b16 %v752
    %v2563 = vunpack.c.l.b16 %v753
    %v2564 = vunpack.c.h.b16 %v753
    %v2565 = vunpack.c.l.b16 %v754
    %v2566 = vunpack.c.h.b16 %v754
    %v2567 = vunpack.c.l.b16 %v755
    %v2568 = vunpack.c.h.b16 %v755
    %v2569 = vunpack.c.l.b16 %v756
    %v2570 = vunpack.c.h.b16 %v756
    %v2571 = vunpack.c.l.b16 %v757
    %v2572 = vunpack.c.h.b16 %v757
    %v2573 = vunpack.c.l.b16 %v758
    %v2574 = vunpack.c.h.b16 %v758
    %v2575 = vunpack.c.l.b16 %v759
    %v2576 = vunpack.c.h.b16 %v759
    %v2577 = vunpack.c.l.b16 %v760
    %v2578 = vunpack.c.h.b16 %v760
    %v2579 = vunpack.c.l.b16 %v761
    %v2580 = vunpack.c.h.b16 %v761
    %v2581 = vunpack.c.l.b16 %v762
    %v2582 = vunpack.c.h.b16 %v762
    %v2583 = vunpack.c.l.b16 %v763
    %v2584 = vunpack.c.h.b16 %v763
    %v2585 = vunpack.c.l.b16 %v764
    %v2586 = vunpack.c.h.b16 %v764
    %v2587 = vunpack.c.l.b16 %v765
    %v2588 = vunpack.c.h.b16 %v765
    %v2589 = vunpack.c.l.b16 %v766
    %v2590 = vunpack.c.h.b16 %v766
    %v2591 = vunpack.c.l.b16 %v767
    %v2592 = vunpack.c.h.b16 %v767
    %v2593 = vunpack.c.l.b16 %v768
    %v2594 = vunpack.c.h.b16 %v768
    %v2595 = vunpack.c.l.b16 %v769
    %v2596 = vunpack.c.h.b16 %v769
    %v2597 = vunpack.c.l.b16 %v770
    %v2598 = vunpack.c.h.b16 %v770
    %v2599 = vunpack.c.l.b16 %v771
    %v2600 = vunpack.c.h.b16 %v771
    %v2601 = vunpack.c.l.b16 %v772
    %v2602 = vunpack.c.h.b16 %v772
    %v2603 = vunpack.c.l.b16 %v773
    %v2604 = vunpack.c.h.b16 %v773
    %v2605 = vunpack.c.l.b16 %v774
    %v2606 = vunpack.c.h.b16 %v774
    %v2607 = vunpack.c.l.b16 %v775
    %v2608 = vunpack.c.h.b16 %v775
    %v2609 = vunpack.c.l.b16 %v776
    %v2610 = vunpack.c.h.b16 %v776
    %v2611 = vunpack.c.l.b16 %v777
    %v2612 = vunpack.c.h.b16 %v777
    %v2613 = vunpack.c.l.b16 %v778
    %v2614 = vunpack.c.h.b16 %v778
    %v2615 = vunpack.c.l.b16 %v779
    %v2616 = vunpack.c.h.b16 %v779
    %v2617 = vunpack.c.l.b16 %v780
    %v2618 = vunpack.c.h.b16 %v780
    %v2619 = vunpack.c.l.b16 %v781
    %v2620 = vunpack.c.h.b16 %v781
    %v2621 = vunpack.c.l.b16 %v782
    %v2622 = vunpack.c.h.b16 %v782
    %v2623 = vunpack.c.l.b16 %v783
    %v2624 = vunpack.c.h.b16 %v783
    %v2625 = vunpack.c.l.b16 %v784
    %v2626 = vunpack.c.h.b16 %v784
    %v2627 = vunpack.c.l.b16 %v785
    %v2628 = vunpack.c.h.b16 %v785
    %v2629 = vunpack.c.l.b16 %v786
    %v2630 = vunpack.c.h.b16 %v786
    %v2631 = vunpack.c.l.b16 %v787
    %v2632 = vunpack.c.h.b16 %v787
    %v2633 = vunpack.c.l.b16 %v788
    %v2634 = vunpack.c.h.b16 %v788
    %v2635 = vunpack.c.l.b16 %v789
    %v2636 = vunpack.c.h.b16 %v789
    %v2637 = vunpack.c.l.b16 %v790
    %v2638 = vunpack.c.h.b16 %v790
    %v2639 = vunpack.c.l.b16 %v791
    %v2640 = vunpack.c.h.b16 %v791
    %v2641 = vunpack.c.l.b16 %v792
    %v2642 = vunpack.c.h.b16 %v792
    %v2643 = vunpack.c.l.b16 %v793
    %v2644 = vunpack.c.h.b16 %v793
    %v2645 = vunpack.c.l.b16 %v794
    %v2646 = vunpack.c.h.b16 %v794
    %v2647 = vunpack.c.l.b16 %v795
    %v2648 = vunpack.c.h.b16 %v795
    %v2649 = vunpack.c.l.b16 %v796
    %v2650 = vunpack.c.h.b16 %v796
    %v2651 = vunpack.c.l.b16 %v797
    %v2652 = vunpack.c.h.b16 %v797
    %v2653 = vunpack.c.l.b16 %v798
    %v2654 = vunpack.c.h.b16 %v798
    %v2655 = vunpack.c.l.b16 %v799
    %v2656 = vunpack.c.h.b16 %v799
    %v2657 = vunpack.c.l.b16 %v800
    %v2658 = vunpack.c.h.b16 %v800
    %v2659 = vunpack.c.l.b16 %v801
    %v2660 = vunpack.c.h.b16 %v801
    %v2661 = vunpack.c.l.b16 %v802
    %v2662 = vunpack.c.h.b16 %v802
    %v2663 = vunpack.c.l.b16 %v803
    %v2664 = vunpack.c.h.b16 %v803
    %v2665 = vunpack.c.l.b16 %v804
    %v2666 = vunpack.c.h.b16 %v804
    %v2667 = vunpack.c.l.b16 %v805
    %v2668 = vunpack.c.h.b16 %v805
    %v2669 = vunpack.c.l.b16 %v806
    %v2670 = vunpack.c.h.b16 %v806
    %v2671 = vunpack.c.l.b16 %v807
    %v2672 = vunpack.c.h.b16 %v807
    %v2673 = vunpack.c.l.b16 %v808
    %v2674 = vunpack.c.h.b16 %v808
    %v2675 = vunpack.c.l.b16 %v809
    %v2676 = vunpack.c.h.b16 %v809
    %v2677 = vunpack.c.l.b16 %v810
    %v2678 = vunpack.c.h.b16 %v810
    %v2679 = vunpack.c.l.b16 %v811
    %v2680 = vunpack.c.h.b16 %v811
    %v2681 = vunpack.c.l.b16 %v812
    %v2682 = vunpack.c.h.b16 %v812
    %v2683 = vunpack.c.l.b16 %v813
    %v2684 = vunpack.c.h.b16 %v813
    %v2685 = vunpack.c.l.b16 %v814
    %v2686 = vunpack.c.h.b16 %v814
    %v2687 = vunpack.c.l.b16 %v815
    %v2688 = vunpack.c.h.b16 %v815
    %v2689 = vunpack.c.l.b16 %v816
    %v2690 = vunpack.c.h.b16 %v816
    %v2691 = vunpack.c.l.b16 %v817
    %v2692 = vunpack.c.h.b16 %v817
    %v2693 = vunpack.c.l.b16 %v818
    %v2694 = vunpack.c.h.b16 %v818
    %v2695 = vunpack.c.l.b16 %v819
    %v2696 = vunpack.c.h.b16 %v819
    %v2697 = vunpack.c.l.b16 %v820
    %v2698 = vunpack.c.h.b16 %v820
    %v2699 = vunpack.c.l.b16 %v821
    %v2700 = vunpack.c.h.b16 %v821
    %v2701 = vunpack.c.l.b16 %v822
    %v2702 = vunpack.c.h.b16 %v822
    %v2703 = vunpack.c.l.b16 %v823
    %v2704 = vunpack.c.h.b16 %v823
    %v2705 = vunpack.c.l.b16 %v824
    %v2706 = vunpack.c.h.b16 %v824
    %v2707 = vunpack.c.l.b16 %v825
    %v2708 = vunpack.c.h.b16 %v825
    %v2709 = vunpack.c.l.b16 %v826
    %v2710 = vunpack.c.h.b16 %v826
    %v2711 = vunpack.c.l.b16 %v827
    %v2712 = vunpack.c.h.b16 %v827
    %v2713 = vunpack.c.l.b16 %v828
    %v2714 = vunpack.c.h.b16 %v828
    %v2715 = vunpack.c.l.b16 %v829
    %v2716 = vunpack.c.h.b16 %v829
    %v2717 = vunpack.c.l.b16 %v830
    %v2718 = vunpack.c.h.b16 %v830
    %v2719 = vunpack.c.l.b16 %v831
    %v2720 = vunpack.c.h.b16 %v831
    %v2721 = vunpack.c.l.b16 %v832
    %v2722 = vunpack.c.h.b16 %v832
    %v2723 = vunpack.c.l.b16 %v833
    %v2724 = vunpack.c.h.b16 %v833
    %v2725 = vunpack.c.l.b16 %v834
    %v2726 = vunpack.c.h.b16 %v834
    %v2727 = vunpack.c.l.b16 %v835
    %v2728 = vunpack.c.h.b16 %v835
    %v2729 = vunpack.c.l.b16 %v836
    %v2730 = vunpack.c.h.b16 %v836
    %v2731 = vunpack.c.l.b16 %v837
    %v2732 = vunpack.c.h.b16 %v837
    %v2733 = vunpack.c.l.b16 %v838
    %v2734 = vunpack.c.h.b16 %v838
    %v2735 = vunpack.c.l.b16 %v839
    %v2736 = vunpack.c.h.b16 %v839
    %v2737 = vunpack.c.l.b16 %v840
    %v2738 = vunpack.c.h.b16 %v840
    %v2739 = vunpack.c.l.b16 %v841
    %v2740 = vunpack.c.h.b16 %v841
    %v2741 = vunpack.c.l.b16 %v842
    %v2742 = vunpack.c.h.b16 %v842
    %v2743 = vunpack.c.l.b16 %v843
    %v2744 = vunpack.c.h.b16 %v843
    %v2745 = vunpack.c.l.b16 %v844
    %v2746 = vunpack.c.h.b16 %v844
    %v2747 = vunpack.c.l.b16 %v845
    %v2748 = vunpack.c.h.b16 %v845
    %v2749 = vunpack.c.l.b16 %v846
    %v2750 = vunpack.c.h.b16 %v846
    %v2751 = vunpack.c.l.b16 %v847
    %v2752 = vunpack.c.h.b16 %v847
    %v2753 = vunpack.c.l.b16 %v848
    %v2754 = vunpack.c.h.b16 %v848
    %v2755 = vunpack.c.l.b16 %v849
    %v2756 = vunpack.c.h.b16 %v849
    %v2757 = vunpack.c.l.b16 %v850
    %v2758 = vunpack.c.h.b16 %v850
    %v2759 = vunpack.c.l.b16 %v851
    %v2760 = vunpack.c.h.b16 %v851
    %v2761 = vunpack.c.l.b16 %v852
    %v2762 = vunpack.c.h.b16 %v852
    %v2763 = vunpack.c.l.b16 %v853
    %v2764 = vunpack.c.h.b16 %v853
    %v2765 = vunpack.c.l.b16 %v854
    %v2766 = vunpack.c.h.b16 %v854
    %v2767 = vunpack.c.l.b16 %v855
    %v2768 = vunpack.c.h.b16 %v855
    %v2769 = vunpack.c.l.b16 %v856
    %v2770 = vunpack.c.h.b16 %v856
    %v2771 = vunpack.c.l.b16 %v857
    %v2772 = vunpack.c.h.b16 %v857
    %v2773 = vunpack.c.l.b16 %v858
    %v2774 = vunpack.c.h.b16 %v858
    %v2775 = vunpack.c.l.b16 %v859
    %v2776 = vunpack.c.h.b16 %v859
    %v2777 = vunpack.c.l.b16 %v860
    %v2778 = vunpack.c.h.b16 %v860
    %v2779 = vunpack.c.l.b16 %v861
    %v2780 = vunpack.c.h.b16 %v861
    %v2781 = vunpack.c.l.b16 %v862
    %v2782 = vunpack.c.h.b16 %v862
    %v2783 = vunpack.c.l.b16 %v863
    %v2784 = vunpack.c.h.b16 %v863
    %v2785 = vunpack.c.l.b16 %v864
    %v2786 = vunpack.c.h.b16 %v864
    %v2787 = vunpack.c.l.b16 %v865
    %v2788 = vunpack.c.h.b16 %v865
    %v2789 = vunpack.c.l.b16 %v866
    %v2790 = vunpack.c.h.b16 %v866
    %v2791 = vunpack.c.l.b16 %v867
    %v2792 = vunpack.c.h.b16 %v867
    %v2793 = vunpack.c.l.b16 %v868
    %v2794 = vunpack.c.h.b16 %v868
    %v2795 = vunpack.c.l.b16 %v869
    %v2796 = vunpack.c.h.b16 %v869
    %v2797 = vunpack.c.l.b16 %v870
    %v2798 = vunpack.c.h.b16 %v870
    %v2799 = vunpack.c.l.b16 %v871
    %v2800 = vunpack.c.h.b16 %v871
    %v2801 = vunpack.c.l.b16 %v872
    %v2802 = vunpack.c.h.b16 %v872
    %v2803 = vunpack.c.l.b16 %v873
    %v2804 = vunpack.c.h.b16 %v873
    %v2805 = vunpack.c.l.b16 %v874
    %v2806 = vunpack.c.h.b16 %v874
    %v2807 = vunpack.c.l.b16 %v875
    %v2808 = vunpack.c.h.b16 %v875
    %v2809 = vunpack.c.l.b16 %v876
    %v2810 = vunpack.c.h.b16 %v876
    %v2811 = vunpack.c.l.b16 %v877
    %v2812 = vunpack.c.h.b16 %v877
    %v2813 = vunpack.c.l.b16 %v878
    %v2814 = vunpack.c.h.b16 %v878
    %v2815 = vunpack.c.l.b16 %v879
    %v2816 = vunpack.c.h.b16 %v879
    %v2817 = vunpack.c.l.b16 %v880
    %v2818 = vunpack.c.h.b16 %v880
    %v2819 = vunpack.c.l.b16 %v881
    %v2820 = vunpack.c.h.b16 %v881
    %v2821 = vunpack.c.l.b16 %v882
    %v2822 = vunpack.c.h.b16 %v882
    %v2823 = vunpack.c.l.b16 %v883
    %v2824 = vunpack.c.h.b16 %v883
    %v2825 = vunpack.c.l.b16 %v884
    %v2826 = vunpack.c.h.b16 %v884
    %v2827 = vunpack.c.l.b16 %v885
    %v2828 = vunpack.c.h.b16 %v885
    %v2829 = vunpack.c.l.b16 %v886
    %v2830 = vunpack.c.h.b16 %v886
    %v2831 = vunpack.c.l.b16 %v887
    %v2832 = vunpack.c.h.b16 %v887
    %v2833 = vunpack.c.l.b16 %v888
    %v2834 = vunpack.c.h.b16 %v888
    %v2835 = vunpack.c.l.b16 %v889
    %v2836 = vunpack.c.h.b16 %v889
    %v2837 = vunpack.c.l.b16 %v890
    %v2838 = vunpack.c.h.b16 %v890
    %v2839 = vunpack.c.l.b16 %v891
    %v2840 = vunpack.c.h.b16 %v891
    %v2841 = vunpack.c.l.b16 %v892
    %v2842 = vunpack.c.h.b16 %v892
    %v2843 = vunpack.c.l.b16 %v893
    %v2844 = vunpack.c.h.b16 %v893
    %v2845 = vunpack.c.l.b16 %v894
    %v2846 = vunpack.c.h.b16 %v894
    %v2847 = vunpack.c.l.b16 %v895
    %v2848 = vunpack.c.h.b16 %v895
    %v2849 = vunpack.c.l.b16 %v896
    %v2850 = vunpack.c.h.b16 %v896
    %v2851 = vunpack.c.l.b16 %v897
    %v2852 = vunpack.c.h.b16 %v897
    %v2853 = vunpack.c.l.b16 %v898
    %v2854 = vunpack.c.h.b16 %v898
    %v2855 = vunpack.c.l.b16 %v899
    %v2856 = vunpack.c.h.b16 %v899
    %v2857 = vunpack.c.l.b16 %v900
    %v2858 = vunpack.c.h.b16 %v900
    %v2859 = vunpack.c.l.b16 %v901
    %v2860 = vunpack.c.h.b16 %v901
    %v2861 = vunpack.c.l.b16 %v902
    %v2862 = vunpack.c.h.b16 %v902
    %v2863 = vunpack.c.l.b16 %v903
    %v2864 = vunpack.c.h.b16 %v903
    %v2865 = vunpack.c.l.b16 %v904
    %v2866 = vunpack.c.h.b16 %v904
    %v2867 = vunpack.c.l.b16 %v905
    %v2868 = vunpack.c.h.b16 %v905
    %v2869 = vunpack.c.l.b16 %v906
    %v2870 = vunpack.c.h.b16 %v906
    %v2871 = vunpack.c.l.b16 %v907
    %v2872 = vunpack.c.h.b16 %v907
    %v2873 = vunpack.c.l.b16 %v908
    %v2874 = vunpack.c.h.b16 %v908
    %v2875 = vunpack.c.l.b16 %v909
    %v2876 = vunpack.c.h.b16 %v909
    %v2877 = vunpack.c.l.b16 %v910
    %v2878 = vunpack.c.h.b16 %v910
    %v2879 = vunpack.c.l.b16 %v911
    %v2880 = vunpack.c.h.b16 %v911
    %v2881 = vunpack.c.l.b16 %v912
    %v2882 = vunpack.c.h.b16 %v912
    %v2883 = vunpack.c.l.b16 %v913
    %v2884 = vunpack.c.h.b16 %v913
    %v2885 = vunpack.c.l.b16 %v914
    %v2886 = vunpack.c.h.b16 %v914
    %v2887 = vunpack.c.l.b16 %v915
    %v2888 = vunpack.c.h.b16 %v915
    %v2889 = vunpack.c.l.b16 %v916
    %v2890 = vunpack.c.h.b16 %v916
    %v2891 = vunpack.c.l.b16 %v917
    %v2892 = vunpack.c.h.b16 %v917
    %v2893 = vunpack.c.l.b16 %v918
    %v2894 = vunpack.c.h.b16 %v918
    %v2895 = vunpack.c.l.b16 %v919
    %v2896 = vunpack.c.h.b16 %v919
    %v2897 = vunpack.c.l.b16 %v920
    %v2898 = vunpack.c.h.b16 %v920
    %v2899 = vunpack.c.l.b16 %v921
    %v2900 = vunpack.c.h.b16 %v921
    %v2901 = vunpack.c.l.b16 %v922
    %v2902 = vunpack.c.h.b16 %v922
    %v2903 = vunpack.c.l.b16 %v923
    %v2904 = vunpack.c.h.b16 %v923
    %v2905 = vunpack.c.l.b16 %v924
    %v2906 = vunpack.c.h.b16 %v924
    %v2907 = vunpack.c.l.b16 %v925
    %v2908 = vunpack.c.h.b16 %v925
    %v2909 = vunpack.c.l.b16 %v926
    %v2910 = vunpack.c.h.b16 %v926
    %v2911 = vunpack.c.l.b16 %v927
    %v2912 = vunpack.c.h.b16 %v927
    %v2913 = vunpack.c.l.b16 %v928
    %v2914 = vunpack.c.h.b16 %v928
    %v2915 = vunpack.c.l.b16 %v929
    %v2916 = vunpack.c.h.b16 %v929
    %v2917 = vunpack.c.l.b16 %v930
    %v2918 = vunpack.c.h.b16 %v930
    %v2919 = vunpack.c.l.b16 %v931
    %v2920 = vunpack.c.h.b16 %v931
    %v2921 = vunpack.c.l.b16 %v932
    %v2922 = vunpack.c.h.b16 %v932
    %v2923 = vunpack.c.l.b16 %v933
    %v2924 = vunpack.c.h.b16 %v933
    %v2925 = vunpack.c.l.b16 %v934
    %v2926 = vunpack.c.h.b16 %v934
    %v2927 = vunpack.c.l.b16 %v935
    %v2928 = vunpack.c.h.b16 %v935
    %v2929 = vunpack.c.l.b16 %v936
    %v2930 = vunpack.c.h.b16 %v936
    %v2931 = vunpack.c.l.b16 %v937
    %v2932 = vunpack.c.h.b16 %v937
    %v2933 = vunpack.c.l.b16 %v938
    %v2934 = vunpack.c.h.b16 %v938
    %v2935 = vunpack.c.l.b16 %v939
    %v2936 = vunpack.c.h.b16 %v939
    %v2937 = vunpack.c.l.b16 %v940
    %v2938 = vunpack.c.h.b16 %v940
    %v2939 = vunpack.c.l.b16 %v941
    %v2940 = vunpack.c.h.b16 %v941
    %v2941 = vunpack.c.l.b16 %v942
    %v2942 = vunpack.c.h.b16 %v942
    %v2943 = vunpack.c.l.b16 %v943
    %v2944 = vunpack.c.h.b16 %v943
    %v2945 = vunpack.c.l.b16 %v944
    %v2946 = vunpack.c.h.b16 %v944
    %v2947 = vunpack.c.l.b16 %v945
    %v2948 = vunpack.c.h.b16 %v945
    %v2949 = vunpack.c.l.b16 %v946
    %v2950 = vunpack.c.h.b16 %v946
    %v2951 = vunpack.c.l.b16 %v947
    %v2952 = vunpack.c.h.b16 %v947
    %v2953 = vunpack.c.l.b16 %v948
    %v2954 = vunpack.c.h.b16 %v948
    %v2955 = vunpack.c.l.b16 %v949
    %v2956 = vunpack.c.h.b16 %v949
    %v2957 = vunpack.c.l.b16 %v950
    %v2958 = vunpack.c.h.b16 %v950
    %v2959 = vunpack.c.l.b16 %v951
    %v2960 = vunpack.c.h.b16 %v951
    %v2961 = vunpack.c.l.b16 %v952
    %v2962 = vunpack.c.h.b16 %v952
    %v2963 = vunpack.c.l.b16 %v953
    %v2964 = vunpack.c.h.b16 %v953
    %v2965 = vunpack.c.l.b16 %v954
    %v2966 = vunpack.c.h.b16 %v954
    %v2967 = vunpack.c.l.b16 %v955
    %v2968 = vunpack.c.h.b16 %v955
    %v2969 = vunpack.c.l.b16 %v956
    %v2970 = vunpack.c.h.b16 %v956
    %v2971 = vunpack.c.l.b16 %v957
    %v2972 = vunpack.c.h.b16 %v957
    %v2973 = vunpack.c.l.b16 %v958
    %v2974 = vunpack.c.h.b16 %v958
    %v2975 = vunpack.c.l.b16 %v959
    %v2976 = vunpack.c.h.b16 %v959
    %v2977 = vunpack.c.l.b16 %v960
    %v2978 = vunpack.c.h.b16 %v960
    %v2979 = vunpack.c.l.b16 %v961
    %v2980 = vunpack.c.h.b16 %v961
    %v2981 = vunpack.c.l.b16 %v962
    %v2982 = vunpack.c.h.b16 %v962
    %v2983 = vunpack.c.l.b16 %v963
    %v2984 = vunpack.c.h.b16 %v963
    %v2985 = vunpack.c.l.b16 %v964
    %v2986 = vunpack.c.h.b16 %v964
    %v2987 = vunpack.c.l.b16 %v965
    %v2988 = vunpack.c.h.b16 %v965
    %v2989 = vunpack.c.l.b16 %v966
    %v2990 = vunpack.c.h.b16 %v966
    %v2991 = vunpack.c.l.b16 %v967
    %v2992 = vunpack.c.h.b16 %v967
    %v2993 = vunpack.c.l.b16 %v968
    %v2994 = vunpack.c.h.b16 %v968
    %v2995 = vunpack.c.l.b16 %v969
    %v2996 = vunpack.c.h.b16 %v969
    %v2997 = vunpack.c.l.b16 %v970
    %v2998 = vunpack.c.h.b16 %v970
    %v2999 = vunpack.c.l.b16 %v971
    %v3000 = vunpack.c.h.b16 %v971
    %v3001 = vunpack.c.l.b16 %v972
    %v3002 = vunpack.c.h.b16 %v972
    %v3003 = vunpack.c.l.b16 %v973
    %v3004 = vunpack.c.h.b16 %v973
    %v3005 = vunpack.c.l.b16 %v974
    %v3006 = vunpack.c.h.b16 %v974
    %v3007 = vunpack.c.l.b16 %v975
    %v3008 = vunpack.c.h.b16 %v975
    %v3009 = vunpack.c.l.b16 %v976
    %v3010 = vunpack.c.h.b16 %v976
    %v3011 = vunpack.c.l.b16 %v977
    %v3012 = vunpack.c.h.b16 %v977
    %v3013 = vunpack.c.l.b16 %v978
    %v3014 = vunpack.c.h.b16 %v978
    %v3015 = vunpack.c.l.b16 %v979
    %v3016 = vunpack.c.h.b16 %v979
    %v3017 = vunpack.c.l.b16 %v980
    %v3018 = vunpack.c.h.b16 %v980
    %v3019 = vunpack.c.l.b16 %v981
    %v3020 = vunpack.c.h.b16 %v981
    %v3021 = vunpack.c.l.b16 %v982
    %v3022 = vunpack.c.h.b16 %v982
    %v3023 = vunpack.c.l.b16 %v983
    %v3024 = vunpack.c.h.b16 %v983
    %v3025 = vunpack.c.l.b16 %v984
    %v3026 = vunpack.c.h.b16 %v984
    %v3027 = vunpack.c.l.b16 %v985
    %v3028 = vunpack.c.h.b16 %v985
    %v3029 = vunpack.c.l.b16 %v986
    %v3030 = vunpack.c.h.b16 %v986
    %v3031 = vunpack.c.l.b16 %v987
    %v3032 = vunpack.c.h.b16 %v987
    %v3033 = vunpack.c.l.b16 %v988
    %v3034 = vunpack.c.h.b16 %v988
    %v3035 = vunpack.c.l.b16 %v989
    %v3036 = vunpack.c.h.b16 %v989
    %v3037 = vunpack.c.l.b16 %v990
    %v3038 = vunpack.c.h.b16 %v990
    %v3039 = vunpack.c.l.b16 %v991
    %v3040 = vunpack.c.h.b16 %v991
    %v3041 = vunpack.c.l.b16 %v992
    %v3042 = vunpack.c.h.b16 %v992
    %v3043 = vunpack.c.l.b16 %v993
    %v3044 = vunpack.c.h.b16 %v993
    %v3045 = vunpack.c.l.b16 %v994
    %v3046 = vunpack.c.h.b16 %v994
    %v3047 = vunpack.c.l.b16 %v995
    %v3048 = vunpack.c.h.b16 %v995
    %v3049 = vunpack.c.l.b16 %v996
    %v3050 = vunpack.c.h.b16 %v996
    %v3051 = vunpack.c.l.b16 %v997
    %v3052 = vunpack.c.h.b16 %v997
    %v3053 = vunpack.c.l.b16 %v998
    %v3054 = vunpack.c.h.b16 %v998
    %v3055 = vunpack.c.l.b16 %v999
    %v3056 = vunpack.c.h.b16 %v999
    %v3057 = vunpack.c.l.b16 %v1000
    %v3058 = vunpack.c.h.b16 %v1000
    %v3059 = vunpack.c.l.b16 %v1001
    %v3060 = vunpack.c.h.b16 %v1001
    %v3061 = vunpack.c.l.b16 %v1002
    %v3062 = vunpack.c.h.b16 %v1002
    %v3063 = vunpack.c.l.b16 %v1003
    %v3064 = vunpack.c.h.b16 %v1003
    %v3065 = vunpack.c.l.b16 %v1004
    %v3066 = vunpack.c.h.b16 %v1004
    %v3067 = vunpack.c.l.b16 %v1005
    %v3068 = vunpack.c.h.b16 %v1005
    %v3069 = vunpack.c.l.b16 %v1006
    %v3070 = vunpack.c.h.b16 %v1006
    %v3071 = vunpack.c.l.b16 %v1007
    %v3072 = vunpack.c.h.b16 %v1007
    %v3073 = vunpack.c.l.b16 %v1008
    %v3074 = vunpack.c.h.b16 %v1008
    %v3075 = vunpack.c.l.b16 %v1009
    %v3076 = vunpack.c.h.b16 %v1009
    %v3077 = vunpack.c.l.b16 %v1010
    %v3078 = vunpack.c.h.b16 %v1010
    %v3079 = vunpack.c.l.b16 %v1011
    %v3080 = vunpack.c.h.b16 %v1011
    %v3081 = vunpack.c.l.b16 %v1012
    %v3082 = vunpack.c.h.b16 %v1012
    %v3083 = vunpack.c.l.b16 %v1013
    %v3084 = vunpack.c.h.b16 %v1013
    %v3085 = vunpack.c.l.b16 %v1014
    %v3086 = vunpack.c.h.b16 %v1014
    %v3087 = vunpack.c.l.b16 %v1015
    %v3088 = vunpack.c.h.b16 %v1015
    %v3089 = vunpack.c.l.b16 %v1016
    %v3090 = vunpack.c.h.b16 %v1016
    %v3091 = vunpack.c.l.b16 %v1017
    %v3092 = vunpack.c.h.b16 %v1017
    %v3093 = vunpack.c.l.b16 %v1018
    %v3094 = vunpack.c.h.b16 %v1018
    %v3095 = vunpack.c.l.b16 %v1019
    %v3096 = vunpack.c.h.b16 %v1019
    %v3097 = vunpack.c.l.b16 %v1020
    %v3098 = vunpack.c.h.b16 %v1020
    %v3099 = vunpack.c.l.b16 %v1021
    %v3100 = vunpack.c.h.b16 %v1021
    %v3101 = vunpack.c.l.b16 %v1022
    %v3102 = vunpack.c.h.b16 %v1022
    %v3103 = vunpack.c.l.b16 %v1023
    %v3104 = vunpack.c.h.b16 %v1023
    %v3105 = vunpack.c.l.b16 %v1024
    %v3106 = vunpack.c.h.b16 %v1024
    %v3107 = vunpack.c.l.b16 %v1025
    %v3108 = vunpack.c.h.b16 %v1025
    %v3109 = vunpack.c.l.b16 %v1026
    %v3110 = vunpack.c.h.b16 %v1026
    %v3111 = vunpack.c.l.b16 %v1027
    %v3112 = vunpack.c.h.b16 %v1027
    %v3113 = vunpack.c.l.b16 %v1028
    %v3114 = vunpack.c.h.b16 %v1028
    %v3115 = vunpack.c.l.b16 %v1029
    %v3116 = vunpack.c.h.b16 %v1029
    %v3117 = vunpack.c.l.b16 %v1030
    %v3118 = vunpack.c.h.b16 %v1030
    %v3119 = vunpack.c.l.b16 %v1031
    %v3120 = vunpack.c.h.b16 %v1031
    %v3121 = vunpack.c.l.b16 %v1032
    %v3122 = vunpack.c.h.b16 %v1032
    %v3123 = vunpack.c.l.b16 %v1033
    %v3124 = vunpack.c.h.b16 %v1033
    %v3125 = vunpack.c.l.b16 %v1034
    %v3126 = vunpack.c.h.b16 %v1034
    %v3127 = vunpack.c.l.b16 %v1035
    %v3128 = vunpack.c.h.b16 %v1035
    %v3129 = vunpack.c.l.b16 %v1036
    %v3130 = vunpack.c.h.b16 %v1036
    %v3131 = vunpack.c.l.b16 %v1037
    %v3132 = vunpack.c.h.b16 %v1037
    %v3133 = vunpack.c.l.b16 %v1038
    %v3134 = vunpack.c.h.b16 %v1038
    %v3135 = vunpack.c.l.b16 %v1039
    %v3136 = vunpack.c.h.b16 %v1039
    %v3137 = vunpack.c.l.b16 %v1040
    %v3138 = vunpack.c.h.b16 %v1040
    %v3139 = vunpack.c.l.b16 %v1041
    %v3140 = vunpack.c.h.b16 %v1041
    %v3141 = vunpack.c.l.b16 %v1042
    %v3142 = vunpack.c.h.b16 %v1042
    %v3143 = vunpack.c.l.b16 %v1043
    %v3144 = vunpack.c.h.b16 %v1043
    %v3145 = vunpack.c.l.b16 %v1044
    %v3146 = vunpack.c.h.b16 %v1044
    %v3147 = vunpack.c.l.b16 %v1045
    %v3148 = vunpack.c.h.b16 %v1045
    %v3149 = vunpack.c.l.b16 %v1046
    %v3150 = vunpack.c.h.b16 %v1046
    %v3151 = vunpack.c.l.b16 %v1047
    %v3152 = vunpack.c.h.b16 %v1047
    %v3153 = vunpack.c.l.b16 %v1048
    %v3154 = vunpack.c.h.b16 %v1048
    %v3155 = vunpack.c.l.b16 %v1049
    %v3156 = vunpack.c.h.b16 %v1049
    %v3157 = vunpack.c.l.b16 %v1050
    %v3158 = vunpack.c.h.b16 %v1050
    %v3159 = vunpack.c.l.b16 %v1051
    %v3160 = vunpack.c.h.b16 %v1051
    %v3161 = vunpack.c.l.b16 %v1052
    %v3162 = vunpack.c.h.b16 %v1052
    %v3163 = vunpack.c.l.b16 %v1053
    %v3164 = vunpack.c.h.b16 %v1053
    %v3165 = vunpack.c.l.b16 %v1054
    %v3166 = vunpack.c.h.b16 %v1054
    %v3167 = vunpack.c.l.b16 %v1055
    %v3168 = vunpack.c.h.b16 %v1055
    %v3169 = vunpack.c.l.b16 %v1056
    %v3170 = vunpack.c.h.b16 %v1056
    %v3171 = vunpack.c.l.b16 %v1057
    %v3172 = vunpack.c.h.b16 %v1057
    %v3173 = vunpack.c.l.b16 %v1058
    %v3174 = vunpack.c.h.b16 %v1058
    %v3175 = vunpack.c.l.b16 %v1059
    %v3176 = vunpack.c.h.b16 %v1059
    %v3177 = vunpack.c.l.b16 %v1060
    %v3178 = vunpack.c.h.b16 %v1060
    %v3179 = vunpack.c.l.b16 %v1061
    %v3180 = vunpack.c.h.b16 %v1061
    %v3181 = vunpack.c.l.b16 %v1062
    %v3182 = vunpack.c.h.b16 %v1062
    %v3183 = vunpack.c.l.b16 %v1063
    %v3184 = vunpack.c.h.b16 %v1063
    %v3185 = vunpack.c.l.b16 %v1064
    %v3186 = vunpack.c.h.b16 %v1064
    %v3187 = vunpack.c.l.b16 %v1065
    %v3188 = vunpack.c.h.b16 %v1065
    %v3189 = vunpack.c.l.b16 %v1066
    %v3190 = vunpack.c.h.b16 %v1066
    %v3191 = vunpack.c.l.b16 %v1067
    %v3192 = vunpack.c.h.b16 %v1067
    %v3193 = vunpack.c.l.b16 %v1068
    %v3194 = vunpack.c.h.b16 %v1068
    %v3195 = vunpack.c.l.b16 %v1069
    %v3196 = vunpack.c.h.b16 %v1069
    %v3197 = vunpack.c.l.b16 %v1070
    %v3198 = vunpack.c.h.b16 %v1070
    %v3199 = vunpack.c.l.b16 %v1071
    %v3200 = vunpack.c.h.b16 %v1071
    %v3201 = vunpack.c.l.b16 %v1072
    %v3202 = vunpack.c.h.b16 %v1072
    %v3203 = vunpack.c.l.b16 %v1073
    %v3204 = vunpack.c.h.b16 %v1073
    %v3205 = vunpack.c.l.b16 %v1074
    %v3206 = vunpack.c.h.b16 %v1074
    %v3207 = vunpack.c.l.b16 %v1075
    %v3208 = vunpack.c.h.b16 %v1075
    %v3209 = vunpack.c.l.b16 %v1076
    %v3210 = vunpack.c.h.b16 %v1076
    %v3211 = vunpack.c.l.b16 %v1077
    %v3212 = vunpack.c.h.b16 %v1077
    %v3213 = vunpack.c.l.b16 %v1078
    %v3214 = vunpack.c.h.b16 %v1078
    %v3215 = vunpack.c.l.b16 %v1079
    %v3216 = vunpack.c.h.b16 %v1079
    %v3217 = vunpack.c.l.b16 %v1080
    %v3218 = vunpack.c.h.b16 %v1080
    %v3219 = vunpack.c.l.b16 %v1081
    %v3220 = vunpack.c.h.b16 %v1081
    %v3221 = vunpack.c.l.b16 %v1082
    %v3222 = vunpack.c.h.b16 %v1082
    %v3223 = vunpack.c.l.b16 %v1083
    %v3224 = vunpack.c.h.b16 %v1083
    %v3225 = vunpack.c.l.b16 %v1084
    %v3226 = vunpack.c.h.b16 %v1084
    %v3227 = vunpack.c.l.b16 %v1085
    %v3228 = vunpack.c.h.b16 %v1085
    %v3229 = vunpack.c.l.b16 %v1086
    %v3230 = vunpack.c.h.b16 %v1086
    %v3231 = vunpack.c.l.b16 %v1087
    %v3232 = vunpack.c.h.b16 %v1087
    %v3233 = vunpack.c.l.b16 %v1088
    %v3234 = vunpack.c.h.b16 %v1088
    %v3235 = vunpack.c.l.b16 %v1089
    %v3236 = vunpack.c.h.b16 %v1089
    %v3237 = vunpack.c.l.b16 %v1090
    %v3238 = vunpack.c.h.b16 %v1090
    %v3239 = vunpack.c.l.b16 %v1091
    %v3240 = vunpack.c.h.b16 %v1091
    %v3241 = vunpack.c.l.b16 %v1092
    %v3242 = vunpack.c.h.b16 %v1092
    %v3243 = vunpack.c.l.b16 %v1093
    %v3244 = vunpack.c.h.b16 %v1093
    %v3245 = vunpack.c.l.b16 %v1094
    %v3246 = vunpack.c.h.b16 %v1094
    %v3247 = vunpack.c.l.b16 %v1095
    %v3248 = vunpack.c.h.b16 %v1095
    %v3249 = vunpack.c.l.b16 %v1096
    %v3250 = vunpack.c.h.b16 %v1096
    %v3251 = vunpack.c.l.b16 %v1097
    %v3252 = vunpack.c.h.b16 %v1097
    %v3253 = vunpack.c.l.b16 %v1098
    %v3254 = vunpack.c.h.b16 %v1098
    %v3255 = vunpack.c.l.b16 %v1099
    %v3256 = vunpack.c.h.b16 %v1099
    %v3257 = vunpack.c.l.b16 %v1100
    %v3258 = vunpack.c.h.b16 %v1100
    %v3259 = vunpack.c.l.b16 %v1101
    %v3260 = vunpack.c.h.b16 %v1101
    %v3261 = vunpack.c.l.b16 %v1102
    %v3262 = vunpack.c.h.b16 %v1102
    %v3263 = vunpack.c.l.b16 %v1103
    %v3264 = vunpack.c.h.b16 %v1103
    %v3265 = vunpack.c.l.b16 %v1104
    %v3266 = vunpack.c.h.b16 %v1104
    %v3267 = vunpack.c.l.b16 %v1105
    %v3268 = vunpack.c.h.b16 %v1105
    %v3269 = vunpack.c.l.b16 %v1106
    %v3270 = vunpack.c.h.b16 %v1106
    %v3271 = vunpack.c.l.b16 %v1107
    %v3272 = vunpack.c.h.b16 %v1107
    %v3273 = vunpack.c.l.b16 %v1108
    %v3274 = vunpack.c.h.b16 %v1108
    %v3275 = vunpack.c.l.b16 %v1109
    %v3276 = vunpack.c.h.b16 %v1109
    %v3277 = vunpack.c.l.b16 %v1110
    %v3278 = vunpack.c.h.b16 %v1110
    %v3279 = vunpack.c.l.b16 %v1111
    %v3280 = vunpack.c.h.b16 %v1111
    %v3281 = vunpack.c.l.b16 %v1112
    %v3282 = vunpack.c.h.b16 %v1112
    %v3283 = vunpack.c.l.b16 %v1113
    %v3284 = vunpack.c.h.b16 %v1113
    %v3285 = vunpack.c.l.b16 %v1114
    %v3286 = vunpack.c.h.b16 %v1114
    %v3287 = vunpack.c.l.b16 %v1115
    %v3288 = vunpack.c.h.b16 %v1115
    %v3289 = vunpack.c.l.b16 %v1116
    %v3290 = vunpack.c.h.b16 %v1116
    %v3291 = vunpack.c.l.b16 %v1117
    %v3292 = vunpack.c.h.b16 %v1117
    %v3293 = vunpack.c.l.b16 %v1118
    %v3294 = vunpack.c.h.b16 %v1118
    %v3295 = vunpack.c.l.b16 %v1119
    %v3296 = vunpack.c.h.b16 %v1119
    %v3297 = vunpack.c.l.b16 %v1120
    %v3298 = vunpack.c.h.b16 %v1120
    %v3299 = vunpack.c.l.b16 %v1121
    %v3300 = vunpack.c.h.b16 %v1121
    %v3301 = vunpack.c.l.b16 %v1122
    %v3302 = vunpack.c.h.b16 %v1122
    %v3303 = vunpack.c.l.b16 %v1123
    %v3304 = vunpack.c.h.b16 %v1123
    %v3305 = vunpack.c.l.b16 %v1124
    %v3306 = vunpack.c.h.b16 %v1124
    %v3307 = vunpack.c.l.b16 %v1125
    %v3308 = vunpack.c.h.b16 %v1125
    %v3309 = vunpack.c.l.b16 %v1126
    %v3310 = vunpack.c.h.b16 %v1126
    %v3311 = vunpack.c.l.b16 %v1127
    %v3312 = vunpack.c.h.b16 %v1127
    %v3313 = vunpack.c.l.b16 %v1128
    %v3314 = vunpack.c.h.b16 %v1128
    %v3315 = vunpack.c.l.b16 %v1129
    %v3316 = vunpack.c.h.b16 %v1129
    %v3317 = vunpack.c.l.b16 %v1130
    %v3318 = vunpack.c.h.b16 %v1130
    %v3319 = vunpack.c.l.b16 %v1131
    %v3320 = vunpack.c.h.b16 %v1131
    %v3321 = vunpack.c.l.b16 %v1132
    %v3322 = vunpack.c.h.b16 %v1132
    %v3323 = vunpack.c.l.b16 %v1133
    %v3324 = vunpack.c.h.b16 %v1133
    %v3325 = vunpack.c.l.b16 %v1134
    %v3326 = vunpack.c.h.b16 %v1134
    %v3327 = vunpack.c.l.b16 %v1135
    %v3328 = vunpack.c.h.b16 %v1135
    %v3329 = vunpack.c.l.b16 %v1136
    %v3330 = vunpack.c.h.b16 %v1136
    %v3331 = vunpack.c.l.b16 %v1137
    %v3332 = vunpack.c.h.b16 %v1137
    %v3333 = vunpack.c.l.b16 %v1138
    %v3334 = vunpack.c.h.b16 %v1138
    %v3335 = vunpack.c.l.b16 %v1139
    %v3336 = vunpack.c.h.b16 %v1139
    %v3337 = vunpack.c.l.b16 %v1140
    %v3338 = vunpack.c.h.b16 %v1140
    %v3339 = vunpack.c.l.b16 %v1141
    %v3340 = vunpack.c.h.b16 %v1141
    %v3341 = vunpack.c.l.b16 %v1142
    %v3342 = vunpack.c.h.b16 %v1142
    %v3343 = vunpack.c.l.b16 %v1143
    %v3344 = vunpack.c.h.b16 %v1143
    %v3345 = vunpack.c.l.b16 %v1144
    %v3346 = vunpack.c.h.b16 %v1144
    %v3347 = vunpack.c.l.b16 %v1145
    %v3348 = vunpack.c.h.b16 %v1145
    %v3349 = vunpack.c.l.b16 %v1146
    %v3350 = vunpack.c.h.b16 %v1146
    %v3351 = vunpack.c.l.b16 %v1147
    %v3352 = vunpack.c.h.b16 %v1147
    %v3353 = vunpack.c.l.b16 %v1148
    %v3354 = vunpack.c.h.b16 %v1148
    %v3355 = vunpack.c.l.b16 %v1149
    %v3356 = vunpack.c.h.b16 %v1149
    %v3357 = vunpack.c.l.b16 %v1150
    %v3358 = vunpack.c.h.b16 %v1150
    %v3359 = vunpack.c.l.b16 %v1151
    %v3360 = vunpack.c.h.b16 %v1151
    %v3361 = vunpack.c.l.b16 %v1152
    %v3362 = vunpack.c.h.b16 %v1152
    %v3363 = vunpack.c.l.b16 %v1153
    %v3364 = vunpack.c.h.b16 %v1153
    %v3365 = vunpack.c.l.b16 %v1154
    %v3366 = vunpack.c.h.b16 %v1154
    %v3367 = vunpack.c.l.b16 %v1155
    %v3368 = vunpack.c.h.b16 %v1155
    %v3369 = vunpack.c.l.b16 %v1156
    %v3370 = vunpack.c.h.b16 %v1156
    %v3371 = vunpack.c.l.b16 %v1157
    %v3372 = vunpack.c.h.b16 %v1157
    %v3373 = vunpack.c.l.b16 %v1158
    %v3374 = vunpack.c.h.b16 %v1158
    %v3375 = vunpack.c.l.b16 %v1159
    %v3376 = vunpack.c.h.b16 %v1159
    %v3377 = vunpack.c.l.b16 %v1160
    %v3378 = vunpack.c.h.b16 %v1160
    %v3379 = vunpack.c.l.b16 %v1161
    %v3380 = vunpack.c.h.b16 %v1161
    %v3381 = vunpack.c.l.b16 %v1162
    %v3382 = vunpack.c.h.b16 %v1162
    %v3383 = vunpack.c.l.b16 %v1163
    %v3384 = vunpack.c.h.b16 %v1163
    %v3385 = vunpack.c.l.b16 %v1164
    %v3386 = vunpack.c.h.b16 %v1164
    %v3387 = vunpack.c.l.b16 %v1165
    %v3388 = vunpack.c.h.b16 %v1165
    %v3389 = vunpack.c.l.b16 %v1166
    %v3390 = vunpack.c.h.b16 %v1166
    %v3391 = vunpack.c.l.b16 %v1167
    %v3392 = vunpack.c.h.b16 %v1167
    %v3393 = vunpack.c.l.b16 %v1168
    %v3394 = vunpack.c.h.b16 %v1168
    %v3395 = vunpack.c.l.b16 %v1169
    %v3396 = vunpack.c.h.b16 %v1169
    %v3397 = vunpack.c.l.b16 %v1170
    %v3398 = vunpack.c.h.b16 %v1170
    %v3399 = vunpack.c.l.b16 %v1171
    %v3400 = vunpack.c.h.b16 %v1171
    %v3401 = vunpack.c.l.b16 %v1172
    %v3402 = vunpack.c.h.b16 %v1172
    %v3403 = vunpack.c.l.b16 %v1173
    %v3404 = vunpack.c.h.b16 %v1173
    %v3405 = vunpack.c.l.b16 %v1174
    %v3406 = vunpack.c.h.b16 %v1174
    %v3407 = vunpack.c.l.b16 %v1175
    %v3408 = vunpack.c.h.b16 %v1175
    %v3409 = vunpack.c.l.b16 %v1176
    %v3410 = vunpack.c.h.b16 %v1176
    %v3411 = vunpack.c.l.b16 %v1177
    %v3412 = vunpack.c.h.b16 %v1177
    %v3413 = vunpack.c.l.b16 %v1178
    %v3414 = vunpack.c.h.b16 %v1178
    %v3415 = vunpack.c.l.b16 %v1179
    %v3416 = vunpack.c.h.b16 %v1179
    %v3417 = vunpack.c.l.b16 %v1180
    %v3418 = vunpack.c.h.b16 %v1180
    %v3419 = vunpack.c.l.b16 %v1181
    %v3420 = vunpack.c.h.b16 %v1181
    %v3421 = vunpack.c.l.b16 %v1182
    %v3422 = vunpack.c.h.b16 %v1182
    %v3423 = vunpack.c.l.b16 %v1183
    %v3424 = vunpack.c.h.b16 %v1183
    %v3425 = vunpack.c.l.b16 %v1184
    %v3426 = vunpack.c.h.b16 %v1184
    %v3427 = vunpack.c.l.b16 %v1185
    %v3428 = vunpack.c.h.b16 %v1185
    %v3429 = vunpack.c.l.b16 %v1186
    %v3430 = vunpack.c.h.b16 %v1186
    %v3431 = vunpack.c.l.b16 %v1187
    %v3432 = vunpack.c.h.b16 %v1187
    %v3433 = vunpack.c.l.b16 %v1188
    %v3434 = vunpack.c.h.b16 %v1188
    %v3435 = vunpack.c.l.b16 %v1189
    %v3436 = vunpack.c.h.b16 %v1189
    %v3437 = vunpack.c.l.b16 %v1190
    %v3438 = vunpack.c.h.b16 %v1190
    %v3439 = vunpack.c.l.b16 %v1191
    %v3440 = vunpack.c.h.b16 %v1191
    %v3441 = vunpack.c.l.b16 %v1192
    %v3442 = vunpack.c.h.b16 %v1192
    %v3443 = vunpack.c.l.b16 %v1193
    %v3444 = vunpack.c.h.b16 %v1193
    %v3445 = vunpack.c.l.b16 %v1194
    %v3446 = vunpack.c.h.b16 %v1194
    %v3447 = vunpack.c.l.b16 %v1195
    %v3448 = vunpack.c.h.b16 %v1195
    %v3449 = vunpack.c.l.b16 %v1196
    %v3450 = vunpack.c.h.b16 %v1196
    %v3451 = vunpack.c.l.b16 %v1197
    %v3452 = vunpack.c.h.b16 %v1197
    %v3453 = vunpack.c.l.b16 %v1198
    %v3454 = vunpack.c.h.b16 %v1198
    %v3455 = vunpack.c.l.b16 %v1199
    %v3456 = vunpack.c.h.b16 %v1199
    %v3457 = vunpack.c.l.b16 %v1200
    %v3458 = vunpack.c.h.b16 %v1200
    %v3459 = vunpack.c.l.b16 %v1201
    %v3460 = vunpack.c.h.b16 %v1201
    %v3461 = vunpack.c.l.b16 %v1202
    %v3462 = vunpack.c.h.b16 %v1202
    %v3463 = vunpack.c.l.b16 %v1203
    %v3464 = vunpack.c.h.b16 %v1203
    %v3465 = vunpack.c.l.b16 %v1204
    %v3466 = vunpack.c.h.b16 %v1204
    %v3467 = vunpack.c.l.b16 %v1205
    %v3468 = vunpack.c.h.b16 %v1205
    %v3469 = vunpack.c.l.b16 %v1206
    %v3470 = vunpack.c.h.b16 %v1206
    %v3471 = vunpack.c.l.b16 %v1207
    %v3472 = vunpack.c.h.b16 %v1207
    %v3473 = vunpack.c.l.b16 %v1208
    %v3474 = vunpack.c.h.b16 %v1208
    %v3475 = vunpack.c.l.b16 %v1209
    %v3476 = vunpack.c.h.b16 %v1209
    %v3477 = vunpack.c.l.b16 %v1210
    %v3478 = vunpack.c.h.b16 %v1210
    %v3479 = vunpack.c.l.b16 %v1211
    %v3480 = vunpack.c.h.b16 %v1211
    %v3481 = vunpack.c.l.b16 %v1212
    %v3482 = vunpack.c.h.b16 %v1212
    %v3483 = vunpack.c.l.b16 %v1213
    %v3484 = vunpack.c.h.b16 %v1213
    %v3485 = vunpack.c.l.b16 %v1214
    %v3486 = vunpack.c.h.b16 %v1214
    %v3487 = vunpack.c.l.b16 %v1215
    %v3488 = vunpack.c.h.b16 %v1215
    %v3489 = vunpack.c.l.b16 %v1216
    %v3490 = vunpack.c.h.b16 %v1216
    %v3491 = vunpack.c.l.b16 %v1217
    %v3492 = vunpack.c.h.b16 %v1217
    %v3493 = vunpack.c.l.b16 %v1218
    %v3494 = vunpack.c.h.b16 %v1218
    %v3495 = vunpack.c.l.b16 %v1219
    %v3496 = vunpack.c.h.b16 %v1219
    %v3497 = vunpack.c.l.b16 %v1220
    %v3498 = vunpack.c.h.b16 %v1220
    %v3499 = vunpack.c.l.b16 %v1221
    %v3500 = vunpack.c.h.b16 %v1221
    %v3501 = vunpack.c.l.b16 %v1222
    %v3502 = vunpack.c.h.b16 %v1222
    %v3503 = vunpack.c.l.b16 %v1223
    %v3504 = vunpack.c.h.b16 %v1223
    %v3505 = vunpack.c.l.b16 %v1224
    %v3506 = vunpack.c.h.b16 %v1224
    %v3507 = vunpack.c.l.b16 %v1225
    %v3508 = vunpack.c.h.b16 %v1225
    %v3509 = vunpack.c.l.b16 %v1226
    %v3510 = vunpack.c.h.b16 %v1226
    %v3511 = vunpack.c.l.b16 %v1227
    %v3512 = vunpack.c.h.b16 %v1227
    %v3513 = vunpack.c.l.b16 %v1228
    %v3514 = vunpack.c.h.b16 %v1228
    %v3515 = vunpack.c.l.b16 %v1229
    %v3516 = vunpack.c.h.b16 %v1229
    %v3517 = vunpack.c.l.b16 %v1230
    %v3518 = vunpack.c.h.b16 %v1230
    %v3519 = vunpack.c.l.b16 %v1231
    %v3520 = vunpack.c.h.b16 %v1231
    %v3521 = vunpack.c.l.b16 %v1232
    %v3522 = vunpack.c.h.b16 %v1232
    %v3523 = vunpack.c.l.b16 %v1233
    %v3524 = vunpack.c.h.b16 %v1233
    %v3525 = vunpack.c.l.b16 %v1234
    %v3526 = vunpack.c.h.b16 %v1234
    %v3527 = vunpack.c.l.b16 %v1235
    %v3528 = vunpack.c.h.b16 %v1235
    %v3529 = vunpack.c.l.b16 %v1236
    %v3530 = vunpack.c.h.b16 %v1236
    %v3531 = vunpack.c.l.b16 %v1237
    %v3532 = vunpack.c.h.b16 %v1237
    %v3533 = vunpack.c.l.b16 %v1238
    %v3534 = vunpack.c.h.b16 %v1238
    %v3535 = vunpack.c.l.b16 %v1239
    %v3536 = vunpack.c.h.b16 %v1239
    %v3537 = vunpack.c.l.b16 %v1240
    %v3538 = vunpack.c.h.b16 %v1240
    %v3539 = vunpack.c.l.b16 %v1241
    %v3540 = vunpack.c.h.b16 %v1241
    %v3541 = vunpack.c.l.b16 %v1242
    %v3542 = vunpack.c.h.b16 %v1242
    %v3543 = vunpack.c.l.b16 %v1243
    %v3544 = vunpack.c.h.b16 %v1243
    %v3545 = vunpack.c.l.b16 %v1244
    %v3546 = vunpack.c.h.b16 %v1244
    %v3547 = vunpack.c.l.b16 %v1245
    %v3548 = vunpack.c.h.b16 %v1245
    %v3549 = vunpack.c.l.b16 %v1246
    %v3550 = vunpack.c.h.b16 %v1246
    %v3551 = vunpack.c.l.b16 %v1247
    %v3552 = vunpack.c.h.b16 %v1247
    %v3553 = vunpack.c.l.b16 %v1248
    %v3554 = vunpack.c.h.b16 %v1248
    %v3555 = vunpack.c.l.b16 %v1249
    %v3556 = vunpack.c.h.b16 %v1249
    %v3557 = vunpack.c.l.b16 %v1250
    %v3558 = vunpack.c.h.b16 %v1250
    %v3559 = vunpack.c.l.b16 %v1251
    %v3560 = vunpack.c.h.b16 %v1251
    %v3561 = vunpack.c.l.b16 %v1252
    %v3562 = vunpack.c.h.b16 %v1252
    %v3563 = vunpack.c.l.b16 %v1253
    %v3564 = vunpack.c.h.b16 %v1253
    %v3565 = vunpack.c.l.b16 %v1254
    %v3566 = vunpack.c.h.b16 %v1254
    %v3567 = vunpack.c.l.b16 %v1255
    %v3568 = vunpack.c.h.b16 %v1255
    %v3569 = vunpack.c.l.b16 %v1256
    %v3570 = vunpack.c.h.b16 %v1256
    %v3571 = vunpack.c.l.b16 %v1257
    %v3572 = vunpack.c.h.b16 %v1257
    %v3573 = vunpack.c.l.b16 %v1258
    %v3574 = vunpack.c.h.b16 %v1258
    %v3575 = vunpack.c.l.b16 %v1259
    %v3576 = vunpack.c.h.b16 %v1259
    %v3577 = vunpack.c.l.b16 %v1260
    %v3578 = vunpack.c.h.b16 %v1260
    %v3579 = vunpack.c.l.b16 %v1261
    %v3580 = vunpack.c.h.b16 %v1261
    %v3581 = vunpack.c.l.b16 %v1262
    %v3582 = vunpack.c.h.b16 %v1262
    %v3583 = vunpack.c.l.b16 %v1263
    %v3584 = vunpack.c.h.b16 %v1263
    %v3585 = vunpack.c.l.b16 %v1264
    %v3586 = vunpack.c.h.b16 %v1264
    %v3587 = vunpack.c.l.b16 %v1265
    %v3588 = vunpack.c.h.b16 %v1265
    %v3589 = vunpack.c.l.b16 %v1266
    %v3590 = vunpack.c.h.b16 %v1266
    %v3591 = vunpack.c.l.b16 %v1267
    %v3592 = vunpack.c.h.b16 %v1267
    %v3593 = vunpack.c.l.b16 %v1268
    %v3594 = vunpack.c.h.b16 %v1268
    %v3595 = vunpack.c.l.b16 %v1269
    %v3596 = vunpack.c.h.b16 %v1269
    %v3597 = vunpack.c.l.b16 %v1270
    %v3598 = vunpack.c.h.b16 %v1270
    %v3599 = vunpack.c.l.b16 %v1271
    %v3600 = vunpack.c.h.b16 %v1271
    %v3601 = vunpack.c.l.b16 %v1272
    %v3602 = vunpack.c.h.b16 %v1272
    %v3603 = vunpack.c.l.b16 %v1273
    %v3604 = vunpack.c.h.b16 %v1273
    %v3605 = vunpack.c.l.b16 %v1274
    %v3606 = vunpack.c.h.b16 %v1274
    %v3607 = vunpack.c.l.b16 %v1275
    %v3608 = vunpack.c.h.b16 %v1275
    %v3609 = vunpack.c.l.b16 %v1276
    %v3610 = vunpack.c.h.b16 %v1276
    %v3611 = vunpack.c.l.b16 %v1277
    %v3612 = vunpack.c.h.b16 %v1277
    %v3613 = vunpack.c.l.b16 %v1278
    %v3614 = vunpack.c.h.b16 %v1278
    %v3615 = vunpack.c.l.b16 %v1279
    %v3616 = vunpack.c.h.b16 %v1279
    %v3617 = vunpack.c.l.b16 %v1280
    %v3618 = vunpack.c.h.b16 %v1280
    %v3619 = vunpack.c.l.b16 %v1281
    %v3620 = vunpack.c.h.b16 %v1281
    %v3621 = vunpack.c.l.b16 %v1282
    %v3622 = vunpack.c.h.b16 %v1282
    %v3623 = vunpack.c.l.b16 %v1283
    %v3624 = vunpack.c.h.b16 %v1283
    %v3625 = vunpack.c.l.b16 %v1284
    %v3626 = vunpack.c.h.b16 %v1284
    %v3627 = vunpack.c.l.b16 %v1285
    %v3628 = vunpack.c.h.b16 %v1285
    %v3629 = vunpack.c.l.b16 %v1286
    %v3630 = vunpack.c.h.b16 %v1286
    %v3631 = vunpack.c.l.b16 %v1287
    %v3632 = vunpack.c.h.b16 %v1287
    %v3633 = vunpack.c.l.b16 %v1288
    %v3634 = vunpack.c.h.b16 %v1288
    %v3635 = vunpack.c.l.b16 %v1289
    %v3636 = vunpack.c.h.b16 %v1289
    %v3637 = vunpack.c.l.b16 %v1290
    %v3638 = vunpack.c.h.b16 %v1290
    %v3639 = vunpack.c.l.b16 %v1291
    %v3640 = vunpack.c.h.b16 %v1291
    %v3641 = vunpack.c.l.b16 %v1292
    %v3642 = vunpack.c.h.b16 %v1292
    %v3643 = vunpack.c.l.b16 %v1293
    %v3644 = vunpack.c.h.b16 %v1293
    %v3645 = vunpack.c.l.b16 %v1294
    %v3646 = vunpack.c.h.b16 %v1294
    %v3647 = vunpack.c.l.b16 %v1295
    %v3648 = vunpack.c.h.b16 %v1295
    %v3649 = vunpack.c.l.b16 %v1296
    %v3650 = vunpack.c.h.b16 %v1296
    %v3651 = vunpack.c.l.b16 %v1297
    %v3652 = vunpack.c.h.b16 %v1297
    %v3653 = vunpack.c.l.b16 %v1298
    %v3654 = vunpack.c.h.b16 %v1298
    %v3655 = vunpack.c.l.b16 %v1299
    %v3656 = vunpack.c.h.b16 %v1299
    %v3657 = vunpack.c.l.b16 %v1300
    %v3658 = vunpack.c.h.b16 %v1300
    %v3659 = vunpack.c.l.b16 %v1301
    %v3660 = vunpack.c.h.b16 %v1301
    %v3661 = vpack.c.b16 %v2109, %v2093
    %v3662 = vpack.c.b16 %v2110, %v2094
    %v3663 = vpack.c.b16 %v2111, %v2095
    %v3664 = vpack.c.b16 %v2112, %v2096
    %v3665 = vpack.c.b16 %v2113, %v2097
    %v3666 = vpack.c.b16 %v2114, %v2098
    %v3667 = vpack.c.b16 %v2115, %v2099
    %v3668 = vpack.c.b16 %v2116, %v2100
    %v3669 = vpack.c.b16 %v2117, %v2101
    %v3670 = vpack.c.b16 %v2118, %v2102
    %v3671 = vpack.c.b16 %v2119, %v2103
    %v3672 = vpack.c.b16 %v2120, %v2104
    %v3673 = vpack.c.b16 %v2121, %v2105
    %v3674 = vpack.c.b16 %v2122, %v2106
    %v3675 = vpack.c.b16 %v2123, %v2107
    %v3676 = vpack.c.b16 %v2124, %v2108
    %v3677 = vpack.c.b16 %v2141, %v2125
    %v3678 = vpack.c.b16 %v2142, %v2126
    %v3679 = vpack.c.b16 %v2143, %v2127
    %v3680 = vpack.c.b16 %v2144, %v2128
    %v3681 = vpack.c.b16 %v2145, %v2129
    %v3682 = vpack.c.b16 %v2146, %v2130
    %v3683 = vpack.c.b16 %v2147, %v2131
    %v3684 = vpack.c.b16 %v2148, %v2132
    %v3685 = vpack.c.b16 %v2149, %v2133
    %v3686 = vpack.c.b16 %v2150, %v2134
    %v3687 = vpack.c.b16 %v2151, %v2135
    %v3688 = vpack.c.b16 %v2152, %v2136
    %v3689 = vpack.c.b16 %v2153, %v2137
    %v3690 = vpack.c.b16 %v2154, %v2138
    %v3691 = vpack.c.b16 %v2155, %v2139
    %v3692 = vpack.c.b16 %v2156, %v2140
    %v3693 = vpack.c.b16 %v2173, %v2157
    %v3694 = vpack.c.b16 %v2174, %v2158
    %v3695 = vpack.c.b16 %v2175, %v2159
    %v3696 = vpack.c.b16 %v2176, %v2160
    %v3697 = vpack.c.b16 %v2177, %v2161
    %v3698 = vpack.c.b16 %v2178, %v2162
    %v3699 = vpack.c.b16 %v2179, %v2163
    %v3700 = vpack.c.b16 %v2180, %v2164
    %v3701 = vpack.c.b16 %v2181, %v2165
    %v3702 = vpack.c.b16 %v2182, %v2166
    %v3703 = vpack.c.b16 %v2183, %v2167
    %v3704 = vpack.c.b16 %v2184, %v2168
    %v3705 = vpack.c.b16 %v2185, %v2169
    %v3706 = vpack.c.b16 %v2186, %v2170
    %v3707 = vpack.c.b16 %v2187, %v2171
    %v3708 = vpack.c.b16 %v2188, %v2172
    %v3709 = vpack.c.b16 %v2205, %v2189
    %v3710 = vpack.c.b16 %v2206, %v2190
    %v3711 = vpack.c.b16 %v2207, %v2191
    %v3712 = vpack.c.b16 %v2208, %v2192
    %v3713 = vpack.c.b16 %v2209, %v2193
    %v3714 = vpack.c.b16 %v2210, %v2194
    %v3715 = vpack.c.b16 %v2211, %v2195
    %v3716 = vpack.c.b16 %v2212, %v2196
    %v3717 = vpack.c.b16 %v2213, %v2197
    %v3718 = vpack.c.b16 %v2214, %v2198
    %v3719 = vpack.c.b16 %v2215, %v2199
    %v3720 = vpack.c.b16 %v2216, %v2200
    %v3721 = vpack.c.b16 %v2217, %v2201
    %v3722 = vpack.c.b16 %v2218, %v2202
    %v3723 = vpack.c.b16 %v2219, %v2203
    %v3724 = vpack.c.b16 %v2220, %v2204
    %v3725 = vpack.c.b16 %v2237, %v2221
    %v3726 = vpack.c.b16 %v2238, %v2222
    %v3727 = vpack.c.b16 %v2239, %v2223
    %v3728 = vpack.c.b16 %v2240, %v2224
    %v3729 = vpack.c.b16 %v2241, %v2225
    %v3730 = vpack.c.b16 %v2242, %v2226
    %v3731 = vpack.c.b16 %v2243, %v2227
    %v3732 = vpack.c.b16 %v2244, %v2228
    %v3733 = vpack.c.b16 %v2245, %v2229
    %v3734 = vpack.c.b16 %v2246, %v2230
    %v3735 = vpack.c.b16 %v2247, %v2231
    %v3736 = vpack.c.b16 %v2248, %v2232
    %v3737 = vpack.c.b16 %v2249, %v2233
    %v3738 = vpack.c.b16 %v2250, %v2234
    %v3739 = vpack.c.b16 %v2251, %v2235
    %v3740 = vpack.c.b16 %v2252, %v2236
    %v3741 = vpack.c.b16 %v2269, %v2253
    %v3742 = vpack.c.b16 %v2270, %v2254
    %v3743 = vpack.c.b16 %v2271, %v2255
    %v3744 = vpack.c.b16 %v2272, %v2256
    %v3745 = vpack.c.b16 %v2273, %v2257
    %v3746 = vpack.c.b16 %v2274, %v2258
    %v3747 = vpack.c.b16 %v2275, %v2259
    %v3748 = vpack.c.b16 %v2276, %v2260
    %v3749 = vpack.c.b16 %v2277, %v2261
    %v3750 = vpack.c.b16 %v2278, %v2262
    %v3751 = vpack.c.b16 %v2279, %v2263
    %v3752 = vpack.c.b16 %v2280, %v2264
    %v3753 = vpack.c.b16 %v2281, %v2265
    %v3754 = vpack.c.b16 %v2282, %v2266
    %v3755 = vpack.c.b16 %v2283, %v2267
    %v3756 = vpack.c.b16 %v2284, %v2268
    %v3757 = vpack.c.b16 %v2301, %v2285
    %v3758 = vpack.c.b16 %v2302, %v2286
    %v3759 = vpack.c.b16 %v2303, %v2287
    %v3760 = vpack.c.b16 %v2304, %v2288
    %v3761 = vpack.c.b16 %v2305, %v2289
    %v3762 = vpack.c.b16 %v2306, %v2290
    %v3763 = vpack.c.b16 %v2307, %v2291
    %v3764 = vpack.c.b16 %v2308, %v2292
    %v3765 = vpack.c.b16 %v2309, %v2293
    %v3766 = vpack.c.b16 %v2310, %v2294
    %v3767 = vpack.c.b16 %v2311, %v2295
    %v3768 = vpack.c.b16 %v2312, %v2296
    %v3769 = vpack.c.b16 %v2313, %v2297
    %v3770 = vpack.c.b16 %v2314, %v2298
    %v3771 = vpack.c.b16 %v2315, %v2299
    %v3772 = vpack.c.b16 %v2316, %v2300
    %v3773 = vpack.c.b16 %v2333, %v2317
    %v3774 = vpack.c.b16 %v2334, %v2318
    %v3775 = vpack.c.b16 %v2335, %v2319
    %v3776 = vpack.c.b16 %v2336, %v2320
    %v3777 = vpack.c.b16 %v2337, %v2321
    %v3778 = vpack.c.b16 %v2338, %v2322
    %v3779 = vpack.c.b16 %v2339, %v2323
    %v3780 = vpack.c.b16 %v2340, %v2324
    %v3781 = vpack.c.b16 %v2341, %v2325
    %v3782 = vpack.c.b16 %v2342, %v2326
    %v3783 = vpack.c.b16 %v2343, %v2327
    %v3784 = vpack.c.b16 %v2344, %v2328
    %v3785 = vpack.c.b16 %v2345, %v2329
    %v3786 = vpack.c.b16 %v2346, %v2330
    %v3787 = vpack.c.b16 %v2347, %v2331
    %v3788 = vpack.c.b16 %v2348, %v2332
    %v3789 = vpack.c.b16 %v2365, %v2349
    %v3790 = vpack.c.b16 %v2366, %v2350
    %v3791 = vpack.c.b16 %v2367, %v2351
    %v3792 = vpack.c.b16 %v2368, %v2352
    %v3793 = vpack.c.b16 %v2369, %v2353
    %v3794 = vpack.c.b16 %v2370, %v2354
    %v3795 = vpack.c.b16 %v2371, %v2355
    %v3796 = vpack.c.b16 %v2372, %v2356
    %v3797 = vpack.c.b16 %v2373, %v2357
    %v3798 = vpack.c.b16 %v2374, %v2358
    %v3799 = vpack.c.b16 %v2375, %v2359
    %v3800 = vpack.c.b16 %v2376, %v2360
    %v3801 = vpack.c.b16 %v2377, %v2361
    %v3802 = vpack.c.b16 %v2378, %v2362
    %v3803 = vpack.c.b16 %v2379, %v2363
    %v3804 = vpack.c.b16 %v2380, %v2364
    %v3805 = vpack.c.b16 %v2397, %v2381
    %v3806 = vpack.c.b16 %v2398, %v2382
    %v3807 = vpack.c.b16 %v2399, %v2383
    %v3808 = vpack.c.b16 %v2400, %v2384
    %v3809 = vpack.c.b16 %v2401, %v2385
    %v3810 = vpack.c.b16 %v2402, %v2386
    %v3811 = vpack.c.b16 %v2403, %v2387
    %v3812 = vpack.c.b16 %v2404, %v2388
    %v3813 = vpack.c.b16 %v2405, %v2389
    %v3814 = vpack.c.b16 %v2406, %v2390
    %v3815 = vpack.c.b16 %v2407, %v2391
    %v3816 = vpack.c.b16 %v2408, %v2392
    %v3817 = vpack.c.b16 %v2409, %v2393
    %v3818 = vpack.c.b16 %v2410, %v2394
    %v3819 = vpack.c.b16 %v2411, %v2395
    %v3820 = vpack.c.b16 %v2412, %v2396
    %v3821 = vpack.c.b16 %v2429, %v2413
    %v3822 = vpack.c.b16 %v2430, %v2414
    %v3823 = vpack.c.b16 %v2431, %v2415
    %v3824 = vpack.c.b16 %v2432, %v2416
    %v3825 = vpack.c.b16 %v2433, %v2417
    %v3826 = vpack.c.b16 %v2434, %v2418
    %v3827 = vpack.c.b16 %v2435, %v2419
    %v3828 = vpack.c.b16 %v2436, %v2420
    %v3829 = vpack.c.b16 %v2437, %v2421
    %v3830 = vpack.c.b16 %v2438, %v2422
    %v3831 = vpack.c.b16 %v2439, %v2423
    %v3832 = vpack.c.b16 %v2440, %v2424
    %v3833 = vpack.c.b16 %v2441, %v2425
    %v3834 = vpack.c.b16 %v2442, %v2426
    %v3835 = vpack.c.b16 %v2443, %v2427
    %v3836 = vpack.c.b16 %v2444, %v2428
    %v3837 = vpack.c.b16 %v2461, %v2445
    %v3838 = vpack.c.b16 %v2462, %v2446
    %v3839 = vpack.c.b16 %v2463, %v2447
    %v3840 = vpack.c.b16 %v2464, %v2448
    %v3841 = vpack.c.b16 %v2465, %v2449
    %v3842 = vpack.c.b16 %v2466, %v2450
    %v3843 = vpack.c.b16 %v2467, %v2451
    %v3844 = vpack.c.b16 %v2468, %v2452
    %v3845 = vpack.c.b16 %v2469, %v2453
    %v3846 = vpack.c.b16 %v2470, %v2454
    %v3847 = vpack.c.b16 %v2471, %v2455
    %v3848 = vpack.c.b16 %v2472, %v2456
    %v3849 = vpack.c.b16 %v2473, %v2457
    %v3850 = vpack.c.b16 %v2474, %v2458
    %v3851 = vpack.c.b16 %v2475, %v2459
    %v3852 = vpack.c.b16 %v2476, %v2460
    %v3853 = vpack.c.b16 %v2493, %v2477
    %v3854 = vpack.c.b16 %v2494, %v2478
    %v3855 = vpack.c.b16 %v2495, %v2479
    %v3856 = vpack.c.b16 %v2496, %v2480
    %v3857 = vpack.c.b16 %v2497, %v2481
    %v3858 = vpack.c.b16 %v2498, %v2482
    %v3859 = vpack.c.b16 %v2499, %v2483
    %v3860 = vpack.c.b16 %v2500, %v2484
    %v3861 = vpack.c.b16 %v2501, %v2485
    %v3862 = vpack.c.b16 %v2502, %v2486
    %v3863 = vpack.c.b16 %v2503, %v2487
    %v3864 = vpack.c.b16 %v2504, %v2488
    %v3865 = vpack.c.b16 %v2505, %v2489
    %v3866 = vpack.c.b16 %v2506, %v2490
    %v3867 = vpack.c.b16 %v2507, %v2491
    %v3868 = vpack.c.b16 %v2508, %v2492
    %v3869 = vpack.c.b16 %v2525, %v2509
    %v3870 = vpack.c.b16 %v2526, %v2510
    %v3871 = vpack.c.b16 %v2527, %v2511
    %v3872 = vpack.c.b16 %v2528, %v2512
    %v3873 = vpack.c.b16 %v2529, %v2513
    %v3874 = vpack.c.b16 %v2530, %v2514
    %v3875 = vpack.c.b16 %v2531, %v2515
    %v3876 = vpack.c.b16 %v2532, %v2516
    %v3877 = vpack.c.b16 %v2533, %v2517
    %v3878 = vpack.c.b16 %v2534, %v2518
    %v3879 = vpack.c.b16 %v2535, %v2519
    %v3880 = vpack.c.b16 %v2536, %v2520
    %v3881 = vpack.c.b16 %v2537, %v2521
    %v3882 = vpack.c.b16 %v2538, %v2522
    %v3883 = vpack.c.b16 %v2539, %v2523
    %v3884 = vpack.c.b16 %v2540, %v2524
    %v3885 = vpack.c.b16 %v2557, %v2541
    %v3886 = vpack.c.b16 %v2558, %v2542
    %v3887 = vpack.c.b16 %v2559, %v2543
    %v3888 = vpack.c.b16 %v2560, %v2544
    %v3889 = vpack.c.b16 %v2561, %v2545
    %v3890 = vpack.c.b16 %v2562, %v2546
    %v3891 = vpack.c.b16 %v2563, %v2547
    %v3892 = vpack.c.b16 %v2564, %v2548
    %v3893 = vpack.c.b16 %v2565, %v2549
    %v3894 = vpack.c.b16 %v2566, %v2550
    %v3895 = vpack.c.b16 %v2567, %v2551
    %v3896 = vpack.c.b16 %v2568, %v2552
    %v3897 = vpack.c.b16 %v2569, %v2553
    %v3898 = vpack.c.b16 %v2570, %v2554
    %v3899 = vpack.c.b16 %v2571, %v2555
    %v3900 = vpack.c.b16 %v2572, %v2556
    %v3901 = vpack.c.b16 %v2589, %v2573
    %v3902 = vpack.c.b16 %v2590, %v2574
    %v3903 = vpack.c.b16 %v2591, %v2575
    %v3904 = vpack.c.b16 %v2592, %v2576
    %v3905 = vpack.c.b16 %v2593, %v2577
    %v3906 = vpack.c.b16 %v2594, %v2578
    %v3907 = vpack.c.b16 %v2595, %v2579
    %v3908 = vpack.c.b16 %v2596, %v2580
    %v3909 = vpack.c.b16 %v2597, %v2581
    %v3910 = vpack.c.b16 %v2598, %v2582
    %v3911 = vpack.c.b16 %v2599, %v2583
    %v3912 = vpack.c.b16 %v2600, %v2584
    %v3913 = vpack.c.b16 %v2601, %v2585
    %v3914 = vpack.c.b16 %v2602, %v2586
    %v3915 = vpack.c.b16 %v2603, %v2587
    %v3916 = vpack.c.b16 %v2604, %v2588
    %v3917 = vpack.c.b16 %v2621, %v2605
    %v3918 = vpack.c.b16 %v2622, %v2606
    %v3919 = vpack.c.b16 %v2623, %v2607
    %v3920 = vpack.c.b16 %v2624, %v2608
    %v3921 = vpack.c.b16 %v2625, %v2609
    %v3922 = vpack.c.b16 %v2626, %v2610
    %v3923 = vpack.c.b16 %v2627, %v2611
    %v3924 = vpack.c.b16 %v2628, %v2612
    %v3925 = vpack.c.b16 %v2629, %v2613
    %v3926 = vpack.c.b16 %v2630, %v2614
    %v3927 = vpack.c.b16 %v2631, %v2615
    %v3928 = vpack.c.b16 %v2632, %v2616
    %v3929 = vpack.c.b16 %v2633, %v2617
    %v3930 = vpack.c.b16 %v2634, %v2618
    %v3931 = vpack.c.b16 %v2635, %v2619
    %v3932 = vpack.c.b16 %v2636, %v2620
    %v3933 = vpack.c.b16 %v2653, %v2637
    %v3934 = vpack.c.b16 %v2654, %v2638
    %v3935 = vpack.c.b16 %v2655, %v2639
    %v3936 = vpack.c.b16 %v2656, %v2640
    %v3937 = vpack.c.b16 %v2657, %v2641
    %v3938 = vpack.c.b16 %v2658, %v2642
    %v3939 = vpack.c.b16 %v2659, %v2643
    %v3940 = vpack.c.b16 %v2660, %v2644
    %v3941 = vpack.c.b16 %v2661, %v2645
    %v3942 = vpack.c.b16 %v2662, %v2646
    %v3943 = vpack.c.b16 %v2663, %v2647
    %v3944 = vpack.c.b16 %v2664, %v2648
    %v3945 = vpack.c.b16 %v2665, %v2649
    %v3946 = vpack.c.b16 %v2666, %v2650
    %v3947 = vpack.c.b16 %v2667, %v2651
    %v3948 = vpack.c.b16 %v2668, %v2652
    %v3949 = vpack.c.b16 %v2685, %v2669
    %v3950 = vpack.c.b16 %v2686, %v2670
    %v3951 = vpack.c.b16 %v2687, %v2671
    %v3952 = vpack.c.b16 %v2688, %v2672
    %v3953 = vpack.c.b16 %v2689, %v2673
    %v3954 = vpack.c.b16 %v2690, %v2674
    %v3955 = vpack.c.b16 %v2691, %v2675
    %v3956 = vpack.c.b16 %v2692, %v2676
    %v3957 = vpack.c.b16 %v2693, %v2677
    %v3958 = vpack.c.b16 %v2694, %v2678
    %v3959 = vpack.c.b16 %v2695, %v2679
    %v3960 = vpack.c.b16 %v2696, %v2680
    %v3961 = vpack.c.b16 %v2697, %v2681
    %v3962 = vpack.c.b16 %v2698, %v2682
    %v3963 = vpack.c.b16 %v2699, %v2683
    %v3964 = vpack.c.b16 %v2700, %v2684
    %v3965 = vpack.c.b16 %v2717, %v2701
    %v3966 = vpack.c.b16 %v2718, %v2702
    %v3967 = vpack.c.b16 %v2719, %v2703
    %v3968 = vpack.c.b16 %v2720, %v2704
    %v3969 = vpack.c.b16 %v2721, %v2705
    %v3970 = vpack.c.b16 %v2722, %v2706
    %v3971 = vpack.c.b16 %v2723, %v2707
    %v3972 = vpack.c.b16 %v2724, %v2708
    %v3973 = vpack.c.b16 %v2725, %v2709
    %v3974 = vpack.c.b16 %v2726, %v2710
    %v3975 = vpack.c.b16 %v2727, %v2711
    %v3976 = vpack.c.b16 %v2728, %v2712
    %v3977 = vpack.c.b16 %v2729, %v2713
    %v3978 = vpack.c.b16 %v2730, %v2714
    %v3979 = vpack.c.b16 %v2731, %v2715
    %v3980 = vpack.c.b16 %v2732, %v2716
    %v3981 = vpack.c.b16 %v2749, %v2733
    %v3982 = vpack.c.b16 %v2750, %v2734
    %v3983 = vpack.c.b16 %v2751, %v2735
    %v3984 = vpack.c.b16 %v2752, %v2736
    %v3985 = vpack.c.b16 %v2753, %v2737
    %v3986 = vpack.c.b16 %v2754, %v2738
    %v3987 = vpack.c.b16 %v2755, %v2739
    %v3988 = vpack.c.b16 %v2756, %v2740
    %v3989 = vpack.c.b16 %v2757, %v2741
    %v3990 = vpack.c.b16 %v2758, %v2742
    %v3991 = vpack.c.b16 %v2759, %v2743
    %v3992 = vpack.c.b16 %v2760, %v2744
    %v3993 = vpack.c.b16 %v2761, %v2745
    %v3994 = vpack.c.b16 %v2762, %v2746
    %v3995 = vpack.c.b16 %v2763, %v2747
    %v3996 = vpack.c.b16 %v2764, %v2748
    %v3997 = vpack.c.b16 %v2781, %v2765
    %v3998 = vpack.c.b16 %v2782, %v2766
    %v3999 = vpack.c.b16 %v2783, %v2767
    %v4000 = vpack.c.b16 %v2784, %v2768
    %v4001 = vpack.c.b16 %v2785, %v2769
    %v4002 = vpack.c.b16 %v2786, %v2770
    %v4003 = vpack.c.b16 %v2787, %v2771
    %v4004 = vpack.c.b16 %v2788, %v2772
    %v4005 = vpack.c.b16 %v2789, %v2773
    %v4006 = vpack.c.b16 %v2790, %v2774
    %v4007 = vpack.c.b16 %v2791, %v2775
    %v4008 = vpack.c.b16 %v2792, %v2776
    %v4009 = vpack.c.b16 %v2793, %v2777
    %v4010 = vpack.c.b16 %v2794, %v2778
    %v4011 = vpack.c.b16 %v2795, %v2779
    %v4012 = vpack.c.b16 %v2796, %v2780
    %v4013 = vpack.c.b16 %v2813, %v2797
    %v4014 = vpack.c.b16 %v2814, %v2798
    %v4015 = vpack.c.b16 %v2815, %v2799
    %v4016 = vpack.c.b16 %v2816, %v2800
    %v4017 = vpack.c.b16 %v2817, %v2801
    %v4018 = vpack.c.b16 %v2818, %v2802
    %v4019 = vpack.c.b16 %v2819, %v2803
    %v4020 = vpack.c.b16 %v2820, %v2804
    %v4021 = vpack.c.b16 %v2821, %v2805
    %v4022 = vpack.c.b16 %v2822, %v2806
    %v4023 = vpack.c.b16 %v2823, %v2807
    %v4024 = vpack.c.b16 %v2824, %v2808
    %v4025 = vpack.c.b16 %v2825, %v2809
    %v4026 = vpack.c.b16 %v2826, %v2810
    %v4027 = vpack.c.b16 %v2827, %v2811
    %v4028 = vpack.c.b16 %v2828, %v2812
    %v4029 = vpack.c.b16 %v2845, %v2829
    %v4030 = vpack.c.b16 %v2846, %v2830
    %v4031 = vpack.c.b16 %v2847, %v2831
    %v4032 = vpack.c.b16 %v2848, %v2832
    %v4033 = vpack.c.b16 %v2849, %v2833
    %v4034 = vpack.c.b16 %v2850, %v2834
    %v4035 = vpack.c.b16 %v2851, %v2835
    %v4036 = vpack.c.b16 %v2852, %v2836
    %v4037 = vpack.c.b16 %v2853, %v2837
    %v4038 = vpack.c.b16 %v2854, %v2838
    %v4039 = vpack.c.b16 %v2855, %v2839
    %v4040 = vpack.c.b16 %v2856, %v2840
    %v4041 = vpack.c.b16 %v2857, %v2841
    %v4042 = vpack.c.b16 %v2858, %v2842
    %v4043 = vpack.c.b16 %v2859, %v2843
    %v4044 = vpack.c.b16 %v2860, %v2844
    %v4045 = vpack.c.b16 %v2877, %v2861
    %v4046 = vpack.c.b16 %v2878, %v2862
    %v4047 = vpack.c.b16 %v2879, %v2863
    %v4048 = vpack.c.b16 %v2880, %v2864
    %v4049 = vpack.c.b16 %v2881, %v2865
    %v4050 = vpack.c.b16 %v2882, %v2866
    %v4051 = vpack.c.b16 %v2883, %v2867
    %v4052 = vpack.c.b16 %v2884, %v2868
    %v4053 = vpack.c.b16 %v2885, %v2869
    %v4054 = vpack.c.b16 %v2886, %v2870
    %v4055 = vpack.c.b16 %v2887, %v2871
    %v4056 = vpack.c.b16 %v2888, %v2872
    %v4057 = vpack.c.b16 %v2889, %v2873
    %v4058 = vpack.c.b16 %v2890, %v2874
    %v4059 = vpack.c.b16 %v2891, %v2875
    %v4060 = vpack.c.b16 %v2892, %v2876
    %v4061 = vpack.c.b16 %v2909, %v2893
    %v4062 = vpack.c.b16 %v2910, %v2894
    %v4063 = vpack.c.b16 %v2911, %v2895
    %v4064 = vpack.c.b16 %v2912, %v2896
    %v4065 = vpack.c.b16 %v2913, %v2897
    %v4066 = vpack.c.b16 %v2914, %v2898
    %v4067 = vpack.c.b16 %v2915, %v2899
    %v4068 = vpack.c.b16 %v2916, %v2900
    %v4069 = vpack.c.b16 %v2917, %v2901
    %v4070 = vpack.c.b16 %v2918, %v2902
    %v4071 = vpack.c.b16 %v2919, %v2903
    %v4072 = vpack.c.b16 %v2920, %v2904
    %v4073 = vpack.c.b16 %v2921, %v2905
    %v4074 = vpack.c.b16 %v2922, %v2906
    %v4075 = vpack.c.b16 %v2923, %v2907
    %v4076 = vpack.c.b16 %v2924, %v2908
    %v4077 = vpack.c.b16 %v2941, %v2925
    %v4078 = vpack.c.b16 %v2942, %v2926
    %v4079 = vpack.c.b16 %v2943, %v2927
    %v4080 = vpack.c.b16 %v2944, %v2928
    %v4081 = vpack.c.b16 %v2945, %v2929
    %v4082 = vpack.c.b16 %v2946, %v2930
    %v4083 = vpack.c.b16 %v2947, %v2931
    %v4084 = vpack.c.b16 %v2948, %v2932
    %v4085 = vpack.c.b16 %v2949, %v2933
    %v4086 = vpack.c.b16 %v2950, %v2934
    %v4087 = vpack.c.b16 %v2951, %v2935
    %v4088 = vpack.c.b16 %v2952, %v2936
    %v4089 = vpack.c.b16 %v2953, %v2937
    %v4090 = vpack.c.b16 %v2954, %v2938
    %v4091 = vpack.c.b16 %v2955, %v2939
    %v4092 = vpack.c.b16 %v2956, %v2940
    %v4093 = vpack.c.b16 %v2973, %v2957
    %v4094 = vpack.c.b16 %v2974, %v2958
    %v4095 = vpack.c.b16 %v2975, %v2959
    %v4096 = vpack.c.b16 %v2976, %v2960
    %v4097 = vpack.c.b16 %v2977, %v2961
    %v4098 = vpack.c.b16 %v2978, %v2962
    %v4099 = vpack.c.b16 %v2979, %v2963
    %v4100 = vpack.c.b16 %v2980, %v2964
    %v4101 = vpack.c.b16 %v2981, %v2965
    %v4102 = vpack.c.b16 %v2982, %v2966
    %v4103 = vpack.c.b16 %v2983, %v2967
    %v4104 = vpack.c.b16 %v2984, %v2968
    %v4105 = vpack.c.b16 %v2985, %v2969
    %v4106 = vpack.c.b16 %v2986, %v2970
    %v4107 = vpack.c.b16 %v2987, %v2971
    %v4108 = vpack.c.b16 %v2988, %v2972
    %v4109 = vpack.c.b16 %v3005, %v2989
    %v4110 = vpack.c.b16 %v3006, %v2990
    %v4111 = vpack.c.b16 %v3007, %v2991
    %v4112 = vpack.c.b16 %v3008, %v2992
    %v4113 = vpack.c.b16 %v3009, %v2993
    %v4114 = vpack.c.b16 %v3010, %v2994
    %v4115 = vpack.c.b16 %v3011, %v2995
    %v4116 = vpack.c.b16 %v3012, %v2996
    %v4117 = vpack.c.b16 %v3013, %v2997
    %v4118 = vpack.c.b16 %v3014, %v2998
    %v4119 = vpack.c.b16 %v3015, %v2999
    %v4120 = vpack.c.b16 %v3016, %v3000
    %v4121 = vpack.c.b16 %v3017, %v3001
    %v4122 = vpack.c.b16 %v3018, %v3002
    %v4123 = vpack.c.b16 %v3019, %v3003
    %v4124 = vpack.c.b16 %v3020, %v3004
    %v4125 = vpack.c.b16 %v3037, %v3021
    %v4126 = vpack.c.b16 %v3038, %v3022
    %v4127 = vpack.c.b16 %v3039, %v3023
    %v4128 = vpack.c.b16 %v3040, %v3024
    %v4129 = vpack.c.b16 %v3041, %v3025
    %v4130 = vpack.c.b16 %v3042, %v3026
    %v4131 = vpack.c.b16 %v3043, %v3027
    %v4132 = vpack.c.b16 %v3044, %v3028
    %v4133 = vpack.c.b16 %v3045, %v3029
    %v4134 = vpack.c.b16 %v3046, %v3030
    %v4135 = vpack.c.b16 %v3047, %v3031
    %v4136 = vpack.c.b16 %v3048, %v3032
    %v4137 = vpack.c.b16 %v3049, %v3033
    %v4138 = vpack.c.b16 %v3050, %v3034
    %v4139 = vpack.c.b16 %v3051, %v3035
    %v4140 = vpack.c.b16 %v3052, %v3036
    %v4141 = vpack.c.b16 %v3069, %v3053
    %v4142 = vpack.c.b16 %v3070, %v3054
    %v4143 = vpack.c.b16 %v3071, %v3055
    %v4144 = vpack.c.b16 %v3072, %v3056
    %v4145 = vpack.c.b16 %v3073, %v3057
    %v4146 = vpack.c.b16 %v3074, %v3058
    %v4147 = vpack.c.b16 %v3075, %v3059
    %v4148 = vpack.c.b16 %v3076, %v3060
    %v4149 = vpack.c.b16 %v3077, %v3061
    %v4150 = vpack.c.b16 %v3078, %v3062
    %v4151 = vpack.c.b16 %v3079, %v3063
    %v4152 = vpack.c.b16 %v3080, %v3064
    %v4153 = vpack.c.b16 %v3081, %v3065
    %v4154 = vpack.c.b16 %v3082, %v3066
    %v4155 = vpack.c.b16 %v3083, %v3067
    %v4156 = vpack.c.b16 %v3084, %v3068
    %v4157 = vpack.c.b16 %v3101, %v3085
    %v4158 = vpack.c.b16 %v3102, %v3086
    %v4159 = vpack.c.b16 %v3103, %v3087
    %v4160 = vpack.c.b16 %v3104, %v3088
    %v4161 = vpack.c.b16 %v3105, %v3089
    %v4162 = vpack.c.b16 %v3106, %v3090
    %v4163 = vpack.c.b16 %v3107, %v3091
    %v4164 = vpack.c.b16 %v3108, %v3092
    %v4165 = vpack.c.b16 %v3109, %v3093
    %v4166 = vpack.c.b16 %v3110, %v3094
    %v4167 = vpack.c.b16 %v3111, %v3095
    %v4168 = vpack.c.b16 %v3112, %v3096
    %v4169 = vpack.c.b16 %v3113, %v3097
    %v4170 = vpack.c.b16 %v3114, %v3098
    %v4171 = vpack.c.b16 %v3115, %v3099
    %v4172 = vpack.c.b16 %v3116, %v3100
    %v4173 = vpack.c.b16 %v3133, %v3117
    %v4174 = vpack.c.b16 %v3134, %v3118
    %v4175 = vpack.c.b16 %v3135, %v3119
    %v4176 = vpack.c.b16 %v3136, %v3120
    %v4177 = vpack.c.b16 %v3137, %v3121
    %v4178 = vpack.c.b16 %v3138, %v3122
    %v4179 = vpack.c.b16 %v3139, %v3123
    %v4180 = vpack.c.b16 %v3140, %v3124
    %v4181 = vpack.c.b16 %v3141, %v3125
    %v4182 = vpack.c.b16 %v3142, %v3126
    %v4183 = vpack.c.b16 %v3143, %v3127
    %v4184 = vpack.c.b16 %v3144, %v3128
    %v4185 = vpack.c.b16 %v3145, %v3129
    %v4186 = vpack.c.b16 %v3146, %v3130
    %v4187 = vpack.c.b16 %v3147, %v3131
    %v4188 = vpack.c.b16 %v3148, %v3132
    %v4189 = vpack.c.b16 %v3165, %v3149
    %v4190 = vpack.c.b16 %v3166, %v3150
    %v4191 = vpack.c.b16 %v3167, %v3151
    %v4192 = vpack.c.b16 %v3168, %v3152
    %v4193 = vpack.c.b16 %v3169, %v3153
    %v4194 = vpack.c.b16 %v3170, %v3154
    %v4195 = vpack.c.b16 %v3171, %v3155
    %v4196 = vpack.c.b16 %v3172, %v3156
    %v4197 = vpack.c.b16 %v3173, %v3157
    %v4198 = vpack.c.b16 %v3174, %v3158
    %v4199 = vpack.c.b16 %v3175, %v3159
    %v4200 = vpack.c.b16 %v3176, %v3160
    %v4201 = vpack.c.b16 %v3177, %v3161
    %v4202 = vpack.c.b16 %v3178, %v3162
    %v4203 = vpack.c.b16 %v3179, %v3163
    %v4204 = vpack.c.b16 %v3180, %v3164
    %v4205 = vpack.c.b16 %v3197, %v3181
    %v4206 = vpack.c.b16 %v3198, %v3182
    %v4207 = vpack.c.b16 %v3199, %v3183
    %v4208 = vpack.c.b16 %v3200, %v3184
    %v4209 = vpack.c.b16 %v3201, %v3185
    %v4210 = vpack.c.b16 %v3202, %v3186
    %v4211 = vpack.c.b16 %v3203, %v3187
    %v4212 = vpack.c.b16 %v3204, %v3188
    %v4213 = vpack.c.b16 %v3205, %v3189
    %v4214 = vpack.c.b16 %v3206, %v3190
    %v4215 = vpack.c.b16 %v3207, %v3191
    %v4216 = vpack.c.b16 %v3208, %v3192
    %v4217 = vpack.c.b16 %v3209, %v3193
    %v4218 = vpack.c.b16 %v3210, %v3194
    %v4219 = vpack.c.b16 %v3211, %v3195
    %v4220 = vpack.c.b16 %v3212, %v3196
    %v4221 = vpack.c.b16 %v3229, %v3213
    %v4222 = vpack.c.b16 %v3230, %v3214
    %v4223 = vpack.c.b16 %v3231, %v3215
    %v4224 = vpack.c.b16 %v3232, %v3216
    %v4225 = vpack.c.b16 %v3233, %v3217
    %v4226 = vpack.c.b16 %v3234, %v3218
    %v4227 = vpack.c.b16 %v3235, %v3219
    %v4228 = vpack.c.b16 %v3236, %v3220
    %v4229 = vpack.c.b16 %v3237, %v3221
    %v4230 = vpack.c.b16 %v3238, %v3222
    %v4231 = vpack.c.b16 %v3239, %v3223
    %v4232 = vpack.c.b16 %v3240, %v3224
    %v4233 = vpack.c.b16 %v3241, %v3225
    %v4234 = vpack.c.b16 %v3242, %v3226
    %v4235 = vpack.c.b16 %v3243, %v3227
    %v4236 = vpack.c.b16 %v3244, %v3228
    %v4237 = vpack.c.b16 %v3261, %v3245
    %v4238 = vpack.c.b16 %v3262, %v3246
    %v4239 = vpack.c.b16 %v3263, %v3247
    %v4240 = vpack.c.b16 %v3264, %v3248
    %v4241 = vpack.c.b16 %v3265, %v3249
    %v4242 = vpack.c.b16 %v3266, %v3250
    %v4243 = vpack.c.b16 %v3267, %v3251
    %v4244 = vpack.c.b16 %v3268, %v3252
    %v4245 = vpack.c.b16 %v3269, %v3253
    %v4246 = vpack.c.b16 %v3270, %v3254
    %v4247 = vpack.c.b16 %v3271, %v3255
    %v4248 = vpack.c.b16 %v3272, %v3256
    %v4249 = vpack.c.b16 %v3273, %v3257
    %v4250 = vpack.c.b16 %v3274, %v3258
    %v4251 = vpack.c.b16 %v3275, %v3259
    %v4252 = vpack.c.b16 %v3276, %v3260
    %v4253 = vpack.c.b16 %v3293, %v3277
    %v4254 = vpack.c.b16 %v3294, %v3278
    %v4255 = vpack.c.b16 %v3295, %v3279
    %v4256 = vpack.c.b16 %v3296, %v3280
    %v4257 = vpack.c.b16 %v3297, %v3281
    %v4258 = vpack.c.b16 %v3298, %v3282
    %v4259 = vpack.c.b16 %v3299, %v3283
    %v4260 = vpack.c.b16 %v3300, %v3284
    %v4261 = vpack.c.b16 %v3301, %v3285
    %v4262 = vpack.c.b16 %v3302, %v3286
    %v4263 = vpack.c.b16 %v3303, %v3287
    %v4264 = vpack.c.b16 %v3304, %v3288
    %v4265 = vpack.c.b16 %v3305, %v3289
    %v4266 = vpack.c.b16 %v3306, %v3290
    %v4267 = vpack.c.b16 %v3307, %v3291
    %v4268 = vpack.c.b16 %v3308, %v3292
    %v4269 = vpack.c.b16 %v3325, %v3309
    %v4270 = vpack.c.b16 %v3326, %v3310
    %v4271 = vpack.c.b16 %v3327, %v3311
    %v4272 = vpack.c.b16 %v3328, %v3312
    %v4273 = vpack.c.b16 %v3329, %v3313
    %v4274 = vpack.c.b16 %v3330, %v3314
    %v4275 = vpack.c.b16 %v3331, %v3315
    %v4276 = vpack.c.b16 %v3332, %v3316
    %v4277 = vpack.c.b16 %v3333, %v3317
    %v4278 = vpack.c.b16 %v3334, %v3318
    %v4279 = vpack.c.b16 %v3335, %v3319
    %v4280 = vpack.c.b16 %v3336, %v3320
    %v4281 = vpack.c.b16 %v3337, %v3321
    %v4282 = vpack.c.b16 %v3338, %v3322
    %v4283 = vpack.c.b16 %v3339, %v3323
    %v4284 = vpack.c.b16 %v3340, %v3324
    %v4285 = vpack.c.b16 %v3357, %v3341
    %v4286 = vpack.c.b16 %v3358, %v3342
    %v4287 = vpack.c.b16 %v3359, %v3343
    %v4288 = vpack.c.b16 %v3360, %v3344
    %v4289 = vpack.c.b16 %v3361, %v3345
    %v4290 = vpack.c.b16 %v3362, %v3346
    %v4291 = vpack.c.b16 %v3363, %v3347
    %v4292 = vpack.c.b16 %v3364, %v3348
    %v4293 = vpack.c.b16 %v3365, %v3349
    %v4294 = vpack.c.b16 %v3366, %v3350
    %v4295 = vpack.c.b16 %v3367, %v3351
    %v4296 = vpack.c.b16 %v3368, %v3352
    %v4297 = vpack.c.b16 %v3369, %v3353
    %v4298 = vpack.c.b16 %v3370, %v3354
    %v4299 = vpack.c.b16 %v3371, %v3355
    %v4300 = vpack.c.b16 %v3372, %v3356
    %v4301 = vpack.c.b16 %v3389, %v3373
    %v4302 = vpack.c.b16 %v3390, %v3374
    %v4303 = vpack.c.b16 %v3391, %v3375
    %v4304 = vpack.c.b16 %v3392, %v3376
    %v4305 = vpack.c.b16 %v3393, %v3377
    %v4306 = vpack.c.b16 %v3394, %v3378
    %v4307 = vpack.c.b16 %v3395, %v3379
    %v4308 = vpack.c.b16 %v3396, %v3380
    %v4309 = vpack.c.b16 %v3397, %v3381
    %v4310 = vpack.c.b16 %v3398, %v3382
    %v4311 = vpack.c.b16 %v3399, %v3383
    %v4312 = vpack.c.b16 %v3400, %v3384
    %v4313 = vpack.c.b16 %v3401, %v3385
    %v4314 = vpack.c.b16 %v3402, %v3386
    %v4315 = vpack.c.b16 %v3403, %v3387
    %v4316 = vpack.c.b16 %v3404, %v3388
    %v4317 = vpack.c.b16 %v3421, %v3405
    %v4318 = vpack.c.b16 %v3422, %v3406
    %v4319 = vpack.c.b16 %v3423, %v3407
    %v4320 = vpack.c.b16 %v3424, %v3408
    %v4321 = vpack.c.b16 %v3425, %v3409
    %v4322 = vpack.c.b16 %v3426, %v3410
    %v4323 = vpack.c.b16 %v3427, %v3411
    %v4324 = vpack.c.b16 %v3428, %v3412
    %v4325 = vpack.c.b16 %v3429, %v3413
    %v4326 = vpack.c.b16 %v3430, %v3414
    %v4327 = vpack.c.b16 %v3431, %v3415
    %v4328 = vpack.c.b16 %v3432, %v3416
    %v4329 = vpack.c.b16 %v3433, %v3417
    %v4330 = vpack.c.b16 %v3434, %v3418
    %v4331 = vpack.c.b16 %v3435, %v3419
    %v4332 = vpack.c.b16 %v3436, %v3420
    %v4333 = vpack.c.b16 %v3453, %v3437
    %v4334 = vpack.c.b16 %v3454, %v3438
    %v4335 = vpack.c.b16 %v3455, %v3439
    %v4336 = vpack.c.b16 %v3456, %v3440
    %v4337 = vpack.c.b16 %v3457, %v3441
    %v4338 = vpack.c.b16 %v3458, %v3442
    %v4339 = vpack.c.b16 %v3459, %v3443
    %v4340 = vpack.c.b16 %v3460, %v3444
    %v4341 = vpack.c.b16 %v3461, %v3445
    %v4342 = vpack.c.b16 %v3462, %v3446
    %v4343 = vpack.c.b16 %v3463, %v3447
    %v4344 = vpack.c.b16 %v3464, %v3448
    %v4345 = vpack.c.b16 %v3465, %v3449
    %v4346 = vpack.c.b16 %v3466, %v3450
    %v4347 = vpack.c.b16 %v3467, %v3451
    %v4348 = vpack.c.b16 %v3468, %v3452
    %v4349 = vpack.c.b16 %v3485, %v3469
    %v4350 = vpack.c.b16 %v3486, %v3470
    %v4351 = vpack.c.b16 %v3487, %v3471
    %v4352 = vpack.c.b16 %v3488, %v3472
    %v4353 = vpack.c.b16 %v3489, %v3473
    %v4354 = vpack.c.b16 %v3490, %v3474
    %v4355 = vpack.c.b16 %v3491, %v3475
    %v4356 = vpack.c.b16 %v3492, %v3476
    %v4357 = vpack.c.b16 %v3493, %v3477
    %v4358 = vpack.c.b16 %v3494, %v3478
    %v4359 = vpack.c.b16 %v3495, %v3479
    %v4360 = vpack.c.b16 %v3496, %v3480
    %v4361 = vpack.c.b16 %v3497, %v3481
    %v4362 = vpack.c.b16 %v3498, %v3482
    %v4363 = vpack.c.b16 %v3499, %v3483
    %v4364 = vpack.c.b16 %v3500, %v3484
    %v4365 = vpack.c.b16 %v3517, %v3501
    %v4366 = vpack.c.b16 %v3518, %v3502
    %v4367 = vpack.c.b16 %v3519, %v3503
    %v4368 = vpack.c.b16 %v3520, %v3504
    %v4369 = vpack.c.b16 %v3521, %v3505
    %v4370 = vpack.c.b16 %v3522, %v3506
    %v4371 = vpack.c.b16 %v3523, %v3507
    %v4372 = vpack.c.b16 %v3524, %v3508
    %v4373 = vpack.c.b16 %v3525, %v3509
    %v4374 = vpack.c.b16 %v3526, %v3510
    %v4375 = vpack.c.b16 %v3527, %v3511
    %v4376 = vpack.c.b16 %v3528, %v3512
    %v4377 = vpack.c.b16 %v3529, %v3513
    %v4378 = vpack.c.b16 %v3530, %v3514
    %v4379 = vpack.c.b16 %v3531, %v3515
    %v4380 = vpack.c.b16 %v3532, %v3516
    %v4381 = vpack.c.b16 %v3549, %v3533
    %v4382 = vpack.c.b16 %v3550, %v3534
    %v4383 = vpack.c.b16 %v3551, %v3535
    %v4384 = vpack.c.b16 %v3552, %v3536
    %v4385 = vpack.c.b16 %v3553, %v3537
    %v4386 = vpack.c.b16 %v3554, %v3538
    %v4387 = vpack.c.b16 %v3555, %v3539
    %v4388 = vpack.c.b16 %v3556, %v3540
    %v4389 = vpack.c.b16 %v3557, %v3541
    %v4390 = vpack.c.b16 %v3558, %v3542
    %v4391 = vpack.c.b16 %v3559, %v3543
    %v4392 = vpack.c.b16 %v3560, %v3544
    %v4393 = vpack.c.b16 %v3561, %v3545
    %v4394 = vpack.c.b16 %v3562, %v3546
    %v4395 = vpack.c.b16 %v3563, %v3547
    %v4396 = vpack.c.b16 %v3564, %v3548
    %v4397 = vpack.c.b16 %v3581, %v3565
    %v4398 = vpack.c.b16 %v3582, %v3566
    %v4399 = vpack.c.b16 %v3583, %v3567
    %v4400 = vpack.c.b16 %v3584, %v3568
    %v4401 = vpack.c.b16 %v3585, %v3569
    %v4402 = vpack.c.b16 %v3586, %v3570
    %v4403 = vpack.c.b16 %v3587, %v3571
    %v4404 = vpack.c.b16 %v3588, %v3572
    %v4405 = vpack.c.b16 %v3589, %v3573
    %v4406 = vpack.c.b16 %v3590, %v3574
    %v4407 = vpack.c.b16 %v3591, %v3575
    %v4408 = vpack.c.b16 %v3592, %v3576
    %v4409 = vpack.c.b16 %v3593, %v3577
    %v4410 = vpack.c.b16 %v3594, %v3578
    %v4411 = vpack.c.b16 %v3595, %v3579
    %v4412 = vpack.c.b16 %v3596, %v3580
    %v4413 = vpack.c.b16 %v3613, %v3597
    %v4414 = vpack.c.b16 %v3614, %v3598
    %v4415 = vpack.c.b16 %v3615, %v3599
    %v4416 = vpack.c.b16 %v3616, %v3600
    %v4417 = vpack.c.b16 %v3617, %v3601
    %v4418 = vpack.c.b16 %v3618, %v3602
    %v4419 = vpack.c.b16 %v3619, %v3603
    %v4420 = vpack.c.b16 %v3620, %v3604
    %v4421 = vpack.c.b16 %v3621, %v3605
    %v4422 = vpack.c.b16 %v3622, %v3606
    %v4423 = vpack.c.b16 %v3623, %v3607
    %v4424 = vpack.c.b16 %v3624, %v3608
    %v4425 = vpack.c.b16 %v3625, %v3609
    %v4426 = vpack.c.b16 %v3626, %v3610
    %v4427 = vpack.c.b16 %v3627, %v3611
    %v4428 = vpack.c.b16 %v3628, %v3612
    %v4429 = vpack.c.b16 %v3645, %v3629
    %v4430 = vpack.c.b16 %v3646, %v3630
    %v4431 = vpack.c.b16 %v3647, %v3631
    %v4432 = vpack.c.b16 %v3648, %v3632
    %v4433 = vpack.c.b16 %v3649, %v3633
    %v4434 = vpack.c.b16 %v3650, %v3634
    %v4435 = vpack.c.b16 %v3651, %v3635
    %v4436 = vpack.c.b16 %v3652, %v3636
    %v4437 = vpack.c.b16 %v3653, %v3637
    %v4438 = vpack.c.b16 %v3654, %v3638
    %v4439 = vpack.c.b16 %v3655, %v3639
    %v4440 = vpack.c.b16 %v3656, %v3640
    %v4441 = vpack.c.b16 %v3657, %v3641
    %v4442 = vpack.c.b16 %v3658, %v3642
    %v4443 = vpack.c.b16 %v3659, %v3643
    %v4444 = vpack.c.b16 %v3660, %v3644
    %vm5229 = vcmask 130048
    %v5231 = vsel %vm5229, %v1308, 0
    %5233 = vmatprep.subr.bf16.mxu0 %v3662
    %5234 = vmatpush1.bf16.msra.mxu0 %v3661
    %5235 = vmatprep.subr.bf16.mxu0 %v3678
    %5236 = vmatpush1.bf16.msra.mxu0 %v3677
    %5237 = vmatprep.subr.bf16.mxu0 %v3694
    %5238 = vmatpush1.bf16.msra.mxu0 %v3693
    %5239 = vmatprep.subr.bf16.mxu0 %v3710
    %5240 = vmatpush1.bf16.msra.mxu0 %v3709
    %5241 = vmatprep.subr.bf16.mxu0 %v3726
    %5242 = vmatpush1.bf16.msra.mxu0 %v3725
    %5243 = vmatprep.subr.bf16.mxu0 %v3742
    %5244 = vmatpush1.bf16.msra.mxu0 %v3741
    %5245 = vmatprep.subr.bf16.mxu0 %v3758
    %5246 = vmatpush1.bf16.msra.mxu0 %v3757
    %5247 = vmatprep.subr.bf16.mxu0 %v3774
    %5248 = vmatpush1.bf16.msra.mxu0 %v3773
    %5249 = vmatprep.subr.bf16.mxu0 %v3790
    %5250 = vmatpush1.bf16.msra.mxu0 %v3789
    %5251 = vmatprep.subr.bf16.mxu0 %v3806
    %5252 = vmatpush1.bf16.msra.mxu0 %v3805
    %5253 = vmatprep.subr.bf16.mxu0 %v3822
    %5254 = vmatpush1.bf16.msra.mxu0 %v3821
    %5255 = vmatprep.subr.bf16.mxu0 %v3838
    %5256 = vmatpush1.bf16.msra.mxu0 %v3837
    %5257 = vmatprep.subr.bf16.mxu0 %v3854
    %5258 = vmatpush1.bf16.msra.mxu0 %v3853
    %5259 = vmatprep.subr.bf16.mxu0 %v3870
    %5260 = vmatpush1.bf16.msra.mxu0 %v3869
    %5261 = vmatprep.subr.bf16.mxu0 %v3886
    %5262 = vmatpush1.bf16.msra.mxu0 %v3885
    %5263 = vmatprep.subr.bf16.mxu0 %v3902
    %5264 = vmatpush1.bf16.msra.mxu0 %v3901
    %5265 = vmatprep.mubr.bf16.mxu0 %v1303
    %5266 = vmatmul.mubr.bf16.gmra.mrb[0].mxu0 %v1302
    %v5267 = vpop.f32.mrb[0].mxu0
    %v5268 = vadd.f32 0.0, %v5267
    %v5269 = vpop.f32.mrb[0].mxu0
    %v5270 = vadd.f32 0.0, %v5269
    %v5271 = vpop.f32.mrb[0].mxu0
    %v5272 = vpop.f32.mrb[0].mxu0
    %5273 = vdwg.mxu0
    %5274 = vmatprep.subr.bf16.mxu0 %v3918
    %5275 = vmatpush1.bf16.msra.mxu0 %v3917
    %5276 = vmatprep.subr.bf16.mxu0 %v3934
    %5277 = vmatpush1.bf16.msra.mxu0 %v3933
    %5278 = vmatprep.subr.bf16.mxu0 %v3950
    %5279 = vmatpush1.bf16.msra.mxu0 %v3949
    %5280 = vmatprep.subr.bf16.mxu0 %v3966
    %5281 = vmatpush1.bf16.msra.mxu0 %v3965
    %5282 = vmatprep.subr.bf16.mxu0 %v3982
    %5283 = vmatpush1.bf16.msra.mxu0 %v3981
    %5284 = vmatprep.subr.bf16.mxu0 %v3998
    %5285 = vmatpush1.bf16.msra.mxu0 %v3997
    %5286 = vmatprep.subr.bf16.mxu0 %v4014
    %5287 = vmatpush1.bf16.msra.mxu0 %v4013
    %5288 = vmatprep.subr.bf16.mxu0 %v4030
    %5289 = vmatpush1.bf16.msra.mxu0 %v4029
    %5290 = vmatprep.subr.bf16.mxu0 %v4046
    %5291 = vmatpush1.bf16.msra.mxu0 %v4045
    %5292 = vmatprep.subr.bf16.mxu0 %v4062
    %5293 = vmatpush1.bf16.msra.mxu0 %v4061
    %5294 = vmatprep.subr.bf16.mxu0 %v4078
    %5295 = vmatpush1.bf16.msra.mxu0 %v4077
    %5296 = vmatprep.subr.bf16.mxu0 %v4094
    %5297 = vmatpush1.bf16.msra.mxu0 %v4093
    %5298 = vmatprep.subr.bf16.mxu0 %v4110
    %5299 = vmatpush1.bf16.msra.mxu0 %v4109
    %5300 = vmatprep.subr.bf16.mxu0 %v4126
    %5301 = vmatpush1.bf16.msra.mxu0 %v4125
    %5302 = vmatprep.subr.bf16.mxu0 %v4142
    %5303 = vmatpush1.bf16.msra.mxu0 %v4141
    %5304 = vmatprep.subr.bf16.mxu0 %v4158
    %5305 = vmatpush1.bf16.msra.mxu0 %v4157
    %5306 = vmatprep.mubr.bf16.mxu0 %v1305
    %5307 = vmatmul.mubr.bf16.gmra.mrb[0].mxu0 %v1304
    %v5308 = vpop.f32.mrb[0].mxu0
    %v5309 = vadd.f32 %v5268, %v5308
    %v5310 = vpop.f32.mrb[0].mxu0
    %v5311 = vadd.f32 %v5270, %v5310
    %v5312 = vpop.f32.mrb[0].mxu0
    %v5313 = vpop.f32.mrb[0].mxu0
    %5314 = vdwg.mxu0
    %5315 = vmatprep.subr.bf16.mxu0 %v4174
    %5316 = vmatpush1.bf16.msra.mxu0 %v4173
    %5317 = vmatprep.subr.bf16.mxu0 %v4190
    %5318 = vmatpush1.bf16.msra.mxu0 %v4189
    %5319 = vmatprep.subr.bf16.mxu0 %v4206
    %5320 = vmatpush1.bf16.msra.mxu0 %v4205
    %5321 = vmatprep.subr.bf16.mxu0 %v4222
    %5322 = vmatpush1.bf16.msra.mxu0 %v4221
    %5323 = vmatprep.subr.bf16.mxu0 %v4238
    %5324 = vmatpush1.bf16.msra.mxu0 %v4237
    %5325 = vmatprep.subr.bf16.mxu0 %v4254
    %5326 = vmatpush1.bf16.msra.mxu0 %v4253
    %5327 = vmatprep.subr.bf16.mxu0 %v4270
    %5328 = vmatpush1.bf16.msra.mxu0 %v4269
    %5329 = vmatprep.subr.bf16.mxu0 %v4286
    %5330 = vmatpush1.bf16.msra.mxu0 %v4285
    %5331 = vmatprep.subr.bf16.mxu0 %v4302
    %5332 = vmatpush1.bf16.msra.mxu0 %v4301
    %5333 = vmatprep.subr.bf16.mxu0 %v4318
    %5334 = vmatpush1.bf16.msra.mxu0 %v4317
    %5335 = vmatprep.subr.bf16.mxu0 %v4334
    %5336 = vmatpush1.bf16.msra.mxu0 %v4333
    %5337 = vmatprep.subr.bf16.mxu0 %v4350
    %5338 = vmatpush1.bf16.msra.mxu0 %v4349
    %5339 = vmatprep.subr.bf16.mxu0 %v4366
    %5340 = vmatpush1.bf16.msra.mxu0 %v4365
    %5341 = vmatprep.subr.bf16.mxu0 %v4382
    %5342 = vmatpush1.bf16.msra.mxu0 %v4381
    %5343 = vmatprep.subr.bf16.mxu0 %v4398
    %5344 = vmatpush1.bf16.msra.mxu0 %v4397
    %5345 = vmatprep.subr.bf16.mxu0 %v4414
    %5346 = vmatpush1.bf16.msra.mxu0 %v4413
    %5347 = vmatprep.mubr.bf16.mxu0 %v1307
    %5348 = vmatmul.mubr.bf16.gmra.mrb[0].mxu0 %v1306
    %v5349 = vpop.f32.mrb[0].mxu0
    %v5350 = vadd.f32 %v5309, %v5349
    %v5351 = vpop.f32.mrb[0].mxu0
    %v5352 = vadd.f32 %v5311, %v5351
    %v5353 = vpop.f32.mrb[0].mxu0
    %v5354 = vpop.f32.mrb[0].mxu0
    %5355 = vdwg.mxu0
    %5356 = vmatprep.subr.bf16.mxu0 %v4430
    %5357 = vmatpush1.bf16.msra.mxu0 %v4429
    %5358 = vmatprep.subr.bf16.mxu0 0
    %5359 = vmatpush1.bf16.msra.mxu0 0
    %5360 = vmatprep.subr.bf16.mxu0 0
    %5361 = vmatpush1.bf16.msra.mxu0 0
    %5362 = vmatprep.subr.bf16.mxu0 0
    %5363 = vmatpush1.bf16.msra.mxu0 0
    %5364 = vmatprep.subr.bf16.mxu0 0
    %5365 = vmatpush1.bf16.msra.mxu0 0
    %5366 = vmatprep.subr.bf16.mxu0 0
    %5367 = vmatpush1.bf16.msra.mxu0 0
    %5368 = vmatprep.subr.bf16.mxu0 0
    %5369 = vmatpush1.bf16.msra.mxu0 0
    %5370 = vmatprep.subr.bf16.mxu0 0
    %5371 = vmatpush1.bf16.msra.mxu0 0
    %5372 = vmatprep.subr.bf16.mxu0 0
    %5373 = vmatpush1.bf16.msra.mxu0 0
    %5374 = vmatprep.subr.bf16.mxu0 0
    %5375 = vmatpush1.bf16.msra.mxu0 0
    %5376 = vmatprep.subr.bf16.mxu0 0
    %5377 = vmatpush1.bf16.msra.mxu0 0
    %5378 = vmatprep.subr.bf16.mxu0 0
    %5379 = vmatpush1.bf16.msra.mxu0 0
    %5380 = vmatprep.subr.bf16.mxu0 0
    %5381 = vmatpush1.bf16.msra.mxu0 0
    %5382 = vmatprep.subr.bf16.mxu0 0
    %5383 = vmatpush1.bf16.msra.mxu0 0
    %5384 = vmatprep.subr.bf16.mxu0 0
    %5385 = vmatpush1.bf16.msra.mxu0 0
    %5386 = vmatprep.subr.bf16.mxu0 0
    %5387 = vmatpush1.bf16.msra.mxu0 0
    %5388 = vmatprep.mubr.bf16.mxu0 0
    %5389 = vmatmul.mubr.bf16.gmra.mrb[0].mxu0 %v5231
    %v5390 = vpop.f32.mrb[0].mxu0
    %v5391 = vadd.f32 %v5350, %v5390
    %v5392 = vpop.f32.mrb[0].mxu0
    %v5393 = vadd.f32 %v5352, %v5392
    %v5394 = vpop.f32.mrb[0].mxu0
    %v5395 = vpop.f32.mrb[0].mxu0
    %5396 = vdwg.mxu0
    %5397 = vmatprep.subr.bf16.mxu0 %v3664
    %5398 = vmatpush1.bf16.msra.mxu0 %v3663
    %5399 = vmatprep.subr.bf16.mxu0 %v3680
    %5400 = vmatpush1.bf16.msra.mxu0 %v3679
    %5401 = vmatprep.subr.bf16.mxu0 %v3696
    %5402 = vmatpush1.bf16.msra.mxu0 %v3695
    %5403 = vmatprep.subr.bf16.mxu0 %v3712
    %5404 = vmatpush1.bf16.msra.mxu0 %v3711
    %5405 = vmatprep.subr.bf16.mxu0 %v3728
    %5406 = vmatpush1.bf16.msra.mxu0 %v3727
    %5407 = vmatprep.subr.bf16.mxu0 %v3744
    %5408 = vmatpush1.bf16.msra.mxu0 %v3743
    %5409 = vmatprep.subr.bf16.mxu0 %v3760
    %5410 = vmatpush1.bf16.msra.mxu0 %v3759
    %5411 = vmatprep.subr.bf16.mxu0 %v3776
    %5412 = vmatpush1.bf16.msra.mxu0 %v3775
    %5413 = vmatprep.subr.bf16.mxu0 %v3792
    %5414 = vmatpush1.bf16.msra.mxu0 %v3791
    %5415 = vmatprep.subr.bf16.mxu0 %v3808
    %5416 = vmatpush1.bf16.msra.mxu0 %v3807
    %5417 = vmatprep.subr.bf16.mxu0 %v3824
    %5418 = vmatpush1.bf16.msra.mxu0 %v3823
    %5419 = vmatprep.subr.bf16.mxu0 %v3840
    %5420 = vmatpush1.bf16.msra.mxu0 %v3839
    %5421 = vmatprep.subr.bf16.mxu0 %v3856
    %5422 = vmatpush1.bf16.msra.mxu0 %v3855
    %5423 = vmatprep.subr.bf16.mxu0 %v3872
    %5424 = vmatpush1.bf16.msra.mxu0 %v3871
    %5425 = vmatprep.subr.bf16.mxu0 %v3888
    %5426 = vmatpush1.bf16.msra.mxu0 %v3887
    %5427 = vmatprep.subr.bf16.mxu0 %v3904
    %5428 = vmatpush1.bf16.msra.mxu0 %v3903
    %5429 = vmatprep.mubr.bf16.mxu0 %v1303
    %5430 = vmatmul.mubr.bf16.gmra.mrb[0].mxu0 %v1302
    %v5431 = vpop.f32.mrb[0].mxu0
    %v5432 = vadd.f32 0.0, %v5431
    %v5433 = vpop.f32.mrb[0].mxu0
    %v5434 = vadd.f32 0.0, %v5433
    %v5435 = vpop.f32.mrb[0].mxu0
    %v5436 = vpop.f32.mrb[0].mxu0
    %5437 = vdwg.mxu0
    %5438 = vmatprep.subr.bf16.mxu0 %v3920
    %5439 = vmatpush1.bf16.msra.mxu0 %v3919
    %5440 = vmatprep.subr.bf16.mxu0 %v3936
    %5441 = vmatpush1.bf16.msra.mxu0 %v3935
    %5442 = vmatprep.subr.bf16.mxu0 %v3952
    %5443 = vmatpush1.bf16.msra.mxu0 %v3951
    %5444 = vmatprep.subr.bf16.mxu0 %v3968
    %5445 = vmatpush1.bf16.msra.mxu0 %v3967
    %5446 = vmatprep.subr.bf16.mxu0 %v3984
    %5447 = vmatpush1.bf16.msra.mxu0 %v3983
    %5448 = vmatprep.subr.bf16.mxu0 %v4000
    %5449 = vmatpush1.bf16.msra.mxu0 %v3999
    %5450 = vmatprep.subr.bf16.mxu0 %v4016
    %5451 = vmatpush1.bf16.msra.mxu0 %v4015
    %5452 = vmatprep.subr.bf16.mxu0 %v4032
    %5453 = vmatpush1.bf16.msra.mxu0 %v4031
    %5454 = vmatprep.subr.bf16.mxu0 %v4048
    %5455 = vmatpush1.bf16.msra.mxu0 %v4047
    %5456 = vmatprep.subr.bf16.mxu0 %v4064
    %5457 = vmatpush1.bf16.msra.mxu0 %v4063
    %5458 = vmatprep.subr.bf16.mxu0 %v4080
    %5459 = vmatpush1.bf16.msra.mxu0 %v4079
    %5460 = vmatprep.subr.bf16.mxu0 %v4096
    %5461 = vmatpush1.bf16.msra.mxu0 %v4095
    %5462 = vmatprep.subr.bf16.mxu0 %v4112
    %5463 = vmatpush1.bf16.msra.mxu0 %v4111
    %5464 = vmatprep.subr.bf16.mxu0 %v4128
    %5465 = vmatpush1.bf16.msra.mxu0 %v4127
    %5466 = vmatprep.subr.bf16.mxu0 %v4144
    %5467 = vmatpush1.bf16.msra.mxu0 %v4143
    %5468 = vmatprep.subr.bf16.mxu0 %v4160
    %5469 = vmatpush1.bf16.msra.mxu0 %v4159
    %5470 = vmatprep.mubr.bf16.mxu0 %v1305
    %5471 = vmatmul.mubr.bf16.gmra.mrb[0].mxu0 %v1304
    %v5472 = vpop.f32.mrb[0].mxu0
    %v5473 = vadd.f32 %v5432, %v5472
    %v5474 = vpop.f32.mrb[0].mxu0
    %v5475 = vadd.f32 %v5434, %v5474
    %v5476 = vpop.f32.mrb[0].mxu0
    %v5477 = vpop.f32.mrb[0].mxu0
    %5478 = vdwg.mxu0
    %5479 = vmatprep.subr.bf16.mxu0 %v4176
    %5480 = vmatpush1.bf16.msra.mxu0 %v4175
    %5481 = vmatprep.subr.bf16.mxu0 %v4192
    %5482 = vmatpush1.bf16.msra.mxu0 %v4191
    %5483 = vmatprep.subr.bf16.mxu0 %v4208
    %5484 = vmatpush1.bf16.msra.mxu0 %v4207
    %5485 = vmatprep.subr.bf16.mxu0 %v4224
    %5486 = vmatpush1.bf16.msra.mxu0 %v4223
    %5487 = vmatprep.subr.bf16.mxu0 %v4240
    %5488 = vmatpush1.bf16.msra.mxu0 %v4239
    %5489 = vmatprep.subr.bf16.mxu0 %v4256
    %5490 = vmatpush1.bf16.msra.mxu0 %v4255
    %5491 = vmatprep.subr.bf16.mxu0 %v4272
    %5492 = vmatpush1.bf16.msra.mxu0 %v4271
    %5493 = vmatprep.subr.bf16.mxu0 %v4288
    %5494 = vmatpush1.bf16.msra.mxu0 %v4287
    %5495 = vmatprep.subr.bf16.mxu0 %v4304
    %5496 = vmatpush1.bf16.msra.mxu0 %v4303
    %5497 = vmatprep.subr.bf16.mxu0 %v4320
    %5498 = vmatpush1.bf16.msra.mxu0 %v4319
    %5499 = vmatprep.subr.bf16.mxu0 %v4336
    %5500 = vmatpush1.bf16.msra.mxu0 %v4335
    %5501 = vmatprep.subr.bf16.mxu0 %v4352
    %5502 = vmatpush1.bf16.msra.mxu0 %v4351
    %5503 = vmatprep.subr.bf16.mxu0 %v4368
    %5504 = vmatpush1.bf16.msra.mxu0 %v4367
    %5505 = vmatprep.subr.bf16.mxu0 %v4384
    %5506 = vmatpush1.bf16.msra.mxu0 %v4383
    %5507 = vmatprep.subr.bf16.mxu0 %v4400
    %5508 = vmatpush1.bf16.msra.mxu0 %v4399
    %5509 = vmatprep.subr.bf16.mxu0 %v4416
    %5510 = vmatpush1.bf16.msra.mxu0 %v4415
    %5511 = vmatprep.mubr.bf16.mxu0 %v1307
    %5512 = vmatmul.mubr.bf16.gmra.mrb[0].mxu0 %v1306
    %v5513 = vpop.f32.mrb[0].mxu0
    %v5514 = vadd.f32 %v5473, %v5513
    %v5515 = vpop.f32.mrb[0].mxu0
    %v5516 = vadd.f32 %v5475, %v5515
    %v5517 = vpop.f32.mrb[0].mxu0
    %v5518 = vpop.f32.mrb[0].mxu0
    %5519 = vdwg.mxu0
    %5520 = vmatprep.subr.bf16.mxu0 %v4432
    %5521 = vmatpush1.bf16.msra.mxu0 %v4431
    %5522 = vmatprep.subr.bf16.mxu0 0
    %5523 = vmatpush1.bf16.msra.mxu0 0
    %5524 = vmatprep.subr.bf16.mxu0 0
    %5525 = vmatpush1.bf16.msra.mxu0 0
    %5526 = vmatprep.subr.bf16.mxu0 0
    %5527 = vmatpush1.bf16.msra.mxu0 0
    %5528 = vmatprep.subr.bf16.mxu0 0
    %5529 = vmatpush1.bf16.msra.mxu0 0
    %5530 = vmatprep.subr.bf16.mxu0 0
    %5531 = vmatpush1.bf16.msra.mxu0 0
    %5532 = vmatprep.subr.bf16.mxu0 0
    %5533 = vmatpush1.bf16.msra.mxu0 0
    %5534 = vmatprep.subr.bf16.mxu0 0
    %5535 = vmatpush1.bf16.msra.mxu0 0
    %5536 = vmatprep.subr.bf16.mxu0 0
    %5537 = vmatpush1.bf16.msra.mxu0 0
    %5538 = vmatprep.subr.bf16.mxu0 0
    %5539 = vmatpush1.bf16.msra.mxu0 0
    %5540 = vmatprep.subr.bf16.mxu0 0
    %5541 = vmatpush1.bf16.msra.mxu0 0
    %5542 = vmatprep.subr.bf16.mxu0 0
    %5543 = vmatpush1.bf16.msra.mxu0 0
    %5544 = vmatprep.subr.bf16.mxu0 0
    %5545 = vmatpush1.bf16.msra.mxu0 0
    %5546 = vmatprep.subr.bf16.mxu0 0
    %5547 = vmatpush1.bf16.msra.mxu0 0
    %5548 = vmatprep.subr.bf16.mxu0 0
    %5549 = vmatpush1.bf16.msra.mxu0 0
    %5550 = vmatprep.subr.bf16.mxu0 0
    %5551 = vmatpush1.bf16.msra.mxu0 0
    %5552 = vmatprep.mubr.bf16.mxu0 0
    %5553 = vmatmul.mubr.bf16.gmra.mrb[0].mxu0 %v5231
    %v5554 = vpop.f32.mrb[0].mxu0
    %v5555 = vadd.f32 %v5514, %v5554
    %v5556 = vpop.f32.mrb[0].mxu0
    %v5557 = vadd.f32 %v5516, %v5556
    %v5558 = vpop.f32.mrb[0].mxu0
    %v5559 = vpop.f32.mrb[0].mxu0
    %5560 = vdwg.mxu0
    %5561 = vmatprep.subr.bf16.mxu0 %v3666
    %5562 = vmatpush1.bf16.msra.mxu0 %v3665
    %5563 = vmatprep.subr.bf16.mxu0 %v3682
    %5564 = vmatpush1.bf16.msra.mxu0 %v3681
    %5565 = vmatprep.subr.bf16.mxu0 %v3698
    %5566 = vmatpush1.bf16.msra.mxu0 %v3697
    %5567 = vmatprep.subr.bf16.mxu0 %v3714
    %5568 = vmatpush1.bf16.msra.mxu0 %v3713
    %5569 = vmatprep.subr.bf16.mxu0 %v3730
    %5570 = vmatpush1.bf16.msra.mxu0 %v3729
    %5571 = vmatprep.subr.bf16.mxu0 %v3746
    %5572 = vmatpush1.bf16.msra.mxu0 %v3745
    %5573 = vmatprep.subr.bf16.mxu0 %v3762
    %5574 = vmatpush1.bf16.msra.mxu0 %v3761
    %5575 = vmatprep.subr.bf16.mxu0 %v3778
    %5576 = vmatpush1.bf16.msra.mxu0 %v3777
    %5577 = vmatprep.subr.bf16.mxu0 %v3794
    %5578 = vmatpush1.bf16.msra.mxu0 %v3793
    %5579 = vmatprep.subr.bf16.mxu0 %v3810
    %5580 = vmatpush1.bf16.msra.mxu0 %v3809
    %5581 = vmatprep.subr.bf16.mxu0 %v3826
    %5582 = vmatpush1.bf16.msra.mxu0 %v3825
    %5583 = vmatprep.subr.bf16.mxu0 %v3842
    %5584 = vmatpush1.bf16.msra.mxu0 %v3841
    %5585 = vmatprep.subr.bf16.mxu0 %v3858
    %5586 = vmatpush1.bf16.msra.mxu0 %v3857
    %5587 = vmatprep.subr.bf16.mxu0 %v3874
    %5588 = vmatpush1.bf16.msra.mxu0 %v3873
    %5589 = vmatprep.subr.bf16.mxu0 %v3890
    %5590 = vmatpush1.bf16.msra.mxu0 %v3889
    %5591 = vmatprep.subr.bf16.mxu0 %v3906
    %5592 = vmatpush1.bf16.msra.mxu0 %v3905
    %5593 = vmatprep.mubr.bf16.mxu0 %v1303
    %5594 = vmatmul.mubr.bf16.gmra.mrb[0].mxu0 %v1302
    %v5595 = vpop.f32.mrb[0].mxu0
    %v5596 = vadd.f32 0.0, %v5595
    %v5597 = vpop.f32.mrb[0].mxu0
    %v5598 = vadd.f32 0.0, %v5597
    %v5599 = vpop.f32.mrb[0].mxu0
    %v5600 = vpop.f32.mrb[0].mxu0
    %5601 = vdwg.mxu0
    %5602 = vmatprep.subr.bf16.mxu0 %v3922
    %5603 = vmatpush1.bf16.msra.mxu0 %v3921
    %5604 = vmatprep.subr.bf16.mxu0 %v3938
    %5605 = vmatpush1.bf16.msra.mxu0 %v3937
    %5606 = vmatprep.subr.bf16.mxu0 %v3954
    %5607 = vmatpush1.bf16.msra.mxu0 %v3953
    %5608 = vmatprep.subr.bf16.mxu0 %v3970
    %5609 = vmatpush1.bf16.msra.mxu0 %v3969
    %5610 = vmatprep.subr.bf16.mxu0 %v3986
    %5611 = vmatpush1.bf16.msra.mxu0 %v3985
    %5612 = vmatprep.subr.bf16.mxu0 %v4002
    %5613 = vmatpush1.bf16.msra.mxu0 %v4001
    %5614 = vmatprep.subr.bf16.mxu0 %v4018
    %5615 = vmatpush1.bf16.msra.mxu0 %v4017
    %5616 = vmatprep.subr.bf16.mxu0 %v4034
    %5617 = vmatpush1.bf16.msra.mxu0 %v4033
    %5618 = vmatprep.subr.bf16.mxu0 %v4050
    %5619 = vmatpush1.bf16.msra.mxu0 %v4049
    %5620 = vmatprep.subr.bf16.mxu0 %v4066
    %5621 = vmatpush1.bf16.msra.mxu0 %v4065
    %5622 = vmatprep.subr.bf16.mxu0 %v4082
    %5623 = vmatpush1.bf16.msra.mxu0 %v4081
    %5624 = vmatprep.subr.bf16.mxu0 %v4098
    %5625 = vmatpush1.bf16.msra.mxu0 %v4097
    %5626 = vmatprep.subr.bf16.mxu0 %v4114
    %5627 = vmatpush1.bf16.msra.mxu0 %v4113
    %5628 = vmatprep.subr.bf16.mxu0 %v4130
    %5629 = vmatpush1.bf16.msra.mxu0 %v4129
    %5630 = vmatprep.subr.bf16.mxu0 %v4146
    %5631 = vmatpush1.bf16.msra.mxu0 %v4145
    %5632 = vmatprep.subr.bf16.mxu0 %v4162
    %5633 = vmatpush1.bf16.msra.mxu0 %v4161
    %5634 = vmatprep.mubr.bf16.mxu0 %v1305
    %5635 = vmatmul.mubr.bf16.gmra.mrb[0].mxu0 %v1304
    %v5636 = vpop.f32.mrb[0].mxu0
    %v5637 = vadd.f32 %v5596, %v5636
    %v5638 = vpop.f32.mrb[0].mxu0
    %v5639 = vadd.f32 %v5598, %v5638
    %v5640 = vpop.f32.mrb[0].mxu0
    %v5641 = vpop.f32.mrb[0].mxu0
    %5642 = vdwg.mxu0
    %5643 = vmatprep.subr.bf16.mxu0 %v4178
    %5644 = vmatpush1.bf16.msra.mxu0 %v4177
    %5645 = vmatprep.subr.bf16.mxu0 %v4194
    %5646 = vmatpush1.bf16.msra.mxu0 %v4193
    %5647 = vmatprep.subr.bf16.mxu0 %v4210
    %5648 = vmatpush1.bf16.msra.mxu0 %v4209
    %5649 = vmatprep.subr.bf16.mxu0 %v4226
    %5650 = vmatpush1.bf16.msra.mxu0 %v4225
    %5651 = vmatprep.subr.bf16.mxu0 %v4242
    %5652 = vmatpush1.bf16.msra.mxu0 %v4241
    %5653 = vmatprep.subr.bf16.mxu0 %v4258
    %5654 = vmatpush1.bf16.msra.mxu0 %v4257
    %5655 = vmatprep.subr.bf16.mxu0 %v4274
    %5656 = vmatpush1.bf16.msra.mxu0 %v4273
    %5657 = vmatprep.subr.bf16.mxu0 %v4290
    %5658 = vmatpush1.bf16.msra.mxu0 %v4289
    %5659 = vmatprep.subr.bf16.mxu0 %v4306
    %5660 = vmatpush1.bf16.msra.mxu0 %v4305
    %5661 = vmatprep.subr.bf16.mxu0 %v4322
    %5662 = vmatpush1.bf16.msra.mxu0 %v4321
    %5663 = vmatprep.subr.bf16.mxu0 %v4338
    %5664 = vmatpush1.bf16.msra.mxu0 %v4337
    %5665 = vmatprep.subr.bf16.mxu0 %v4354
    %5666 = vmatpush1.bf16.msra.mxu0 %v4353
    %5667 = vmatprep.subr.bf16.mxu0 %v4370
    %5668 = vmatpush1.bf16.msra.mxu0 %v4369
    %5669 = vmatprep.subr.bf16.mxu0 %v4386
    %5670 = vmatpush1.bf16.msra.mxu0 %v4385
    %5671 = vmatprep.subr.bf16.mxu0 %v4402
    %5672 = vmatpush1.bf16.msra.mxu0 %v4401
    %5673 = vmatprep.subr.bf16.mxu0 %v4418
    %5674 = vmatpush1.bf16.msra.mxu0 %v4417
    %5675 = vmatprep.mubr.bf16.mxu0 %v1307
    %5676 = vmatmul.mubr.bf16.gmra.mrb[0].mxu0 %v1306
    %v5677 = vpop.f32.mrb[0].mxu0
    %v5678 = vadd.f32 %v5637, %v5677
    %v5679 = vpop.f32.mrb[0].mxu0
    %v5680 = vadd.f32 %v5639, %v5679
    %v5681 = vpop.f32.mrb[0].mxu0
    %v5682 = vpop.f32.mrb[0].mxu0
    %5683 = vdwg.mxu0
    %5684 = vmatprep.subr.bf16.mxu0 %v4434
    %5685 = vmatpush1.bf16.msra.mxu0 %v4433
    %5686 = vmatprep.subr.bf16.mxu0 0
    %5687 = vmatpush1.bf16.msra.mxu0 0
    %5688 = vmatprep.subr.bf16.mxu0 0
    %5689 = vmatpush1.bf16.msra.mxu0 0
    %5690 = vmatprep.subr.bf16.mxu0 0
    %5691 = vmatpush1.bf16.msra.mxu0 0
    %5692 = vmatprep.subr.bf16.mxu0 0
    %5693 = vmatpush1.bf16.msra.mxu0 0
    %5694 = vmatprep.subr.bf16.mxu0 0
    %5695 = vmatpush1.bf16.msra.mxu0 0
    %5696 = vmatprep.subr.bf16.mxu0 0
    %5697 = vmatpush1.bf16.msra.mxu0 0
    %5698 = vmatprep.subr.bf16.mxu0 0
    %5699 = vmatpush1.bf16.msra.mxu0 0
    %5700 = vmatprep.subr.bf16.mxu0 0
    %5701 = vmatpush1.bf16.msra.mxu0 0
    %5702 = vmatprep.subr.bf16.mxu0 0
    %5703 = vmatpush1.bf16.msra.mxu0 0
    %5704 = vmatprep.subr.bf16.mxu0 0
    %5705 = vmatpush1.bf16.msra.mxu0 0
    %5706 = vmatprep.subr.bf16.mxu0 0
    %5707 = vmatpush1.bf16.msra.mxu0 0
    %5708 = vmatprep.subr.bf16.mxu0 0
    %5709 = vmatpush1.bf16.msra.mxu0 0
    %5710 = vmatprep.subr.bf16.mxu0 0
    %5711 = vmatpush1.bf16.msra.mxu0 0
    %5712 = vmatprep.subr.bf16.mxu0 0
    %5713 = vmatpush1.bf16.msra.mxu0 0
    %5714 = vmatprep.subr.bf16.mxu0 0
    %5715 = vmatpush1.bf16.msra.mxu0 0
    %5716 = vmatprep.mubr.bf16.mxu0 0
    %5717 = vmatmul.mubr.bf16.gmra.mrb[0].mxu0 %v5231
    %v5718 = vpop.f32.mrb[0].mxu0
    %v5719 = vadd.f32 %v5678, %v5718
    %v5720 = vpop.f32.mrb[0].mxu0
    %v5721 = vadd.f32 %v5680, %v5720
    %v5722 = vpop.f32.mrb[0].mxu0
    %v5723 = vpop.f32.mrb[0].mxu0
    %5724 = vdwg.mxu0
    %5725 = vmatprep.subr.bf16.mxu0 %v3668
    %5726 = vmatpush1.bf16.msra.mxu0 %v3667
    %5727 = vmatprep.subr.bf16.mxu0 %v3684
    %5728 = vmatpush1.bf16.msra.mxu0 %v3683
    %5729 = vmatprep.subr.bf16.mxu0 %v3700
    %5730 = vmatpush1.bf16.msra.mxu0 %v3699
    %5731 = vmatprep.subr.bf16.mxu0 %v3716
    %5732 = vmatpush1.bf16.msra.mxu0 %v3715
    %5733 = vmatprep.subr.bf16.mxu0 %v3732
    %5734 = vmatpush1.bf16.msra.mxu0 %v3731
    %5735 = vmatprep.subr.bf16.mxu0 %v3748
    %5736 = vmatpush1.bf16.msra.mxu0 %v3747
    %5737 = vmatprep.subr.bf16.mxu0 %v3764
    %5738 = vmatpush1.bf16.msra.mxu0 %v3763
    %5739 = vmatprep.subr.bf16.mxu0 %v3780
    %5740 = vmatpush1.bf16.msra.mxu0 %v3779
    %5741 = vmatprep.subr.bf16.mxu0 %v3796
    %5742 = vmatpush1.bf16.msra.mxu0 %v3795
    %5743 = vmatprep.subr.bf16.mxu0 %v3812
    %5744 = vmatpush1.bf16.msra.mxu0 %v3811
    %5745 = vmatprep.subr.bf16.mxu0 %v3828
    %5746 = vmatpush1.bf16.msra.mxu0 %v3827
    %5747 = vmatprep.subr.bf16.mxu0 %v3844
    %5748 = vmatpush1.bf16.msra.mxu0 %v3843
    %5749 = vmatprep.subr.bf16.mxu0 %v3860
    %5750 = vmatpush1.bf16.msra.mxu0 %v3859
    %5751 = vmatprep.subr.bf16.mxu0 %v3876
    %5752 = vmatpush1.bf16.msra.mxu0 %v3875
    %5753 = vmatprep.subr.bf16.mxu0 %v3892
    %5754 = vmatpush1.bf16.msra.mxu0 %v3891
    %5755 = vmatprep.subr.bf16.mxu0 %v3908
    %5756 = vmatpush1.bf16.msra.mxu0 %v3907
    %5757 = vmatprep.mubr.bf16.mxu0 %v1303
    %5758 = vmatmul.mubr.bf16.gmra.mrb[0].mxu0 %v1302
    %v5759 = vpop.f32.mrb[0].mxu0
    %v5760 = vadd.f32 0.0, %v5759
    %v5761 = vpop.f32.mrb[0].mxu0
    %v5762 = vadd.f32 0.0, %v5761
    %v5763 = vpop.f32.mrb[0].mxu0
    %v5764 = vpop.f32.mrb[0].mxu0
    %5765 = vdwg.mxu0
    %5766 = vmatprep.subr.bf16.mxu0 %v3924
    %5767 = vmatpush1.bf16.msra.mxu0 %v3923
    %5768 = vmatprep.subr.bf16.mxu0 %v3940
    %5769 = vmatpush1.bf16.msra.mxu0 %v3939
    %5770 = vmatprep.subr.bf16.mxu0 %v3956
    %5771 = vmatpush1.bf16.msra.mxu0 %v3955
    %5772 = vmatprep.subr.bf16.mxu0 %v3972
    %5773 = vmatpush1.bf16.msra.mxu0 %v3971
    %5774 = vmatprep.subr.bf16.mxu0 %v3988
    %5775 = vmatpush1.bf16.msra.mxu0 %v3987
    %5776 = vmatprep.subr.bf16.mxu0 %v4004
    %5777 = vmatpush1.bf16.msra.mxu0 %v4003
    %5778 = vmatprep.subr.bf16.mxu0 %v4020
    %5779 = vmatpush1.bf16.msra.mxu0 %v4019
    %5780 = vmatprep.subr.bf16.mxu0 %v4036
    %5781 = vmatpush1.bf16.msra.mxu0 %v4035
    %5782 = vmatprep.subr.bf16.mxu0 %v4052
    %5783 = vmatpush1.bf16.msra.mxu0 %v4051
    %5784 = vmatprep.subr.bf16.mxu0 %v4068
    %5785 = vmatpush1.bf16.msra.mxu0 %v4067
    %5786 = vmatprep.subr.bf16.mxu0 %v4084
    %5787 = vmatpush1.bf16.msra.mxu0 %v4083
    %5788 = vmatprep.subr.bf16.mxu0 %v4100
    %5789 = vmatpush1.bf16.msra.mxu0 %v4099
    %5790 = vmatprep.subr.bf16.mxu0 %v4116
    %5791 = vmatpush1.bf16.msra.mxu0 %v4115
    %5792 = vmatprep.subr.bf16.mxu0 %v4132
    %5793 = vmatpush1.bf16.msra.mxu0 %v4131
    %5794 = vmatprep.subr.bf16.mxu0 %v4148
    %5795 = vmatpush1.bf16.msra.mxu0 %v4147
    %5796 = vmatprep.subr.bf16.mxu0 %v4164
    %5797 = vmatpush1.bf16.msra.mxu0 %v4163
    %5798 = vmatprep.mubr.bf16.mxu0 %v1305
    %5799 = vmatmul.mubr.bf16.gmra.mrb[0].mxu0 %v1304
    %v5800 = vpop.f32.mrb[0].mxu0
    %v5801 = vadd.f32 %v5760, %v5800
    %v5802 = vpop.f32.mrb[0].mxu0
    %v5803 = vadd.f32 %v5762, %v5802
    %v5804 = vpop.f32.mrb[0].mxu0
    %v5805 = vpop.f32.mrb[0].mxu0
    %5806 = vdwg.mxu0
    %5807 = vmatprep.subr.bf16.mxu0 %v4180
    %5808 = vmatpush1.bf16.msra.mxu0 %v4179
    %5809 = vmatprep.subr.bf16.mxu0 %v4196
    %5810 = vmatpush1.bf16.msra.mxu0 %v4195
    %5811 = vmatprep.subr.bf16.mxu0 %v4212
    %5812 = vmatpush1.bf16.msra.mxu0 %v4211
    %5813 = vmatprep.subr.bf16.mxu0 %v4228
    %5814 = vmatpush1.bf16.msra.mxu0 %v4227
    %5815 = vmatprep.subr.bf16.mxu0 %v4244
    %5816 = vmatpush1.bf16.msra.mxu0 %v4243
    %5817 = vmatprep.subr.bf16.mxu0 %v4260
    %5818 = vmatpush1.bf16.msra.mxu0 %v4259
    %5819 = vmatprep.subr.bf16.mxu0 %v4276
    %5820 = vmatpush1.bf16.msra.mxu0 %v4275
    %5821 = vmatprep.subr.bf16.mxu0 %v4292
    %5822 = vmatpush1.bf16.msra.mxu0 %v4291
    %5823 = vmatprep.subr.bf16.mxu0 %v4308
    %5824 = vmatpush1.bf16.msra.mxu0 %v4307
    %5825 = vmatprep.subr.bf16.mxu0 %v4324
    %5826 = vmatpush1.bf16.msra.mxu0 %v4323
    %5827 = vmatprep.subr.bf16.mxu0 %v4340
    %5828 = vmatpush1.bf16.msra.mxu0 %v4339
    %5829 = vmatprep.subr.bf16.mxu0 %v4356
    %5830 = vmatpush1.bf16.msra.mxu0 %v4355
    %5831 = vmatprep.subr.bf16.mxu0 %v4372
    %5832 = vmatpush1.bf16.msra.mxu0 %v4371
    %5833 = vmatprep.subr.bf16.mxu0 %v4388
    %5834 = vmatpush1.bf16.msra.mxu0 %v4387
    %5835 = vmatprep.subr.bf16.mxu0 %v4404
    %5836 = vmatpush1.bf16.msra.mxu0 %v4403
    %5837 = vmatprep.subr.bf16.mxu0 %v4420
    %5838 = vmatpush1.bf16.msra.mxu0 %v4419
    %5839 = vmatprep.mubr.bf16.mxu0 %v1307
    %5840 = vmatmul.mubr.bf16.gmra.mrb[0].mxu0 %v1306
    %v5841 = vpop.f32.mrb[0].mxu0
    %v5842 = vadd.f32 %v5801, %v5841
    %v5843 = vpop.f32.mrb[0].mxu0
    %v5844 = vadd.f32 %v5803, %v5843
    %v5845 = vpop.f32.mrb[0].mxu0
    %v5846 = vpop.f32.mrb[0].mxu0
    %5847 = vdwg.mxu0
    %5848 = vmatprep.subr.bf16.mxu0 %v4436
    %5849 = vmatpush1.bf16.msra.mxu0 %v4435
    %5850 = vmatprep.subr.bf16.mxu0 0
    %5851 = vmatpush1.bf16.msra.mxu0 0
    %5852 = vmatprep.subr.bf16.mxu0 0
    %5853 = vmatpush1.bf16.msra.mxu0 0
    %5854 = vmatprep.subr.bf16.mxu0 0
    %5855 = vmatpush1.bf16.msra.mxu0 0
    %5856 = vmatprep.subr.bf16.mxu0 0
    %5857 = vmatpush1.bf16.msra.mxu0 0
    %5858 = vmatprep.subr.bf16.mxu0 0
    %5859 = vmatpush1.bf16.msra.mxu0 0
    %5860 = vmatprep.subr.bf16.mxu0 0
    %5861 = vmatpush1.bf16.msra.mxu0 0
    %5862 = vmatprep.subr.bf16.mxu0 0
    %5863 = vmatpush1.bf16.msra.mxu0 0
    %5864 = vmatprep.subr.bf16.mxu0 0
    %5865 = vmatpush1.bf16.msra.mxu0 0
    %5866 = vmatprep.subr.bf16.mxu0 0
    %5867 = vmatpush1.bf16.msra.mxu0 0
    %5868 = vmatprep.subr.bf16.mxu0 0
    %5869 = vmatpush1.bf16.msra.mxu0 0
    %5870 = vmatprep.subr.bf16.mxu0 0
    %5871 = vmatpush1.bf16.msra.mxu0 0
    %5872 = vmatprep.subr.bf16.mxu0 0
    %5873 = vmatpush1.bf16.msra.mxu0 0
    %5874 = vmatprep.subr.bf16.mxu0 0
    %5875 = vmatpush1.bf16.msra.mxu0 0
    %5876 = vmatprep.subr.bf16.mxu0 0
    %5877 = vmatpush1.bf16.msra.mxu0 0
    %5878 = vmatprep.subr.bf16.mxu0 0
    %5879 = vmatpush1.bf16.msra.mxu0 0
    %5880 = vmatprep.mubr.bf16.mxu0 0
    %5881 = vmatmul.mubr.bf16.gmra.mrb[0].mxu0 %v5231
    %v5882 = vpop.f32.mrb[0].mxu0
    %v5883 = vadd.f32 %v5842, %v5882
    %v5884 = vpop.f32.mrb[0].mxu0
    %v5885 = vadd.f32 %v5844, %v5884
    %v5886 = vpop.f32.mrb[0].mxu0
    %v5887 = vpop.f32.mrb[0].mxu0
    %5888 = vdwg.mxu0
    %5889 = vmatprep.subr.bf16.mxu0 %v3670
    %5890 = vmatpush1.bf16.msra.mxu0 %v3669
    %5891 = vmatprep.subr.bf16.mxu0 %v3686
    %5892 = vmatpush1.bf16.msra.mxu0 %v3685
    %5893 = vmatprep.subr.bf16.mxu0 %v3702
    %5894 = vmatpush1.bf16.msra.mxu0 %v3701
    %5895 = vmatprep.subr.bf16.mxu0 %v3718
    %5896 = vmatpush1.bf16.msra.mxu0 %v3717
    %5897 = vmatprep.subr.bf16.mxu0 %v3734
    %5898 = vmatpush1.bf16.msra.mxu0 %v3733
    %5899 = vmatprep.subr.bf16.mxu0 %v3750
    %5900 = vmatpush1.bf16.msra.mxu0 %v3749
    %5901 = vmatprep.subr.bf16.mxu0 %v3766
    %5902 = vmatpush1.bf16.msra.mxu0 %v3765
    %5903 = vmatprep.subr.bf16.mxu0 %v3782
    %5904 = vmatpush1.bf16.msra.mxu0 %v3781
    %5905 = vmatprep.subr.bf16.mxu0 %v3798
    %5906 = vmatpush1.bf16.msra.mxu0 %v3797
    %5907 = vmatprep.subr.bf16.mxu0 %v3814
    %5908 = vmatpush1.bf16.msra.mxu0 %v3813
    %5909 = vmatprep.subr.bf16.mxu0 %v3830
    %5910 = vmatpush1.bf16.msra.mxu0 %v3829
    %5911 = vmatprep.subr.bf16.mxu0 %v3846
    %5912 = vmatpush1.bf16.msra.mxu0 %v3845
    %5913 = vmatprep.subr.bf16.mxu0 %v3862
    %5914 = vmatpush1.bf16.msra.mxu0 %v3861
    %5915 = vmatprep.subr.bf16.mxu0 %v3878
    %5916 = vmatpush1.bf16.msra.mxu0 %v3877
    %5917 = vmatprep.subr.bf16.mxu0 %v3894
    %5918 = vmatpush1.bf16.msra.mxu0 %v3893
    %5919 = vmatprep.subr.bf16.mxu0 %v3910
    %5920 = vmatpush1.bf16.msra.mxu0 %v3909
    %5921 = vmatprep.mubr.bf16.mxu0 %v1303
    %5922 = vmatmul.mubr.bf16.gmra.mrb[0].mxu0 %v1302
    %v5923 = vpop.f32.mrb[0].mxu0
    %v5924 = vadd.f32 0.0, %v5923
    %v5925 = vpop.f32.mrb[0].mxu0
    %v5926 = vadd.f32 0.0, %v5925
    %v5927 = vpop.f32.mrb[0].mxu0
    %v5928 = vpop.f32.mrb[0].mxu0
    %5929 = vdwg.mxu0
    %5930 = vmatprep.subr.bf16.mxu0 %v3926
    %5931 = vmatpush1.bf16.msra.mxu0 %v3925
    %5932 = vmatprep.subr.bf16.mxu0 %v3942
    %5933 = vmatpush1.bf16.msra.mxu0 %v3941
    %5934 = vmatprep.subr.bf16.mxu0 %v3958
    %5935 = vmatpush1.bf16.msra.mxu0 %v3957
    %5936 = vmatprep.subr.bf16.mxu0 %v3974
    %5937 = vmatpush1.bf16.msra.mxu0 %v3973
    %5938 = vmatprep.subr.bf16.mxu0 %v3990
    %5939 = vmatpush1.bf16.msra.mxu0 %v3989
    %5940 = vmatprep.subr.bf16.mxu0 %v4006
    %5941 = vmatpush1.bf16.msra.mxu0 %v4005
    %5942 = vmatprep.subr.bf16.mxu0 %v4022
    %5943 = vmatpush1.bf16.msra.mxu0 %v4021
    %5944 = vmatprep.subr.bf16.mxu0 %v4038
    %5945 = vmatpush1.bf16.msra.mxu0 %v4037
    %5946 = vmatprep.subr.bf16.mxu0 %v4054
    %5947 = vmatpush1.bf16.msra.mxu0 %v4053
    %5948 = vmatprep.subr.bf16.mxu0 %v4070
    %5949 = vmatpush1.bf16.msra.mxu0 %v4069
    %5950 = vmatprep.subr.bf16.mxu0 %v4086
    %5951 = vmatpush1.bf16.msra.mxu0 %v4085
    %5952 = vmatprep.subr.bf16.mxu0 %v4102
    %5953 = vmatpush1.bf16.msra.mxu0 %v4101
    %5954 = vmatprep.subr.bf16.mxu0 %v4118
    %5955 = vmatpush1.bf16.msra.mxu0 %v4117
    %5956 = vmatprep.subr.bf16.mxu0 %v4134
    %5957 = vmatpush1.bf16.msra.mxu0 %v4133
    %5958 = vmatprep.subr.bf16.mxu0 %v4150
    %5959 = vmatpush1.bf16.msra.mxu0 %v4149
    %5960 = vmatprep.subr.bf16.mxu0 %v4166
    %5961 = vmatpush1.bf16.msra.mxu0 %v4165
    %5962 = vmatprep.mubr.bf16.mxu0 %v1305
    %5963 = vmatmul.mubr.bf16.gmra.mrb[0].mxu0 %v1304
    %v5964 = vpop.f32.mrb[0].mxu0
    %v5965 = vadd.f32 %v5924, %v5964
    %v5966 = vpop.f32.mrb[0].mxu0
    %v5967 = vadd.f32 %v5926, %v5966
    %v5968 = vpop.f32.mrb[0].mxu0
    %v5969 = vpop.f32.mrb[0].mxu0
    %5970 = vdwg.mxu0
    %5971 = vmatprep.subr.bf16.mxu0 %v4182
    %5972 = vmatpush1.bf16.msra.mxu0 %v4181
    %5973 = vmatprep.subr.bf16.mxu0 %v4198
    %5974 = vmatpush1.bf16.msra.mxu0 %v4197
    %5975 = vmatprep.subr.bf16.mxu0 %v4214
    %5976 = vmatpush1.bf16.msra.mxu0 %v4213
    %5977 = vmatprep.subr.bf16.mxu0 %v4230
    %5978 = vmatpush1.bf16.msra.mxu0 %v4229
    %5979 = vmatprep.subr.bf16.mxu0 %v4246
    %5980 = vmatpush1.bf16.msra.mxu0 %v4245
    %5981 = vmatprep.subr.bf16.mxu0 %v4262
    %5982 = vmatpush1.bf16.msra.mxu0 %v4261
    %5983 = vmatprep.subr.bf16.mxu0 %v4278
    %5984 = vmatpush1.bf16.msra.mxu0 %v4277
    %5985 = vmatprep.subr.bf16.mxu0 %v4294
    %5986 = vmatpush1.bf16.msra.mxu0 %v4293
    %5987 = vmatprep.subr.bf16.mxu0 %v4310
    %5988 = vmatpush1.bf16.msra.mxu0 %v4309
    %5989 = vmatprep.subr.bf16.mxu0 %v4326
    %5990 = vmatpush1.bf16.msra.mxu0 %v4325
    %5991 = vmatprep.subr.bf16.mxu0 %v4342
    %5992 = vmatpush1.bf16.msra.mxu0 %v4341
    %5993 = vmatprep.subr.bf16.mxu0 %v4358
    %5994 = vmatpush1.bf16.msra.mxu0 %v4357
    %5995 = vmatprep.subr.bf16.mxu0 %v4374
    %5996 = vmatpush1.bf16.msra.mxu0 %v4373
    %5997 = vmatprep.subr.bf16.mxu0 %v4390
    %5998 = vmatpush1.bf16.msra.mxu0 %v4389
    %5999 = vmatprep.subr.bf16.mxu0 %v4406
    %6000 = vmatpush1.bf16.msra.mxu0 %v4405
    %6001 = vmatprep.subr.bf16.mxu0 %v4422
    %6002 = vmatpush1.bf16.msra.mxu0 %v4421
    %6003 = vmatprep.mubr.bf16.mxu0 %v1307
    %6004 = vmatmul.mubr.bf16.gmra.mrb[0].mxu0 %v1306
    %v6005 = vpop.f32.mrb[0].mxu0
    %v6006 = vadd.f32 %v5965, %v6005
    %v6007 = vpop.f32.mrb[0].mxu0
    %v6008 = vadd.f32 %v5967, %v6007
    %v6009 = vpop.f32.mrb[0].mxu0
    %v6010 = vpop.f32.mrb[0].mxu0
    %6011 = vdwg.mxu0
    %6012 = vmatprep.subr.bf16.mxu0 %v4438
    %6013 = vmatpush1.bf16.msra.mxu0 %v4437
    %6014 = vmatprep.subr.bf16.mxu0 0
    %6015 = vmatpush1.bf16.msra.mxu0 0
    %6016 = vmatprep.subr.bf16.mxu0 0
    %6017 = vmatpush1.bf16.msra.mxu0 0
    %6018 = vmatprep.subr.bf16.mxu0 0
    %6019 = vmatpush1.bf16.msra.mxu0 0
    %6020 = vmatprep.subr.bf16.mxu0 0
    %6021 = vmatpush1.bf16.msra.mxu0 0
    %6022 = vmatprep.subr.bf16.mxu0 0
    %6023 = vmatpush1.bf16.msra.mxu0 0
    %6024 = vmatprep.subr.bf16.mxu0 0
    %6025 = vmatpush1.bf16.msra.mxu0 0
    %6026 = vmatprep.subr.bf16.mxu0 0
    %6027 = vmatpush1.bf16.msra.mxu0 0
    %6028 = vmatprep.subr.bf16.mxu0 0
    %6029 = vmatpush1.bf16.msra.mxu0 0
    %6030 = vmatprep.subr.bf16.mxu0 0
    %6031 = vmatpush1.bf16.msra.mxu0 0
    %6032 = vmatprep.subr.bf16.mxu0 0
    %6033 = vmatpush1.bf16.msra.mxu0 0
    %6034 = vmatprep.subr.bf16.mxu0 0
    %6035 = vmatpush1.bf16.msra.mxu0 0
    %6036 = vmatprep.subr.bf16.mxu0 0
    %6037 = vmatpush1.bf16.msra.mxu0 0
    %6038 = vmatprep.subr.bf16.mxu0 0
    %6039 = vmatpush1.bf16.msra.mxu0 0
    %6040 = vmatprep.subr.bf16.mxu0 0
    %6041 = vmatpush1.bf16.msra.mxu0 0
    %6042 = vmatprep.subr.bf16.mxu0 0
    %6043 = vmatpush1.bf16.msra.mxu0 0
    %6044 = vmatprep.mubr.bf16.mxu0 0
    %6045 = vmatmul.mubr.bf16.gmra.mrb[0].mxu0 %v5231
    %v6046 = vpop.f32.mrb[0].mxu0
    %v6047 = vadd.f32 %v6006, %v6046
    %v6048 = vpop.f32.mrb[0].mxu0
    %v6049 = vadd.f32 %v6008, %v6048
    %v6050 = vpop.f32.mrb[0].mxu0
    %v6051 = vpop.f32.mrb[0].mxu0
    %6052 = vdwg.mxu0
    %6053 = vmatprep.subr.bf16.mxu0 %v3672
    %6054 = vmatpush1.bf16.msra.mxu0 %v3671
    %6055 = vmatprep.subr.bf16.mxu0 %v3688
    %6056 = vmatpush1.bf16.msra.mxu0 %v3687
    %6057 = vmatprep.subr.bf16.mxu0 %v3704
    %6058 = vmatpush1.bf16.msra.mxu0 %v3703
    %6059 = vmatprep.subr.bf16.mxu0 %v3720
    %6060 = vmatpush1.bf16.msra.mxu0 %v3719
    %6061 = vmatprep.subr.bf16.mxu0 %v3736
    %6062 = vmatpush1.bf16.msra.mxu0 %v3735
    %6063 = vmatprep.subr.bf16.mxu0 %v3752
    %6064 = vmatpush1.bf16.msra.mxu0 %v3751
    %6065 = vmatprep.subr.bf16.mxu0 %v3768
    %6066 = vmatpush1.bf16.msra.mxu0 %v3767
    %6067 = vmatprep.subr.bf16.mxu0 %v3784
    %6068 = vmatpush1.bf16.msra.mxu0 %v3783
    %6069 = vmatprep.subr.bf16.mxu0 %v3800
    %6070 = vmatpush1.bf16.msra.mxu0 %v3799
    %6071 = vmatprep.subr.bf16.mxu0 %v3816
    %6072 = vmatpush1.bf16.msra.mxu0 %v3815
    %6073 = vmatprep.subr.bf16.mxu0 %v3832
    %6074 = vmatpush1.bf16.msra.mxu0 %v3831
    %6075 = vmatprep.subr.bf16.mxu0 %v3848
    %6076 = vmatpush1.bf16.msra.mxu0 %v3847
    %6077 = vmatprep.subr.bf16.mxu0 %v3864
    %6078 = vmatpush1.bf16.msra.mxu0 %v3863
    %6079 = vmatprep.subr.bf16.mxu0 %v3880
    %6080 = vmatpush1.bf16.msra.mxu0 %v3879
    %6081 = vmatprep.subr.bf16.mxu0 %v3896
    %6082 = vmatpush1.bf16.msra.mxu0 %v3895
    %6083 = vmatprep.subr.bf16.mxu0 %v3912
    %6084 = vmatpush1.bf16.msra.mxu0 %v3911
    %6085 = vmatprep.mubr.bf16.mxu0 %v1303
    %6086 = vmatmul.mubr.bf16.gmra.mrb[0].mxu0 %v1302
    %v6087 = vpop.f32.mrb[0].mxu0
    %v6088 = vadd.f32 0.0, %v6087
    %v6089 = vpop.f32.mrb[0].mxu0
    %v6090 = vadd.f32 0.0, %v6089
    %v6091 = vpop.f32.mrb[0].mxu0
    %v6092 = vpop.f32.mrb[0].mxu0
    %6093 = vdwg.mxu0
    %6094 = vmatprep.subr.bf16.mxu0 %v3928
    %6095 = vmatpush1.bf16.msra.mxu0 %v3927
    %6096 = vmatprep.subr.bf16.mxu0 %v3944
    %6097 = vmatpush1.bf16.msra.mxu0 %v3943
    %6098 = vmatprep.subr.bf16.mxu0 %v3960
    %6099 = vmatpush1.bf16.msra.mxu0 %v3959
    %6100 = vmatprep.subr.bf16.mxu0 %v3976
    %6101 = vmatpush1.bf16.msra.mxu0 %v3975
    %6102 = vmatprep.subr.bf16.mxu0 %v3992
    %6103 = vmatpush1.bf16.msra.mxu0 %v3991
    %6104 = vmatprep.subr.bf16.mxu0 %v4008
    %6105 = vmatpush1.bf16.msra.mxu0 %v4007
    %6106 = vmatprep.subr.bf16.mxu0 %v4024
    %6107 = vmatpush1.bf16.msra.mxu0 %v4023
    %6108 = vmatprep.subr.bf16.mxu0 %v4040
    %6109 = vmatpush1.bf16.msra.mxu0 %v4039
    %6110 = vmatprep.subr.bf16.mxu0 %v4056
    %6111 = vmatpush1.bf16.msra.mxu0 %v4055
    %6112 = vmatprep.subr.bf16.mxu0 %v4072
    %6113 = vmatpush1.bf16.msra.mxu0 %v4071
    %6114 = vmatprep.subr.bf16.mxu0 %v4088
    %6115 = vmatpush1.bf16.msra.mxu0 %v4087
    %6116 = vmatprep.subr.bf16.mxu0 %v4104
    %6117 = vmatpush1.bf16.msra.mxu0 %v4103
    %6118 = vmatprep.subr.bf16.mxu0 %v4120
    %6119 = vmatpush1.bf16.msra.mxu0 %v4119
    %6120 = vmatprep.subr.bf16.mxu0 %v4136
    %6121 = vmatpush1.bf16.msra.mxu0 %v4135
    %6122 = vmatprep.subr.bf16.mxu0 %v4152
    %6123 = vmatpush1.bf16.msra.mxu0 %v4151
    %6124 = vmatprep.subr.bf16.mxu0 %v4168
    %6125 = vmatpush1.bf16.msra.mxu0 %v4167
    %6126 = vmatprep.mubr.bf16.mxu0 %v1305
    %6127 = vmatmul.mubr.bf16.gmra.mrb[0].mxu0 %v1304
    %v6128 = vpop.f32.mrb[0].mxu0
    %v6129 = vadd.f32 %v6088, %v6128
    %v6130 = vpop.f32.mrb[0].mxu0
    %v6131 = vadd.f32 %v6090, %v6130
    %v6132 = vpop.f32.mrb[0].mxu0
    %v6133 = vpop.f32.mrb[0].mxu0
    %6134 = vdwg.mxu0
    %6135 = vmatprep.subr.bf16.mxu0 %v4184
    %6136 = vmatpush1.bf16.msra.mxu0 %v4183
    %6137 = vmatprep.subr.bf16.mxu0 %v4200
    %6138 = vmatpush1.bf16.msra.mxu0 %v4199
    %6139 = vmatprep.subr.bf16.mxu0 %v4216
    %6140 = vmatpush1.bf16.msra.mxu0 %v4215
    %6141 = vmatprep.subr.bf16.mxu0 %v4232
    %6142 = vmatpush1.bf16.msra.mxu0 %v4231
    %6143 = vmatprep.subr.bf16.mxu0 %v4248
    %6144 = vmatpush1.bf16.msra.mxu0 %v4247
    %6145 = vmatprep.subr.bf16.mxu0 %v4264
    %6146 = vmatpush1.bf16.msra.mxu0 %v4263
    %6147 = vmatprep.subr.bf16.mxu0 %v4280
    %6148 = vmatpush1.bf16.msra.mxu0 %v4279
    %6149 = vmatprep.subr.bf16.mxu0 %v4296
    %6150 = vmatpush1.bf16.msra.mxu0 %v4295
    %6151 = vmatprep.subr.bf16.mxu0 %v4312
    %6152 = vmatpush1.bf16.msra.mxu0 %v4311
    %6153 = vmatprep.subr.bf16.mxu0 %v4328
    %6154 = vmatpush1.bf16.msra.mxu0 %v4327
    %6155 = vmatprep.subr.bf16.mxu0 %v4344
    %6156 = vmatpush1.bf16.msra.mxu0 %v4343
    %6157 = vmatprep.subr.bf16.mxu0 %v4360
    %6158 = vmatpush1.bf16.msra.mxu0 %v4359
    %6159 = vmatprep.subr.bf16.mxu0 %v4376
    %6160 = vmatpush1.bf16.msra.mxu0 %v4375
    %6161 = vmatprep.subr.bf16.mxu0 %v4392
    %6162 = vmatpush1.bf16.msra.mxu0 %v4391
    %6163 = vmatprep.subr.bf16.mxu0 %v4408
    %6164 = vmatpush1.bf16.msra.mxu0 %v4407
    %6165 = vmatprep.subr.bf16.mxu0 %v4424
    %6166 = vmatpush1.bf16.msra.mxu0 %v4423
    %6167 = vmatprep.mubr.bf16.mxu0 %v1307
    %6168 = vmatmul.mubr.bf16.gmra.mrb[0].mxu0 %v1306
    %v6169 = vpop.f32.mrb[0].mxu0
    %v6170 = vadd.f32 %v6129, %v6169
    %v6171 = vpop.f32.mrb[0].mxu0
    %v6172 = vadd.f32 %v6131, %v6171
    %v6173 = vpop.f32.mrb[0].mxu0
    %v6174 = vpop.f32.mrb[0].mxu0
    %6175 = vdwg.mxu0
    %6176 = vmatprep.subr.bf16.mxu0 %v4440
    %6177 = vmatpush1.bf16.msra.mxu0 %v4439
    %6178 = vmatprep.subr.bf16.mxu0 0
    %6179 = vmatpush1.bf16.msra.mxu0 0
    %6180 = vmatprep.subr.bf16.mxu0 0
    %6181 = vmatpush1.bf16.msra.mxu0 0
    %6182 = vmatprep.subr.bf16.mxu0 0
    %6183 = vmatpush1.bf16.msra.mxu0 0
    %6184 = vmatprep.subr.bf16.mxu0 0
    %6185 = vmatpush1.bf16.msra.mxu0 0
    %6186 = vmatprep.subr.bf16.mxu0 0
    %6187 = vmatpush1.bf16.msra.mxu0 0
    %6188 = vmatprep.subr.bf16.mxu0 0
    %6189 = vmatpush1.bf16.msra.mxu0 0
    %6190 = vmatprep.subr.bf16.mxu0 0
    %6191 = vmatpush1.bf16.msra.mxu0 0
    %6192 = vmatprep.subr.bf16.mxu0 0
    %6193 = vmatpush1.bf16.msra.mxu0 0
    %6194 = vmatprep.subr.bf16.mxu0 0
    %6195 = vmatpush1.bf16.msra.mxu0 0
    %6196 = vmatprep.subr.bf16.mxu0 0
    %6197 = vmatpush1.bf16.msra.mxu0 0
    %6198 = vmatprep.subr.bf16.mxu0 0
    %6199 = vmatpush1.bf16.msra.mxu0 0
    %6200 = vmatprep.subr.bf16.mxu0 0
    %6201 = vmatpush1.bf16.msra.mxu0 0
    %6202 = vmatprep.subr.bf16.mxu0 0
    %6203 = vmatpush1.bf16.msra.mxu0 0
    %6204 = vmatprep.subr.bf16.mxu0 0
    %6205 = vmatpush1.bf16.msra.mxu0 0
    %6206 = vmatprep.subr.bf16.mxu0 0
    %6207 = vmatpush1.bf16.msra.mxu0 0
    %6208 = vmatprep.mubr.bf16.mxu0 0
    %6209 = vmatmul.mubr.bf16.gmra.mrb[0].mxu0 %v5231
    %v6210 = vpop.f32.mrb[0].mxu0
    %v6211 = vadd.f32 %v6170, %v6210
    %v6212 = vpop.f32.mrb[0].mxu0
    %v6213 = vadd.f32 %v6172, %v6212
    %v6214 = vpop.f32.mrb[0].mxu0
    %v6215 = vpop.f32.mrb[0].mxu0
    %6216 = vdwg.mxu0
    %6217 = vmatprep.subr.bf16.mxu0 %v3674
    %6218 = vmatpush1.bf16.msra.mxu0 %v3673
    %6219 = vmatprep.subr.bf16.mxu0 %v3690
    %6220 = vmatpush1.bf16.msra.mxu0 %v3689
    %6221 = vmatprep.subr.bf16.mxu0 %v3706
    %6222 = vmatpush1.bf16.msra.mxu0 %v3705
    %6223 = vmatprep.subr.bf16.mxu0 %v3722
    %6224 = vmatpush1.bf16.msra.mxu0 %v3721
    %6225 = vmatprep.subr.bf16.mxu0 %v3738
    %6226 = vmatpush1.bf16.msra.mxu0 %v3737
    %6227 = vmatprep.subr.bf16.mxu0 %v3754
    %6228 = vmatpush1.bf16.msra.mxu0 %v3753
    %6229 = vmatprep.subr.bf16.mxu0 %v3770
    %6230 = vmatpush1.bf16.msra.mxu0 %v3769
    %6231 = vmatprep.subr.bf16.mxu0 %v3786
    %6232 = vmatpush1.bf16.msra.mxu0 %v3785
    %6233 = vmatprep.subr.bf16.mxu0 %v3802
    %6234 = vmatpush1.bf16.msra.mxu0 %v3801
    %6235 = vmatprep.subr.bf16.mxu0 %v3818
    %6236 = vmatpush1.bf16.msra.mxu0 %v3817
    %6237 = vmatprep.subr.bf16.mxu0 %v3834
    %6238 = vmatpush1.bf16.msra.mxu0 %v3833
    %6239 = vmatprep.subr.bf16.mxu0 %v3850
    %6240 = vmatpush1.bf16.msra.mxu0 %v3849
    %6241 = vmatprep.subr.bf16.mxu0 %v3866
    %6242 = vmatpush1.bf16.msra.mxu0 %v3865
    %6243 = vmatprep.subr.bf16.mxu0 %v3882
    %6244 = vmatpush1.bf16.msra.mxu0 %v3881
    %6245 = vmatprep.subr.bf16.mxu0 %v3898
    %6246 = vmatpush1.bf16.msra.mxu0 %v3897
    %6247 = vmatprep.subr.bf16.mxu0 %v3914
    %6248 = vmatpush1.bf16.msra.mxu0 %v3913
    %6249 = vmatprep.mubr.bf16.mxu0 %v1303
    %6250 = vmatmul.mubr.bf16.gmra.mrb[0].mxu0 %v1302
    %v6251 = vpop.f32.mrb[0].mxu0
    %v6252 = vadd.f32 0.0, %v6251
    %v6253 = vpop.f32.mrb[0].mxu0
    %v6254 = vadd.f32 0.0, %v6253
    %v6255 = vpop.f32.mrb[0].mxu0
    %v6256 = vpop.f32.mrb[0].mxu0
    %6257 = vdwg.mxu0
    %6258 = vmatprep.subr.bf16.mxu0 %v3930
    %6259 = vmatpush1.bf16.msra.mxu0 %v3929
    %6260 = vmatprep.subr.bf16.mxu0 %v3946
    %6261 = vmatpush1.bf16.msra.mxu0 %v3945
    %6262 = vmatprep.subr.bf16.mxu0 %v3962
    %6263 = vmatpush1.bf16.msra.mxu0 %v3961
    %6264 = vmatprep.subr.bf16.mxu0 %v3978
    %6265 = vmatpush1.bf16.msra.mxu0 %v3977
    %6266 = vmatprep.subr.bf16.mxu0 %v3994
    %6267 = vmatpush1.bf16.msra.mxu0 %v3993
    %6268 = vmatprep.subr.bf16.mxu0 %v4010
    %6269 = vmatpush1.bf16.msra.mxu0 %v4009
    %6270 = vmatprep.subr.bf16.mxu0 %v4026
    %6271 = vmatpush1.bf16.msra.mxu0 %v4025
    %6272 = vmatprep.subr.bf16.mxu0 %v4042
    %6273 = vmatpush1.bf16.msra.mxu0 %v4041
    %6274 = vmatprep.subr.bf16.mxu0 %v4058
    %6275 = vmatpush1.bf16.msra.mxu0 %v4057
    %6276 = vmatprep.subr.bf16.mxu0 %v4074
    %6277 = vmatpush1.bf16.msra.mxu0 %v4073
    %6278 = vmatprep.subr.bf16.mxu0 %v4090
    %6279 = vmatpush1.bf16.msra.mxu0 %v4089
    %6280 = vmatprep.subr.bf16.mxu0 %v4106
    %6281 = vmatpush1.bf16.msra.mxu0 %v4105
    %6282 = vmatprep.subr.bf16.mxu0 %v4122
    %6283 = vmatpush1.bf16.msra.mxu0 %v4121
    %6284 = vmatprep.subr.bf16.mxu0 %v4138
    %6285 = vmatpush1.bf16.msra.mxu0 %v4137
    %6286 = vmatprep.subr.bf16.mxu0 %v4154
    %6287 = vmatpush1.bf16.msra.mxu0 %v4153
    %6288 = vmatprep.subr.bf16.mxu0 %v4170
    %6289 = vmatpush1.bf16.msra.mxu0 %v4169
    %6290 = vmatprep.mubr.bf16.mxu0 %v1305
    %6291 = vmatmul.mubr.bf16.gmra.mrb[0].mxu0 %v1304
    %v6292 = vpop.f32.mrb[0].mxu0
    %v6293 = vadd.f32 %v6252, %v6292
    %v6294 = vpop.f32.mrb[0].mxu0
    %v6295 = vadd.f32 %v6254, %v6294
    %v6296 = vpop.f32.mrb[0].mxu0
    %v6297 = vpop.f32.mrb[0].mxu0
    %6298 = vdwg.mxu0
    %6299 = vmatprep.subr.bf16.mxu0 %v4186
    %6300 = vmatpush1.bf16.msra.mxu0 %v4185
    %6301 = vmatprep.subr.bf16.mxu0 %v4202
    %6302 = vmatpush1.bf16.msra.mxu0 %v4201
    %6303 = vmatprep.subr.bf16.mxu0 %v4218
    %6304 = vmatpush1.bf16.msra.mxu0 %v4217
    %6305 = vmatprep.subr.bf16.mxu0 %v4234
    %6306 = vmatpush1.bf16.msra.mxu0 %v4233
    %6307 = vmatprep.subr.bf16.mxu0 %v4250
    %6308 = vmatpush1.bf16.msra.mxu0 %v4249
    %6309 = vmatprep.subr.bf16.mxu0 %v4266
    %6310 = vmatpush1.bf16.msra.mxu0 %v4265
    %6311 = vmatprep.subr.bf16.mxu0 %v4282
    %6312 = vmatpush1.bf16.msra.mxu0 %v4281
    %6313 = vmatprep.subr.bf16.mxu0 %v4298
    %6314 = vmatpush1.bf16.msra.mxu0 %v4297
    %6315 = vmatprep.subr.bf16.mxu0 %v4314
    %6316 = vmatpush1.bf16.msra.mxu0 %v4313
    %6317 = vmatprep.subr.bf16.mxu0 %v4330
    %6318 = vmatpush1.bf16.msra.mxu0 %v4329
    %6319 = vmatprep.subr.bf16.mxu0 %v4346
    %6320 = vmatpush1.bf16.msra.mxu0 %v4345
    %6321 = vmatprep.subr.bf16.mxu0 %v4362
    %6322 = vmatpush1.bf16.msra.mxu0 %v4361
    %6323 = vmatprep.subr.bf16.mxu0 %v4378
    %6324 = vmatpush1.bf16.msra.mxu0 %v4377
    %6325 = vmatprep.subr.bf16.mxu0 %v4394
    %6326 = vmatpush1.bf16.msra.mxu0 %v4393
    %6327 = vmatprep.subr.bf16.mxu0 %v4410
    %6328 = vmatpush1.bf16.msra.mxu0 %v4409
    %6329 = vmatprep.subr.bf16.mxu0 %v4426
    %6330 = vmatpush1.bf16.msra.mxu0 %v4425
    %6331 = vmatprep.mubr.bf16.mxu0 %v1307
    %6332 = vmatmul.mubr.bf16.gmra.mrb[0].mxu0 %v1306
    %v6333 = vpop.f32.mrb[0].mxu0
    %v6334 = vadd.f32 %v6293, %v6333
    %v6335 = vpop.f32.mrb[0].mxu0
    %v6336 = vadd.f32 %v6295, %v6335
    %v6337 = vpop.f32.mrb[0].mxu0
    %v6338 = vpop.f32.mrb[0].mxu0
    %6339 = vdwg.mxu0
    %6340 = vmatprep.subr.bf16.mxu0 %v4442
    %6341 = vmatpush1.bf16.msra.mxu0 %v4441
    %6342 = vmatprep.subr.bf16.mxu0 0
    %6343 = vmatpush1.bf16.msra.mxu0 0
    %6344 = vmatprep.subr.bf16.mxu0 0
    %6345 = vmatpush1.bf16.msra.mxu0 0
    %6346 = vmatprep.subr.bf16.mxu0 0
    %6347 = vmatpush1.bf16.msra.mxu0 0
    %6348 = vmatprep.subr.bf16.mxu0 0
    %6349 = vmatpush1.bf16.msra.mxu0 0
    %6350 = vmatprep.subr.bf16.mxu0 0
    %6351 = vmatpush1.bf16.msra.mxu0 0
    %6352 = vmatprep.subr.bf16.mxu0 0
    %6353 = vmatpush1.bf16.msra.mxu0 0
    %6354 = vmatprep.subr.bf16.mxu0 0
    %6355 = vmatpush1.bf16.msra.mxu0 0
    %6356 = vmatprep.subr.bf16.mxu0 0
    %6357 = vmatpush1.bf16.msra.mxu0 0
    %6358 = vmatprep.subr.bf16.mxu0 0
    %6359 = vmatpush1.bf16.msra.mxu0 0
    %6360 = vmatprep.subr.bf16.mxu0 0
    %6361 = vmatpush1.bf16.msra.mxu0 0
    %6362 = vmatprep.subr.bf16.mxu0 0
    %6363 = vmatpush1.bf16.msra.mxu0 0
    %6364 = vmatprep.subr.bf16.mxu0 0
    %6365 = vmatpush1.bf16.msra.mxu0 0
    %6366 = vmatprep.subr.bf16.mxu0 0
    %6367 = vmatpush1.bf16.msra.mxu0 0
    %6368 = vmatprep.subr.bf16.mxu0 0
    %6369 = vmatpush1.bf16.msra.mxu0 0
    %6370 = vmatprep.subr.bf16.mxu0 0
    %6371 = vmatpush1.bf16.msra.mxu0 0
    %6372 = vmatprep.mubr.bf16.mxu0 0
    %6373 = vmatmul.mubr.bf16.gmra.mrb[0].mxu0 %v5231
    %v6374 = vpop.f32.mrb[0].mxu0
    %v6375 = vadd.f32 %v6334, %v6374
    %v6376 = vpop.f32.mrb[0].mxu0
    %v6377 = vadd.f32 %v6336, %v6376
    %v6378 = vpop.f32.mrb[0].mxu0
    %v6379 = vpop.f32.mrb[0].mxu0
    %6380 = vdwg.mxu0
    %6381 = vmatprep.subr.bf16.mxu0 %v3676
    %6382 = vmatpush1.bf16.msra.mxu0 %v3675
    %6383 = vmatprep.subr.bf16.mxu0 %v3692
    %6384 = vmatpush1.bf16.msra.mxu0 %v3691
    %6385 = vmatprep.subr.bf16.mxu0 %v3708
    %6386 = vmatpush1.bf16.msra.mxu0 %v3707
    %6387 = vmatprep.subr.bf16.mxu0 %v3724
    %6388 = vmatpush1.bf16.msra.mxu0 %v3723
    %6389 = vmatprep.subr.bf16.mxu0 %v3740
    %6390 = vmatpush1.bf16.msra.mxu0 %v3739
    %6391 = vmatprep.subr.bf16.mxu0 %v3756
    %6392 = vmatpush1.bf16.msra.mxu0 %v3755
    %6393 = vmatprep.subr.bf16.mxu0 %v3772
    %6394 = vmatpush1.bf16.msra.mxu0 %v3771
    %6395 = vmatprep.subr.bf16.mxu0 %v3788
    %6396 = vmatpush1.bf16.msra.mxu0 %v3787
    %6397 = vmatprep.subr.bf16.mxu0 %v3804
    %6398 = vmatpush1.bf16.msra.mxu0 %v3803
    %6399 = vmatprep.subr.bf16.mxu0 %v3820
    %6400 = vmatpush1.bf16.msra.mxu0 %v3819
    %6401 = vmatprep.subr.bf16.mxu0 %v3836
    %6402 = vmatpush1.bf16.msra.mxu0 %v3835
    %6403 = vmatprep.subr.bf16.mxu0 %v3852
    %6404 = vmatpush1.bf16.msra.mxu0 %v3851
    %6405 = vmatprep.subr.bf16.mxu0 %v3868
    %6406 = vmatpush1.bf16.msra.mxu0 %v3867
    %6407 = vmatprep.subr.bf16.mxu0 %v3884
    %6408 = vmatpush1.bf16.msra.mxu0 %v3883
    %6409 = vmatprep.subr.bf16.mxu0 %v3900
    %6410 = vmatpush1.bf16.msra.mxu0 %v3899
    %6411 = vmatprep.subr.bf16.mxu0 %v3916
    %6412 = vmatpush1.bf16.msra.mxu0 %v3915
    %6413 = vmatprep.mubr.bf16.mxu0 %v1303
    %6414 = vmatmul.mubr.bf16.gmra.mrb[0].mxu0 %v1302
    %v6415 = vpop.f32.mrb[0].mxu0
    %v6416 = vadd.f32 0.0, %v6415
    %v6417 = vpop.f32.mrb[0].mxu0
    %v6418 = vadd.f32 0.0, %v6417
    %v6419 = vpop.f32.mrb[0].mxu0
    %v6420 = vpop.f32.mrb[0].mxu0
    %6421 = vdwg.mxu0
    %6422 = vmatprep.subr.bf16.mxu0 %v3932
    %6423 = vmatpush1.bf16.msra.mxu0 %v3931
    %6424 = vmatprep.subr.bf16.mxu0 %v3948
    %6425 = vmatpush1.bf16.msra.mxu0 %v3947
    %6426 = vmatprep.subr.bf16.mxu0 %v3964
    %6427 = vmatpush1.bf16.msra.mxu0 %v3963
    %6428 = vmatprep.subr.bf16.mxu0 %v3980
    %6429 = vmatpush1.bf16.msra.mxu0 %v3979
    %6430 = vmatprep.subr.bf16.mxu0 %v3996
    %6431 = vmatpush1.bf16.msra.mxu0 %v3995
    %6432 = vmatprep.subr.bf16.mxu0 %v4012
    %6433 = vmatpush1.bf16.msra.mxu0 %v4011
    %6434 = vmatprep.subr.bf16.mxu0 %v4028
    %6435 = vmatpush1.bf16.msra.mxu0 %v4027
    %6436 = vmatprep.subr.bf16.mxu0 %v4044
    %6437 = vmatpush1.bf16.msra.mxu0 %v4043
    %6438 = vmatprep.subr.bf16.mxu0 %v4060
    %6439 = vmatpush1.bf16.msra.mxu0 %v4059
    %6440 = vmatprep.subr.bf16.mxu0 %v4076
    %6441 = vmatpush1.bf16.msra.mxu0 %v4075
    %6442 = vmatprep.subr.bf16.mxu0 %v4092
    %6443 = vmatpush1.bf16.msra.mxu0 %v4091
    %6444 = vmatprep.subr.bf16.mxu0 %v4108
    %6445 = vmatpush1.bf16.msra.mxu0 %v4107
    %6446 = vmatprep.subr.bf16.mxu0 %v4124
    %6447 = vmatpush1.bf16.msra.mxu0 %v4123
    %6448 = vmatprep.subr.bf16.mxu0 %v4140
    %6449 = vmatpush1.bf16.msra.mxu0 %v4139
    %6450 = vmatprep.subr.bf16.mxu0 %v4156
    %6451 = vmatpush1.bf16.msra.mxu0 %v4155
    %6452 = vmatprep.subr.bf16.mxu0 %v4172
    %6453 = vmatpush1.bf16.msra.mxu0 %v4171
    %6454 = vmatprep.mubr.bf16.mxu0 %v1305
    %6455 = vmatmul.mubr.bf16.gmra.mrb[0].mxu0 %v1304
    %v6456 = vpop.f32.mrb[0].mxu0
    %v6457 = vadd.f32 %v6416, %v6456
    %v6458 = vpop.f32.mrb[0].mxu0
    %v6459 = vadd.f32 %v6418, %v6458
    %v6460 = vpop.f32.mrb[0].mxu0
    %v6461 = vpop.f32.mrb[0].mxu0
    %6462 = vdwg.mxu0
    %6463 = vmatprep.subr.bf16.mxu0 %v4188
    %6464 = vmatpush1.bf16.msra.mxu0 %v4187
    %6465 = vmatprep.subr.bf16.mxu0 %v4204
    %6466 = vmatpush1.bf16.msra.mxu0 %v4203
    %6467 = vmatprep.subr.bf16.mxu0 %v4220
    %6468 = vmatpush1.bf16.msra.mxu0 %v4219
    %6469 = vmatprep.subr.bf16.mxu0 %v4236
    %6470 = vmatpush1.bf16.msra.mxu0 %v4235
    %6471 = vmatprep.subr.bf16.mxu0 %v4252
    %6472 = vmatpush1.bf16.msra.mxu0 %v4251
    %6473 = vmatprep.subr.bf16.mxu0 %v4268
    %6474 = vmatpush1.bf16.msra.mxu0 %v4267
    %6475 = vmatprep.subr.bf16.mxu0 %v4284
    %6476 = vmatpush1.bf16.msra.mxu0 %v4283
    %6477 = vmatprep.subr.bf16.mxu0 %v4300
    %6478 = vmatpush1.bf16.msra.mxu0 %v4299
    %6479 = vmatprep.subr.bf16.mxu0 %v4316
    %6480 = vmatpush1.bf16.msra.mxu0 %v4315
    %6481 = vmatprep.subr.bf16.mxu0 %v4332
    %6482 = vmatpush1.bf16.msra.mxu0 %v4331
    %6483 = vmatprep.subr.bf16.mxu0 %v4348
    %6484 = vmatpush1.bf16.msra.mxu0 %v4347
    %6485 = vmatprep.subr.bf16.mxu0 %v4364
    %6486 = vmatpush1.bf16.msra.mxu0 %v4363
    %6487 = vmatprep.subr.bf16.mxu0 %v4380
    %6488 = vmatpush1.bf16.msra.mxu0 %v4379
    %6489 = vmatprep.subr.bf16.mxu0 %v4396
    %6490 = vmatpush1.bf16.msra.mxu0 %v4395
    %6491 = vmatprep.subr.bf16.mxu0 %v4412
    %6492 = vmatpush1.bf16.msra.mxu0 %v4411
    %6493 = vmatprep.subr.bf16.mxu0 %v4428
    %6494 = vmatpush1.bf16.msra.mxu0 %v4427
    %6495 = vmatprep.mubr.bf16.mxu0 %v1307
    %6496 = vmatmul.mubr.bf16.gmra.mrb[0].mxu0 %v1306
    %v6497 = vpop.f32.mrb[0].mxu0
    %v6498 = vadd.f32 %v6457, %v6497
    %v6499 = vpop.f32.mrb[0].mxu0
    %v6500 = vadd.f32 %v6459, %v6499
    %v6501 = vpop.f32.mrb[0].mxu0
    %v6502 = vpop.f32.mrb[0].mxu0
    %6503 = vdwg.mxu0
    %6504 = vmatprep.subr.bf16.mxu0 %v4444
    %6505 = vmatpush1.bf16.msra.mxu0 %v4443
    %6506 = vmatprep.subr.bf16.mxu0 0
    %6507 = vmatpush1.bf16.msra.mxu0 0
    %6508 = vmatprep.subr.bf16.mxu0 0
    %6509 = vmatpush1.bf16.msra.mxu0 0
    %6510 = vmatprep.subr.bf16.mxu0 0
    %6511 = vmatpush1.bf16.msra.mxu0 0
    %6512 = vmatprep.subr.bf16.mxu0 0
    %6513 = vmatpush1.bf16.msra.mxu0 0
    %6514 = vmatprep.subr.bf16.mxu0 0
    %6515 = vmatpush1.bf16.msra.mxu0 0
    %6516 = vmatprep.subr.bf16.mxu0 0
    %6517 = vmatpush1.bf16.msra.mxu0 0
    %6518 = vmatprep.subr.bf16.mxu0 0
    %6519 = vmatpush1.bf16.msra.mxu0 0
    %6520 = vmatprep.subr.bf16.mxu0 0
    %6521 = vmatpush1.bf16.msra.mxu0 0
    %6522 = vmatprep.subr.bf16.mxu0 0
    %6523 = vmatpush1.bf16.msra.mxu0 0
    %6524 = vmatprep.subr.bf16.mxu0 0
    %6525 = vmatpush1.bf16.msra.mxu0 0
    %6526 = vmatprep.subr.bf16.mxu0 0
    %6527 = vmatpush1.bf16.msra.mxu0 0
    %6528 = vmatprep.subr.bf16.mxu0 0
    %6529 = vmatpush1.bf16.msra.mxu0 0
    %6530 = vmatprep.subr.bf16.mxu0 0
    %6531 = vmatpush1.bf16.msra.mxu0 0
    %6532 = vmatprep.subr.bf16.mxu0 0
    %6533 = vmatpush1.bf16.msra.mxu0 0
    %6534 = vmatprep.subr.bf16.mxu0 0
    %6535 = vmatpush1.bf16.msra.mxu0 0
    %6536 = vmatprep.mubr.bf16.mxu0 0
    %6537 = vmatmul.mubr.bf16.gmra.mrb[0].mxu0 %v5231
    %v6538 = vpop.f32.mrb[0].mxu0
    %v6539 = vadd.f32 %v6498, %v6538
    %v6540 = vpop.f32.mrb[0].mxu0
    %v6541 = vadd.f32 %v6500, %v6540
    %v6542 = vpop.f32.mrb[0].mxu0
    %v6543 = vpop.f32.mrb[0].mxu0
    %6544 = vdwg.mxu0
    %v6545 = vld [vmem:[#allocation5 + $0x10] sm:$0xff]
    %v6546 = vld [vmem:[#allocation5 + $0x18] sm:$0xff]
    %v6549 = vlaneseq
    %v6550 = vshrl.u32 %v6549, 7
    %v6551 = vsub.s32 0, %v6550
    %v6552 = vrot.slane %v6545, %v6551
    %v6553 = vlaneseq
    %v6554 = vshrl.u32 %v6553, 7
    %v6555 = vsub.s32 1, %v6554
    %v6556 = vrot.slane %v6545, %v6555
    %v6557 = vlaneseq
    %v6558 = vshrl.u32 %v6557, 7
    %v6559 = vsub.s32 2, %v6558
    %v6560 = vrot.slane %v6545, %v6559
    %v6561 = vlaneseq
    %v6562 = vshrl.u32 %v6561, 7
    %v6563 = vsub.s32 3, %v6562
    %v6564 = vrot.slane %v6545, %v6563
    %v6565 = vlaneseq
    %v6566 = vshrl.u32 %v6565, 7
    %v6567 = vsub.s32 4, %v6566
    %v6568 = vrot.slane %v6545, %v6567
    %v6569 = vlaneseq
    %v6570 = vshrl.u32 %v6569, 7
    %v6571 = vsub.s32 5, %v6570
    %v6572 = vrot.slane %v6545, %v6571
    %v6573 = vlaneseq
    %v6574 = vshrl.u32 %v6573, 7
    %v6575 = vsub.s32 6, %v6574
    %v6576 = vrot.slane %v6545, %v6575
    %v6577 = vlaneseq
    %v6578 = vshrl.u32 %v6577, 7
    %v6579 = vsub.s32 7, %v6578
    %v6580 = vrot.slane %v6545, %v6579
    %v6581 = vlaneseq
    %v6582 = vshrl.u32 %v6581, 7
    %v6583 = vsub.s32 0, %v6582
    %v6584 = vrot.slane %v6546, %v6583
    %v6585 = vlaneseq
    %v6586 = vshrl.u32 %v6585, 7
    %v6587 = vsub.s32 1, %v6586
    %v6588 = vrot.slane %v6546, %v6587
    %v6589 = vlaneseq
    %v6590 = vshrl.u32 %v6589, 7
    %v6591 = vsub.s32 2, %v6590
    %v6592 = vrot.slane %v6546, %v6591
    %v6593 = vlaneseq
    %v6594 = vshrl.u32 %v6593, 7
    %v6595 = vsub.s32 3, %v6594
    %v6596 = vrot.slane %v6546, %v6595
    %v6597 = vlaneseq
    %v6598 = vshrl.u32 %v6597, 7
    %v6599 = vsub.s32 4, %v6598
    %v6600 = vrot.slane %v6546, %v6599
    %v6601 = vlaneseq
    %v6602 = vshrl.u32 %v6601, 7
    %v6603 = vsub.s32 5, %v6602
    %v6604 = vrot.slane %v6546, %v6603
    %v6605 = vlaneseq
    %v6606 = vshrl.u32 %v6605, 7
    %v6607 = vsub.s32 6, %v6606
    %v6608 = vrot.slane %v6546, %v6607
    %v6609 = vlaneseq
    %v6610 = vshrl.u32 %v6609, 7
    %v6611 = vsub.s32 7, %v6610
    %v6612 = vrot.slane %v6546, %v6611
    %v6629 = vmul.f32 %v5391, %v6552
    %v6630 = vmul.f32 %v5393, %v6556
    %v6631 = vmul.f32 %v5555, %v6560
    %v6632 = vmul.f32 %v5557, %v6564
    %v6633 = vmul.f32 %v5719, %v6568
    %v6634 = vmul.f32 %v5721, %v6572
    %v6635 = vmul.f32 %v5883, %v6576
    %v6636 = vmul.f32 %v5885, %v6580
    %v6637 = vmul.f32 %v6047, %v6584
    %v6638 = vmul.f32 %v6049, %v6588
    %v6639 = vmul.f32 %v6211, %v6592
    %v6640 = vmul.f32 %v6213, %v6596
    %v6641 = vmul.f32 %v6375, %v6600
    %v6642 = vmul.f32 %v6377, %v6604
    %v6643 = vmul.f32 %v6539, %v6608
    %v6644 = vmul.f32 %v6541, %v6612
    %v6645 = vld [vmem:[#allocation5] sm:$0xff]
    %v6646 = vld [vmem:[#allocation5 + $0x8] sm:$0xff]
    %v6649 = vlaneseq
    %v6650 = vshrl.u32 %v6649, 7
    %v6651 = vsub.s32 0, %v6650
    %v6652 = vrot.slane %v6645, %v6651
    %v6653 = vlaneseq
    %v6654 = vshrl.u32 %v6653, 7
    %v6655 = vsub.s32 1, %v6654
    %v6656 = vrot.slane %v6645, %v6655
    %v6657 = vlaneseq
    %v6658 = vshrl.u32 %v6657, 7
    %v6659 = vsub.s32 2, %v6658
    %v6660 = vrot.slane %v6645, %v6659
    %v6661 = vlaneseq
    %v6662 = vshrl.u32 %v6661, 7
    %v6663 = vsub.s32 3, %v6662
    %v6664 = vrot.slane %v6645, %v6663
    %v6665 = vlaneseq
    %v6666 = vshrl.u32 %v6665, 7
    %v6667 = vsub.s32 4, %v6666
    %v6668 = vrot.slane %v6645, %v6667
    %v6669 = vlaneseq
    %v6670 = vshrl.u32 %v6669, 7
    %v6671 = vsub.s32 5, %v6670
    %v6672 = vrot.slane %v6645, %v6671
    %v6673 = vlaneseq
    %v6674 = vshrl.u32 %v6673, 7
    %v6675 = vsub.s32 6, %v6674
    %v6676 = vrot.slane %v6645, %v6675
    %v6677 = vlaneseq
    %v6678 = vshrl.u32 %v6677, 7
    %v6679 = vsub.s32 7, %v6678
    %v6680 = vrot.slane %v6645, %v6679
    %v6681 = vlaneseq
    %v6682 = vshrl.u32 %v6681, 7
    %v6683 = vsub.s32 0, %v6682
    %v6684 = vrot.slane %v6646, %v6683
    %v6685 = vlaneseq
    %v6686 = vshrl.u32 %v6685, 7
    %v6687 = vsub.s32 1, %v6686
    %v6688 = vrot.slane %v6646, %v6687
    %v6689 = vlaneseq
    %v6690 = vshrl.u32 %v6689, 7
    %v6691 = vsub.s32 2, %v6690
    %v6692 = vrot.slane %v6646, %v6691
    %v6693 = vlaneseq
    %v6694 = vshrl.u32 %v6693, 7
    %v6695 = vsub.s32 3, %v6694
    %v6696 = vrot.slane %v6646, %v6695
    %v6697 = vlaneseq
    %v6698 = vshrl.u32 %v6697, 7
    %v6699 = vsub.s32 4, %v6698
    %v6700 = vrot.slane %v6646, %v6699
    %v6701 = vlaneseq
    %v6702 = vshrl.u32 %v6701, 7
    %v6703 = vsub.s32 5, %v6702
    %v6704 = vrot.slane %v6646, %v6703
    %v6705 = vlaneseq
    %v6706 = vshrl.u32 %v6705, 7
    %v6707 = vsub.s32 6, %v6706
    %v6708 = vrot.slane %v6646, %v6707
    %v6709 = vlaneseq
    %v6710 = vshrl.u32 %v6709, 7
    %v6711 = vsub.s32 7, %v6710
    %v6712 = vrot.slane %v6646, %v6711
    %v6729 = vadd.f32 %v6629, %v6652
    %v6730 = vadd.f32 %v6630, %v6656
    %v6731 = vadd.f32 %v6631, %v6660
    %v6732 = vadd.f32 %v6632, %v6664
    %v6733 = vadd.f32 %v6633, %v6668
    %v6734 = vadd.f32 %v6634, %v6672
    %v6735 = vadd.f32 %v6635, %v6676
    %v6736 = vadd.f32 %v6636, %v6680
    %v6737 = vadd.f32 %v6637, %v6684
    %v6738 = vadd.f32 %v6638, %v6688
    %v6739 = vadd.f32 %v6639, %v6692
    %v6740 = vadd.f32 %v6640, %v6696
    %v6741 = vadd.f32 %v6641, %v6700
    %v6742 = vadd.f32 %v6642, %v6704
    %v6743 = vadd.f32 %v6643, %v6708
    %v6744 = vadd.f32 %v6644, %v6712
    %v6745 = vmax.f32 %v6729, 0.0
    %v6746 = vmax.f32 %v6730, 0.0
    %v6747 = vmax.f32 %v6731, 0.0
    %v6748 = vmax.f32 %v6732, 0.0
    %v6749 = vmax.f32 %v6733, 0.0
    %v6750 = vmax.f32 %v6734, 0.0
    %v6751 = vmax.f32 %v6735, 0.0
    %v6752 = vmax.f32 %v6736, 0.0
    %v6753 = vmax.f32 %v6737, 0.0
    %v6754 = vmax.f32 %v6738, 0.0
    %v6755 = vmax.f32 %v6739, 0.0
    %v6756 = vmax.f32 %v6740, 0.0
    %v6757 = vmax.f32 %v6741, 0.0
    %v6758 = vmax.f32 %v6742, 0.0
    %v6759 = vmax.f32 %v6743, 0.0
    %v6760 = vmax.f32 %v6744, 0.0
    %v6761 = vld [vmem:[#allocation8] sm:$0xff]
    %v6762 = vld [vmem:[#allocation8 + $0x8] sm:$0xff]
    %v6763 = vld [vmem:[#allocation8 + $0x10] sm:$0xff]
    %v6764 = vld [vmem:[#allocation8 + $0x18] sm:$0xff]
    %v6765 = vld [vmem:[#allocation8 + $0x20] sm:$0xff]
    %v6766 = vld [vmem:[#allocation8 + $0x28] sm:$0xff]
    %v6767 = vld [vmem:[#allocation8 + $0x30] sm:$0xff]
    %v6768 = vld [vmem:[#allocation8 + $0x38] sm:$0xff]
    %v6769 = vld [vmem:[#allocation8 + $0x40] sm:$0xff]
    %v6770 = vld [vmem:[#allocation8 + $0x48] sm:$0xff]
    %v6771 = vld [vmem:[#allocation8 + $0x50] sm:$0xff]
    %v6772 = vld [vmem:[#allocation8 + $0x58] sm:$0xff]
    %v6773 = vld [vmem:[#allocation8 + $0x60] sm:$0xff]
    %v6774 = vld [vmem:[#allocation8 + $0x68] sm:$0xff]
    %v6775 = vld [vmem:[#allocation8 + $0x70] sm:$0xff]
    %v6776 = vld [vmem:[#allocation8 + $0x78] sm:$0xff]
    %v6777 = vld [vmem:[#allocation8 + $0x80] sm:$0xff]
    %v6778 = vld [vmem:[#allocation8 + $0x88] sm:$0xff]
    %v6779 = vld [vmem:[#allocation8 + $0x90] sm:$0xff]
    %v6780 = vld [vmem:[#allocation8 + $0x98] sm:$0xff]
    %v6781 = vld [vmem:[#allocation8 + $0xa0] sm:$0xff]
    %v6782 = vld [vmem:[#allocation8 + $0xa8] sm:$0xff]
    %v6783 = vld [vmem:[#allocation8 + $0xb0] sm:$0xff]
    %v6784 = vld [vmem:[#allocation8 + $0xb8] sm:$0xff]
    %v6785 = vld [vmem:[#allocation8 + $0xc0] sm:$0xff]
    %v6786 = vld [vmem:[#allocation8 + $0xc8] sm:$0xff]
    %v6787 = vld [vmem:[#allocation8 + $0xd0] sm:$0xff]
    %v6788 = vld [vmem:[#allocation8 + $0xd8] sm:$0xff]
    %v6789 = vld [vmem:[#allocation8 + $0xe0] sm:$0xff]
    %v6790 = vld [vmem:[#allocation8 + $0xe8] sm:$0xff]
    %v6791 = vld [vmem:[#allocation8 + $0xf0] sm:$0xff]
    %v6792 = vld [vmem:[#allocation8 + $0xf8] sm:$0xff]
    %v6793 = vld [vmem:[#allocation8 + $0x100] sm:$0xff]
    %v6794 = vld [vmem:[#allocation8 + $0x108] sm:$0xff]
    %v6795 = vld [vmem:[#allocation8 + $0x110] sm:$0xff]
    %v6796 = vld [vmem:[#allocation8 + $0x118] sm:$0xff]
    %v6797 = vld [vmem:[#allocation8 + $0x120] sm:$0xff]
    %v6798 = vld [vmem:[#allocation8 + $0x128] sm:$0xff]
    %v6799 = vld [vmem:[#allocation8 + $0x130] sm:$0xff]
    %v6800 = vld [vmem:[#allocation8 + $0x138] sm:$0xff]
    %v6801 = vld [vmem:[#allocation8 + $0x140] sm:$0xff]
    %v6802 = vld [vmem:[#allocation8 + $0x148] sm:$0xff]
    %v6803 = vld [vmem:[#allocation8 + $0x150] sm:$0xff]
    %v6804 = vld [vmem:[#allocation8 + $0x158] sm:$0xff]
    %v6805 = vld [vmem:[#allocation8 + $0x160] sm:$0xff]
    %v6806 = vld [vmem:[#allocation8 + $0x168] sm:$0xff]
    %v6807 = vld [vmem:[#allocation8 + $0x170] sm:$0xff]
    %v6808 = vld [vmem:[#allocation8 + $0x178] sm:$0xff]
    %v6809 = vld [vmem:[#allocation8 + $0x180] sm:$0xff]
    %v6810 = vld [vmem:[#allocation8 + $0x188] sm:$0xff]
    %v6811 = vld [vmem:[#allocation8 + $0x190] sm:$0xff]
    %v6812 = vld [vmem:[#allocation8 + $0x198] sm:$0xff]
    %v6813 = vld [vmem:[#allocation8 + $0x1a0] sm:$0xff]
    %v6814 = vld [vmem:[#allocation8 + $0x1a8] sm:$0xff]
    %v6815 = vld [vmem:[#allocation8 + $0x1b0] sm:$0xff]
    %v6816 = vld [vmem:[#allocation8 + $0x1b8] sm:$0xff]
    %v6817 = vld [vmem:[#allocation8 + $0x1c0] sm:$0xff]
    %v6818 = vld [vmem:[#allocation8 + $0x1c8] sm:$0xff]
    %v6819 = vld [vmem:[#allocation8 + $0x1d0] sm:$0xff]
    %v6820 = vld [vmem:[#allocation8 + $0x1d8] sm:$0xff]
    %v6821 = vld [vmem:[#allocation8 + $0x1e0] sm:$0xff]
    %v6822 = vld [vmem:[#allocation8 + $0x1e8] sm:$0xff]
    %v6823 = vld [vmem:[#allocation8 + $0x1f0] sm:$0xff]
    %v6824 = vld [vmem:[#allocation8 + $0x1f8] sm:$0xff]
    %v6825 = vld [vmem:[#allocation8 + $0x200] sm:$0xff]
    %v6826 = vld [vmem:[#allocation8 + $0x208] sm:$0xff]
    %v6827 = vld [vmem:[#allocation8 + $0x210] sm:$0xff]
    %v6828 = vld [vmem:[#allocation8 + $0x218] sm:$0xff]
    %v6829 = vld [vmem:[#allocation8 + $0x220] sm:$0xff]
    %v6830 = vld [vmem:[#allocation8 + $0x228] sm:$0xff]
    %v6831 = vld [vmem:[#allocation8 + $0x230] sm:$0xff]
    %v6832 = vld [vmem:[#allocation8 + $0x238] sm:$0xff]
    %v6833 = vld [vmem:[#allocation8 + $0x240] sm:$0xff]
    %v6834 = vld [vmem:[#allocation8 + $0x248] sm:$0xff]
    %v6835 = vld [vmem:[#allocation8 + $0x250] sm:$0xff]
    %v6836 = vld [vmem:[#allocation8 + $0x258] sm:$0xff]
    %v6837 = vld [vmem:[#allocation8 + $0x260] sm:$0xff]
    %v6838 = vld [vmem:[#allocation8 + $0x268] sm:$0xff]
    %v6839 = vld [vmem:[#allocation8 + $0x270] sm:$0xff]
    %v6840 = vld [vmem:[#allocation8 + $0x278] sm:$0xff]
    %v6841 = vld [vmem:[#allocation8 + $0x280] sm:$0xff]
    %v6842 = vld [vmem:[#allocation8 + $0x288] sm:$0xff]
    %v6843 = vld [vmem:[#allocation8 + $0x290] sm:$0xff]
    %v6844 = vld [vmem:[#allocation8 + $0x298] sm:$0xff]
    %v6845 = vld [vmem:[#allocation8 + $0x2a0] sm:$0xff]
    %v6846 = vld [vmem:[#allocation8 + $0x2a8] sm:$0xff]
    %v6847 = vld [vmem:[#allocation8 + $0x2b0] sm:$0xff]
    %v6848 = vld [vmem:[#allocation8 + $0x2b8] sm:$0xff]
    %v6849 = vld [vmem:[#allocation8 + $0x2c0] sm:$0xff]
    %v6850 = vld [vmem:[#allocation8 + $0x2c8] sm:$0xff]
    %v6851 = vld [vmem:[#allocation8 + $0x2d0] sm:$0xff]
    %v6852 = vld [vmem:[#allocation8 + $0x2d8] sm:$0xff]
    %v6853 = vld [vmem:[#allocation8 + $0x2e0] sm:$0xff]
    %v6854 = vld [vmem:[#allocation8 + $0x2e8] sm:$0xff]
    %v6855 = vld [vmem:[#allocation8 + $0x2f0] sm:$0xff]
    %v6856 = vld [vmem:[#allocation8 + $0x2f8] sm:$0xff]
    %v6857 = vld [vmem:[#allocation8 + $0x300] sm:$0xff]
    %v6858 = vld [vmem:[#allocation8 + $0x308] sm:$0xff]
    %v6859 = vld [vmem:[#allocation8 + $0x310] sm:$0xff]
    %v6860 = vld [vmem:[#allocation8 + $0x318] sm:$0xff]
    %v6861 = vld [vmem:[#allocation8 + $0x320] sm:$0xff]
    %v6862 = vld [vmem:[#allocation8 + $0x328] sm:$0xff]
    %v6863 = vld [vmem:[#allocation8 + $0x330] sm:$0xff]
    %v6864 = vld [vmem:[#allocation8 + $0x338] sm:$0xff]
    %v6865 = vld [vmem:[#allocation8 + $0x340] sm:$0xff]
    %v6866 = vld [vmem:[#allocation8 + $0x348] sm:$0xff]
    %v6867 = vld [vmem:[#allocation8 + $0x350] sm:$0xff]
    %v6868 = vld [vmem:[#allocation8 + $0x358] sm:$0xff]
    %v6869 = vld [vmem:[#allocation8 + $0x360] sm:$0xff]
    %v6870 = vld [vmem:[#allocation8 + $0x368] sm:$0xff]
    %v6871 = vld [vmem:[#allocation8 + $0x370] sm:$0xff]
    %v6872 = vld [vmem:[#allocation8 + $0x378] sm:$0xff]
    %v6873 = vld [vmem:[#allocation8 + $0x380] sm:$0xff]
    %v6874 = vld [vmem:[#allocation8 + $0x388] sm:$0xff]
    %v6875 = vld [vmem:[#allocation8 + $0x390] sm:$0xff]
    %v6876 = vld [vmem:[#allocation8 + $0x398] sm:$0xff]
    %v6877 = vld [vmem:[#allocation8 + $0x3a0] sm:$0xff]
    %v6878 = vld [vmem:[#allocation8 + $0x3a8] sm:$0xff]
    %v6879 = vld [vmem:[#allocation8 + $0x3b0] sm:$0xff]
    %v6880 = vld [vmem:[#allocation8 + $0x3b8] sm:$0xff]
    %v6881 = vld [vmem:[#allocation8 + $0x3c0] sm:$0xff]
    %v6882 = vld [vmem:[#allocation8 + $0x3c8] sm:$0xff]
    %v6883 = vld [vmem:[#allocation8 + $0x3d0] sm:$0xff]
    %v6884 = vld [vmem:[#allocation8 + $0x3d8] sm:$0xff]
    %v6885 = vld [vmem:[#allocation8 + $0x3e0] sm:$0xff]
    %v6886 = vld [vmem:[#allocation8 + $0x3e8] sm:$0xff]
    %v6887 = vld [vmem:[#allocation8 + $0x3f0] sm:$0xff]
    %v6888 = vld [vmem:[#allocation8 + $0x3f8] sm:$0xff]
    %v6889 = vld [vmem:[#allocation8 + $0x400] sm:$0xff]
    %v6890 = vld [vmem:[#allocation8 + $0x408] sm:$0xff]
    %v6891 = vld [vmem:[#allocation8 + $0x410] sm:$0xff]
    %v6892 = vld [vmem:[#allocation8 + $0x418] sm:$0xff]
    %v6893 = vld [vmem:[#allocation8 + $0x420] sm:$0xff]
    %v6894 = vld [vmem:[#allocation8 + $0x428] sm:$0xff]
    %v6895 = vld [vmem:[#allocation8 + $0x430] sm:$0xff]
    %v6896 = vld [vmem:[#allocation8 + $0x438] sm:$0xff]
    %v6897 = vld [vmem:[#allocation8 + $0x440] sm:$0xff]
    %v6898 = vld [vmem:[#allocation8 + $0x448] sm:$0xff]
    %v6899 = vld [vmem:[#allocation8 + $0x450] sm:$0xff]
    %v6900 = vld [vmem:[#allocation8 + $0x458] sm:$0xff]
    %v6901 = vld [vmem:[#allocation8 + $0x460] sm:$0xff]
    %v6902 = vld [vmem:[#allocation8 + $0x468] sm:$0xff]
    %v6903 = vld [vmem:[#allocation8 + $0x470] sm:$0xff]
    %v6904 = vld [vmem:[#allocation8 + $0x478] sm:$0xff]
    %v6905 = vld [vmem:[#allocation8 + $0x480] sm:$0xff]
    %v6906 = vld [vmem:[#allocation8 + $0x488] sm:$0xff]
    %v6907 = vld [vmem:[#allocation8 + $0x490] sm:$0xff]
    %v6908 = vld [vmem:[#allocation8 + $0x498] sm:$0xff]
    %v6909 = vld [vmem:[#allocation8 + $0x4a0] sm:$0xff]
    %v6910 = vld [vmem:[#allocation8 + $0x4a8] sm:$0xff]
    %v6911 = vld [vmem:[#allocation8 + $0x4b0] sm:$0xff]
    %v6912 = vld [vmem:[#allocation8 + $0x4b8] sm:$0xff]
    %v6913 = vld [vmem:[#allocation8 + $0x4c0] sm:$0xff]
    %v6914 = vld [vmem:[#allocation8 + $0x4c8] sm:$0xff]
    %v6915 = vld [vmem:[#allocation8 + $0x4d0] sm:$0xff]
    %v6916 = vld [vmem:[#allocation8 + $0x4d8] sm:$0xff]
    %v6917 = vld [vmem:[#allocation8 + $0x4e0] sm:$0xff]
    %v6918 = vld [vmem:[#allocation8 + $0x4e8] sm:$0xff]
    %v6919 = vld [vmem:[#allocation8 + $0x4f0] sm:$0xff]
    %v6920 = vld [vmem:[#allocation8 + $0x4f8] sm:$0xff]
    %v6921 = vld [vmem:[#allocation8 + $0x500] sm:$0xff]
    %v6922 = vld [vmem:[#allocation8 + $0x508] sm:$0xff]
    %v6923 = vld [vmem:[#allocation8 + $0x510] sm:$0xff]
    %v6924 = vld [vmem:[#allocation8 + $0x518] sm:$0xff]
    %v6925 = vld [vmem:[#allocation8 + $0x520] sm:$0xff]
    %v6926 = vld [vmem:[#allocation8 + $0x528] sm:$0xff]
    %v6927 = vld [vmem:[#allocation8 + $0x530] sm:$0xff]
    %v6928 = vld [vmem:[#allocation8 + $0x538] sm:$0xff]
    %v6929 = vld [vmem:[#allocation8 + $0x540] sm:$0xff]
    %v6930 = vld [vmem:[#allocation8 + $0x548] sm:$0xff]
    %v6931 = vld [vmem:[#allocation8 + $0x550] sm:$0xff]
    %v6932 = vld [vmem:[#allocation8 + $0x558] sm:$0xff]
    %v6933 = vld [vmem:[#allocation8 + $0x560] sm:$0xff]
    %v6934 = vld [vmem:[#allocation8 + $0x568] sm:$0xff]
    %v6935 = vld [vmem:[#allocation8 + $0x570] sm:$0xff]
    %v6936 = vld [vmem:[#allocation8 + $0x578] sm:$0xff]
    %v6937 = vld [vmem:[#allocation8 + $0x580] sm:$0xff]
    %v6938 = vld [vmem:[#allocation8 + $0x588] sm:$0xff]
    %v6939 = vld [vmem:[#allocation8 + $0x590] sm:$0xff]
    %v6940 = vld [vmem:[#allocation8 + $0x598] sm:$0xff]
    %v6941 = vld [vmem:[#allocation8 + $0x5a0] sm:$0xff]
    %v6942 = vld [vmem:[#allocation8 + $0x5a8] sm:$0xff]
    %v6943 = vld [vmem:[#allocation8 + $0x5b0] sm:$0xff]
    %v6944 = vld [vmem:[#allocation8 + $0x5b8] sm:$0xff]
    %v6945 = vld [vmem:[#allocation8 + $0x5c0] sm:$0xff]
    %v6946 = vld [vmem:[#allocation8 + $0x5c8] sm:$0xff]
    %v6947 = vld [vmem:[#allocation8 + $0x5d0] sm:$0xff]
    %v6948 = vld [vmem:[#allocation8 + $0x5d8] sm:$0xff]
    %v6949 = vld [vmem:[#allocation8 + $0x5e0] sm:$0xff]
    %v6950 = vld [vmem:[#allocation8 + $0x5e8] sm:$0xff]
    %v6951 = vld [vmem:[#allocation8 + $0x5f0] sm:$0xff]
    %v6952 = vld [vmem:[#allocation8 + $0x5f8] sm:$0xff]
    %v6953 = vld [vmem:[#allocation8 + $0x600] sm:$0xff]
    %v6954 = vld [vmem:[#allocation8 + $0x608] sm:$0xff]
    %v6955 = vld [vmem:[#allocation8 + $0x610] sm:$0xff]
    %v6956 = vld [vmem:[#allocation8 + $0x618] sm:$0xff]
    %v6957 = vld [vmem:[#allocation8 + $0x620] sm:$0xff]
    %v6958 = vld [vmem:[#allocation8 + $0x628] sm:$0xff]
    %v6959 = vld [vmem:[#allocation8 + $0x630] sm:$0xff]
    %v6960 = vld [vmem:[#allocation8 + $0x638] sm:$0xff]
    %v6961 = vld [vmem:[#allocation8 + $0x640] sm:$0xff]
    %v6962 = vld [vmem:[#allocation8 + $0x648] sm:$0xff]
    %v6963 = vld [vmem:[#allocation8 + $0x650] sm:$0xff]
    %v6964 = vld [vmem:[#allocation8 + $0x658] sm:$0xff]
    %v6965 = vld [vmem:[#allocation8 + $0x660] sm:$0xff]
    %v6966 = vld [vmem:[#allocation8 + $0x668] sm:$0xff]
    %v6967 = vld [vmem:[#allocation8 + $0x670] sm:$0xff]
    %v6968 = vld [vmem:[#allocation8 + $0x678] sm:$0xff]
    %v6969 = vld [vmem:[#allocation8 + $0x680] sm:$0xff]
    %v6970 = vld [vmem:[#allocation8 + $0x688] sm:$0xff]
    %v6971 = vld [vmem:[#allocation8 + $0x690] sm:$0xff]
    %v6972 = vld [vmem:[#allocation8 + $0x698] sm:$0xff]
    %v6973 = vld [vmem:[#allocation8 + $0x6a0] sm:$0xff]
    %v6974 = vld [vmem:[#allocation8 + $0x6a8] sm:$0xff]
    %v6975 = vld [vmem:[#allocation8 + $0x6b0] sm:$0xff]
    %v6976 = vld [vmem:[#allocation8 + $0x6b8] sm:$0xff]
    %v6977 = vld [vmem:[#allocation8 + $0x6c0] sm:$0xff]
    %v6978 = vld [vmem:[#allocation8 + $0x6c8] sm:$0xff]
    %v6979 = vld [vmem:[#allocation8 + $0x6d0] sm:$0xff]
    %v6980 = vld [vmem:[#allocation8 + $0x6d8] sm:$0xff]
    %v6981 = vld [vmem:[#allocation8 + $0x6e0] sm:$0xff]
    %v6982 = vld [vmem:[#allocation8 + $0x6e8] sm:$0xff]
    %v6983 = vld [vmem:[#allocation8 + $0x6f0] sm:$0xff]
    %v6984 = vld [vmem:[#allocation8 + $0x6f8] sm:$0xff]
    %v6985 = vld [vmem:[#allocation8 + $0x700] sm:$0xff]
    %v6986 = vld [vmem:[#allocation8 + $0x708] sm:$0xff]
    %v6987 = vld [vmem:[#allocation8 + $0x710] sm:$0xff]
    %v6988 = vld [vmem:[#allocation8 + $0x718] sm:$0xff]
    %v6989 = vld [vmem:[#allocation8 + $0x720] sm:$0xff]
    %v6990 = vld [vmem:[#allocation8 + $0x728] sm:$0xff]
    %v6991 = vld [vmem:[#allocation8 + $0x730] sm:$0xff]
    %v6992 = vld [vmem:[#allocation8 + $0x738] sm:$0xff]
    %v6993 = vld [vmem:[#allocation8 + $0x740] sm:$0xff]
    %v6994 = vld [vmem:[#allocation8 + $0x748] sm:$0xff]
    %v6995 = vld [vmem:[#allocation8 + $0x750] sm:$0xff]
    %v6996 = vld [vmem:[#allocation8 + $0x758] sm:$0xff]
    %v6997 = vld [vmem:[#allocation8 + $0x760] sm:$0xff]
    %v6998 = vld [vmem:[#allocation8 + $0x768] sm:$0xff]
    %v6999 = vld [vmem:[#allocation8 + $0x770] sm:$0xff]
    %v7000 = vld [vmem:[#allocation8 + $0x778] sm:$0xff]
    %v7001 = vld [vmem:[#allocation8 + $0x780] sm:$0xff]
    %v7002 = vld [vmem:[#allocation8 + $0x788] sm:$0xff]
    %v7003 = vld [vmem:[#allocation8 + $0x790] sm:$0xff]
    %v7004 = vld [vmem:[#allocation8 + $0x798] sm:$0xff]
    %v7005 = vld [vmem:[#allocation8 + $0x7a0] sm:$0xff]
    %v7006 = vld [vmem:[#allocation8 + $0x7a8] sm:$0xff]
    %v7007 = vld [vmem:[#allocation8 + $0x7b0] sm:$0xff]
    %v7008 = vld [vmem:[#allocation8 + $0x7b8] sm:$0xff]
    %v7009 = vld [vmem:[#allocation8 + $0x7c0] sm:$0xff]
    %v7010 = vld [vmem:[#allocation8 + $0x7c8] sm:$0xff]
    %v7011 = vld [vmem:[#allocation8 + $0x7d0] sm:$0xff]
    %v7012 = vld [vmem:[#allocation8 + $0x7d8] sm:$0xff]
    %v7013 = vld [vmem:[#allocation8 + $0x7e0] sm:$0xff]
    %v7014 = vld [vmem:[#allocation8 + $0x7e8] sm:$0xff]
    %v7015 = vld [vmem:[#allocation8 + $0x7f0] sm:$0xff]
    %v7016 = vld [vmem:[#allocation8 + $0x7f8] sm:$0xff]
    %v7017 = vld [vmem:[#allocation8 + $0x800] sm:$0xff]
    %v7018 = vld [vmem:[#allocation8 + $0x808] sm:$0xff]
    %v7019 = vld [vmem:[#allocation8 + $0x810] sm:$0xff]
    %v7020 = vld [vmem:[#allocation8 + $0x818] sm:$0xff]
    %v7021 = vld [vmem:[#allocation8 + $0x820] sm:$0xff]
    %v7022 = vld [vmem:[#allocation8 + $0x828] sm:$0xff]
    %v7023 = vld [vmem:[#allocation8 + $0x830] sm:$0xff]
    %v7024 = vld [vmem:[#allocation8 + $0x838] sm:$0xff]
    %v7025 = vld [vmem:[#allocation8 + $0x840] sm:$0xff]
    %v7026 = vld [vmem:[#allocation8 + $0x848] sm:$0xff]
    %v7027 = vld [vmem:[#allocation8 + $0x850] sm:$0xff]
    %v7028 = vld [vmem:[#allocation8 + $0x858] sm:$0xff]
    %v7029 = vld [vmem:[#allocation8 + $0x860] sm:$0xff]
    %v7030 = vld [vmem:[#allocation8 + $0x868] sm:$0xff]
    %v7031 = vld [vmem:[#allocation8 + $0x870] sm:$0xff]
    %v7032 = vld [vmem:[#allocation8 + $0x878] sm:$0xff]
    %v7033 = vld [vmem:[#allocation8 + $0x880] sm:$0xff]
    %v7034 = vld [vmem:[#allocation8 + $0x888] sm:$0xff]
    %v7035 = vld [vmem:[#allocation8 + $0x890] sm:$0xff]
    %v7036 = vld [vmem:[#allocation8 + $0x898] sm:$0xff]
    %v7037 = vld [vmem:[#allocation8 + $0x8a0] sm:$0xff]
    %v7038 = vld [vmem:[#allocation8 + $0x8a8] sm:$0xff]
    %v7039 = vld [vmem:[#allocation8 + $0x8b0] sm:$0xff]
    %v7040 = vld [vmem:[#allocation8 + $0x8b8] sm:$0xff]
    %v7041 = vld [vmem:[#allocation8 + $0x8c0] sm:$0xff]
    %v7042 = vld [vmem:[#allocation8 + $0x8c8] sm:$0xff]
    %v7043 = vld [vmem:[#allocation8 + $0x8d0] sm:$0xff]
    %v7044 = vld [vmem:[#allocation8 + $0x8d8] sm:$0xff]
    %v7045 = vld [vmem:[#allocation8 + $0x8e0] sm:$0xff]
    %v7046 = vld [vmem:[#allocation8 + $0x8e8] sm:$0xff]
    %v7047 = vld [vmem:[#allocation8 + $0x8f0] sm:$0xff]
    %v7048 = vld [vmem:[#allocation8 + $0x8f8] sm:$0xff]
    %v7049 = vld [vmem:[#allocation8 + $0x900] sm:$0xff]
    %v7050 = vld [vmem:[#allocation8 + $0x908] sm:$0xff]
    %v7051 = vld [vmem:[#allocation8 + $0x910] sm:$0xff]
    %v7052 = vld [vmem:[#allocation8 + $0x918] sm:$0xff]
    %v7053 = vld [vmem:[#allocation8 + $0x920] sm:$0xff]
    %v7054 = vld [vmem:[#allocation8 + $0x928] sm:$0xff]
    %v7055 = vld [vmem:[#allocation8 + $0x930] sm:$0xff]
    %v7056 = vld [vmem:[#allocation8 + $0x938] sm:$0xff]
    %v7057 = vld [vmem:[#allocation8 + $0x940] sm:$0xff]
    %v7058 = vld [vmem:[#allocation8 + $0x948] sm:$0xff]
    %v7059 = vld [vmem:[#allocation8 + $0x950] sm:$0xff]
    %v7060 = vld [vmem:[#allocation8 + $0x958] sm:$0xff]
    %v7061 = vld [vmem:[#allocation8 + $0x960] sm:$0xff]
    %v7062 = vld [vmem:[#allocation8 + $0x968] sm:$0xff]
    %v7063 = vld [vmem:[#allocation8 + $0x970] sm:$0xff]
    %v7064 = vld [vmem:[#allocation8 + $0x978] sm:$0xff]
    %v7065 = vld [vmem:[#allocation8 + $0x980] sm:$0xff]
    %v7066 = vld [vmem:[#allocation8 + $0x988] sm:$0xff]
    %v7067 = vld [vmem:[#allocation8 + $0x990] sm:$0xff]
    %v7068 = vld [vmem:[#allocation8 + $0x998] sm:$0xff]
    %v7069 = vld [vmem:[#allocation8 + $0x9a0] sm:$0xff]
    %v7070 = vld [vmem:[#allocation8 + $0x9a8] sm:$0xff]
    %v7071 = vld [vmem:[#allocation8 + $0x9b0] sm:$0xff]
    %v7072 = vld [vmem:[#allocation8 + $0x9b8] sm:$0xff]
    %v7073 = vld [vmem:[#allocation8 + $0x9c0] sm:$0xff]
    %v7074 = vld [vmem:[#allocation8 + $0x9c8] sm:$0xff]
    %v7075 = vld [vmem:[#allocation8 + $0x9d0] sm:$0xff]
    %v7076 = vld [vmem:[#allocation8 + $0x9d8] sm:$0xff]
    %v7077 = vld [vmem:[#allocation8 + $0x9e0] sm:$0xff]
    %v7078 = vld [vmem:[#allocation8 + $0x9e8] sm:$0xff]
    %v7079 = vld [vmem:[#allocation8 + $0x9f0] sm:$0xff]
    %v7080 = vld [vmem:[#allocation8 + $0x9f8] sm:$0xff]
    %v7081 = vld [vmem:[#allocation8 + $0xa00] sm:$0xff]
    %v7082 = vld [vmem:[#allocation8 + $0xa08] sm:$0xff]
    %v7083 = vld [vmem:[#allocation8 + $0xa10] sm:$0xff]
    %v7084 = vld [vmem:[#allocation8 + $0xa18] sm:$0xff]
    %v7085 = vld [vmem:[#allocation8 + $0xa20] sm:$0xff]
    %v7086 = vld [vmem:[#allocation8 + $0xa28] sm:$0xff]
    %v7087 = vld [vmem:[#allocation8 + $0xa30] sm:$0xff]
    %v7088 = vld [vmem:[#allocation8 + $0xa38] sm:$0xff]
    %v7089 = vld [vmem:[#allocation8 + $0xa40] sm:$0xff]
    %v7090 = vld [vmem:[#allocation8 + $0xa48] sm:$0xff]
    %v7091 = vld [vmem:[#allocation8 + $0xa50] sm:$0xff]
    %v7092 = vld [vmem:[#allocation8 + $0xa58] sm:$0xff]
    %v7093 = vld [vmem:[#allocation8 + $0xa60] sm:$0xff]
    %v7094 = vld [vmem:[#allocation8 + $0xa68] sm:$0xff]
    %v7095 = vld [vmem:[#allocation8 + $0xa70] sm:$0xff]
    %v7096 = vld [vmem:[#allocation8 + $0xa78] sm:$0xff]
    %v7097 = vld [vmem:[#allocation8 + $0xa80] sm:$0xff]
    %v7098 = vld [vmem:[#allocation8 + $0xa88] sm:$0xff]
    %v7099 = vld [vmem:[#allocation8 + $0xa90] sm:$0xff]
    %v7100 = vld [vmem:[#allocation8 + $0xa98] sm:$0xff]
    %v7101 = vld [vmem:[#allocation8 + $0xaa0] sm:$0xff]
    %v7102 = vld [vmem:[#allocation8 + $0xaa8] sm:$0xff]
    %v7103 = vld [vmem:[#allocation8 + $0xab0] sm:$0xff]
    %v7104 = vld [vmem:[#allocation8 + $0xab8] sm:$0xff]
    %v7105 = vld [vmem:[#allocation8 + $0xac0] sm:$0xff]
    %v7106 = vld [vmem:[#allocation8 + $0xac8] sm:$0xff]
    %v7107 = vld [vmem:[#allocation8 + $0xad0] sm:$0xff]
    %v7108 = vld [vmem:[#allocation8 + $0xad8] sm:$0xff]
    %v7109 = vld [vmem:[#allocation8 + $0xae0] sm:$0xff]
    %v7110 = vld [vmem:[#allocation8 + $0xae8] sm:$0xff]
    %v7111 = vld [vmem:[#allocation8 + $0xaf0] sm:$0xff]
    %v7112 = vld [vmem:[#allocation8 + $0xaf8] sm:$0xff]
    %v7113 = vld [vmem:[#allocation8 + $0xb00] sm:$0xff]
    %v7114 = vld [vmem:[#allocation8 + $0xb08] sm:$0xff]
    %v7115 = vld [vmem:[#allocation8 + $0xb10] sm:$0xff]
    %v7116 = vld [vmem:[#allocation8 + $0xb18] sm:$0xff]
    %v7117 = vld [vmem:[#allocation8 + $0xb20] sm:$0xff]
    %v7118 = vld [vmem:[#allocation8 + $0xb28] sm:$0xff]
    %v7119 = vld [vmem:[#allocation8 + $0xb30] sm:$0xff]
    %v7120 = vld [vmem:[#allocation8 + $0xb38] sm:$0xff]
    %v7121 = vld [vmem:[#allocation8 + $0xb40] sm:$0xff]
    %v7122 = vld [vmem:[#allocation8 + $0xb48] sm:$0xff]
    %v7123 = vld [vmem:[#allocation8 + $0xb50] sm:$0xff]
    %v7124 = vld [vmem:[#allocation8 + $0xb58] sm:$0xff]
    %v7125 = vld [vmem:[#allocation8 + $0xb60] sm:$0xff]
    %v7126 = vld [vmem:[#allocation8 + $0xb68] sm:$0xff]
    %v7127 = vld [vmem:[#allocation8 + $0xb70] sm:$0xff]
    %v7128 = vld [vmem:[#allocation8 + $0xb78] sm:$0xff]
    %v7129 = vld [vmem:[#allocation8 + $0xb80] sm:$0xff]
    %v7130 = vld [vmem:[#allocation8 + $0xb88] sm:$0xff]
    %v7131 = vld [vmem:[#allocation8 + $0xb90] sm:$0xff]
    %v7132 = vld [vmem:[#allocation8 + $0xb98] sm:$0xff]
    %v7133 = vld [vmem:[#allocation8 + $0xba0] sm:$0xff]
    %v7134 = vld [vmem:[#allocation8 + $0xba8] sm:$0xff]
    %v7135 = vld [vmem:[#allocation8 + $0xbb0] sm:$0xff]
    %v7136 = vld [vmem:[#allocation8 + $0xbb8] sm:$0xff]
    %v7137 = vld [vmem:[#allocation8 + $0xbc0] sm:$0xff]
    %v7138 = vld [vmem:[#allocation8 + $0xbc8] sm:$0xff]
    %v7139 = vld [vmem:[#allocation8 + $0xbd0] sm:$0xff]
    %v7140 = vld [vmem:[#allocation8 + $0xbd8] sm:$0xff]
    %v7141 = vld [vmem:[#allocation8 + $0xbe0] sm:$0xff]
    %v7142 = vld [vmem:[#allocation8 + $0xbe8] sm:$0xff]
    %v7143 = vld [vmem:[#allocation8 + $0xbf0] sm:$0xff]
    %v7144 = vld [vmem:[#allocation8 + $0xbf8] sm:$0xff]
    %v7145 = vld [vmem:[#allocation8 + $0xc00] sm:$0xff]
    %v7146 = vld [vmem:[#allocation8 + $0xc08] sm:$0xff]
    %v7147 = vld [vmem:[#allocation8 + $0xc10] sm:$0xff]
    %v7148 = vld [vmem:[#allocation8 + $0xc18] sm:$0xff]
    %v7149 = vld [vmem:[#allocation8 + $0xc20] sm:$0xff]
    %v7150 = vld [vmem:[#allocation8 + $0xc28] sm:$0xff]
    %v7151 = vld [vmem:[#allocation8 + $0xc30] sm:$0xff]
    %v7152 = vld [vmem:[#allocation8 + $0xc38] sm:$0xff]
    %v7153 = vld [vmem:[#allocation8 + $0xc40] sm:$0xff]
    %v7154 = vld [vmem:[#allocation8 + $0xc48] sm:$0xff]
    %v7155 = vld [vmem:[#allocation8 + $0xc50] sm:$0xff]
    %v7156 = vld [vmem:[#allocation8 + $0xc58] sm:$0xff]
    %v7157 = vld [vmem:[#allocation8 + $0xc60] sm:$0xff]
    %v7158 = vld [vmem:[#allocation8 + $0xc68] sm:$0xff]
    %v7159 = vld [vmem:[#allocation8 + $0xc70] sm:$0xff]
    %v7160 = vld [vmem:[#allocation8 + $0xc78] sm:$0xff]
    %v7161 = vld [vmem:[#allocation8 + $0xc80] sm:$0xff]
    %v7162 = vld [vmem:[#allocation8 + $0xc88] sm:$0xff]
    %v7163 = vld [vmem:[#allocation8 + $0xc90] sm:$0xff]
    %v7164 = vld [vmem:[#allocation8 + $0xc98] sm:$0xff]
    %v7165 = vld [vmem:[#allocation8 + $0xca0] sm:$0xff]
    %v7166 = vld [vmem:[#allocation8 + $0xca8] sm:$0xff]
    %v7167 = vld [vmem:[#allocation8 + $0xcb0] sm:$0xff]
    %v7168 = vld [vmem:[#allocation8 + $0xcb8] sm:$0xff]
    %v7169 = vld [vmem:[#allocation8 + $0xcc0] sm:$0xff]
    %v7170 = vld [vmem:[#allocation8 + $0xcc8] sm:$0xff]
    %v7171 = vld [vmem:[#allocation8 + $0xcd0] sm:$0xff]
    %v7172 = vld [vmem:[#allocation8 + $0xcd8] sm:$0xff]
    %v7173 = vld [vmem:[#allocation8 + $0xce0] sm:$0xff]
    %v7174 = vld [vmem:[#allocation8 + $0xce8] sm:$0xff]
    %v7175 = vld [vmem:[#allocation8 + $0xcf0] sm:$0xff]
    %v7176 = vld [vmem:[#allocation8 + $0xcf8] sm:$0xff]
    %v7177 = vld [vmem:[#allocation8 + $0xd00] sm:$0xff]
    %v7178 = vld [vmem:[#allocation8 + $0xd08] sm:$0xff]
    %v7179 = vld [vmem:[#allocation8 + $0xd10] sm:$0xff]
    %v7180 = vld [vmem:[#allocation8 + $0xd18] sm:$0xff]
    %v7181 = vld [vmem:[#allocation8 + $0xd20] sm:$0xff]
    %v7182 = vld [vmem:[#allocation8 + $0xd28] sm:$0xff]
    %v7183 = vld [vmem:[#allocation8 + $0xd30] sm:$0xff]
    %v7184 = vld [vmem:[#allocation8 + $0xd38] sm:$0xff]
    %v7185 = vld [vmem:[#allocation8 + $0xd40] sm:$0xff]
    %v7186 = vld [vmem:[#allocation8 + $0xd48] sm:$0xff]
    %v7187 = vld [vmem:[#allocation8 + $0xd50] sm:$0xff]
    %v7188 = vld [vmem:[#allocation8 + $0xd58] sm:$0xff]
    %v7189 = vld [vmem:[#allocation8 + $0xd60] sm:$0xff]
    %v7190 = vld [vmem:[#allocation8 + $0xd68] sm:$0xff]
    %v7191 = vld [vmem:[#allocation8 + $0xd70] sm:$0xff]
    %v7192 = vld [vmem:[#allocation8 + $0xd78] sm:$0xff]
    %v7193 = vld [vmem:[#allocation8 + $0xd80] sm:$0xff]
    %v7194 = vld [vmem:[#allocation8 + $0xd88] sm:$0xff]
    %v7195 = vld [vmem:[#allocation8 + $0xd90] sm:$0xff]
    %v7196 = vld [vmem:[#allocation8 + $0xd98] sm:$0xff]
    %v7197 = vld [vmem:[#allocation8 + $0xda0] sm:$0xff]
    %v7198 = vld [vmem:[#allocation8 + $0xda8] sm:$0xff]
    %v7199 = vld [vmem:[#allocation8 + $0xdb0] sm:$0xff]
    %v7200 = vld [vmem:[#allocation8 + $0xdb8] sm:$0xff]
    %v7201 = vld [vmem:[#allocation8 + $0xdc0] sm:$0xff]
    %v7202 = vld [vmem:[#allocation8 + $0xdc8] sm:$0xff]
    %v7203 = vld [vmem:[#allocation8 + $0xdd0] sm:$0xff]
    %v7204 = vld [vmem:[#allocation8 + $0xdd8] sm:$0xff]
    %v7205 = vld [vmem:[#allocation8 + $0xde0] sm:$0xff]
    %v7206 = vld [vmem:[#allocation8 + $0xde8] sm:$0xff]
    %v7207 = vld [vmem:[#allocation8 + $0xdf0] sm:$0xff]
    %v7208 = vld [vmem:[#allocation8 + $0xdf8] sm:$0xff]
    %v7209 = vld [vmem:[#allocation8 + $0xe00] sm:$0xff]
    %v7210 = vld [vmem:[#allocation8 + $0xe08] sm:$0xff]
    %v7211 = vld [vmem:[#allocation8 + $0xe10] sm:$0xff]
    %v7212 = vld [vmem:[#allocation8 + $0xe18] sm:$0xff]
    %v7213 = vld [vmem:[#allocation8 + $0xe20] sm:$0xff]
    %v7214 = vld [vmem:[#allocation8 + $0xe28] sm:$0xff]
    %v7215 = vld [vmem:[#allocation8 + $0xe30] sm:$0xff]
    %v7216 = vld [vmem:[#allocation8 + $0xe38] sm:$0xff]
    %v7217 = vld [vmem:[#allocation8 + $0xe40] sm:$0xff]
    %v7218 = vld [vmem:[#allocation8 + $0xe48] sm:$0xff]
    %v7219 = vld [vmem:[#allocation8 + $0xe50] sm:$0xff]
    %v7220 = vld [vmem:[#allocation8 + $0xe58] sm:$0xff]
    %v7221 = vld [vmem:[#allocation8 + $0xe60] sm:$0xff]
    %v7222 = vld [vmem:[#allocation8 + $0xe68] sm:$0xff]
    %v7223 = vld [vmem:[#allocation8 + $0xe70] sm:$0xff]
    %v7224 = vld [vmem:[#allocation8 + $0xe78] sm:$0xff]
    %v7225 = vld [vmem:[#allocation8 + $0xe80] sm:$0xff]
    %v7226 = vld [vmem:[#allocation8 + $0xe88] sm:$0xff]
    %v7227 = vld [vmem:[#allocation8 + $0xe90] sm:$0xff]
    %v7228 = vld [vmem:[#allocation8 + $0xe98] sm:$0xff]
    %v7229 = vld [vmem:[#allocation8 + $0xea0] sm:$0xff]
    %v7230 = vld [vmem:[#allocation8 + $0xea8] sm:$0xff]
    %v7231 = vld [vmem:[#allocation8 + $0xeb0] sm:$0xff]
    %v7232 = vld [vmem:[#allocation8 + $0xeb8] sm:$0xff]
    %v7233 = vld [vmem:[#allocation8 + $0xec0] sm:$0xff]
    %v7234 = vld [vmem:[#allocation8 + $0xec8] sm:$0xff]
    %v7235 = vld [vmem:[#allocation8 + $0xed0] sm:$0xff]
    %v7236 = vld [vmem:[#allocation8 + $0xed8] sm:$0xff]
    %v7237 = vld [vmem:[#allocation8 + $0xee0] sm:$0xff]
    %v7238 = vld [vmem:[#allocation8 + $0xee8] sm:$0xff]
    %v7239 = vld [vmem:[#allocation8 + $0xef0] sm:$0xff]
    %v7240 = vld [vmem:[#allocation8 + $0xef8] sm:$0xff]
    %v7241 = vld [vmem:[#allocation8 + $0xf00] sm:$0xff]
    %v7242 = vld [vmem:[#allocation8 + $0xf08] sm:$0xff]
    %v7243 = vld [vmem:[#allocation8 + $0xf10] sm:$0xff]
    %v7244 = vld [vmem:[#allocation8 + $0xf18] sm:$0xff]
    %v7245 = vld [vmem:[#allocation8 + $0xf20] sm:$0xff]
    %v7246 = vld [vmem:[#allocation8 + $0xf28] sm:$0xff]
    %v7247 = vld [vmem:[#allocation8 + $0xf30] sm:$0xff]
    %v7248 = vld [vmem:[#allocation8 + $0xf38] sm:$0xff]
    %v7249 = vld [vmem:[#allocation8 + $0xf40] sm:$0xff]
    %v7250 = vld [vmem:[#allocation8 + $0xf48] sm:$0xff]
    %v7251 = vld [vmem:[#allocation8 + $0xf50] sm:$0xff]
    %v7252 = vld [vmem:[#allocation8 + $0xf58] sm:$0xff]
    %v7253 = vld [vmem:[#allocation8 + $0xf60] sm:$0xff]
    %v7254 = vld [vmem:[#allocation8 + $0xf68] sm:$0xff]
    %v7255 = vld [vmem:[#allocation8 + $0xf70] sm:$0xff]
    %v7256 = vld [vmem:[#allocation8 + $0xf78] sm:$0xff]
    %v7257 = vld [vmem:[#allocation8 + $0xf80] sm:$0xff]
    %v7258 = vld [vmem:[#allocation8 + $0xf88] sm:$0xff]
    %v7259 = vld [vmem:[#allocation8 + $0xf90] sm:$0xff]
    %v7260 = vld [vmem:[#allocation8 + $0xf98] sm:$0xff]
    %v7261 = vld [vmem:[#allocation8 + $0xfa0] sm:$0xff]
    %v7262 = vld [vmem:[#allocation8 + $0xfa8] sm:$0xff]
    %v7263 = vld [vmem:[#allocation8 + $0xfb0] sm:$0xff]
    %v7264 = vld [vmem:[#allocation8 + $0xfb8] sm:$0xff]
    %v7265 = vld [vmem:[#allocation8 + $0xfc0] sm:$0xff]
    %v7266 = vld [vmem:[#allocation8 + $0xfc8] sm:$0xff]
    %v7267 = vld [vmem:[#allocation8 + $0xfd0] sm:$0xff]
    %v7268 = vld [vmem:[#allocation8 + $0xfd8] sm:$0xff]
    %v7269 = vld [vmem:[#allocation8 + $0xfe0] sm:$0xff]
    %v7270 = vld [vmem:[#allocation8 + $0xfe8] sm:$0xff]
    %v7271 = vld [vmem:[#allocation8 + $0xff0] sm:$0xff]
    %v7272 = vld [vmem:[#allocation8 + $0xff8] sm:$0xff]
    %v7273 = vunpack.c.l.s8.bf16 %v6761
    %v7274 = vunpack.c.l.s8.bf16 %v6762
    %v7275 = vunpack.c.l.s8.bf16 %v6763
    %v7276 = vunpack.c.l.s8.bf16 %v6764
    %v7277 = vunpack.c.l.s8.bf16 %v6765
    %v7278 = vunpack.c.l.s8.bf16 %v6766
    %v7279 = vunpack.c.l.s8.bf16 %v6767
    %v7280 = vunpack.c.l.s8.bf16 %v6768
    %v7281 = vunpack.c.h.s8.bf16 %v6761
    %v7282 = vunpack.c.h.s8.bf16 %v6762
    %v7283 = vunpack.c.h.s8.bf16 %v6763
    %v7284 = vunpack.c.h.s8.bf16 %v6764
    %v7285 = vunpack.c.h.s8.bf16 %v6765
    %v7286 = vunpack.c.h.s8.bf16 %v6766
    %v7287 = vunpack.c.h.s8.bf16 %v6767
    %v7288 = vunpack.c.h.s8.bf16 %v6768
    %v7289 = vunpack.c.l.s8.bf16 %v6769
    %v7290 = vunpack.c.l.s8.bf16 %v6770
    %v7291 = vunpack.c.l.s8.bf16 %v6771
    %v7292 = vunpack.c.l.s8.bf16 %v6772
    %v7293 = vunpack.c.l.s8.bf16 %v6773
    %v7294 = vunpack.c.l.s8.bf16 %v6774
    %v7295 = vunpack.c.l.s8.bf16 %v6775
    %v7296 = vunpack.c.l.s8.bf16 %v6776
    %v7297 = vunpack.c.h.s8.bf16 %v6769
    %v7298 = vunpack.c.h.s8.bf16 %v6770
    %v7299 = vunpack.c.h.s8.bf16 %v6771
    %v7300 = vunpack.c.h.s8.bf16 %v6772
    %v7301 = vunpack.c.h.s8.bf16 %v6773
    %v7302 = vunpack.c.h.s8.bf16 %v6774
    %v7303 = vunpack.c.h.s8.bf16 %v6775
    %v7304 = vunpack.c.h.s8.bf16 %v6776
    %v7305 = vunpack.c.l.s8.bf16 %v6777
    %v7306 = vunpack.c.l.s8.bf16 %v6778
    %v7307 = vunpack.c.l.s8.bf16 %v6779
    %v7308 = vunpack.c.l.s8.bf16 %v6780
    %v7309 = vunpack.c.l.s8.bf16 %v6781
    %v7310 = vunpack.c.l.s8.bf16 %v6782
    %v7311 = vunpack.c.l.s8.bf16 %v6783
    %v7312 = vunpack.c.l.s8.bf16 %v6784
    %v7313 = vunpack.c.h.s8.bf16 %v6777
    %v7314 = vunpack.c.h.s8.bf16 %v6778
    %v7315 = vunpack.c.h.s8.bf16 %v6779
    %v7316 = vunpack.c.h.s8.bf16 %v6780
    %v7317 = vunpack.c.h.s8.bf16 %v6781
    %v7318 = vunpack.c.h.s8.bf16 %v6782
    %v7319 = vunpack.c.h.s8.bf16 %v6783
    %v7320 = vunpack.c.h.s8.bf16 %v6784
    %v7321 = vunpack.c.l.s8.bf16 %v6785
    %v7322 = vunpack.c.l.s8.bf16 %v6786
    %v7323 = vunpack.c.l.s8.bf16 %v6787
    %v7324 = vunpack.c.l.s8.bf16 %v6788
    %v7325 = vunpack.c.l.s8.bf16 %v6789
    %v7326 = vunpack.c.l.s8.bf16 %v6790
    %v7327 = vunpack.c.l.s8.bf16 %v6791
    %v7328 = vunpack.c.l.s8.bf16 %v6792
    %v7329 = vunpack.c.h.s8.bf16 %v6785
    %v7330 = vunpack.c.h.s8.bf16 %v6786
    %v7331 = vunpack.c.h.s8.bf16 %v6787
    %v7332 = vunpack.c.h.s8.bf16 %v6788
    %v7333 = vunpack.c.h.s8.bf16 %v6789
    %v7334 = vunpack.c.h.s8.bf16 %v6790
    %v7335 = vunpack.c.h.s8.bf16 %v6791
    %v7336 = vunpack.c.h.s8.bf16 %v6792
    %v7337 = vunpack.c.l.s8.bf16 %v6793
    %v7338 = vunpack.c.l.s8.bf16 %v6794
    %v7339 = vunpack.c.l.s8.bf16 %v6795
    %v7340 = vunpack.c.l.s8.bf16 %v6796
    %v7341 = vunpack.c.l.s8.bf16 %v6797
    %v7342 = vunpack.c.l.s8.bf16 %v6798
    %v7343 = vunpack.c.l.s8.bf16 %v6799
    %v7344 = vunpack.c.l.s8.bf16 %v6800
    %v7345 = vunpack.c.h.s8.bf16 %v6793
    %v7346 = vunpack.c.h.s8.bf16 %v6794
    %v7347 = vunpack.c.h.s8.bf16 %v6795
    %v7348 = vunpack.c.h.s8.bf16 %v6796
    %v7349 = vunpack.c.h.s8.bf16 %v6797
    %v7350 = vunpack.c.h.s8.bf16 %v6798
    %v7351 = vunpack.c.h.s8.bf16 %v6799
    %v7352 = vunpack.c.h.s8.bf16 %v6800
    %v7353 = vunpack.c.l.s8.bf16 %v6801
    %v7354 = vunpack.c.l.s8.bf16 %v6802
    %v7355 = vunpack.c.l.s8.bf16 %v6803
    %v7356 = vunpack.c.l.s8.bf16 %v6804
    %v7357 = vunpack.c.l.s8.bf16 %v6805
    %v7358 = vunpack.c.l.s8.bf16 %v6806
    %v7359 = vunpack.c.l.s8.bf16 %v6807
    %v7360 = vunpack.c.l.s8.bf16 %v6808
    %v7361 = vunpack.c.h.s8.bf16 %v6801
    %v7362 = vunpack.c.h.s8.bf16 %v6802
    %v7363 = vunpack.c.h.s8.bf16 %v6803
    %v7364 = vunpack.c.h.s8.bf16 %v6804
    %v7365 = vunpack.c.h.s8.bf16 %v6805
    %v7366 = vunpack.c.h.s8.bf16 %v6806
    %v7367 = vunpack.c.h.s8.bf16 %v6807
    %v7368 = vunpack.c.h.s8.bf16 %v6808
    %v7369 = vunpack.c.l.s8.bf16 %v6809
    %v7370 = vunpack.c.l.s8.bf16 %v6810
    %v7371 = vunpack.c.l.s8.bf16 %v6811
    %v7372 = vunpack.c.l.s8.bf16 %v6812
    %v7373 = vunpack.c.l.s8.bf16 %v6813
    %v7374 = vunpack.c.l.s8.bf16 %v6814
    %v7375 = vunpack.c.l.s8.bf16 %v6815
    %v7376 = vunpack.c.l.s8.bf16 %v6816
    %v7377 = vunpack.c.h.s8.bf16 %v6809
    %v7378 = vunpack.c.h.s8.bf16 %v6810
    %v7379 = vunpack.c.h.s8.bf16 %v6811
    %v7380 = vunpack.c.h.s8.bf16 %v6812
    %v7381 = vunpack.c.h.s8.bf16 %v6813
    %v7382 = vunpack.c.h.s8.bf16 %v6814
    %v7383 = vunpack.c.h.s8.bf16 %v6815
    %v7384 = vunpack.c.h.s8.bf16 %v6816
    %v7385 = vunpack.c.l.s8.bf16 %v6817
    %v7386 = vunpack.c.l.s8.bf16 %v6818
    %v7387 = vunpack.c.l.s8.bf16 %v6819
    %v7388 = vunpack.c.l.s8.bf16 %v6820
    %v7389 = vunpack.c.l.s8.bf16 %v6821
    %v7390 = vunpack.c.l.s8.bf16 %v6822
    %v7391 = vunpack.c.l.s8.bf16 %v6823
    %v7392 = vunpack.c.l.s8.bf16 %v6824
    %v7393 = vunpack.c.h.s8.bf16 %v6817
    %v7394 = vunpack.c.h.s8.bf16 %v6818
    %v7395 = vunpack.c.h.s8.bf16 %v6819
    %v7396 = vunpack.c.h.s8.bf16 %v6820
    %v7397 = vunpack.c.h.s8.bf16 %v6821
    %v7398 = vunpack.c.h.s8.bf16 %v6822
    %v7399 = vunpack.c.h.s8.bf16 %v6823
    %v7400 = vunpack.c.h.s8.bf16 %v6824
    %v7401 = vunpack.c.l.s8.bf16 %v6825
    %v7402 = vunpack.c.l.s8.bf16 %v6826
    %v7403 = vunpack.c.l.s8.bf16 %v6827
    %v7404 = vunpack.c.l.s8.bf16 %v6828
    %v7405 = vunpack.c.l.s8.bf16 %v6829
    %v7406 = vunpack.c.l.s8.bf16 %v6830
    %v7407 = vunpack.c.l.s8.bf16 %v6831
    %v7408 = vunpack.c.l.s8.bf16 %v6832
    %v7409 = vunpack.c.h.s8.bf16 %v6825
    %v7410 = vunpack.c.h.s8.bf16 %v6826
    %v7411 = vunpack.c.h.s8.bf16 %v6827
    %v7412 = vunpack.c.h.s8.bf16 %v6828
    %v7413 = vunpack.c.h.s8.bf16 %v6829
    %v7414 = vunpack.c.h.s8.bf16 %v6830
    %v7415 = vunpack.c.h.s8.bf16 %v6831
    %v7416 = vunpack.c.h.s8.bf16 %v6832
    %v7417 = vunpack.c.l.s8.bf16 %v6833
    %v7418 = vunpack.c.l.s8.bf16 %v6834
    %v7419 = vunpack.c.l.s8.bf16 %v6835
    %v7420 = vunpack.c.l.s8.bf16 %v6836
    %v7421 = vunpack.c.l.s8.bf16 %v6837
    %v7422 = vunpack.c.l.s8.bf16 %v6838
    %v7423 = vunpack.c.l.s8.bf16 %v6839
    %v7424 = vunpack.c.l.s8.bf16 %v6840
    %v7425 = vunpack.c.h.s8.bf16 %v6833
    %v7426 = vunpack.c.h.s8.bf16 %v6834
    %v7427 = vunpack.c.h.s8.bf16 %v6835
    %v7428 = vunpack.c.h.s8.bf16 %v6836
    %v7429 = vunpack.c.h.s8.bf16 %v6837
    %v7430 = vunpack.c.h.s8.bf16 %v6838
    %v7431 = vunpack.c.h.s8.bf16 %v6839
    %v7432 = vunpack.c.h.s8.bf16 %v6840
    %v7433 = vunpack.c.l.s8.bf16 %v6841
    %v7434 = vunpack.c.l.s8.bf16 %v6842
    %v7435 = vunpack.c.l.s8.bf16 %v6843
    %v7436 = vunpack.c.l.s8.bf16 %v6844
    %v7437 = vunpack.c.l.s8.bf16 %v6845
    %v7438 = vunpack.c.l.s8.bf16 %v6846
    %v7439 = vunpack.c.l.s8.bf16 %v6847
    %v7440 = vunpack.c.l.s8.bf16 %v6848
    %v7441 = vunpack.c.h.s8.bf16 %v6841
    %v7442 = vunpack.c.h.s8.bf16 %v6842
    %v7443 = vunpack.c.h.s8.bf16 %v6843
    %v7444 = vunpack.c.h.s8.bf16 %v6844
    %v7445 = vunpack.c.h.s8.bf16 %v6845
    %v7446 = vunpack.c.h.s8.bf16 %v6846
    %v7447 = vunpack.c.h.s8.bf16 %v6847
    %v7448 = vunpack.c.h.s8.bf16 %v6848
    %v7449 = vunpack.c.l.s8.bf16 %v6849
    %v7450 = vunpack.c.l.s8.bf16 %v6850
    %v7451 = vunpack.c.l.s8.bf16 %v6851
    %v7452 = vunpack.c.l.s8.bf16 %v6852
    %v7453 = vunpack.c.l.s8.bf16 %v6853
    %v7454 = vunpack.c.l.s8.bf16 %v6854
    %v7455 = vunpack.c.l.s8.bf16 %v6855
    %v7456 = vunpack.c.l.s8.bf16 %v6856
    %v7457 = vunpack.c.h.s8.bf16 %v6849
    %v7458 = vunpack.c.h.s8.bf16 %v6850
    %v7459 = vunpack.c.h.s8.bf16 %v6851
    %v7460 = vunpack.c.h.s8.bf16 %v6852
    %v7461 = vunpack.c.h.s8.bf16 %v6853
    %v7462 = vunpack.c.h.s8.bf16 %v6854
    %v7463 = vunpack.c.h.s8.bf16 %v6855
    %v7464 = vunpack.c.h.s8.bf16 %v6856
    %v7465 = vunpack.c.l.s8.bf16 %v6857
    %v7466 = vunpack.c.l.s8.bf16 %v6858
    %v7467 = vunpack.c.l.s8.bf16 %v6859
    %v7468 = vunpack.c.l.s8.bf16 %v6860
    %v7469 = vunpack.c.l.s8.bf16 %v6861
    %v7470 = vunpack.c.l.s8.bf16 %v6862
    %v7471 = vunpack.c.l.s8.bf16 %v6863
    %v7472 = vunpack.c.l.s8.bf16 %v6864
    %v7473 = vunpack.c.h.s8.bf16 %v6857
    %v7474 = vunpack.c.h.s8.bf16 %v6858
    %v7475 = vunpack.c.h.s8.bf16 %v6859
    %v7476 = vunpack.c.h.s8.bf16 %v6860
    %v7477 = vunpack.c.h.s8.bf16 %v6861
    %v7478 = vunpack.c.h.s8.bf16 %v6862
    %v7479 = vunpack.c.h.s8.bf16 %v6863
    %v7480 = vunpack.c.h.s8.bf16 %v6864
    %v7481 = vunpack.c.l.s8.bf16 %v6865
    %v7482 = vunpack.c.l.s8.bf16 %v6866
    %v7483 = vunpack.c.l.s8.bf16 %v6867
    %v7484 = vunpack.c.l.s8.bf16 %v6868
    %v7485 = vunpack.c.l.s8.bf16 %v6869
    %v7486 = vunpack.c.l.s8.bf16 %v6870
    %v7487 = vunpack.c.l.s8.bf16 %v6871
    %v7488 = vunpack.c.l.s8.bf16 %v6872
    %v7489 = vunpack.c.h.s8.bf16 %v6865
    %v7490 = vunpack.c.h.s8.bf16 %v6866
    %v7491 = vunpack.c.h.s8.bf16 %v6867
    %v7492 = vunpack.c.h.s8.bf16 %v6868
    %v7493 = vunpack.c.h.s8.bf16 %v6869
    %v7494 = vunpack.c.h.s8.bf16 %v6870
    %v7495 = vunpack.c.h.s8.bf16 %v6871
    %v7496 = vunpack.c.h.s8.bf16 %v6872
    %v7497 = vunpack.c.l.s8.bf16 %v6873
    %v7498 = vunpack.c.l.s8.bf16 %v6874
    %v7499 = vunpack.c.l.s8.bf16 %v6875
    %v7500 = vunpack.c.l.s8.bf16 %v6876
    %v7501 = vunpack.c.l.s8.bf16 %v6877
    %v7502 = vunpack.c.l.s8.bf16 %v6878
    %v7503 = vunpack.c.l.s8.bf16 %v6879
    %v7504 = vunpack.c.l.s8.bf16 %v6880
    %v7505 = vunpack.c.h.s8.bf16 %v6873
    %v7506 = vunpack.c.h.s8.bf16 %v6874
    %v7507 = vunpack.c.h.s8.bf16 %v6875
    %v7508 = vunpack.c.h.s8.bf16 %v6876
    %v7509 = vunpack.c.h.s8.bf16 %v6877
    %v7510 = vunpack.c.h.s8.bf16 %v6878
    %v7511 = vunpack.c.h.s8.bf16 %v6879
    %v7512 = vunpack.c.h.s8.bf16 %v6880
    %v7513 = vunpack.c.l.s8.bf16 %v6881
    %v7514 = vunpack.c.l.s8.bf16 %v6882
    %v7515 = vunpack.c.l.s8.bf16 %v6883
    %v7516 = vunpack.c.l.s8.bf16 %v6884
    %v7517 = vunpack.c.l.s8.bf16 %v6885
    %v7518 = vunpack.c.l.s8.bf16 %v6886
    %v7519 = vunpack.c.l.s8.bf16 %v6887
    %v7520 = vunpack.c.l.s8.bf16 %v6888
    %v7521 = vunpack.c.h.s8.bf16 %v6881
    %v7522 = vunpack.c.h.s8.bf16 %v6882
    %v7523 = vunpack.c.h.s8.bf16 %v6883
    %v7524 = vunpack.c.h.s8.bf16 %v6884
    %v7525 = vunpack.c.h.s8.bf16 %v6885
    %v7526 = vunpack.c.h.s8.bf16 %v6886
    %v7527 = vunpack.c.h.s8.bf16 %v6887
    %v7528 = vunpack.c.h.s8.bf16 %v6888
    %v7529 = vunpack.c.l.s8.bf16 %v6889
    %v7530 = vunpack.c.l.s8.bf16 %v6890
    %v7531 = vunpack.c.l.s8.bf16 %v6891
    %v7532 = vunpack.c.l.s8.bf16 %v6892
    %v7533 = vunpack.c.l.s8.bf16 %v6893
    %v7534 = vunpack.c.l.s8.bf16 %v6894
    %v7535 = vunpack.c.l.s8.bf16 %v6895
    %v7536 = vunpack.c.l.s8.bf16 %v6896
    %v7537 = vunpack.c.h.s8.bf16 %v6889
    %v7538 = vunpack.c.h.s8.bf16 %v6890
    %v7539 = vunpack.c.h.s8.bf16 %v6891
    %v7540 = vunpack.c.h.s8.bf16 %v6892
    %v7541 = vunpack.c.h.s8.bf16 %v6893
    %v7542 = vunpack.c.h.s8.bf16 %v6894
    %v7543 = vunpack.c.h.s8.bf16 %v6895
    %v7544 = vunpack.c.h.s8.bf16 %v6896
    %v7545 = vunpack.c.l.s8.bf16 %v6897
    %v7546 = vunpack.c.l.s8.bf16 %v6898
    %v7547 = vunpack.c.l.s8.bf16 %v6899
    %v7548 = vunpack.c.l.s8.bf16 %v6900
    %v7549 = vunpack.c.l.s8.bf16 %v6901
    %v7550 = vunpack.c.l.s8.bf16 %v6902
    %v7551 = vunpack.c.l.s8.bf16 %v6903
    %v7552 = vunpack.c.l.s8.bf16 %v6904
    %v7553 = vunpack.c.h.s8.bf16 %v6897
    %v7554 = vunpack.c.h.s8.bf16 %v6898
    %v7555 = vunpack.c.h.s8.bf16 %v6899
    %v7556 = vunpack.c.h.s8.bf16 %v6900
    %v7557 = vunpack.c.h.s8.bf16 %v6901
    %v7558 = vunpack.c.h.s8.bf16 %v6902
    %v7559 = vunpack.c.h.s8.bf16 %v6903
    %v7560 = vunpack.c.h.s8.bf16 %v6904
    %v7561 = vunpack.c.l.s8.bf16 %v6905
    %v7562 = vunpack.c.l.s8.bf16 %v6906
    %v7563 = vunpack.c.l.s8.bf16 %v6907
    %v7564 = vunpack.c.l.s8.bf16 %v6908
    %v7565 = vunpack.c.l.s8.bf16 %v6909
    %v7566 = vunpack.c.l.s8.bf16 %v6910
    %v7567 = vunpack.c.l.s8.bf16 %v6911
    %v7568 = vunpack.c.l.s8.bf16 %v6912
    %v7569 = vunpack.c.h.s8.bf16 %v6905
    %v7570 = vunpack.c.h.s8.bf16 %v6906
    %v7571 = vunpack.c.h.s8.bf16 %v6907
    %v7572 = vunpack.c.h.s8.bf16 %v6908
    %v7573 = vunpack.c.h.s8.bf16 %v6909
    %v7574 = vunpack.c.h.s8.bf16 %v6910
    %v7575 = vunpack.c.h.s8.bf16 %v6911
    %v7576 = vunpack.c.h.s8.bf16 %v6912
    %v7577 = vunpack.c.l.s8.bf16 %v6913
    %v7578 = vunpack.c.l.s8.bf16 %v6914
    %v7579 = vunpack.c.l.s8.bf16 %v6915
    %v7580 = vunpack.c.l.s8.bf16 %v6916
    %v7581 = vunpack.c.l.s8.bf16 %v6917
    %v7582 = vunpack.c.l.s8.bf16 %v6918
    %v7583 = vunpack.c.l.s8.bf16 %v6919
    %v7584 = vunpack.c.l.s8.bf16 %v6920
    %v7585 = vunpack.c.h.s8.bf16 %v6913
    %v7586 = vunpack.c.h.s8.bf16 %v6914
    %v7587 = vunpack.c.h.s8.bf16 %v6915
    %v7588 = vunpack.c.h.s8.bf16 %v6916
    %v7589 = vunpack.c.h.s8.bf16 %v6917
    %v7590 = vunpack.c.h.s8.bf16 %v6918
    %v7591 = vunpack.c.h.s8.bf16 %v6919
    %v7592 = vunpack.c.h.s8.bf16 %v6920
    %v7593 = vunpack.c.l.s8.bf16 %v6921
    %v7594 = vunpack.c.l.s8.bf16 %v6922
    %v7595 = vunpack.c.l.s8.bf16 %v6923
    %v7596 = vunpack.c.l.s8.bf16 %v6924
    %v7597 = vunpack.c.l.s8.bf16 %v6925
    %v7598 = vunpack.c.l.s8.bf16 %v6926
    %v7599 = vunpack.c.l.s8.bf16 %v6927
    %v7600 = vunpack.c.l.s8.bf16 %v6928
    %v7601 = vunpack.c.h.s8.bf16 %v6921
    %v7602 = vunpack.c.h.s8.bf16 %v6922
    %v7603 = vunpack.c.h.s8.bf16 %v6923
    %v7604 = vunpack.c.h.s8.bf16 %v6924
    %v7605 = vunpack.c.h.s8.bf16 %v6925
    %v7606 = vunpack.c.h.s8.bf16 %v6926
    %v7607 = vunpack.c.h.s8.bf16 %v6927
    %v7608 = vunpack.c.h.s8.bf16 %v6928
    %v7609 = vunpack.c.l.s8.bf16 %v6929
    %v7610 = vunpack.c.l.s8.bf16 %v6930
    %v7611 = vunpack.c.l.s8.bf16 %v6931
    %v7612 = vunpack.c.l.s8.bf16 %v6932
    %v7613 = vunpack.c.l.s8.bf16 %v6933
    %v7614 = vunpack.c.l.s8.bf16 %v6934
    %v7615 = vunpack.c.l.s8.bf16 %v6935
    %v7616 = vunpack.c.l.s8.bf16 %v6936
    %v7617 = vunpack.c.h.s8.bf16 %v6929
    %v7618 = vunpack.c.h.s8.bf16 %v6930
    %v7619 = vunpack.c.h.s8.bf16 %v6931
    %v7620 = vunpack.c.h.s8.bf16 %v6932
    %v7621 = vunpack.c.h.s8.bf16 %v6933
    %v7622 = vunpack.c.h.s8.bf16 %v6934
    %v7623 = vunpack.c.h.s8.bf16 %v6935
    %v7624 = vunpack.c.h.s8.bf16 %v6936
    %v7625 = vunpack.c.l.s8.bf16 %v6937
    %v7626 = vunpack.c.l.s8.bf16 %v6938
    %v7627 = vunpack.c.l.s8.bf16 %v6939
    %v7628 = vunpack.c.l.s8.bf16 %v6940
    %v7629 = vunpack.c.l.s8.bf16 %v6941
    %v7630 = vunpack.c.l.s8.bf16 %v6942
    %v7631 = vunpack.c.l.s8.bf16 %v6943
    %v7632 = vunpack.c.l.s8.bf16 %v6944
    %v7633 = vunpack.c.h.s8.bf16 %v6937
    %v7634 = vunpack.c.h.s8.bf16 %v6938
    %v7635 = vunpack.c.h.s8.bf16 %v6939
    %v7636 = vunpack.c.h.s8.bf16 %v6940
    %v7637 = vunpack.c.h.s8.bf16 %v6941
    %v7638 = vunpack.c.h.s8.bf16 %v6942
    %v7639 = vunpack.c.h.s8.bf16 %v6943
    %v7640 = vunpack.c.h.s8.bf16 %v6944
    %v7641 = vunpack.c.l.s8.bf16 %v6945
    %v7642 = vunpack.c.l.s8.bf16 %v6946
    %v7643 = vunpack.c.l.s8.bf16 %v6947
    %v7644 = vunpack.c.l.s8.bf16 %v6948
    %v7645 = vunpack.c.l.s8.bf16 %v6949
    %v7646 = vunpack.c.l.s8.bf16 %v6950
    %v7647 = vunpack.c.l.s8.bf16 %v6951
    %v7648 = vunpack.c.l.s8.bf16 %v6952
    %v7649 = vunpack.c.h.s8.bf16 %v6945
    %v7650 = vunpack.c.h.s8.bf16 %v6946
    %v7651 = vunpack.c.h.s8.bf16 %v6947
    %v7652 = vunpack.c.h.s8.bf16 %v6948
    %v7653 = vunpack.c.h.s8.bf16 %v6949
    %v7654 = vunpack.c.h.s8.bf16 %v6950
    %v7655 = vunpack.c.h.s8.bf16 %v6951
    %v7656 = vunpack.c.h.s8.bf16 %v6952
    %v7657 = vunpack.c.l.s8.bf16 %v6953
    %v7658 = vunpack.c.l.s8.bf16 %v6954
    %v7659 = vunpack.c.l.s8.bf16 %v6955
    %v7660 = vunpack.c.l.s8.bf16 %v6956
    %v7661 = vunpack.c.l.s8.bf16 %v6957
    %v7662 = vunpack.c.l.s8.bf16 %v6958
    %v7663 = vunpack.c.l.s8.bf16 %v6959
    %v7664 = vunpack.c.l.s8.bf16 %v6960
    %v7665 = vunpack.c.h.s8.bf16 %v6953
    %v7666 = vunpack.c.h.s8.bf16 %v6954
    %v7667 = vunpack.c.h.s8.bf16 %v6955
    %v7668 = vunpack.c.h.s8.bf16 %v6956
    %v7669 = vunpack.c.h.s8.bf16 %v6957
    %v7670 = vunpack.c.h.s8.bf16 %v6958
    %v7671 = vunpack.c.h.s8.bf16 %v6959
    %v7672 = vunpack.c.h.s8.bf16 %v6960
    %v7673 = vunpack.c.l.s8.bf16 %v6961
    %v7674 = vunpack.c.l.s8.bf16 %v6962
    %v7675 = vunpack.c.l.s8.bf16 %v6963
    %v7676 = vunpack.c.l.s8.bf16 %v6964
    %v7677 = vunpack.c.l.s8.bf16 %v6965
    %v7678 = vunpack.c.l.s8.bf16 %v6966
    %v7679 = vunpack.c.l.s8.bf16 %v6967
    %v7680 = vunpack.c.l.s8.bf16 %v6968
    %v7681 = vunpack.c.h.s8.bf16 %v6961
    %v7682 = vunpack.c.h.s8.bf16 %v6962
    %v7683 = vunpack.c.h.s8.bf16 %v6963
    %v7684 = vunpack.c.h.s8.bf16 %v6964
    %v7685 = vunpack.c.h.s8.bf16 %v6965
    %v7686 = vunpack.c.h.s8.bf16 %v6966
    %v7687 = vunpack.c.h.s8.bf16 %v6967
    %v7688 = vunpack.c.h.s8.bf16 %v6968
    %v7689 = vunpack.c.l.s8.bf16 %v6969
    %v7690 = vunpack.c.l.s8.bf16 %v6970
    %v7691 = vunpack.c.l.s8.bf16 %v6971
    %v7692 = vunpack.c.l.s8.bf16 %v6972
    %v7693 = vunpack.c.l.s8.bf16 %v6973
    %v7694 = vunpack.c.l.s8.bf16 %v6974
    %v7695 = vunpack.c.l.s8.bf16 %v6975
    %v7696 = vunpack.c.l.s8.bf16 %v6976
    %v7697 = vunpack.c.h.s8.bf16 %v6969
    %v7698 = vunpack.c.h.s8.bf16 %v6970
    %v7699 = vunpack.c.h.s8.bf16 %v6971
    %v7700 = vunpack.c.h.s8.bf16 %v6972
    %v7701 = vunpack.c.h.s8.bf16 %v6973
    %v7702 = vunpack.c.h.s8.bf16 %v6974
    %v7703 = vunpack.c.h.s8.bf16 %v6975
    %v7704 = vunpack.c.h.s8.bf16 %v6976
    %v7705 = vunpack.c.l.s8.bf16 %v6977
    %v7706 = vunpack.c.l.s8.bf16 %v6978
    %v7707 = vunpack.c.l.s8.bf16 %v6979
    %v7708 = vunpack.c.l.s8.bf16 %v6980
    %v7709 = vunpack.c.l.s8.bf16 %v6981
    %v7710 = vunpack.c.l.s8.bf16 %v6982
    %v7711 = vunpack.c.l.s8.bf16 %v6983
    %v7712 = vunpack.c.l.s8.bf16 %v6984
    %v7713 = vunpack.c.h.s8.bf16 %v6977
    %v7714 = vunpack.c.h.s8.bf16 %v6978
    %v7715 = vunpack.c.h.s8.bf16 %v6979
    %v7716 = vunpack.c.h.s8.bf16 %v6980
    %v7717 = vunpack.c.h.s8.bf16 %v6981
    %v7718 = vunpack.c.h.s8.bf16 %v6982
    %v7719 = vunpack.c.h.s8.bf16 %v6983
    %v7720 = vunpack.c.h.s8.bf16 %v6984
    %v7721 = vunpack.c.l.s8.bf16 %v6985
    %v7722 = vunpack.c.l.s8.bf16 %v6986
    %v7723 = vunpack.c.l.s8.bf16 %v6987
    %v7724 = vunpack.c.l.s8.bf16 %v6988
    %v7725 = vunpack.c.l.s8.bf16 %v6989
    %v7726 = vunpack.c.l.s8.bf16 %v6990
    %v7727 = vunpack.c.l.s8.bf16 %v6991
    %v7728 = vunpack.c.l.s8.bf16 %v6992
    %v7729 = vunpack.c.h.s8.bf16 %v6985
    %v7730 = vunpack.c.h.s8.bf16 %v6986
    %v7731 = vunpack.c.h.s8.bf16 %v6987
    %v7732 = vunpack.c.h.s8.bf16 %v6988
    %v7733 = vunpack.c.h.s8.bf16 %v6989
    %v7734 = vunpack.c.h.s8.bf16 %v6990
    %v7735 = vunpack.c.h.s8.bf16 %v6991
    %v7736 = vunpack.c.h.s8.bf16 %v6992
    %v7737 = vunpack.c.l.s8.bf16 %v6993
    %v7738 = vunpack.c.l.s8.bf16 %v6994
    %v7739 = vunpack.c.l.s8.bf16 %v6995
    %v7740 = vunpack.c.l.s8.bf16 %v6996
    %v7741 = vunpack.c.l.s8.bf16 %v6997
    %v7742 = vunpack.c.l.s8.bf16 %v6998
    %v7743 = vunpack.c.l.s8.bf16 %v6999
    %v7744 = vunpack.c.l.s8.bf16 %v7000
    %v7745 = vunpack.c.h.s8.bf16 %v6993
    %v7746 = vunpack.c.h.s8.bf16 %v6994
    %v7747 = vunpack.c.h.s8.bf16 %v6995
    %v7748 = vunpack.c.h.s8.bf16 %v6996
    %v7749 = vunpack.c.h.s8.bf16 %v6997
    %v7750 = vunpack.c.h.s8.bf16 %v6998
    %v7751 = vunpack.c.h.s8.bf16 %v6999
    %v7752 = vunpack.c.h.s8.bf16 %v7000
    %v7753 = vunpack.c.l.s8.bf16 %v7001
    %v7754 = vunpack.c.l.s8.bf16 %v7002
    %v7755 = vunpack.c.l.s8.bf16 %v7003
    %v7756 = vunpack.c.l.s8.bf16 %v7004
    %v7757 = vunpack.c.l.s8.bf16 %v7005
    %v7758 = vunpack.c.l.s8.bf16 %v7006
    %v7759 = vunpack.c.l.s8.bf16 %v7007
    %v7760 = vunpack.c.l.s8.bf16 %v7008
    %v7761 = vunpack.c.h.s8.bf16 %v7001
    %v7762 = vunpack.c.h.s8.bf16 %v7002
    %v7763 = vunpack.c.h.s8.bf16 %v7003
    %v7764 = vunpack.c.h.s8.bf16 %v7004
    %v7765 = vunpack.c.h.s8.bf16 %v7005
    %v7766 = vunpack.c.h.s8.bf16 %v7006
    %v7767 = vunpack.c.h.s8.bf16 %v7007
    %v7768 = vunpack.c.h.s8.bf16 %v7008
    %v7769 = vunpack.c.l.s8.bf16 %v7009
    %v7770 = vunpack.c.l.s8.bf16 %v7010
    %v7771 = vunpack.c.l.s8.bf16 %v7011
    %v7772 = vunpack.c.l.s8.bf16 %v7012
    %v7773 = vunpack.c.l.s8.bf16 %v7013
    %v7774 = vunpack.c.l.s8.bf16 %v7014
    %v7775 = vunpack.c.l.s8.bf16 %v7015
    %v7776 = vunpack.c.l.s8.bf16 %v7016
    %v7777 = vunpack.c.h.s8.bf16 %v7009
    %v7778 = vunpack.c.h.s8.bf16 %v7010
    %v7779 = vunpack.c.h.s8.bf16 %v7011
    %v7780 = vunpack.c.h.s8.bf16 %v7012
    %v7781 = vunpack.c.h.s8.bf16 %v7013
    %v7782 = vunpack.c.h.s8.bf16 %v7014
    %v7783 = vunpack.c.h.s8.bf16 %v7015
    %v7784 = vunpack.c.h.s8.bf16 %v7016
    %v7785 = vunpack.c.l.s8.bf16 %v7017
    %v7786 = vunpack.c.l.s8.bf16 %v7018
    %v7787 = vunpack.c.l.s8.bf16 %v7019
    %v7788 = vunpack.c.l.s8.bf16 %v7020
    %v7789 = vunpack.c.l.s8.bf16 %v7021
    %v7790 = vunpack.c.l.s8.bf16 %v7022
    %v7791 = vunpack.c.l.s8.bf16 %v7023
    %v7792 = vunpack.c.l.s8.bf16 %v7024
    %v7793 = vunpack.c.h.s8.bf16 %v7017
    %v7794 = vunpack.c.h.s8.bf16 %v7018
    %v7795 = vunpack.c.h.s8.bf16 %v7019
    %v7796 = vunpack.c.h.s8.bf16 %v7020
    %v7797 = vunpack.c.h.s8.bf16 %v7021
    %v7798 = vunpack.c.h.s8.bf16 %v7022
    %v7799 = vunpack.c.h.s8.bf16 %v7023
    %v7800 = vunpack.c.h.s8.bf16 %v7024
    %v7801 = vunpack.c.l.s8.bf16 %v7025
    %v7802 = vunpack.c.l.s8.bf16 %v7026
    %v7803 = vunpack.c.l.s8.bf16 %v7027
    %v7804 = vunpack.c.l.s8.bf16 %v7028
    %v7805 = vunpack.c.l.s8.bf16 %v7029
    %v7806 = vunpack.c.l.s8.bf16 %v7030
    %v7807 = vunpack.c.l.s8.bf16 %v7031
    %v7808 = vunpack.c.l.s8.bf16 %v7032
    %v7809 = vunpack.c.h.s8.bf16 %v7025
    %v7810 = vunpack.c.h.s8.bf16 %v7026
    %v7811 = vunpack.c.h.s8.bf16 %v7027
    %v7812 = vunpack.c.h.s8.bf16 %v7028
    %v7813 = vunpack.c.h.s8.bf16 %v7029
    %v7814 = vunpack.c.h.s8.bf16 %v7030
    %v7815 = vunpack.c.h.s8.bf16 %v7031
    %v7816 = vunpack.c.h.s8.bf16 %v7032
    %v7817 = vunpack.c.l.s8.bf16 %v7033
    %v7818 = vunpack.c.l.s8.bf16 %v7034
    %v7819 = vunpack.c.l.s8.bf16 %v7035
    %v7820 = vunpack.c.l.s8.bf16 %v7036
    %v7821 = vunpack.c.l.s8.bf16 %v7037
    %v7822 = vunpack.c.l.s8.bf16 %v7038
    %v7823 = vunpack.c.l.s8.bf16 %v7039
    %v7824 = vunpack.c.l.s8.bf16 %v7040
    %v7825 = vunpack.c.h.s8.bf16 %v7033
    %v7826 = vunpack.c.h.s8.bf16 %v7034
    %v7827 = vunpack.c.h.s8.bf16 %v7035
    %v7828 = vunpack.c.h.s8.bf16 %v7036
    %v7829 = vunpack.c.h.s8.bf16 %v7037
    %v7830 = vunpack.c.h.s8.bf16 %v7038
    %v7831 = vunpack.c.h.s8.bf16 %v7039
    %v7832 = vunpack.c.h.s8.bf16 %v7040
    %v7833 = vunpack.c.l.s8.bf16 %v7041
    %v7834 = vunpack.c.l.s8.bf16 %v7042
    %v7835 = vunpack.c.l.s8.bf16 %v7043
    %v7836 = vunpack.c.l.s8.bf16 %v7044
    %v7837 = vunpack.c.l.s8.bf16 %v7045
    %v7838 = vunpack.c.l.s8.bf16 %v7046
    %v7839 = vunpack.c.l.s8.bf16 %v7047
    %v7840 = vunpack.c.l.s8.bf16 %v7048
    %v7841 = vunpack.c.h.s8.bf16 %v7041
    %v7842 = vunpack.c.h.s8.bf16 %v7042
    %v7843 = vunpack.c.h.s8.bf16 %v7043
    %v7844 = vunpack.c.h.s8.bf16 %v7044
    %v7845 = vunpack.c.h.s8.bf16 %v7045
    %v7846 = vunpack.c.h.s8.bf16 %v7046
    %v7847 = vunpack.c.h.s8.bf16 %v7047
    %v7848 = vunpack.c.h.s8.bf16 %v7048
    %v7849 = vunpack.c.l.s8.bf16 %v7049
    %v7850 = vunpack.c.l.s8.bf16 %v7050
    %v7851 = vunpack.c.l.s8.bf16 %v7051
    %v7852 = vunpack.c.l.s8.bf16 %v7052
    %v7853 = vunpack.c.l.s8.bf16 %v7053
    %v7854 = vunpack.c.l.s8.bf16 %v7054
    %v7855 = vunpack.c.l.s8.bf16 %v7055
    %v7856 = vunpack.c.l.s8.bf16 %v7056
    %v7857 = vunpack.c.h.s8.bf16 %v7049
    %v7858 = vunpack.c.h.s8.bf16 %v7050
    %v7859 = vunpack.c.h.s8.bf16 %v7051
    %v7860 = vunpack.c.h.s8.bf16 %v7052
    %v7861 = vunpack.c.h.s8.bf16 %v7053
    %v7862 = vunpack.c.h.s8.bf16 %v7054
    %v7863 = vunpack.c.h.s8.bf16 %v7055
    %v7864 = vunpack.c.h.s8.bf16 %v7056
    %v7865 = vunpack.c.l.s8.bf16 %v7057
    %v7866 = vunpack.c.l.s8.bf16 %v7058
    %v7867 = vunpack.c.l.s8.bf16 %v7059
    %v7868 = vunpack.c.l.s8.bf16 %v7060
    %v7869 = vunpack.c.l.s8.bf16 %v7061
    %v7870 = vunpack.c.l.s8.bf16 %v7062
    %v7871 = vunpack.c.l.s8.bf16 %v7063
    %v7872 = vunpack.c.l.s8.bf16 %v7064
    %v7873 = vunpack.c.h.s8.bf16 %v7057
    %v7874 = vunpack.c.h.s8.bf16 %v7058
    %v7875 = vunpack.c.h.s8.bf16 %v7059
    %v7876 = vunpack.c.h.s8.bf16 %v7060
    %v7877 = vunpack.c.h.s8.bf16 %v7061
    %v7878 = vunpack.c.h.s8.bf16 %v7062
    %v7879 = vunpack.c.h.s8.bf16 %v7063
    %v7880 = vunpack.c.h.s8.bf16 %v7064
    %v7881 = vunpack.c.l.s8.bf16 %v7065
    %v7882 = vunpack.c.l.s8.bf16 %v7066
    %v7883 = vunpack.c.l.s8.bf16 %v7067
    %v7884 = vunpack.c.l.s8.bf16 %v7068
    %v7885 = vunpack.c.l.s8.bf16 %v7069
    %v7886 = vunpack.c.l.s8.bf16 %v7070
    %v7887 = vunpack.c.l.s8.bf16 %v7071
    %v7888 = vunpack.c.l.s8.bf16 %v7072
    %v7889 = vunpack.c.h.s8.bf16 %v7065
    %v7890 = vunpack.c.h.s8.bf16 %v7066
    %v7891 = vunpack.c.h.s8.bf16 %v7067
    %v7892 = vunpack.c.h.s8.bf16 %v7068
    %v7893 = vunpack.c.h.s8.bf16 %v7069
    %v7894 = vunpack.c.h.s8.bf16 %v7070
    %v7895 = vunpack.c.h.s8.bf16 %v7071
    %v7896 = vunpack.c.h.s8.bf16 %v7072
    %v7897 = vunpack.c.l.s8.bf16 %v7073
    %v7898 = vunpack.c.l.s8.bf16 %v7074
    %v7899 = vunpack.c.l.s8.bf16 %v7075
    %v7900 = vunpack.c.l.s8.bf16 %v7076
    %v7901 = vunpack.c.l.s8.bf16 %v7077
    %v7902 = vunpack.c.l.s8.bf16 %v7078
    %v7903 = vunpack.c.l.s8.bf16 %v7079
    %v7904 = vunpack.c.l.s8.bf16 %v7080
    %v7905 = vunpack.c.h.s8.bf16 %v7073
    %v7906 = vunpack.c.h.s8.bf16 %v7074
    %v7907 = vunpack.c.h.s8.bf16 %v7075
    %v7908 = vunpack.c.h.s8.bf16 %v7076
    %v7909 = vunpack.c.h.s8.bf16 %v7077
    %v7910 = vunpack.c.h.s8.bf16 %v7078
    %v7911 = vunpack.c.h.s8.bf16 %v7079
    %v7912 = vunpack.c.h.s8.bf16 %v7080
    %v7913 = vunpack.c.l.s8.bf16 %v7081
    %v7914 = vunpack.c.l.s8.bf16 %v7082
    %v7915 = vunpack.c.l.s8.bf16 %v7083
    %v7916 = vunpack.c.l.s8.bf16 %v7084
    %v7917 = vunpack.c.l.s8.bf16 %v7085
    %v7918 = vunpack.c.l.s8.bf16 %v7086
    %v7919 = vunpack.c.l.s8.bf16 %v7087
    %v7920 = vunpack.c.l.s8.bf16 %v7088
    %v7921 = vunpack.c.h.s8.bf16 %v7081
    %v7922 = vunpack.c.h.s8.bf16 %v7082
    %v7923 = vunpack.c.h.s8.bf16 %v7083
    %v7924 = vunpack.c.h.s8.bf16 %v7084
    %v7925 = vunpack.c.h.s8.bf16 %v7085
    %v7926 = vunpack.c.h.s8.bf16 %v7086
    %v7927 = vunpack.c.h.s8.bf16 %v7087
    %v7928 = vunpack.c.h.s8.bf16 %v7088
    %v7929 = vunpack.c.l.s8.bf16 %v7089
    %v7930 = vunpack.c.l.s8.bf16 %v7090
    %v7931 = vunpack.c.l.s8.bf16 %v7091
    %v7932 = vunpack.c.l.s8.bf16 %v7092
    %v7933 = vunpack.c.l.s8.bf16 %v7093
    %v7934 = vunpack.c.l.s8.bf16 %v7094
    %v7935 = vunpack.c.l.s8.bf16 %v7095
    %v7936 = vunpack.c.l.s8.bf16 %v7096
    %v7937 = vunpack.c.h.s8.bf16 %v7089
    %v7938 = vunpack.c.h.s8.bf16 %v7090
    %v7939 = vunpack.c.h.s8.bf16 %v7091
    %v7940 = vunpack.c.h.s8.bf16 %v7092
    %v7941 = vunpack.c.h.s8.bf16 %v7093
    %v7942 = vunpack.c.h.s8.bf16 %v7094
    %v7943 = vunpack.c.h.s8.bf16 %v7095
    %v7944 = vunpack.c.h.s8.bf16 %v7096
    %v7945 = vunpack.c.l.s8.bf16 %v7097
    %v7946 = vunpack.c.l.s8.bf16 %v7098
    %v7947 = vunpack.c.l.s8.bf16 %v7099
    %v7948 = vunpack.c.l.s8.bf16 %v7100
    %v7949 = vunpack.c.l.s8.bf16 %v7101
    %v7950 = vunpack.c.l.s8.bf16 %v7102
    %v7951 = vunpack.c.l.s8.bf16 %v7103
    %v7952 = vunpack.c.l.s8.bf16 %v7104
    %v7953 = vunpack.c.h.s8.bf16 %v7097
    %v7954 = vunpack.c.h.s8.bf16 %v7098
    %v7955 = vunpack.c.h.s8.bf16 %v7099
    %v7956 = vunpack.c.h.s8.bf16 %v7100
    %v7957 = vunpack.c.h.s8.bf16 %v7101
    %v7958 = vunpack.c.h.s8.bf16 %v7102
    %v7959 = vunpack.c.h.s8.bf16 %v7103
    %v7960 = vunpack.c.h.s8.bf16 %v7104
    %v7961 = vunpack.c.l.s8.bf16 %v7105
    %v7962 = vunpack.c.l.s8.bf16 %v7106
    %v7963 = vunpack.c.l.s8.bf16 %v7107
    %v7964 = vunpack.c.l.s8.bf16 %v7108
    %v7965 = vunpack.c.l.s8.bf16 %v7109
    %v7966 = vunpack.c.l.s8.bf16 %v7110
    %v7967 = vunpack.c.l.s8.bf16 %v7111
    %v7968 = vunpack.c.l.s8.bf16 %v7112
    %v7969 = vunpack.c.h.s8.bf16 %v7105
    %v7970 = vunpack.c.h.s8.bf16 %v7106
    %v7971 = vunpack.c.h.s8.bf16 %v7107
    %v7972 = vunpack.c.h.s8.bf16 %v7108
    %v7973 = vunpack.c.h.s8.bf16 %v7109
    %v7974 = vunpack.c.h.s8.bf16 %v7110
    %v7975 = vunpack.c.h.s8.bf16 %v7111
    %v7976 = vunpack.c.h.s8.bf16 %v7112
    %v7977 = vunpack.c.l.s8.bf16 %v7113
    %v7978 = vunpack.c.l.s8.bf16 %v7114
    %v7979 = vunpack.c.l.s8.bf16 %v7115
    %v7980 = vunpack.c.l.s8.bf16 %v7116
    %v7981 = vunpack.c.l.s8.bf16 %v7117
    %v7982 = vunpack.c.l.s8.bf16 %v7118
    %v7983 = vunpack.c.l.s8.bf16 %v7119
    %v7984 = vunpack.c.l.s8.bf16 %v7120
    %v7985 = vunpack.c.h.s8.bf16 %v7113
    %v7986 = vunpack.c.h.s8.bf16 %v7114
    %v7987 = vunpack.c.h.s8.bf16 %v7115
    %v7988 = vunpack.c.h.s8.bf16 %v7116
    %v7989 = vunpack.c.h.s8.bf16 %v7117
    %v7990 = vunpack.c.h.s8.bf16 %v7118
    %v7991 = vunpack.c.h.s8.bf16 %v7119
    %v7992 = vunpack.c.h.s8.bf16 %v7120
    %v7993 = vunpack.c.l.s8.bf16 %v7121
    %v7994 = vunpack.c.l.s8.bf16 %v7122
    %v7995 = vunpack.c.l.s8.bf16 %v7123
    %v7996 = vunpack.c.l.s8.bf16 %v7124
    %v7997 = vunpack.c.l.s8.bf16 %v7125
    %v7998 = vunpack.c.l.s8.bf16 %v7126
    %v7999 = vunpack.c.l.s8.bf16 %v7127
    %v8000 = vunpack.c.l.s8.bf16 %v7128
    %v8001 = vunpack.c.h.s8.bf16 %v7121
    %v8002 = vunpack.c.h.s8.bf16 %v7122
    %v8003 = vunpack.c.h.s8.bf16 %v7123
    %v8004 = vunpack.c.h.s8.bf16 %v7124
    %v8005 = vunpack.c.h.s8.bf16 %v7125
    %v8006 = vunpack.c.h.s8.bf16 %v7126
    %v8007 = vunpack.c.h.s8.bf16 %v7127
    %v8008 = vunpack.c.h.s8.bf16 %v7128
    %v8009 = vunpack.c.l.s8.bf16 %v7129
    %v8010 = vunpack.c.l.s8.bf16 %v7130
    %v8011 = vunpack.c.l.s8.bf16 %v7131
    %v8012 = vunpack.c.l.s8.bf16 %v7132
    %v8013 = vunpack.c.l.s8.bf16 %v7133
    %v8014 = vunpack.c.l.s8.bf16 %v7134
    %v8015 = vunpack.c.l.s8.bf16 %v7135
    %v8016 = vunpack.c.l.s8.bf16 %v7136
    %v8017 = vunpack.c.h.s8.bf16 %v7129
    %v8018 = vunpack.c.h.s8.bf16 %v7130
    %v8019 = vunpack.c.h.s8.bf16 %v7131
    %v8020 = vunpack.c.h.s8.bf16 %v7132
    %v8021 = vunpack.c.h.s8.bf16 %v7133
    %v8022 = vunpack.c.h.s8.bf16 %v7134
    %v8023 = vunpack.c.h.s8.bf16 %v7135
    %v8024 = vunpack.c.h.s8.bf16 %v7136
    %v8025 = vunpack.c.l.s8.bf16 %v7137
    %v8026 = vunpack.c.l.s8.bf16 %v7138
    %v8027 = vunpack.c.l.s8.bf16 %v7139
    %v8028 = vunpack.c.l.s8.bf16 %v7140
    %v8029 = vunpack.c.l.s8.bf16 %v7141
    %v8030 = vunpack.c.l.s8.bf16 %v7142
    %v8031 = vunpack.c.l.s8.bf16 %v7143
    %v8032 = vunpack.c.l.s8.bf16 %v7144
    %v8033 = vunpack.c.h.s8.bf16 %v7137
    %v8034 = vunpack.c.h.s8.bf16 %v7138
    %v8035 = vunpack.c.h.s8.bf16 %v7139
    %v8036 = vunpack.c.h.s8.bf16 %v7140
    %v8037 = vunpack.c.h.s8.bf16 %v7141
    %v8038 = vunpack.c.h.s8.bf16 %v7142
    %v8039 = vunpack.c.h.s8.bf16 %v7143
    %v8040 = vunpack.c.h.s8.bf16 %v7144
    %v8041 = vunpack.c.l.s8.bf16 %v7145
    %v8042 = vunpack.c.l.s8.bf16 %v7146
    %v8043 = vunpack.c.l.s8.bf16 %v7147
    %v8044 = vunpack.c.l.s8.bf16 %v7148
    %v8045 = vunpack.c.l.s8.bf16 %v7149
    %v8046 = vunpack.c.l.s8.bf16 %v7150
    %v8047 = vunpack.c.l.s8.bf16 %v7151
    %v8048 = vunpack.c.l.s8.bf16 %v7152
    %v8049 = vunpack.c.h.s8.bf16 %v7145
    %v8050 = vunpack.c.h.s8.bf16 %v7146
    %v8051 = vunpack.c.h.s8.bf16 %v7147
    %v8052 = vunpack.c.h.s8.bf16 %v7148
    %v8053 = vunpack.c.h.s8.bf16 %v7149
    %v8054 = vunpack.c.h.s8.bf16 %v7150
    %v8055 = vunpack.c.h.s8.bf16 %v7151
    %v8056 = vunpack.c.h.s8.bf16 %v7152
    %v8057 = vunpack.c.l.s8.bf16 %v7153
    %v8058 = vunpack.c.l.s8.bf16 %v7154
    %v8059 = vunpack.c.l.s8.bf16 %v7155
    %v8060 = vunpack.c.l.s8.bf16 %v7156
    %v8061 = vunpack.c.l.s8.bf16 %v7157
    %v8062 = vunpack.c.l.s8.bf16 %v7158
    %v8063 = vunpack.c.l.s8.bf16 %v7159
    %v8064 = vunpack.c.l.s8.bf16 %v7160
    %v8065 = vunpack.c.h.s8.bf16 %v7153
    %v8066 = vunpack.c.h.s8.bf16 %v7154
    %v8067 = vunpack.c.h.s8.bf16 %v7155
    %v8068 = vunpack.c.h.s8.bf16 %v7156
    %v8069 = vunpack.c.h.s8.bf16 %v7157
    %v8070 = vunpack.c.h.s8.bf16 %v7158
    %v8071 = vunpack.c.h.s8.bf16 %v7159
    %v8072 = vunpack.c.h.s8.bf16 %v7160
    %v8073 = vunpack.c.l.s8.bf16 %v7161
    %v8074 = vunpack.c.l.s8.bf16 %v7162
    %v8075 = vunpack.c.l.s8.bf16 %v7163
    %v8076 = vunpack.c.l.s8.bf16 %v7164
    %v8077 = vunpack.c.l.s8.bf16 %v7165
    %v8078 = vunpack.c.l.s8.bf16 %v7166
    %v8079 = vunpack.c.l.s8.bf16 %v7167
    %v8080 = vunpack.c.l.s8.bf16 %v7168
    %v8081 = vunpack.c.h.s8.bf16 %v7161
    %v8082 = vunpack.c.h.s8.bf16 %v7162
    %v8083 = vunpack.c.h.s8.bf16 %v7163
    %v8084 = vunpack.c.h.s8.bf16 %v7164
    %v8085 = vunpack.c.h.s8.bf16 %v7165
    %v8086 = vunpack.c.h.s8.bf16 %v7166
    %v8087 = vunpack.c.h.s8.bf16 %v7167
    %v8088 = vunpack.c.h.s8.bf16 %v7168
    %v8089 = vunpack.c.l.s8.bf16 %v7169
    %v8090 = vunpack.c.l.s8.bf16 %v7170
    %v8091 = vunpack.c.l.s8.bf16 %v7171
    %v8092 = vunpack.c.l.s8.bf16 %v7172
    %v8093 = vunpack.c.l.s8.bf16 %v7173
    %v8094 = vunpack.c.l.s8.bf16 %v7174
    %v8095 = vunpack.c.l.s8.bf16 %v7175
    %v8096 = vunpack.c.l.s8.bf16 %v7176
    %v8097 = vunpack.c.h.s8.bf16 %v7169
    %v8098 = vunpack.c.h.s8.bf16 %v7170
    %v8099 = vunpack.c.h.s8.bf16 %v7171
    %v8100 = vunpack.c.h.s8.bf16 %v7172
    %v8101 = vunpack.c.h.s8.bf16 %v7173
    %v8102 = vunpack.c.h.s8.bf16 %v7174
    %v8103 = vunpack.c.h.s8.bf16 %v7175
    %v8104 = vunpack.c.h.s8.bf16 %v7176
    %v8105 = vunpack.c.l.s8.bf16 %v7177
    %v8106 = vunpack.c.l.s8.bf16 %v7178
    %v8107 = vunpack.c.l.s8.bf16 %v7179
    %v8108 = vunpack.c.l.s8.bf16 %v7180
    %v8109 = vunpack.c.l.s8.bf16 %v7181
    %v8110 = vunpack.c.l.s8.bf16 %v7182
    %v8111 = vunpack.c.l.s8.bf16 %v7183
    %v8112 = vunpack.c.l.s8.bf16 %v7184
    %v8113 = vunpack.c.h.s8.bf16 %v7177
    %v8114 = vunpack.c.h.s8.bf16 %v7178
    %v8115 = vunpack.c.h.s8.bf16 %v7179
    %v8116 = vunpack.c.h.s8.bf16 %v7180
    %v8117 = vunpack.c.h.s8.bf16 %v7181
    %v8118 = vunpack.c.h.s8.bf16 %v7182
    %v8119 = vunpack.c.h.s8.bf16 %v7183
    %v8120 = vunpack.c.h.s8.bf16 %v7184
    %v8121 = vunpack.c.l.s8.bf16 %v7185
    %v8122 = vunpack.c.l.s8.bf16 %v7186
    %v8123 = vunpack.c.l.s8.bf16 %v7187
    %v8124 = vunpack.c.l.s8.bf16 %v7188
    %v8125 = vunpack.c.l.s8.bf16 %v7189
    %v8126 = vunpack.c.l.s8.bf16 %v7190
    %v8127 = vunpack.c.l.s8.bf16 %v7191
    %v8128 = vunpack.c.l.s8.bf16 %v7192
    %v8129 = vunpack.c.h.s8.bf16 %v7185
    %v8130 = vunpack.c.h.s8.bf16 %v7186
    %v8131 = vunpack.c.h.s8.bf16 %v7187
    %v8132 = vunpack.c.h.s8.bf16 %v7188
    %v8133 = vunpack.c.h.s8.bf16 %v7189
    %v8134 = vunpack.c.h.s8.bf16 %v7190
    %v8135 = vunpack.c.h.s8.bf16 %v7191
    %v8136 = vunpack.c.h.s8.bf16 %v7192
    %v8137 = vunpack.c.l.s8.bf16 %v7193
    %v8138 = vunpack.c.l.s8.bf16 %v7194
    %v8139 = vunpack.c.l.s8.bf16 %v7195
    %v8140 = vunpack.c.l.s8.bf16 %v7196
    %v8141 = vunpack.c.l.s8.bf16 %v7197
    %v8142 = vunpack.c.l.s8.bf16 %v7198
    %v8143 = vunpack.c.l.s8.bf16 %v7199
    %v8144 = vunpack.c.l.s8.bf16 %v7200
    %v8145 = vunpack.c.h.s8.bf16 %v7193
    %v8146 = vunpack.c.h.s8.bf16 %v7194
    %v8147 = vunpack.c.h.s8.bf16 %v7195
    %v8148 = vunpack.c.h.s8.bf16 %v7196
    %v8149 = vunpack.c.h.s8.bf16 %v7197
    %v8150 = vunpack.c.h.s8.bf16 %v7198
    %v8151 = vunpack.c.h.s8.bf16 %v7199
    %v8152 = vunpack.c.h.s8.bf16 %v7200
    %v8153 = vunpack.c.l.s8.bf16 %v7201
    %v8154 = vunpack.c.l.s8.bf16 %v7202
    %v8155 = vunpack.c.l.s8.bf16 %v7203
    %v8156 = vunpack.c.l.s8.bf16 %v7204
    %v8157 = vunpack.c.l.s8.bf16 %v7205
    %v8158 = vunpack.c.l.s8.bf16 %v7206
    %v8159 = vunpack.c.l.s8.bf16 %v7207
    %v8160 = vunpack.c.l.s8.bf16 %v7208
    %v8161 = vunpack.c.h.s8.bf16 %v7201
    %v8162 = vunpack.c.h.s8.bf16 %v7202
    %v8163 = vunpack.c.h.s8.bf16 %v7203
    %v8164 = vunpack.c.h.s8.bf16 %v7204
    %v8165 = vunpack.c.h.s8.bf16 %v7205
    %v8166 = vunpack.c.h.s8.bf16 %v7206
    %v8167 = vunpack.c.h.s8.bf16 %v7207
    %v8168 = vunpack.c.h.s8.bf16 %v7208
    %v8169 = vunpack.c.l.s8.bf16 %v7209
    %v8170 = vunpack.c.l.s8.bf16 %v7210
    %v8171 = vunpack.c.l.s8.bf16 %v7211
    %v8172 = vunpack.c.l.s8.bf16 %v7212
    %v8173 = vunpack.c.l.s8.bf16 %v7213
    %v8174 = vunpack.c.l.s8.bf16 %v7214
    %v8175 = vunpack.c.l.s8.bf16 %v7215
    %v8176 = vunpack.c.l.s8.bf16 %v7216
    %v8177 = vunpack.c.h.s8.bf16 %v7209
    %v8178 = vunpack.c.h.s8.bf16 %v7210
    %v8179 = vunpack.c.h.s8.bf16 %v7211
    %v8180 = vunpack.c.h.s8.bf16 %v7212
    %v8181 = vunpack.c.h.s8.bf16 %v7213
    %v8182 = vunpack.c.h.s8.bf16 %v7214
    %v8183 = vunpack.c.h.s8.bf16 %v7215
    %v8184 = vunpack.c.h.s8.bf16 %v7216
    %v8185 = vunpack.c.l.s8.bf16 %v7217
    %v8186 = vunpack.c.l.s8.bf16 %v7218
    %v8187 = vunpack.c.l.s8.bf16 %v7219
    %v8188 = vunpack.c.l.s8.bf16 %v7220
    %v8189 = vunpack.c.l.s8.bf16 %v7221
    %v8190 = vunpack.c.l.s8.bf16 %v7222
    %v8191 = vunpack.c.l.s8.bf16 %v7223
    %v8192 = vunpack.c.l.s8.bf16 %v7224
    %v8193 = vunpack.c.h.s8.bf16 %v7217
    %v8194 = vunpack.c.h.s8.bf16 %v7218
    %v8195 = vunpack.c.h.s8.bf16 %v7219
    %v8196 = vunpack.c.h.s8.bf16 %v7220
    %v8197 = vunpack.c.h.s8.bf16 %v7221
    %v8198 = vunpack.c.h.s8.bf16 %v7222
    %v8199 = vunpack.c.h.s8.bf16 %v7223
    %v8200 = vunpack.c.h.s8.bf16 %v7224
    %v8201 = vunpack.c.l.s8.bf16 %v7225
    %v8202 = vunpack.c.l.s8.bf16 %v7226
    %v8203 = vunpack.c.l.s8.bf16 %v7227
    %v8204 = vunpack.c.l.s8.bf16 %v7228
    %v8205 = vunpack.c.l.s8.bf16 %v7229
    %v8206 = vunpack.c.l.s8.bf16 %v7230
    %v8207 = vunpack.c.l.s8.bf16 %v7231
    %v8208 = vunpack.c.l.s8.bf16 %v7232
    %v8209 = vunpack.c.h.s8.bf16 %v7225
    %v8210 = vunpack.c.h.s8.bf16 %v7226
    %v8211 = vunpack.c.h.s8.bf16 %v7227
    %v8212 = vunpack.c.h.s8.bf16 %v7228
    %v8213 = vunpack.c.h.s8.bf16 %v7229
    %v8214 = vunpack.c.h.s8.bf16 %v7230
    %v8215 = vunpack.c.h.s8.bf16 %v7231
    %v8216 = vunpack.c.h.s8.bf16 %v7232
    %v8217 = vunpack.c.l.s8.bf16 %v7233
    %v8218 = vunpack.c.l.s8.bf16 %v7234
    %v8219 = vunpack.c.l.s8.bf16 %v7235
    %v8220 = vunpack.c.l.s8.bf16 %v7236
    %v8221 = vunpack.c.l.s8.bf16 %v7237
    %v8222 = vunpack.c.l.s8.bf16 %v7238
    %v8223 = vunpack.c.l.s8.bf16 %v7239
    %v8224 = vunpack.c.l.s8.bf16 %v7240
    %v8225 = vunpack.c.h.s8.bf16 %v7233
    %v8226 = vunpack.c.h.s8.bf16 %v7234
    %v8227 = vunpack.c.h.s8.bf16 %v7235
    %v8228 = vunpack.c.h.s8.bf16 %v7236
    %v8229 = vunpack.c.h.s8.bf16 %v7237
    %v8230 = vunpack.c.h.s8.bf16 %v7238
    %v8231 = vunpack.c.h.s8.bf16 %v7239
    %v8232 = vunpack.c.h.s8.bf16 %v7240
    %v8233 = vunpack.c.l.s8.bf16 %v7241
    %v8234 = vunpack.c.l.s8.bf16 %v7242
    %v8235 = vunpack.c.l.s8.bf16 %v7243
    %v8236 = vunpack.c.l.s8.bf16 %v7244
    %v8237 = vunpack.c.l.s8.bf16 %v7245
    %v8238 = vunpack.c.l.s8.bf16 %v7246
    %v8239 = vunpack.c.l.s8.bf16 %v7247
    %v8240 = vunpack.c.l.s8.bf16 %v7248
    %v8241 = vunpack.c.h.s8.bf16 %v7241
    %v8242 = vunpack.c.h.s8.bf16 %v7242
    %v8243 = vunpack.c.h.s8.bf16 %v7243
    %v8244 = vunpack.c.h.s8.bf16 %v7244
    %v8245 = vunpack.c.h.s8.bf16 %v7245
    %v8246 = vunpack.c.h.s8.bf16 %v7246
    %v8247 = vunpack.c.h.s8.bf16 %v7247
    %v8248 = vunpack.c.h.s8.bf16 %v7248
    %v8249 = vunpack.c.l.s8.bf16 %v7249
    %v8250 = vunpack.c.l.s8.bf16 %v7250
    %v8251 = vunpack.c.l.s8.bf16 %v7251
    %v8252 = vunpack.c.l.s8.bf16 %v7252
    %v8253 = vunpack.c.l.s8.bf16 %v7253
    %v8254 = vunpack.c.l.s8.bf16 %v7254
    %v8255 = vunpack.c.l.s8.bf16 %v7255
    %v8256 = vunpack.c.l.s8.bf16 %v7256
    %v8257 = vunpack.c.h.s8.bf16 %v7249
    %v8258 = vunpack.c.h.s8.bf16 %v7250
    %v8259 = vunpack.c.h.s8.bf16 %v7251
    %v8260 = vunpack.c.h.s8.bf16 %v7252
    %v8261 = vunpack.c.h.s8.bf16 %v7253
    %v8262 = vunpack.c.h.s8.bf16 %v7254
    %v8263 = vunpack.c.h.s8.bf16 %v7255
    %v8264 = vunpack.c.h.s8.bf16 %v7256
    %v8265 = vunpack.c.l.s8.bf16 %v7257
    %v8266 = vunpack.c.l.s8.bf16 %v7258
    %v8267 = vunpack.c.l.s8.bf16 %v7259
    %v8268 = vunpack.c.l.s8.bf16 %v7260
    %v8269 = vunpack.c.l.s8.bf16 %v7261
    %v8270 = vunpack.c.l.s8.bf16 %v7262
    %v8271 = vunpack.c.l.s8.bf16 %v7263
    %v8272 = vunpack.c.l.s8.bf16 %v7264
    %v8273 = vunpack.c.h.s8.bf16 %v7257
    %v8274 = vunpack.c.h.s8.bf16 %v7258
    %v8275 = vunpack.c.h.s8.bf16 %v7259
    %v8276 = vunpack.c.h.s8.bf16 %v7260
    %v8277 = vunpack.c.h.s8.bf16 %v7261
    %v8278 = vunpack.c.h.s8.bf16 %v7262
    %v8279 = vunpack.c.h.s8.bf16 %v7263
    %v8280 = vunpack.c.h.s8.bf16 %v7264
    %v8281 = vunpack.c.l.s8.bf16 %v7265
    %v8282 = vunpack.c.l.s8.bf16 %v7266
    %v8283 = vunpack.c.l.s8.bf16 %v7267
    %v8284 = vunpack.c.l.s8.bf16 %v7268
    %v8285 = vunpack.c.l.s8.bf16 %v7269
    %v8286 = vunpack.c.l.s8.bf16 %v7270
    %v8287 = vunpack.c.l.s8.bf16 %v7271
    %v8288 = vunpack.c.l.s8.bf16 %v7272
    %v8289 = vunpack.c.h.s8.bf16 %v7265
    %v8290 = vunpack.c.h.s8.bf16 %v7266
    %v8291 = vunpack.c.h.s8.bf16 %v7267
    %v8292 = vunpack.c.h.s8.bf16 %v7268
    %v8293 = vunpack.c.h.s8.bf16 %v7269
    %v8294 = vunpack.c.h.s8.bf16 %v7270
    %v8295 = vunpack.c.h.s8.bf16 %v7271
    %v8296 = vunpack.c.h.s8.bf16 %v7272
    %v8297 = vpack.c.bf16 %v6745, %v6745
    %v8298 = vpack.c.bf16 %v6746, %v6746
    %v8299 = vpack.c.bf16 %v6747, %v6747
    %v8300 = vpack.c.bf16 %v6748, %v6748
    %v8301 = vpack.c.bf16 %v6749, %v6749
    %v8302 = vpack.c.bf16 %v6750, %v6750
    %v8303 = vpack.c.bf16 %v6751, %v6751
    %v8304 = vpack.c.bf16 %v6752, %v6752
    %v8305 = vpack.c.bf16 %v6753, %v6753
    %v8306 = vpack.c.bf16 %v6754, %v6754
    %v8307 = vpack.c.bf16 %v6755, %v6755
    %v8308 = vpack.c.bf16 %v6756, %v6756
    %v8309 = vpack.c.bf16 %v6757, %v6757
    %v8310 = vpack.c.bf16 %v6758, %v6758
    %v8311 = vpack.c.bf16 %v6759, %v6759
    %v8312 = vpack.c.bf16 %v6760, %v6760
    %8313 = vmatprep.subr.bf16.mxu0 %v7274
    %8314 = vmatpush1.bf16.msra.mxu0 %v7273
    %8315 = vmatprep.subr.bf16.mxu0 %v7282
    %8316 = vmatpush1.bf16.msra.mxu0 %v7281
    %8317 = vmatprep.subr.bf16.mxu0 %v7290
    %8318 = vmatpush1.bf16.msra.mxu0 %v7289
    %8319 = vmatprep.subr.bf16.mxu0 %v7298
    %8320 = vmatpush1.bf16.msra.mxu0 %v7297
    %8321 = vmatprep.subr.bf16.mxu0 %v7306
    %8322 = vmatpush1.bf16.msra.mxu0 %v7305
    %8323 = vmatprep.subr.bf16.mxu0 %v7314
    %8324 = vmatpush1.bf16.msra.mxu0 %v7313
    %8325 = vmatprep.subr.bf16.mxu0 %v7322
    %8326 = vmatpush1.bf16.msra.mxu0 %v7321
    %8327 = vmatprep.subr.bf16.mxu0 %v7330
    %8328 = vmatpush1.bf16.msra.mxu0 %v7329
    %8329 = vmatprep.subr.bf16.mxu0 %v7338
    %8330 = vmatpush1.bf16.msra.mxu0 %v7337
    %8331 = vmatprep.subr.bf16.mxu0 %v7346
    %8332 = vmatpush1.bf16.msra.mxu0 %v7345
    %8333 = vmatprep.subr.bf16.mxu0 %v7354
    %8334 = vmatpush1.bf16.msra.mxu0 %v7353
    %8335 = vmatprep.subr.bf16.mxu0 %v7362
    %8336 = vmatpush1.bf16.msra.mxu0 %v7361
    %8337 = vmatprep.subr.bf16.mxu0 %v7370
    %8338 = vmatpush1.bf16.msra.mxu0 %v7369
    %8339 = vmatprep.subr.bf16.mxu0 %v7378
    %8340 = vmatpush1.bf16.msra.mxu0 %v7377
    %8341 = vmatprep.subr.bf16.mxu0 %v7386
    %8342 = vmatpush1.bf16.msra.mxu0 %v7385
    %8343 = vmatprep.subr.bf16.mxu0 %v7394
    %8344 = vmatpush1.bf16.msra.mxu0 %v7393
    %8345 = vmatprep.mubr.bf16.mxu0 %v8298
    %8346 = vmatmul.mubr.bf16.gmra.mrb[0].mxu0 %v8297
    %v8347 = vpop.f32.mrb[0].mxu0
    %v8348 = vadd.f32 0.0, %v8347
    %v8349 = vpop.f32.mrb[0].mxu0
    %v8350 = vadd.f32 0.0, %v8349
    %v8351 = vpop.f32.mrb[0].mxu0
    %v8352 = vpop.f32.mrb[0].mxu0
    %8353 = vdwg.mxu0
    %8354 = vmatprep.subr.bf16.mxu0 %v7402
    %8355 = vmatpush1.bf16.msra.mxu0 %v7401
    %8356 = vmatprep.subr.bf16.mxu0 %v7410
    %8357 = vmatpush1.bf16.msra.mxu0 %v7409
    %8358 = vmatprep.subr.bf16.mxu0 %v7418
    %8359 = vmatpush1.bf16.msra.mxu0 %v7417
    %8360 = vmatprep.subr.bf16.mxu0 %v7426
    %8361 = vmatpush1.bf16.msra.mxu0 %v7425
    %8362 = vmatprep.subr.bf16.mxu0 %v7434
    %8363 = vmatpush1.bf16.msra.mxu0 %v7433
    %8364 = vmatprep.subr.bf16.mxu0 %v7442
    %8365 = vmatpush1.bf16.msra.mxu0 %v7441
    %8366 = vmatprep.subr.bf16.mxu0 %v7450
    %8367 = vmatpush1.bf16.msra.mxu0 %v7449
    %8368 = vmatprep.subr.bf16.mxu0 %v7458
    %8369 = vmatpush1.bf16.msra.mxu0 %v7457
    %8370 = vmatprep.subr.bf16.mxu0 %v7466
    %8371 = vmatpush1.bf16.msra.mxu0 %v7465
    %8372 = vmatprep.subr.bf16.mxu0 %v7474
    %8373 = vmatpush1.bf16.msra.mxu0 %v7473
    %8374 = vmatprep.subr.bf16.mxu0 %v7482
    %8375 = vmatpush1.bf16.msra.mxu0 %v7481
    %8376 = vmatprep.subr.bf16.mxu0 %v7490
    %8377 = vmatpush1.bf16.msra.mxu0 %v7489
    %8378 = vmatprep.subr.bf16.mxu0 %v7498
    %8379 = vmatpush1.bf16.msra.mxu0 %v7497
    %8380 = vmatprep.subr.bf16.mxu0 %v7506
    %8381 = vmatpush1.bf16.msra.mxu0 %v7505
    %8382 = vmatprep.subr.bf16.mxu0 %v7514
    %8383 = vmatpush1.bf16.msra.mxu0 %v7513
    %8384 = vmatprep.subr.bf16.mxu0 %v7522
    %8385 = vmatpush1.bf16.msra.mxu0 %v7521
    %8386 = vmatprep.mubr.bf16.mxu0 %v8300
    %8387 = vmatmul.mubr.bf16.gmra.mrb[0].mxu0 %v8299
    %v8388 = vpop.f32.mrb[0].mxu0
    %v8389 = vadd.f32 %v8348, %v8388
    %v8390 = vpop.f32.mrb[0].mxu0
    %v8391 = vadd.f32 %v8350, %v8390
    %v8392 = vpop.f32.mrb[0].mxu0
    %v8393 = vpop.f32.mrb[0].mxu0
    %8394 = vdwg.mxu0
    %8395 = vmatprep.subr.bf16.mxu0 %v7530
    %8396 = vmatpush1.bf16.msra.mxu0 %v7529
    %8397 = vmatprep.subr.bf16.mxu0 %v7538
    %8398 = vmatpush1.bf16.msra.mxu0 %v7537
    %8399 = vmatprep.subr.bf16.mxu0 %v7546
    %8400 = vmatpush1.bf16.msra.mxu0 %v7545
    %8401 = vmatprep.subr.bf16.mxu0 %v7554
    %8402 = vmatpush1.bf16.msra.mxu0 %v7553
    %8403 = vmatprep.subr.bf16.mxu0 %v7562
    %8404 = vmatpush1.bf16.msra.mxu0 %v7561
    %8405 = vmatprep.subr.bf16.mxu0 %v7570
    %8406 = vmatpush1.bf16.msra.mxu0 %v7569
    %8407 = vmatprep.subr.bf16.mxu0 %v7578
    %8408 = vmatpush1.bf16.msra.mxu0 %v7577
    %8409 = vmatprep.subr.bf16.mxu0 %v7586
    %8410 = vmatpush1.bf16.msra.mxu0 %v7585
    %8411 = vmatprep.subr.bf16.mxu0 %v7594
    %8412 = vmatpush1.bf16.msra.mxu0 %v7593
    %8413 = vmatprep.subr.bf16.mxu0 %v7602
    %8414 = vmatpush1.bf16.msra.mxu0 %v7601
    %8415 = vmatprep.subr.bf16.mxu0 %v7610
    %8416 = vmatpush1.bf16.msra.mxu0 %v7609
    %8417 = vmatprep.subr.bf16.mxu0 %v7618
    %8418 = vmatpush1.bf16.msra.mxu0 %v7617
    %8419 = vmatprep.subr.bf16.mxu0 %v7626
    %8420 = vmatpush1.bf16.msra.mxu0 %v7625
    %8421 = vmatprep.subr.bf16.mxu0 %v7634
    %8422 = vmatpush1.bf16.msra.mxu0 %v7633
    %8423 = vmatprep.subr.bf16.mxu0 %v7642
    %8424 = vmatpush1.bf16.msra.mxu0 %v7641
    %8425 = vmatprep.subr.bf16.mxu0 %v7650
    %8426 = vmatpush1.bf16.msra.mxu0 %v7649
    %8427 = vmatprep.mubr.bf16.mxu0 %v8302
    %8428 = vmatmul.mubr.bf16.gmra.mrb[0].mxu0 %v8301
    %v8429 = vpop.f32.mrb[0].mxu0
    %v8430 = vadd.f32 %v8389, %v8429
    %v8431 = vpop.f32.mrb[0].mxu0
    %v8432 = vadd.f32 %v8391, %v8431
    %v8433 = vpop.f32.mrb[0].mxu0
    %v8434 = vpop.f32.mrb[0].mxu0
    %8435 = vdwg.mxu0
    %8436 = vmatprep.subr.bf16.mxu0 %v7658
    %8437 = vmatpush1.bf16.msra.mxu0 %v7657
    %8438 = vmatprep.subr.bf16.mxu0 %v7666
    %8439 = vmatpush1.bf16.msra.mxu0 %v7665
    %8440 = vmatprep.subr.bf16.mxu0 %v7674
    %8441 = vmatpush1.bf16.msra.mxu0 %v7673
    %8442 = vmatprep.subr.bf16.mxu0 %v7682
    %8443 = vmatpush1.bf16.msra.mxu0 %v7681
    %8444 = vmatprep.subr.bf16.mxu0 %v7690
    %8445 = vmatpush1.bf16.msra.mxu0 %v7689
    %8446 = vmatprep.subr.bf16.mxu0 %v7698
    %8447 = vmatpush1.bf16.msra.mxu0 %v7697
    %8448 = vmatprep.subr.bf16.mxu0 %v7706
    %8449 = vmatpush1.bf16.msra.mxu0 %v7705
    %8450 = vmatprep.subr.bf16.mxu0 %v7714
    %8451 = vmatpush1.bf16.msra.mxu0 %v7713
    %8452 = vmatprep.subr.bf16.mxu0 %v7722
    %8453 = vmatpush1.bf16.msra.mxu0 %v7721
    %8454 = vmatprep.subr.bf16.mxu0 %v7730
    %8455 = vmatpush1.bf16.msra.mxu0 %v7729
    %8456 = vmatprep.subr.bf16.mxu0 %v7738
    %8457 = vmatpush1.bf16.msra.mxu0 %v7737
    %8458 = vmatprep.subr.bf16.mxu0 %v7746
    %8459 = vmatpush1.bf16.msra.mxu0 %v7745
    %8460 = vmatprep.subr.bf16.mxu0 %v7754
    %8461 = vmatpush1.bf16.msra.mxu0 %v7753
    %8462 = vmatprep.subr.bf16.mxu0 %v7762
    %8463 = vmatpush1.bf16.msra.mxu0 %v7761
    %8464 = vmatprep.subr.bf16.mxu0 %v7770
    %8465 = vmatpush1.bf16.msra.mxu0 %v7769
    %8466 = vmatprep.subr.bf16.mxu0 %v7778
    %8467 = vmatpush1.bf16.msra.mxu0 %v7777
    %8468 = vmatprep.mubr.bf16.mxu0 %v8304
    %8469 = vmatmul.mubr.bf16.gmra.mrb[0].mxu0 %v8303
    %v8470 = vpop.f32.mrb[0].mxu0
    %v8471 = vadd.f32 %v8430, %v8470
    %v8472 = vpop.f32.mrb[0].mxu0
    %v8473 = vadd.f32 %v8432, %v8472
    %v8474 = vpop.f32.mrb[0].mxu0
    %v8475 = vpop.f32.mrb[0].mxu0
    %8476 = vdwg.mxu0
    %8477 = vmatprep.subr.bf16.mxu0 %v7786
    %8478 = vmatpush1.bf16.msra.mxu0 %v7785
    %8479 = vmatprep.subr.bf16.mxu0 %v7794
    %8480 = vmatpush1.bf16.msra.mxu0 %v7793
    %8481 = vmatprep.subr.bf16.mxu0 %v7802
    %8482 = vmatpush1.bf16.msra.mxu0 %v7801
    %8483 = vmatprep.subr.bf16.mxu0 %v7810
    %8484 = vmatpush1.bf16.msra.mxu0 %v7809
    %8485 = vmatprep.subr.bf16.mxu0 %v7818
    %8486 = vmatpush1.bf16.msra.mxu0 %v7817
    %8487 = vmatprep.subr.bf16.mxu0 %v7826
    %8488 = vmatpush1.bf16.msra.mxu0 %v7825
    %8489 = vmatprep.subr.bf16.mxu0 %v7834
    %8490 = vmatpush1.bf16.msra.mxu0 %v7833
    %8491 = vmatprep.subr.bf16.mxu0 %v7842
    %8492 = vmatpush1.bf16.msra.mxu0 %v7841
    %8493 = vmatprep.subr.bf16.mxu0 %v7850
    %8494 = vmatpush1.bf16.msra.mxu0 %v7849
    %8495 = vmatprep.subr.bf16.mxu0 %v7858
    %8496 = vmatpush1.bf16.msra.mxu0 %v7857
    %8497 = vmatprep.subr.bf16.mxu0 %v7866
    %8498 = vmatpush1.bf16.msra.mxu0 %v7865
    %8499 = vmatprep.subr.bf16.mxu0 %v7874
    %8500 = vmatpush1.bf16.msra.mxu0 %v7873
    %8501 = vmatprep.subr.bf16.mxu0 %v7882
    %8502 = vmatpush1.bf16.msra.mxu0 %v7881
    %8503 = vmatprep.subr.bf16.mxu0 %v7890
    %8504 = vmatpush1.bf16.msra.mxu0 %v7889
    %8505 = vmatprep.subr.bf16.mxu0 %v7898
    %8506 = vmatpush1.bf16.msra.mxu0 %v7897
    %8507 = vmatprep.subr.bf16.mxu0 %v7906
    %8508 = vmatpush1.bf16.msra.mxu0 %v7905
    %8509 = vmatprep.mubr.bf16.mxu0 %v8306
    %8510 = vmatmul.mubr.bf16.gmra.mrb[0].mxu0 %v8305
    %v8511 = vpop.f32.mrb[0].mxu0
    %v8512 = vadd.f32 %v8471, %v8511
    %v8513 = vpop.f32.mrb[0].mxu0
    %v8514 = vadd.f32 %v8473, %v8513
    %v8515 = vpop.f32.mrb[0].mxu0
    %v8516 = vpop.f32.mrb[0].mxu0
    %8517 = vdwg.mxu0
    %8518 = vmatprep.subr.bf16.mxu0 %v7914
    %8519 = vmatpush1.bf16.msra.mxu0 %v7913
    %8520 = vmatprep.subr.bf16.mxu0 %v7922
    %8521 = vmatpush1.bf16.msra.mxu0 %v7921
    %8522 = vmatprep.subr.bf16.mxu0 %v7930
    %8523 = vmatpush1.bf16.msra.mxu0 %v7929
    %8524 = vmatprep.subr.bf16.mxu0 %v7938
    %8525 = vmatpush1.bf16.msra.mxu0 %v7937
    %8526 = vmatprep.subr.bf16.mxu0 %v7946
    %8527 = vmatpush1.bf16.msra.mxu0 %v7945
    %8528 = vmatprep.subr.bf16.mxu0 %v7954
    %8529 = vmatpush1.bf16.msra.mxu0 %v7953
    %8530 = vmatprep.subr.bf16.mxu0 %v7962
    %8531 = vmatpush1.bf16.msra.mxu0 %v7961
    %8532 = vmatprep.subr.bf16.mxu0 %v7970
    %8533 = vmatpush1.bf16.msra.mxu0 %v7969
    %8534 = vmatprep.subr.bf16.mxu0 %v7978
    %8535 = vmatpush1.bf16.msra.mxu0 %v7977
    %8536 = vmatprep.subr.bf16.mxu0 %v7986
    %8537 = vmatpush1.bf16.msra.mxu0 %v7985
    %8538 = vmatprep.subr.bf16.mxu0 %v7994
    %8539 = vmatpush1.bf16.msra.mxu0 %v7993
    %8540 = vmatprep.subr.bf16.mxu0 %v8002
    %8541 = vmatpush1.bf16.msra.mxu0 %v8001
    %8542 = vmatprep.subr.bf16.mxu0 %v8010
    %8543 = vmatpush1.bf16.msra.mxu0 %v8009
    %8544 = vmatprep.subr.bf16.mxu0 %v8018
    %8545 = vmatpush1.bf16.msra.mxu0 %v8017
    %8546 = vmatprep.subr.bf16.mxu0 %v8026
    %8547 = vmatpush1.bf16.msra.mxu0 %v8025
    %8548 = vmatprep.subr.bf16.mxu0 %v8034
    %8549 = vmatpush1.bf16.msra.mxu0 %v8033
    %8550 = vmatprep.mubr.bf16.mxu0 %v8308
    %8551 = vmatmul.mubr.bf16.gmra.mrb[0].mxu0 %v8307
    %v8552 = vpop.f32.mrb[0].mxu0
    %v8553 = vadd.f32 %v8512, %v8552
    %v8554 = vpop.f32.mrb[0].mxu0
    %v8555 = vadd.f32 %v8514, %v8554
    %v8556 = vpop.f32.mrb[0].mxu0
    %v8557 = vpop.f32.mrb[0].mxu0
    %8558 = vdwg.mxu0
    %8559 = vmatprep.subr.bf16.mxu0 %v8042
    %8560 = vmatpush1.bf16.msra.mxu0 %v8041
    %8561 = vmatprep.subr.bf16.mxu0 %v8050
    %8562 = vmatpush1.bf16.msra.mxu0 %v8049
    %8563 = vmatprep.subr.bf16.mxu0 %v8058
    %8564 = vmatpush1.bf16.msra.mxu0 %v8057
    %8565 = vmatprep.subr.bf16.mxu0 %v8066
    %8566 = vmatpush1.bf16.msra.mxu0 %v8065
    %8567 = vmatprep.subr.bf16.mxu0 %v8074
    %8568 = vmatpush1.bf16.msra.mxu0 %v8073
    %8569 = vmatprep.subr.bf16.mxu0 %v8082
    %8570 = vmatpush1.bf16.msra.mxu0 %v8081
    %8571 = vmatprep.subr.bf16.mxu0 %v8090
    %8572 = vmatpush1.bf16.msra.mxu0 %v8089
    %8573 = vmatprep.subr.bf16.mxu0 %v8098
    %8574 = vmatpush1.bf16.msra.mxu0 %v8097
    %8575 = vmatprep.subr.bf16.mxu0 %v8106
    %8576 = vmatpush1.bf16.msra.mxu0 %v8105
    %8577 = vmatprep.subr.bf16.mxu0 %v8114
    %8578 = vmatpush1.bf16.msra.mxu0 %v8113
    %8579 = vmatprep.subr.bf16.mxu0 %v8122
    %8580 = vmatpush1.bf16.msra.mxu0 %v8121
    %8581 = vmatprep.subr.bf16.mxu0 %v8130
    %8582 = vmatpush1.bf16.msra.mxu0 %v8129
    %8583 = vmatprep.subr.bf16.mxu0 %v8138
    %8584 = vmatpush1.bf16.msra.mxu0 %v8137
    %8585 = vmatprep.subr.bf16.mxu0 %v8146
    %8586 = vmatpush1.bf16.msra.mxu0 %v8145
    %8587 = vmatprep.subr.bf16.mxu0 %v8154
    %8588 = vmatpush1.bf16.msra.mxu0 %v8153
    %8589 = vmatprep.subr.bf16.mxu0 %v8162
    %8590 = vmatpush1.bf16.msra.mxu0 %v8161
    %8591 = vmatprep.mubr.bf16.mxu0 %v8310
    %8592 = vmatmul.mubr.bf16.gmra.mrb[0].mxu0 %v8309
    %v8593 = vpop.f32.mrb[0].mxu0
    %v8594 = vadd.f32 %v8553, %v8593
    %v8595 = vpop.f32.mrb[0].mxu0
    %v8596 = vadd.f32 %v8555, %v8595
    %v8597 = vpop.f32.mrb[0].mxu0
    %v8598 = vpop.f32.mrb[0].mxu0
    %8599 = vdwg.mxu0
    %8600 = vmatprep.subr.bf16.mxu0 %v8170
    %8601 = vmatpush1.bf16.msra.mxu0 %v8169
    %8602 = vmatprep.subr.bf16.mxu0 %v8178
    %8603 = vmatpush1.bf16.msra.mxu0 %v8177
    %8604 = vmatprep.subr.bf16.mxu0 %v8186
    %8605 = vmatpush1.bf16.msra.mxu0 %v8185
    %8606 = vmatprep.subr.bf16.mxu0 %v8194
    %8607 = vmatpush1.bf16.msra.mxu0 %v8193
    %8608 = vmatprep.subr.bf16.mxu0 %v8202
    %8609 = vmatpush1.bf16.msra.mxu0 %v8201
    %8610 = vmatprep.subr.bf16.mxu0 %v8210
    %8611 = vmatpush1.bf16.msra.mxu0 %v8209
    %8612 = vmatprep.subr.bf16.mxu0 %v8218
    %8613 = vmatpush1.bf16.msra.mxu0 %v8217
    %8614 = vmatprep.subr.bf16.mxu0 %v8226
    %8615 = vmatpush1.bf16.msra.mxu0 %v8225
    %8616 = vmatprep.subr.bf16.mxu0 %v8234
    %8617 = vmatpush1.bf16.msra.mxu0 %v8233
    %8618 = vmatprep.subr.bf16.mxu0 %v8242
    %8619 = vmatpush1.bf16.msra.mxu0 %v8241
    %8620 = vmatprep.subr.bf16.mxu0 %v8250
    %8621 = vmatpush1.bf16.msra.mxu0 %v8249
    %8622 = vmatprep.subr.bf16.mxu0 %v8258
    %8623 = vmatpush1.bf16.msra.mxu0 %v8257
    %8624 = vmatprep.subr.bf16.mxu0 %v8266
    %8625 = vmatpush1.bf16.msra.mxu0 %v8265
    %8626 = vmatprep.subr.bf16.mxu0 %v8274
    %8627 = vmatpush1.bf16.msra.mxu0 %v8273
    %8628 = vmatprep.subr.bf16.mxu0 %v8282
    %8629 = vmatpush1.bf16.msra.mxu0 %v8281
    %8630 = vmatprep.subr.bf16.mxu0 %v8290
    %8631 = vmatpush1.bf16.msra.mxu0 %v8289
    %8632 = vmatprep.mubr.bf16.mxu0 %v8312
    %8633 = vmatmul.mubr.bf16.gmra.mrb[0].mxu0 %v8311
    %v8634 = vpop.f32.mrb[0].mxu0
    %v8635 = vadd.f32 %v8594, %v8634
    %v8636 = vpop.f32.mrb[0].mxu0
    %v8637 = vadd.f32 %v8596, %v8636
    %v8638 = vpop.f32.mrb[0].mxu0
    %v8639 = vpop.f32.mrb[0].mxu0
    %8640 = vdwg.mxu0
    %8641 = vmatprep.subr.bf16.mxu0 %v7276
    %8642 = vmatpush1.bf16.msra.mxu0 %v7275
    %8643 = vmatprep.subr.bf16.mxu0 %v7284
    %8644 = vmatpush1.bf16.msra.mxu0 %v7283
    %8645 = vmatprep.subr.bf16.mxu0 %v7292
    %8646 = vmatpush1.bf16.msra.mxu0 %v7291
    %8647 = vmatprep.subr.bf16.mxu0 %v7300
    %8648 = vmatpush1.bf16.msra.mxu0 %v7299
    %8649 = vmatprep.subr.bf16.mxu0 %v7308
    %8650 = vmatpush1.bf16.msra.mxu0 %v7307
    %8651 = vmatprep.subr.bf16.mxu0 %v7316
    %8652 = vmatpush1.bf16.msra.mxu0 %v7315
    %8653 = vmatprep.subr.bf16.mxu0 %v7324
    %8654 = vmatpush1.bf16.msra.mxu0 %v7323
    %8655 = vmatprep.subr.bf16.mxu0 %v7332
    %8656 = vmatpush1.bf16.msra.mxu0 %v7331
    %8657 = vmatprep.subr.bf16.mxu0 %v7340
    %8658 = vmatpush1.bf16.msra.mxu0 %v7339
    %8659 = vmatprep.subr.bf16.mxu0 %v7348
    %8660 = vmatpush1.bf16.msra.mxu0 %v7347
    %8661 = vmatprep.subr.bf16.mxu0 %v7356
    %8662 = vmatpush1.bf16.msra.mxu0 %v7355
    %8663 = vmatprep.subr.bf16.mxu0 %v7364
    %8664 = vmatpush1.bf16.msra.mxu0 %v7363
    %8665 = vmatprep.subr.bf16.mxu0 %v7372
    %8666 = vmatpush1.bf16.msra.mxu0 %v7371
    %8667 = vmatprep.subr.bf16.mxu0 %v7380
    %8668 = vmatpush1.bf16.msra.mxu0 %v7379
    %8669 = vmatprep.subr.bf16.mxu0 %v7388
    %8670 = vmatpush1.bf16.msra.mxu0 %v7387
    %8671 = vmatprep.subr.bf16.mxu0 %v7396
    %8672 = vmatpush1.bf16.msra.mxu0 %v7395
    %8673 = vmatprep.mubr.bf16.mxu0 %v8298
    %8674 = vmatmul.mubr.bf16.gmra.mrb[0].mxu0 %v8297
    %v8675 = vpop.f32.mrb[0].mxu0
    %v8676 = vadd.f32 0.0, %v8675
    %v8677 = vpop.f32.mrb[0].mxu0
    %v8678 = vadd.f32 0.0, %v8677
    %v8679 = vpop.f32.mrb[0].mxu0
    %v8680 = vpop.f32.mrb[0].mxu0
    %8681 = vdwg.mxu0
    %8682 = vmatprep.subr.bf16.mxu0 %v7404
    %8683 = vmatpush1.bf16.msra.mxu0 %v7403
    %8684 = vmatprep.subr.bf16.mxu0 %v7412
    %8685 = vmatpush1.bf16.msra.mxu0 %v7411
    %8686 = vmatprep.subr.bf16.mxu0 %v7420
    %8687 = vmatpush1.bf16.msra.mxu0 %v7419
    %8688 = vmatprep.subr.bf16.mxu0 %v7428
    %8689 = vmatpush1.bf16.msra.mxu0 %v7427
    %8690 = vmatprep.subr.bf16.mxu0 %v7436
    %8691 = vmatpush1.bf16.msra.mxu0 %v7435
    %8692 = vmatprep.subr.bf16.mxu0 %v7444
    %8693 = vmatpush1.bf16.msra.mxu0 %v7443
    %8694 = vmatprep.subr.bf16.mxu0 %v7452
    %8695 = vmatpush1.bf16.msra.mxu0 %v7451
    %8696 = vmatprep.subr.bf16.mxu0 %v7460
    %8697 = vmatpush1.bf16.msra.mxu0 %v7459
    %8698 = vmatprep.subr.bf16.mxu0 %v7468
    %8699 = vmatpush1.bf16.msra.mxu0 %v7467
    %8700 = vmatprep.subr.bf16.mxu0 %v7476
    %8701 = vmatpush1.bf16.msra.mxu0 %v7475
    %8702 = vmatprep.subr.bf16.mxu0 %v7484
    %8703 = vmatpush1.bf16.msra.mxu0 %v7483
    %8704 = vmatprep.subr.bf16.mxu0 %v7492
    %8705 = vmatpush1.bf16.msra.mxu0 %v7491
    %8706 = vmatprep.subr.bf16.mxu0 %v7500
    %8707 = vmatpush1.bf16.msra.mxu0 %v7499
    %8708 = vmatprep.subr.bf16.mxu0 %v7508
    %8709 = vmatpush1.bf16.msra.mxu0 %v7507
    %8710 = vmatprep.subr.bf16.mxu0 %v7516
    %8711 = vmatpush1.bf16.msra.mxu0 %v7515
    %8712 = vmatprep.subr.bf16.mxu0 %v7524
    %8713 = vmatpush1.bf16.msra.mxu0 %v7523
    %8714 = vmatprep.mubr.bf16.mxu0 %v8300
    %8715 = vmatmul.mubr.bf16.gmra.mrb[0].mxu0 %v8299
    %v8716 = vpop.f32.mrb[0].mxu0
    %v8717 = vadd.f32 %v8676, %v8716
    %v8718 = vpop.f32.mrb[0].mxu0
    %v8719 = vadd.f32 %v8678, %v8718
    %v8720 = vpop.f32.mrb[0].mxu0
    %v8721 = vpop.f32.mrb[0].mxu0
    %8722 = vdwg.mxu0
    %8723 = vmatprep.subr.bf16.mxu0 %v7532
    %8724 = vmatpush1.bf16.msra.mxu0 %v7531
    %8725 = vmatprep.subr.bf16.mxu0 %v7540
    %8726 = vmatpush1.bf16.msra.mxu0 %v7539
    %8727 = vmatprep.subr.bf16.mxu0 %v7548
    %8728 = vmatpush1.bf16.msra.mxu0 %v7547
    %8729 = vmatprep.subr.bf16.mxu0 %v7556
    %8730 = vmatpush1.bf16.msra.mxu0 %v7555
    %8731 = vmatprep.subr.bf16.mxu0 %v7564
    %8732 = vmatpush1.bf16.msra.mxu0 %v7563
    %8733 = vmatprep.subr.bf16.mxu0 %v7572
    %8734 = vmatpush1.bf16.msra.mxu0 %v7571
    %8735 = vmatprep.subr.bf16.mxu0 %v7580
    %8736 = vmatpush1.bf16.msra.mxu0 %v7579
    %8737 = vmatprep.subr.bf16.mxu0 %v7588
    %8738 = vmatpush1.bf16.msra.mxu0 %v7587
    %8739 = vmatprep.subr.bf16.mxu0 %v7596
    %8740 = vmatpush1.bf16.msra.mxu0 %v7595
    %8741 = vmatprep.subr.bf16.mxu0 %v7604
    %8742 = vmatpush1.bf16.msra.mxu0 %v7603
    %8743 = vmatprep.subr.bf16.mxu0 %v7612
    %8744 = vmatpush1.bf16.msra.mxu0 %v7611
    %8745 = vmatprep.subr.bf16.mxu0 %v7620
    %8746 = vmatpush1.bf16.msra.mxu0 %v7619
    %8747 = vmatprep.subr.bf16.mxu0 %v7628
    %8748 = vmatpush1.bf16.msra.mxu0 %v7627
    %8749 = vmatprep.subr.bf16.mxu0 %v7636
    %8750 = vmatpush1.bf16.msra.mxu0 %v7635
    %8751 = vmatprep.subr.bf16.mxu0 %v7644
    %8752 = vmatpush1.bf16.msra.mxu0 %v7643
    %8753 = vmatprep.subr.bf16.mxu0 %v7652
    %8754 = vmatpush1.bf16.msra.mxu0 %v7651
    %8755 = vmatprep.mubr.bf16.mxu0 %v8302
    %8756 = vmatmul.mubr.bf16.gmra.mrb[0].mxu0 %v8301
    %v8757 = vpop.f32.mrb[0].mxu0
    %v8758 = vadd.f32 %v8717, %v8757
    %v8759 = vpop.f32.mrb[0].mxu0
    %v8760 = vadd.f32 %v8719, %v8759
    %v8761 = vpop.f32.mrb[0].mxu0
    %v8762 = vpop.f32.mrb[0].mxu0
    %8763 = vdwg.mxu0
    %8764 = vmatprep.subr.bf16.mxu0 %v7660
    %8765 = vmatpush1.bf16.msra.mxu0 %v7659
    %8766 = vmatprep.subr.bf16.mxu0 %v7668
    %8767 = vmatpush1.bf16.msra.mxu0 %v7667
    %8768 = vmatprep.subr.bf16.mxu0 %v7676
    %8769 = vmatpush1.bf16.msra.mxu0 %v7675
    %8770 = vmatprep.subr.bf16.mxu0 %v7684
    %8771 = vmatpush1.bf16.msra.mxu0 %v7683
    %8772 = vmatprep.subr.bf16.mxu0 %v7692
    %8773 = vmatpush1.bf16.msra.mxu0 %v7691
    %8774 = vmatprep.subr.bf16.mxu0 %v7700
    %8775 = vmatpush1.bf16.msra.mxu0 %v7699
    %8776 = vmatprep.subr.bf16.mxu0 %v7708
    %8777 = vmatpush1.bf16.msra.mxu0 %v7707
    %8778 = vmatprep.subr.bf16.mxu0 %v7716
    %8779 = vmatpush1.bf16.msra.mxu0 %v7715
    %8780 = vmatprep.subr.bf16.mxu0 %v7724
    %8781 = vmatpush1.bf16.msra.mxu0 %v7723
    %8782 = vmatprep.subr.bf16.mxu0 %v7732
    %8783 = vmatpush1.bf16.msra.mxu0 %v7731
    %8784 = vmatprep.subr.bf16.mxu0 %v7740
    %8785 = vmatpush1.bf16.msra.mxu0 %v7739
    %8786 = vmatprep.subr.bf16.mxu0 %v7748
    %8787 = vmatpush1.bf16.msra.mxu0 %v7747
    %8788 = vmatprep.subr.bf16.mxu0 %v7756
    %8789 = vmatpush1.bf16.msra.mxu0 %v7755
    %8790 = vmatprep.subr.bf16.mxu0 %v7764
    %8791 = vmatpush1.bf16.msra.mxu0 %v7763
    %8792 = vmatprep.subr.bf16.mxu0 %v7772
    %8793 = vmatpush1.bf16.msra.mxu0 %v7771
    %8794 = vmatprep.subr.bf16.mxu0 %v7780
    %8795 = vmatpush1.bf16.msra.mxu0 %v7779
    %8796 = vmatprep.mubr.bf16.mxu0 %v8304
    %8797 = vmatmul.mubr.bf16.gmra.mrb[0].mxu0 %v8303
    %v8798 = vpop.f32.mrb[0].mxu0
    %v8799 = vadd.f32 %v8758, %v8798
    %v8800 = vpop.f32.mrb[0].mxu0
    %v8801 = vadd.f32 %v8760, %v8800
    %v8802 = vpop.f32.mrb[0].mxu0
    %v8803 = vpop.f32.mrb[0].mxu0
    %8804 = vdwg.mxu0
    %8805 = vmatprep.subr.bf16.mxu0 %v7788
    %8806 = vmatpush1.bf16.msra.mxu0 %v7787
    %8807 = vmatprep.subr.bf16.mxu0 %v7796
    %8808 = vmatpush1.bf16.msra.mxu0 %v7795
    %8809 = vmatprep.subr.bf16.mxu0 %v7804
    %8810 = vmatpush1.bf16.msra.mxu0 %v7803
    %8811 = vmatprep.subr.bf16.mxu0 %v7812
    %8812 = vmatpush1.bf16.msra.mxu0 %v7811
    %8813 = vmatprep.subr.bf16.mxu0 %v7820
    %8814 = vmatpush1.bf16.msra.mxu0 %v7819
    %8815 = vmatprep.subr.bf16.mxu0 %v7828
    %8816 = vmatpush1.bf16.msra.mxu0 %v7827
    %8817 = vmatprep.subr.bf16.mxu0 %v7836
    %8818 = vmatpush1.bf16.msra.mxu0 %v7835
    %8819 = vmatprep.subr.bf16.mxu0 %v7844
    %8820 = vmatpush1.bf16.msra.mxu0 %v7843
    %8821 = vmatprep.subr.bf16.mxu0 %v7852
    %8822 = vmatpush1.bf16.msra.mxu0 %v7851
    %8823 = vmatprep.subr.bf16.mxu0 %v7860
    %8824 = vmatpush1.bf16.msra.mxu0 %v7859
    %8825 = vmatprep.subr.bf16.mxu0 %v7868
    %8826 = vmatpush1.bf16.msra.mxu0 %v7867
    %8827 = vmatprep.subr.bf16.mxu0 %v7876
    %8828 = vmatpush1.bf16.msra.mxu0 %v7875
    %8829 = vmatprep.subr.bf16.mxu0 %v7884
    %8830 = vmatpush1.bf16.msra.mxu0 %v7883
    %8831 = vmatprep.subr.bf16.mxu0 %v7892
    %8832 = vmatpush1.bf16.msra.mxu0 %v7891
    %8833 = vmatprep.subr.bf16.mxu0 %v7900
    %8834 = vmatpush1.bf16.msra.mxu0 %v7899
    %8835 = vmatprep.subr.bf16.mxu0 %v7908
    %8836 = vmatpush1.bf16.msra.mxu0 %v7907
    %8837 = vmatprep.mubr.bf16.mxu0 %v8306
    %8838 = vmatmul.mubr.bf16.gmra.mrb[0].mxu0 %v8305
    %v8839 = vpop.f32.mrb[0].mxu0
    %v8840 = vadd.f32 %v8799, %v8839
    %v8841 = vpop.f32.mrb[0].mxu0
    %v8842 = vadd.f32 %v8801, %v8841
    %v8843 = vpop.f32.mrb[0].mxu0
    %v8844 = vpop.f32.mrb[0].mxu0
    %8845 = vdwg.mxu0
    %8846 = vmatprep.subr.bf16.mxu0 %v7916
    %8847 = vmatpush1.bf16.msra.mxu0 %v7915
    %8848 = vmatprep.subr.bf16.mxu0 %v7924
    %8849 = vmatpush1.bf16.msra.mxu0 %v7923
    %8850 = vmatprep.subr.bf16.mxu0 %v7932
    %8851 = vmatpush1.bf16.msra.mxu0 %v7931
    %8852 = vmatprep.subr.bf16.mxu0 %v7940
    %8853 = vmatpush1.bf16.msra.mxu0 %v7939
    %8854 = vmatprep.subr.bf16.mxu0 %v7948
    %8855 = vmatpush1.bf16.msra.mxu0 %v7947
    %8856 = vmatprep.subr.bf16.mxu0 %v7956
    %8857 = vmatpush1.bf16.msra.mxu0 %v7955
    %8858 = vmatprep.subr.bf16.mxu0 %v7964
    %8859 = vmatpush1.bf16.msra.mxu0 %v7963
    %8860 = vmatprep.subr.bf16.mxu0 %v7972
    %8861 = vmatpush1.bf16.msra.mxu0 %v7971
    %8862 = vmatprep.subr.bf16.mxu0 %v7980
    %8863 = vmatpush1.bf16.msra.mxu0 %v7979
    %8864 = vmatprep.subr.bf16.mxu0 %v7988
    %8865 = vmatpush1.bf16.msra.mxu0 %v7987
    %8866 = vmatprep.subr.bf16.mxu0 %v7996
    %8867 = vmatpush1.bf16.msra.mxu0 %v7995
    %8868 = vmatprep.subr.bf16.mxu0 %v8004
    %8869 = vmatpush1.bf16.msra.mxu0 %v8003
    %8870 = vmatprep.subr.bf16.mxu0 %v8012
    %8871 = vmatpush1.bf16.msra.mxu0 %v8011
    %8872 = vmatprep.subr.bf16.mxu0 %v8020
    %8873 = vmatpush1.bf16.msra.mxu0 %v8019
    %8874 = vmatprep.subr.bf16.mxu0 %v8028
    %8875 = vmatpush1.bf16.msra.mxu0 %v8027
    %8876 = vmatprep.subr.bf16.mxu0 %v8036
    %8877 = vmatpush1.bf16.msra.mxu0 %v8035
    %8878 = vmatprep.mubr.bf16.mxu0 %v8308
    %8879 = vmatmul.mubr.bf16.gmra.mrb[0].mxu0 %v8307
    %v8880 = vpop.f32.mrb[0].mxu0
    %v8881 = vadd.f32 %v8840, %v8880
    %v8882 = vpop.f32.mrb[0].mxu0
    %v8883 = vadd.f32 %v8842, %v8882
    %v8884 = vpop.f32.mrb[0].mxu0
    %v8885 = vpop.f32.mrb[0].mxu0
    %8886 = vdwg.mxu0
    %8887 = vmatprep.subr.bf16.mxu0 %v8044
    %8888 = vmatpush1.bf16.msra.mxu0 %v8043
    %8889 = vmatprep.subr.bf16.mxu0 %v8052
    %8890 = vmatpush1.bf16.msra.mxu0 %v8051
    %8891 = vmatprep.subr.bf16.mxu0 %v8060
    %8892 = vmatpush1.bf16.msra.mxu0 %v8059
    %8893 = vmatprep.subr.bf16.mxu0 %v8068
    %8894 = vmatpush1.bf16.msra.mxu0 %v8067
    %8895 = vmatprep.subr.bf16.mxu0 %v8076
    %8896 = vmatpush1.bf16.msra.mxu0 %v8075
    %8897 = vmatprep.subr.bf16.mxu0 %v8084
    %8898 = vmatpush1.bf16.msra.mxu0 %v8083
    %8899 = vmatprep.subr.bf16.mxu0 %v8092
    %8900 = vmatpush1.bf16.msra.mxu0 %v8091
    %8901 = vmatprep.subr.bf16.mxu0 %v8100
    %8902 = vmatpush1.bf16.msra.mxu0 %v8099
    %8903 = vmatprep.subr.bf16.mxu0 %v8108
    %8904 = vmatpush1.bf16.msra.mxu0 %v8107
    %8905 = vmatprep.subr.bf16.mxu0 %v8116
    %8906 = vmatpush1.bf16.msra.mxu0 %v8115
    %8907 = vmatprep.subr.bf16.mxu0 %v8124
    %8908 = vmatpush1.bf16.msra.mxu0 %v8123
    %8909 = vmatprep.subr.bf16.mxu0 %v8132
    %8910 = vmatpush1.bf16.msra.mxu0 %v8131
    %8911 = vmatprep.subr.bf16.mxu0 %v8140
    %8912 = vmatpush1.bf16.msra.mxu0 %v8139
    %8913 = vmatprep.subr.bf16.mxu0 %v8148
    %8914 = vmatpush1.bf16.msra.mxu0 %v8147
    %8915 = vmatprep.subr.bf16.mxu0 %v8156
    %8916 = vmatpush1.bf16.msra.mxu0 %v8155
    %8917 = vmatprep.subr.bf16.mxu0 %v8164
    %8918 = vmatpush1.bf16.msra.mxu0 %v8163
    %8919 = vmatprep.mubr.bf16.mxu0 %v8310
    %8920 = vmatmul.mubr.bf16.gmra.mrb[0].mxu0 %v8309
    %v8921 = vpop.f32.mrb[0].mxu0
    %v8922 = vadd.f32 %v8881, %v8921
    %v8923 = vpop.f32.mrb[0].mxu0
    %v8924 = vadd.f32 %v8883, %v8923
    %v8925 = vpop.f32.mrb[0].mxu0
    %v8926 = vpop.f32.mrb[0].mxu0
    %8927 = vdwg.mxu0
    %8928 = vmatprep.subr.bf16.mxu0 %v8172
    %8929 = vmatpush1.bf16.msra.mxu0 %v8171
    %8930 = vmatprep.subr.bf16.mxu0 %v8180
    %8931 = vmatpush1.bf16.msra.mxu0 %v8179
    %8932 = vmatprep.subr.bf16.mxu0 %v8188
    %8933 = vmatpush1.bf16.msra.mxu0 %v8187
    %8934 = vmatprep.subr.bf16.mxu0 %v8196
    %8935 = vmatpush1.bf16.msra.mxu0 %v8195
    %8936 = vmatprep.subr.bf16.mxu0 %v8204
    %8937 = vmatpush1.bf16.msra.mxu0 %v8203
    %8938 = vmatprep.subr.bf16.mxu0 %v8212
    %8939 = vmatpush1.bf16.msra.mxu0 %v8211
    %8940 = vmatprep.subr.bf16.mxu0 %v8220
    %8941 = vmatpush1.bf16.msra.mxu0 %v8219
    %8942 = vmatprep.subr.bf16.mxu0 %v8228
    %8943 = vmatpush1.bf16.msra.mxu0 %v8227
    %8944 = vmatprep.subr.bf16.mxu0 %v8236
    %8945 = vmatpush1.bf16.msra.mxu0 %v8235
    %8946 = vmatprep.subr.bf16.mxu0 %v8244
    %8947 = vmatpush1.bf16.msra.mxu0 %v8243
    %8948 = vmatprep.subr.bf16.mxu0 %v8252
    %8949 = vmatpush1.bf16.msra.mxu0 %v8251
    %8950 = vmatprep.subr.bf16.mxu0 %v8260
    %8951 = vmatpush1.bf16.msra.mxu0 %v8259
    %8952 = vmatprep.subr.bf16.mxu0 %v8268
    %8953 = vmatpush1.bf16.msra.mxu0 %v8267
    %8954 = vmatprep.subr.bf16.mxu0 %v8276
    %8955 = vmatpush1.bf16.msra.mxu0 %v8275
    %8956 = vmatprep.subr.bf16.mxu0 %v8284
    %8957 = vmatpush1.bf16.msra.mxu0 %v8283
    %8958 = vmatprep.subr.bf16.mxu0 %v8292
    %8959 = vmatpush1.bf16.msra.mxu0 %v8291
    %8960 = vmatprep.mubr.bf16.mxu0 %v8312
    %8961 = vmatmul.mubr.bf16.gmra.mrb[0].mxu0 %v8311
    %v8962 = vpop.f32.mrb[0].mxu0
    %v8963 = vadd.f32 %v8922, %v8962
    %v8964 = vpop.f32.mrb[0].mxu0
    %v8965 = vadd.f32 %v8924, %v8964
    %v8966 = vpop.f32.mrb[0].mxu0
    %v8967 = vpop.f32.mrb[0].mxu0
    %8968 = vdwg.mxu0
    %8969 = vmatprep.subr.bf16.mxu0 %v7278
    %8970 = vmatpush1.bf16.msra.mxu0 %v7277
    %8971 = vmatprep.subr.bf16.mxu0 %v7286
    %8972 = vmatpush1.bf16.msra.mxu0 %v7285
    %8973 = vmatprep.subr.bf16.mxu0 %v7294
    %8974 = vmatpush1.bf16.msra.mxu0 %v7293
    %8975 = vmatprep.subr.bf16.mxu0 %v7302
    %8976 = vmatpush1.bf16.msra.mxu0 %v7301
    %8977 = vmatprep.subr.bf16.mxu0 %v7310
    %8978 = vmatpush1.bf16.msra.mxu0 %v7309
    %8979 = vmatprep.subr.bf16.mxu0 %v7318
    %8980 = vmatpush1.bf16.msra.mxu0 %v7317
    %8981 = vmatprep.subr.bf16.mxu0 %v7326
    %8982 = vmatpush1.bf16.msra.mxu0 %v7325
    %8983 = vmatprep.subr.bf16.mxu0 %v7334
    %8984 = vmatpush1.bf16.msra.mxu0 %v7333
    %8985 = vmatprep.subr.bf16.mxu0 %v7342
    %8986 = vmatpush1.bf16.msra.mxu0 %v7341
    %8987 = vmatprep.subr.bf16.mxu0 %v7350
    %8988 = vmatpush1.bf16.msra.mxu0 %v7349
    %8989 = vmatprep.subr.bf16.mxu0 %v7358
    %8990 = vmatpush1.bf16.msra.mxu0 %v7357
    %8991 = vmatprep.subr.bf16.mxu0 %v7366
    %8992 = vmatpush1.bf16.msra.mxu0 %v7365
    %8993 = vmatprep.subr.bf16.mxu0 %v7374
    %8994 = vmatpush1.bf16.msra.mxu0 %v7373
    %8995 = vmatprep.subr.bf16.mxu0 %v7382
    %8996 = vmatpush1.bf16.msra.mxu0 %v7381
    %8997 = vmatprep.subr.bf16.mxu0 %v7390
    %8998 = vmatpush1.bf16.msra.mxu0 %v7389
    %8999 = vmatprep.subr.bf16.mxu0 %v7398
    %9000 = vmatpush1.bf16.msra.mxu0 %v7397
    %9001 = vmatprep.mubr.bf16.mxu0 %v8298
    %9002 = vmatmul.mubr.bf16.gmra.mrb[0].mxu0 %v8297
    %v9003 = vpop.f32.mrb[0].mxu0
    %v9004 = vadd.f32 0.0, %v9003
    %v9005 = vpop.f32.mrb[0].mxu0
    %v9006 = vadd.f32 0.0, %v9005
    %v9007 = vpop.f32.mrb[0].mxu0
    %v9008 = vpop.f32.mrb[0].mxu0
    %9009 = vdwg.mxu0
    %9010 = vmatprep.subr.bf16.mxu0 %v7406
    %9011 = vmatpush1.bf16.msra.mxu0 %v7405
    %9012 = vmatprep.subr.bf16.mxu0 %v7414
    %9013 = vmatpush1.bf16.msra.mxu0 %v7413
    %9014 = vmatprep.subr.bf16.mxu0 %v7422
    %9015 = vmatpush1.bf16.msra.mxu0 %v7421
    %9016 = vmatprep.subr.bf16.mxu0 %v7430
    %9017 = vmatpush1.bf16.msra.mxu0 %v7429
    %9018 = vmatprep.subr.bf16.mxu0 %v7438
    %9019 = vmatpush1.bf16.msra.mxu0 %v7437
    %9020 = vmatprep.subr.bf16.mxu0 %v7446
    %9021 = vmatpush1.bf16.msra.mxu0 %v7445
    %9022 = vmatprep.subr.bf16.mxu0 %v7454
    %9023 = vmatpush1.bf16.msra.mxu0 %v7453
    %9024 = vmatprep.subr.bf16.mxu0 %v7462
    %9025 = vmatpush1.bf16.msra.mxu0 %v7461
    %9026 = vmatprep.subr.bf16.mxu0 %v7470
    %9027 = vmatpush1.bf16.msra.mxu0 %v7469
    %9028 = vmatprep.subr.bf16.mxu0 %v7478
    %9029 = vmatpush1.bf16.msra.mxu0 %v7477
    %9030 = vmatprep.subr.bf16.mxu0 %v7486
    %9031 = vmatpush1.bf16.msra.mxu0 %v7485
    %9032 = vmatprep.subr.bf16.mxu0 %v7494
    %9033 = vmatpush1.bf16.msra.mxu0 %v7493
    %9034 = vmatprep.subr.bf16.mxu0 %v7502
    %9035 = vmatpush1.bf16.msra.mxu0 %v7501
    %9036 = vmatprep.subr.bf16.mxu0 %v7510
    %9037 = vmatpush1.bf16.msra.mxu0 %v7509
    %9038 = vmatprep.subr.bf16.mxu0 %v7518
    %9039 = vmatpush1.bf16.msra.mxu0 %v7517
    %9040 = vmatprep.subr.bf16.mxu0 %v7526
    %9041 = vmatpush1.bf16.msra.mxu0 %v7525
    %9042 = vmatprep.mubr.bf16.mxu0 %v8300
    %9043 = vmatmul.mubr.bf16.gmra.mrb[0].mxu0 %v8299
    %v9044 = vpop.f32.mrb[0].mxu0
    %v9045 = vadd.f32 %v9004, %v9044
    %v9046 = vpop.f32.mrb[0].mxu0
    %v9047 = vadd.f32 %v9006, %v9046
    %v9048 = vpop.f32.mrb[0].mxu0
    %v9049 = vpop.f32.mrb[0].mxu0
    %9050 = vdwg.mxu0
    %9051 = vmatprep.subr.bf16.mxu0 %v7534
    %9052 = vmatpush1.bf16.msra.mxu0 %v7533
    %9053 = vmatprep.subr.bf16.mxu0 %v7542
    %9054 = vmatpush1.bf16.msra.mxu0 %v7541
    %9055 = vmatprep.subr.bf16.mxu0 %v7550
    %9056 = vmatpush1.bf16.msra.mxu0 %v7549
    %9057 = vmatprep.subr.bf16.mxu0 %v7558
    %9058 = vmatpush1.bf16.msra.mxu0 %v7557
    %9059 = vmatprep.subr.bf16.mxu0 %v7566
    %9060 = vmatpush1.bf16.msra.mxu0 %v7565
    %9061 = vmatprep.subr.bf16.mxu0 %v7574
    %9062 = vmatpush1.bf16.msra.mxu0 %v7573
    %9063 = vmatprep.subr.bf16.mxu0 %v7582
    %9064 = vmatpush1.bf16.msra.mxu0 %v7581
    %9065 = vmatprep.subr.bf16.mxu0 %v7590
    %9066 = vmatpush1.bf16.msra.mxu0 %v7589
    %9067 = vmatprep.subr.bf16.mxu0 %v7598
    %9068 = vmatpush1.bf16.msra.mxu0 %v7597
    %9069 = vmatprep.subr.bf16.mxu0 %v7606
    %9070 = vmatpush1.bf16.msra.mxu0 %v7605
    %9071 = vmatprep.subr.bf16.mxu0 %v7614
    %9072 = vmatpush1.bf16.msra.mxu0 %v7613
    %9073 = vmatprep.subr.bf16.mxu0 %v7622
    %9074 = vmatpush1.bf16.msra.mxu0 %v7621
    %9075 = vmatprep.subr.bf16.mxu0 %v7630
    %9076 = vmatpush1.bf16.msra.mxu0 %v7629
    %9077 = vmatprep.subr.bf16.mxu0 %v7638
    %9078 = vmatpush1.bf16.msra.mxu0 %v7637
    %9079 = vmatprep.subr.bf16.mxu0 %v7646
    %9080 = vmatpush1.bf16.msra.mxu0 %v7645
    %9081 = vmatprep.subr.bf16.mxu0 %v7654
    %9082 = vmatpush1.bf16.msra.mxu0 %v7653
    %9083 = vmatprep.mubr.bf16.mxu0 %v8302
    %9084 = vmatmul.mubr.bf16.gmra.mrb[0].mxu0 %v8301
    %v9085 = vpop.f32.mrb[0].mxu0
    %v9086 = vadd.f32 %v9045, %v9085
    %v9087 = vpop.f32.mrb[0].mxu0
    %v9088 = vadd.f32 %v9047, %v9087
    %v9089 = vpop.f32.mrb[0].mxu0
    %v9090 = vpop.f32.mrb[0].mxu0
    %9091 = vdwg.mxu0
    %9092 = vmatprep.subr.bf16.mxu0 %v7662
    %9093 = vmatpush1.bf16.msra.mxu0 %v7661
    %9094 = vmatprep.subr.bf16.mxu0 %v7670
    %9095 = vmatpush1.bf16.msra.mxu0 %v7669
    %9096 = vmatprep.subr.bf16.mxu0 %v7678
    %9097 = vmatpush1.bf16.msra.mxu0 %v7677
    %9098 = vmatprep.subr.bf16.mxu0 %v7686
    %9099 = vmatpush1.bf16.msra.mxu0 %v7685
    %9100 = vmatprep.subr.bf16.mxu0 %v7694
    %9101 = vmatpush1.bf16.msra.mxu0 %v7693
    %9102 = vmatprep.subr.bf16.mxu0 %v7702
    %9103 = vmatpush1.bf16.msra.mxu0 %v7701
    %9104 = vmatprep.subr.bf16.mxu0 %v7710
    %9105 = vmatpush1.bf16.msra.mxu0 %v7709
    %9106 = vmatprep.subr.bf16.mxu0 %v7718
    %9107 = vmatpush1.bf16.msra.mxu0 %v7717
    %9108 = vmatprep.subr.bf16.mxu0 %v7726
    %9109 = vmatpush1.bf16.msra.mxu0 %v7725
    %9110 = vmatprep.subr.bf16.mxu0 %v7734
    %9111 = vmatpush1.bf16.msra.mxu0 %v7733
    %9112 = vmatprep.subr.bf16.mxu0 %v7742
    %9113 = vmatpush1.bf16.msra.mxu0 %v7741
    %9114 = vmatprep.subr.bf16.mxu0 %v7750
    %9115 = vmatpush1.bf16.msra.mxu0 %v7749
    %9116 = vmatprep.subr.bf16.mxu0 %v7758
    %9117 = vmatpush1.bf16.msra.mxu0 %v7757
    %9118 = vmatprep.subr.bf16.mxu0 %v7766
    %9119 = vmatpush1.bf16.msra.mxu0 %v7765
    %9120 = vmatprep.subr.bf16.mxu0 %v7774
    %9121 = vmatpush1.bf16.msra.mxu0 %v7773
    %9122 = vmatprep.subr.bf16.mxu0 %v7782
    %9123 = vmatpush1.bf16.msra.mxu0 %v7781
    %9124 = vmatprep.mubr.bf16.mxu0 %v8304
    %9125 = vmatmul.mubr.bf16.gmra.mrb[0].mxu0 %v8303
    %v9126 = vpop.f32.mrb[0].mxu0
    %v9127 = vadd.f32 %v9086, %v9126
    %v9128 = vpop.f32.mrb[0].mxu0
    %v9129 = vadd.f32 %v9088, %v9128
    %v9130 = vpop.f32.mrb[0].mxu0
    %v9131 = vpop.f32.mrb[0].mxu0
    %9132 = vdwg.mxu0
    %9133 = vmatprep.subr.bf16.mxu0 %v7790
    %9134 = vmatpush1.bf16.msra.mxu0 %v7789
    %9135 = vmatprep.subr.bf16.mxu0 %v7798
    %9136 = vmatpush1.bf16.msra.mxu0 %v7797
    %9137 = vmatprep.subr.bf16.mxu0 %v7806
    %9138 = vmatpush1.bf16.msra.mxu0 %v7805
    %9139 = vmatprep.subr.bf16.mxu0 %v7814
    %9140 = vmatpush1.bf16.msra.mxu0 %v7813
    %9141 = vmatprep.subr.bf16.mxu0 %v7822
    %9142 = vmatpush1.bf16.msra.mxu0 %v7821
    %9143 = vmatprep.subr.bf16.mxu0 %v7830
    %9144 = vmatpush1.bf16.msra.mxu0 %v7829
    %9145 = vmatprep.subr.bf16.mxu0 %v7838
    %9146 = vmatpush1.bf16.msra.mxu0 %v7837
    %9147 = vmatprep.subr.bf16.mxu0 %v7846
    %9148 = vmatpush1.bf16.msra.mxu0 %v7845
    %9149 = vmatprep.subr.bf16.mxu0 %v7854
    %9150 = vmatpush1.bf16.msra.mxu0 %v7853
    %9151 = vmatprep.subr.bf16.mxu0 %v7862
    %9152 = vmatpush1.bf16.msra.mxu0 %v7861
    %9153 = vmatprep.subr.bf16.mxu0 %v7870
    %9154 = vmatpush1.bf16.msra.mxu0 %v7869
    %9155 = vmatprep.subr.bf16.mxu0 %v7878
    %9156 = vmatpush1.bf16.msra.mxu0 %v7877
    %9157 = vmatprep.subr.bf16.mxu0 %v7886
    %9158 = vmatpush1.bf16.msra.mxu0 %v7885
    %9159 = vmatprep.subr.bf16.mxu0 %v7894
    %9160 = vmatpush1.bf16.msra.mxu0 %v7893
    %9161 = vmatprep.subr.bf16.mxu0 %v7902
    %9162 = vmatpush1.bf16.msra.mxu0 %v7901
    %9163 = vmatprep.subr.bf16.mxu0 %v7910
    %9164 = vmatpush1.bf16.msra.mxu0 %v7909
    %9165 = vmatprep.mubr.bf16.mxu0 %v8306
    %9166 = vmatmul.mubr.bf16.gmra.mrb[0].mxu0 %v8305
    %v9167 = vpop.f32.mrb[0].mxu0
    %v9168 = vadd.f32 %v9127, %v9167
    %v9169 = vpop.f32.mrb[0].mxu0
    %v9170 = vadd.f32 %v9129, %v9169
    %v9171 = vpop.f32.mrb[0].mxu0
    %v9172 = vpop.f32.mrb[0].mxu0
    %9173 = vdwg.mxu0
    %9174 = vmatprep.subr.bf16.mxu0 %v7918
    %9175 = vmatpush1.bf16.msra.mxu0 %v7917
    %9176 = vmatprep.subr.bf16.mxu0 %v7926
    %9177 = vmatpush1.bf16.msra.mxu0 %v7925
    %9178 = vmatprep.subr.bf16.mxu0 %v7934
    %9179 = vmatpush1.bf16.msra.mxu0 %v7933
    %9180 = vmatprep.subr.bf16.mxu0 %v7942
    %9181 = vmatpush1.bf16.msra.mxu0 %v7941
    %9182 = vmatprep.subr.bf16.mxu0 %v7950
    %9183 = vmatpush1.bf16.msra.mxu0 %v7949
    %9184 = vmatprep.subr.bf16.mxu0 %v7958
    %9185 = vmatpush1.bf16.msra.mxu0 %v7957
    %9186 = vmatprep.subr.bf16.mxu0 %v7966
    %9187 = vmatpush1.bf16.msra.mxu0 %v7965
    %9188 = vmatprep.subr.bf16.mxu0 %v7974
    %9189 = vmatpush1.bf16.msra.mxu0 %v7973
    %9190 = vmatprep.subr.bf16.mxu0 %v7982
    %9191 = vmatpush1.bf16.msra.mxu0 %v7981
    %9192 = vmatprep.subr.bf16.mxu0 %v7990
    %9193 = vmatpush1.bf16.msra.mxu0 %v7989
    %9194 = vmatprep.subr.bf16.mxu0 %v7998
    %9195 = vmatpush1.bf16.msra.mxu0 %v7997
    %9196 = vmatprep.subr.bf16.mxu0 %v8006
    %9197 = vmatpush1.bf16.msra.mxu0 %v8005
    %9198 = vmatprep.subr.bf16.mxu0 %v8014
    %9199 = vmatpush1.bf16.msra.mxu0 %v8013
    %9200 = vmatprep.subr.bf16.mxu0 %v8022
    %9201 = vmatpush1.bf16.msra.mxu0 %v8021
    %9202 = vmatprep.subr.bf16.mxu0 %v8030
    %9203 = vmatpush1.bf16.msra.mxu0 %v8029
    %9204 = vmatprep.subr.bf16.mxu0 %v8038
    %9205 = vmatpush1.bf16.msra.mxu0 %v8037
    %9206 = vmatprep.mubr.bf16.mxu0 %v8308
    %9207 = vmatmul.mubr.bf16.gmra.mrb[0].mxu0 %v8307
    %v9208 = vpop.f32.mrb[0].mxu0
    %v9209 = vadd.f32 %v9168, %v9208
    %v9210 = vpop.f32.mrb[0].mxu0
    %v9211 = vadd.f32 %v9170, %v9210
    %v9212 = vpop.f32.mrb[0].mxu0
    %v9213 = vpop.f32.mrb[0].mxu0
    %9214 = vdwg.mxu0
    %9215 = vmatprep.subr.bf16.mxu0 %v8046
    %9216 = vmatpush1.bf16.msra.mxu0 %v8045
    %9217 = vmatprep.subr.bf16.mxu0 %v8054
    %9218 = vmatpush1.bf16.msra.mxu0 %v8053
    %9219 = vmatprep.subr.bf16.mxu0 %v8062
    %9220 = vmatpush1.bf16.msra.mxu0 %v8061
    %9221 = vmatprep.subr.bf16.mxu0 %v8070
    %9222 = vmatpush1.bf16.msra.mxu0 %v8069
    %9223 = vmatprep.subr.bf16.mxu0 %v8078
    %9224 = vmatpush1.bf16.msra.mxu0 %v8077
    %9225 = vmatprep.subr.bf16.mxu0 %v8086
    %9226 = vmatpush1.bf16.msra.mxu0 %v8085
    %9227 = vmatprep.subr.bf16.mxu0 %v8094
    %9228 = vmatpush1.bf16.msra.mxu0 %v8093
    %9229 = vmatprep.subr.bf16.mxu0 %v8102
    %9230 = vmatpush1.bf16.msra.mxu0 %v8101
    %9231 = vmatprep.subr.bf16.mxu0 %v8110
    %9232 = vmatpush1.bf16.msra.mxu0 %v8109
    %9233 = vmatprep.subr.bf16.mxu0 %v8118
    %9234 = vmatpush1.bf16.msra.mxu0 %v8117
    %9235 = vmatprep.subr.bf16.mxu0 %v8126
    %9236 = vmatpush1.bf16.msra.mxu0 %v8125
    %9237 = vmatprep.subr.bf16.mxu0 %v8134
    %9238 = vmatpush1.bf16.msra.mxu0 %v8133
    %9239 = vmatprep.subr.bf16.mxu0 %v8142
    %9240 = vmatpush1.bf16.msra.mxu0 %v8141
    %9241 = vmatprep.subr.bf16.mxu0 %v8150
    %9242 = vmatpush1.bf16.msra.mxu0 %v8149
    %9243 = vmatprep.subr.bf16.mxu0 %v8158
    %9244 = vmatpush1.bf16.msra.mxu0 %v8157
    %9245 = vmatprep.subr.bf16.mxu0 %v8166
    %9246 = vmatpush1.bf16.msra.mxu0 %v8165
    %9247 = vmatprep.mubr.bf16.mxu0 %v8310
    %9248 = vmatmul.mubr.bf16.gmra.mrb[0].mxu0 %v8309
    %v9249 = vpop.f32.mrb[0].mxu0
    %v9250 = vadd.f32 %v9209, %v9249
    %v9251 = vpop.f32.mrb[0].mxu0
    %v9252 = vadd.f32 %v9211, %v9251
    %v9253 = vpop.f32.mrb[0].mxu0
    %v9254 = vpop.f32.mrb[0].mxu0
    %9255 = vdwg.mxu0
    %9256 = vmatprep.subr.bf16.mxu0 %v8174
    %9257 = vmatpush1.bf16.msra.mxu0 %v8173
    %9258 = vmatprep.subr.bf16.mxu0 %v8182
    %9259 = vmatpush1.bf16.msra.mxu0 %v8181
    %9260 = vmatprep.subr.bf16.mxu0 %v8190
    %9261 = vmatpush1.bf16.msra.mxu0 %v8189
    %9262 = vmatprep.subr.bf16.mxu0 %v8198
    %9263 = vmatpush1.bf16.msra.mxu0 %v8197
    %9264 = vmatprep.subr.bf16.mxu0 %v8206
    %9265 = vmatpush1.bf16.msra.mxu0 %v8205
    %9266 = vmatprep.subr.bf16.mxu0 %v8214
    %9267 = vmatpush1.bf16.msra.mxu0 %v8213
    %9268 = vmatprep.subr.bf16.mxu0 %v8222
    %9269 = vmatpush1.bf16.msra.mxu0 %v8221
    %9270 = vmatprep.subr.bf16.mxu0 %v8230
    %9271 = vmatpush1.bf16.msra.mxu0 %v8229
    %9272 = vmatprep.subr.bf16.mxu0 %v8238
    %9273 = vmatpush1.bf16.msra.mxu0 %v8237
    %9274 = vmatprep.subr.bf16.mxu0 %v8246
    %9275 = vmatpush1.bf16.msra.mxu0 %v8245
    %9276 = vmatprep.subr.bf16.mxu0 %v8254
    %9277 = vmatpush1.bf16.msra.mxu0 %v8253
    %9278 = vmatprep.subr.bf16.mxu0 %v8262
    %9279 = vmatpush1.bf16.msra.mxu0 %v8261
    %9280 = vmatprep.subr.bf16.mxu0 %v8270
    %9281 = vmatpush1.bf16.msra.mxu0 %v8269
    %9282 = vmatprep.subr.bf16.mxu0 %v8278
    %9283 = vmatpush1.bf16.msra.mxu0 %v8277
    %9284 = vmatprep.subr.bf16.mxu0 %v8286
    %9285 = vmatpush1.bf16.msra.mxu0 %v8285
    %9286 = vmatprep.subr.bf16.mxu0 %v8294
    %9287 = vmatpush1.bf16.msra.mxu0 %v8293
    %9288 = vmatprep.mubr.bf16.mxu0 %v8312
    %9289 = vmatmul.mubr.bf16.gmra.mrb[0].mxu0 %v8311
    %v9290 = vpop.f32.mrb[0].mxu0
    %v9291 = vadd.f32 %v9250, %v9290
    %v9292 = vpop.f32.mrb[0].mxu0
    %v9293 = vadd.f32 %v9252, %v9292
    %v9294 = vpop.f32.mrb[0].mxu0
    %v9295 = vpop.f32.mrb[0].mxu0
    %9296 = vdwg.mxu0
    %9297 = vmatprep.subr.bf16.mxu0 %v7280
    %9298 = vmatpush1.bf16.msra.mxu0 %v7279
    %9299 = vmatprep.subr.bf16.mxu0 %v7288
    %9300 = vmatpush1.bf16.msra.mxu0 %v7287
    %9301 = vmatprep.subr.bf16.mxu0 %v7296
    %9302 = vmatpush1.bf16.msra.mxu0 %v7295
    %9303 = vmatprep.subr.bf16.mxu0 %v7304
    %9304 = vmatpush1.bf16.msra.mxu0 %v7303
    %9305 = vmatprep.subr.bf16.mxu0 %v7312
    %9306 = vmatpush1.bf16.msra.mxu0 %v7311
    %9307 = vmatprep.subr.bf16.mxu0 %v7320
    %9308 = vmatpush1.bf16.msra.mxu0 %v7319
    %9309 = vmatprep.subr.bf16.mxu0 %v7328
    %9310 = vmatpush1.bf16.msra.mxu0 %v7327
    %9311 = vmatprep.subr.bf16.mxu0 %v7336
    %9312 = vmatpush1.bf16.msra.mxu0 %v7335
    %9313 = vmatprep.subr.bf16.mxu0 %v7344
    %9314 = vmatpush1.bf16.msra.mxu0 %v7343
    %9315 = vmatprep.subr.bf16.mxu0 %v7352
    %9316 = vmatpush1.bf16.msra.mxu0 %v7351
    %9317 = vmatprep.subr.bf16.mxu0 %v7360
    %9318 = vmatpush1.bf16.msra.mxu0 %v7359
    %9319 = vmatprep.subr.bf16.mxu0 %v7368
    %9320 = vmatpush1.bf16.msra.mxu0 %v7367
    %9321 = vmatprep.subr.bf16.mxu0 %v7376
    %9322 = vmatpush1.bf16.msra.mxu0 %v7375
    %9323 = vmatprep.subr.bf16.mxu0 %v7384
    %9324 = vmatpush1.bf16.msra.mxu0 %v7383
    %9325 = vmatprep.subr.bf16.mxu0 %v7392
    %9326 = vmatpush1.bf16.msra.mxu0 %v7391
    %9327 = vmatprep.subr.bf16.mxu0 %v7400
    %9328 = vmatpush1.bf16.msra.mxu0 %v7399
    %9329 = vmatprep.mubr.bf16.mxu0 %v8298
    %9330 = vmatmul.mubr.bf16.gmra.mrb[0].mxu0 %v8297
    %v9331 = vpop.f32.mrb[0].mxu0
    %v9332 = vadd.f32 0.0, %v9331
    %v9333 = vpop.f32.mrb[0].mxu0
    %v9334 = vadd.f32 0.0, %v9333
    %v9335 = vpop.f32.mrb[0].mxu0
    %v9336 = vpop.f32.mrb[0].mxu0
    %9337 = vdwg.mxu0
    %9338 = vmatprep.subr.bf16.mxu0 %v7408
    %9339 = vmatpush1.bf16.msra.mxu0 %v7407
    %9340 = vmatprep.subr.bf16.mxu0 %v7416
    %9341 = vmatpush1.bf16.msra.mxu0 %v7415
    %9342 = vmatprep.subr.bf16.mxu0 %v7424
    %9343 = vmatpush1.bf16.msra.mxu0 %v7423
    %9344 = vmatprep.subr.bf16.mxu0 %v7432
    %9345 = vmatpush1.bf16.msra.mxu0 %v7431
    %9346 = vmatprep.subr.bf16.mxu0 %v7440
    %9347 = vmatpush1.bf16.msra.mxu0 %v7439
    %9348 = vmatprep.subr.bf16.mxu0 %v7448
    %9349 = vmatpush1.bf16.msra.mxu0 %v7447
    %9350 = vmatprep.subr.bf16.mxu0 %v7456
    %9351 = vmatpush1.bf16.msra.mxu0 %v7455
    %9352 = vmatprep.subr.bf16.mxu0 %v7464
    %9353 = vmatpush1.bf16.msra.mxu0 %v7463
    %9354 = vmatprep.subr.bf16.mxu0 %v7472
    %9355 = vmatpush1.bf16.msra.mxu0 %v7471
    %9356 = vmatprep.subr.bf16.mxu0 %v7480
    %9357 = vmatpush1.bf16.msra.mxu0 %v7479
    %9358 = vmatprep.subr.bf16.mxu0 %v7488
    %9359 = vmatpush1.bf16.msra.mxu0 %v7487
    %9360 = vmatprep.subr.bf16.mxu0 %v7496
    %9361 = vmatpush1.bf16.msra.mxu0 %v7495
    %9362 = vmatprep.subr.bf16.mxu0 %v7504
    %9363 = vmatpush1.bf16.msra.mxu0 %v7503
    %9364 = vmatprep.subr.bf16.mxu0 %v7512
    %9365 = vmatpush1.bf16.msra.mxu0 %v7511
    %9366 = vmatprep.subr.bf16.mxu0 %v7520
    %9367 = vmatpush1.bf16.msra.mxu0 %v7519
    %9368 = vmatprep.subr.bf16.mxu0 %v7528
    %9369 = vmatpush1.bf16.msra.mxu0 %v7527
    %9370 = vmatprep.mubr.bf16.mxu0 %v8300
    %9371 = vmatmul.mubr.bf16.gmra.mrb[0].mxu0 %v8299
    %v9372 = vpop.f32.mrb[0].mxu0
    %v9373 = vadd.f32 %v9332, %v9372
    %v9374 = vpop.f32.mrb[0].mxu0
    %v9375 = vadd.f32 %v9334, %v9374
    %v9376 = vpop.f32.mrb[0].mxu0
    %v9377 = vpop.f32.mrb[0].mxu0
    %9378 = vdwg.mxu0
    %9379 = vmatprep.subr.bf16.mxu0 %v7536
    %9380 = vmatpush1.bf16.msra.mxu0 %v7535
    %9381 = vmatprep.subr.bf16.mxu0 %v7544
    %9382 = vmatpush1.bf16.msra.mxu0 %v7543
    %9383 = vmatprep.subr.bf16.mxu0 %v7552
    %9384 = vmatpush1.bf16.msra.mxu0 %v7551
    %9385 = vmatprep.subr.bf16.mxu0 %v7560
    %9386 = vmatpush1.bf16.msra.mxu0 %v7559
    %9387 = vmatprep.subr.bf16.mxu0 %v7568
    %9388 = vmatpush1.bf16.msra.mxu0 %v7567
    %9389 = vmatprep.subr.bf16.mxu0 %v7576
    %9390 = vmatpush1.bf16.msra.mxu0 %v7575
    %9391 = vmatprep.subr.bf16.mxu0 %v7584
    %9392 = vmatpush1.bf16.msra.mxu0 %v7583
    %9393 = vmatprep.subr.bf16.mxu0 %v7592
    %9394 = vmatpush1.bf16.msra.mxu0 %v7591
    %9395 = vmatprep.subr.bf16.mxu0 %v7600
    %9396 = vmatpush1.bf16.msra.mxu0 %v7599
    %9397 = vmatprep.subr.bf16.mxu0 %v7608
    %9398 = vmatpush1.bf16.msra.mxu0 %v7607
    %9399 = vmatprep.subr.bf16.mxu0 %v7616
    %9400 = vmatpush1.bf16.msra.mxu0 %v7615
    %9401 = vmatprep.subr.bf16.mxu0 %v7624
    %9402 = vmatpush1.bf16.msra.mxu0 %v7623
    %9403 = vmatprep.subr.bf16.mxu0 %v7632
    %9404 = vmatpush1.bf16.msra.mxu0 %v7631
    %9405 = vmatprep.subr.bf16.mxu0 %v7640
    %9406 = vmatpush1.bf16.msra.mxu0 %v7639
    %9407 = vmatprep.subr.bf16.mxu0 %v7648
    %9408 = vmatpush1.bf16.msra.mxu0 %v7647
    %9409 = vmatprep.subr.bf16.mxu0 %v7656
    %9410 = vmatpush1.bf16.msra.mxu0 %v7655
    %9411 = vmatprep.mubr.bf16.mxu0 %v8302
    %9412 = vmatmul.mubr.bf16.gmra.mrb[0].mxu0 %v8301
    %v9413 = vpop.f32.mrb[0].mxu0
    %v9414 = vadd.f32 %v9373, %v9413
    %v9415 = vpop.f32.mrb[0].mxu0
    %v9416 = vadd.f32 %v9375, %v9415
    %v9417 = vpop.f32.mrb[0].mxu0
    %v9418 = vpop.f32.mrb[0].mxu0
    %9419 = vdwg.mxu0
    %9420 = vmatprep.subr.bf16.mxu0 %v7664
    %9421 = vmatpush1.bf16.msra.mxu0 %v7663
    %9422 = vmatprep.subr.bf16.mxu0 %v7672
    %9423 = vmatpush1.bf16.msra.mxu0 %v7671
    %9424 = vmatprep.subr.bf16.mxu0 %v7680
    %9425 = vmatpush1.bf16.msra.mxu0 %v7679
    %9426 = vmatprep.subr.bf16.mxu0 %v7688
    %9427 = vmatpush1.bf16.msra.mxu0 %v7687
    %9428 = vmatprep.subr.bf16.mxu0 %v7696
    %9429 = vmatpush1.bf16.msra.mxu0 %v7695
    %9430 = vmatprep.subr.bf16.mxu0 %v7704
    %9431 = vmatpush1.bf16.msra.mxu0 %v7703
    %9432 = vmatprep.subr.bf16.mxu0 %v7712
    %9433 = vmatpush1.bf16.msra.mxu0 %v7711
    %9434 = vmatprep.subr.bf16.mxu0 %v7720
    %9435 = vmatpush1.bf16.msra.mxu0 %v7719
    %9436 = vmatprep.subr.bf16.mxu0 %v7728
    %9437 = vmatpush1.bf16.msra.mxu0 %v7727
    %9438 = vmatprep.subr.bf16.mxu0 %v7736
    %9439 = vmatpush1.bf16.msra.mxu0 %v7735
    %9440 = vmatprep.subr.bf16.mxu0 %v7744
    %9441 = vmatpush1.bf16.msra.mxu0 %v7743
    %9442 = vmatprep.subr.bf16.mxu0 %v7752
    %9443 = vmatpush1.bf16.msra.mxu0 %v7751
    %9444 = vmatprep.subr.bf16.mxu0 %v7760
    %9445 = vmatpush1.bf16.msra.mxu0 %v7759
    %9446 = vmatprep.subr.bf16.mxu0 %v7768
    %9447 = vmatpush1.bf16.msra.mxu0 %v7767
    %9448 = vmatprep.subr.bf16.mxu0 %v7776
    %9449 = vmatpush1.bf16.msra.mxu0 %v7775
    %9450 = vmatprep.subr.bf16.mxu0 %v7784
    %9451 = vmatpush1.bf16.msra.mxu0 %v7783
    %9452 = vmatprep.mubr.bf16.mxu0 %v8304
    %9453 = vmatmul.mubr.bf16.gmra.mrb[0].mxu0 %v8303
    %v9454 = vpop.f32.mrb[0].mxu0
    %v9455 = vadd.f32 %v9414, %v9454
    %v9456 = vpop.f32.mrb[0].mxu0
    %v9457 = vadd.f32 %v9416, %v9456
    %v9458 = vpop.f32.mrb[0].mxu0
    %v9459 = vpop.f32.mrb[0].mxu0
    %9460 = vdwg.mxu0
    %9461 = vmatprep.subr.bf16.mxu0 %v7792
    %9462 = vmatpush1.bf16.msra.mxu0 %v7791
    %9463 = vmatprep.subr.bf16.mxu0 %v7800
    %9464 = vmatpush1.bf16.msra.mxu0 %v7799
    %9465 = vmatprep.subr.bf16.mxu0 %v7808
    %9466 = vmatpush1.bf16.msra.mxu0 %v7807
    %9467 = vmatprep.subr.bf16.mxu0 %v7816
    %9468 = vmatpush1.bf16.msra.mxu0 %v7815
    %9469 = vmatprep.subr.bf16.mxu0 %v7824
    %9470 = vmatpush1.bf16.msra.mxu0 %v7823
    %9471 = vmatprep.subr.bf16.mxu0 %v7832
    %9472 = vmatpush1.bf16.msra.mxu0 %v7831
    %9473 = vmatprep.subr.bf16.mxu0 %v7840
    %9474 = vmatpush1.bf16.msra.mxu0 %v7839
    %9475 = vmatprep.subr.bf16.mxu0 %v7848
    %9476 = vmatpush1.bf16.msra.mxu0 %v7847
    %9477 = vmatprep.subr.bf16.mxu0 %v7856
    %9478 = vmatpush1.bf16.msra.mxu0 %v7855
    %9479 = vmatprep.subr.bf16.mxu0 %v7864
    %9480 = vmatpush1.bf16.msra.mxu0 %v7863
    %9481 = vmatprep.subr.bf16.mxu0 %v7872
    %9482 = vmatpush1.bf16.msra.mxu0 %v7871
    %9483 = vmatprep.subr.bf16.mxu0 %v7880
    %9484 = vmatpush1.bf16.msra.mxu0 %v7879
    %9485 = vmatprep.subr.bf16.mxu0 %v7888
    %9486 = vmatpush1.bf16.msra.mxu0 %v7887
    %9487 = vmatprep.subr.bf16.mxu0 %v7896
    %9488 = vmatpush1.bf16.msra.mxu0 %v7895
    %9489 = vmatprep.subr.bf16.mxu0 %v7904
    %9490 = vmatpush1.bf16.msra.mxu0 %v7903
    %9491 = vmatprep.subr.bf16.mxu0 %v7912
    %9492 = vmatpush1.bf16.msra.mxu0 %v7911
    %9493 = vmatprep.mubr.bf16.mxu0 %v8306
    %9494 = vmatmul.mubr.bf16.gmra.mrb[0].mxu0 %v8305
    %v9495 = vpop.f32.mrb[0].mxu0
    %v9496 = vadd.f32 %v9455, %v9495
    %v9497 = vpop.f32.mrb[0].mxu0
    %v9498 = vadd.f32 %v9457, %v9497
    %v9499 = vpop.f32.mrb[0].mxu0
    %v9500 = vpop.f32.mrb[0].mxu0
    %9501 = vdwg.mxu0
    %9502 = vmatprep.subr.bf16.mxu0 %v7920
    %9503 = vmatpush1.bf16.msra.mxu0 %v7919
    %9504 = vmatprep.subr.bf16.mxu0 %v7928
    %9505 = vmatpush1.bf16.msra.mxu0 %v7927
    %9506 = vmatprep.subr.bf16.mxu0 %v7936
    %9507 = vmatpush1.bf16.msra.mxu0 %v7935
    %9508 = vmatprep.subr.bf16.mxu0 %v7944
    %9509 = vmatpush1.bf16.msra.mxu0 %v7943
    %9510 = vmatprep.subr.bf16.mxu0 %v7952
    %9511 = vmatpush1.bf16.msra.mxu0 %v7951
    %9512 = vmatprep.subr.bf16.mxu0 %v7960
    %9513 = vmatpush1.bf16.msra.mxu0 %v7959
    %9514 = vmatprep.subr.bf16.mxu0 %v7968
    %9515 = vmatpush1.bf16.msra.mxu0 %v7967
    %9516 = vmatprep.subr.bf16.mxu0 %v7976
    %9517 = vmatpush1.bf16.msra.mxu0 %v7975
    %9518 = vmatprep.subr.bf16.mxu0 %v7984
    %9519 = vmatpush1.bf16.msra.mxu0 %v7983
    %9520 = vmatprep.subr.bf16.mxu0 %v7992
    %9521 = vmatpush1.bf16.msra.mxu0 %v7991
    %9522 = vmatprep.subr.bf16.mxu0 %v8000
    %9523 = vmatpush1.bf16.msra.mxu0 %v7999
    %9524 = vmatprep.subr.bf16.mxu0 %v8008
    %9525 = vmatpush1.bf16.msra.mxu0 %v8007
    %9526 = vmatprep.subr.bf16.mxu0 %v8016
    %9527 = vmatpush1.bf16.msra.mxu0 %v8015
    %9528 = vmatprep.subr.bf16.mxu0 %v8024
    %9529 = vmatpush1.bf16.msra.mxu0 %v8023
    %9530 = vmatprep.subr.bf16.mxu0 %v8032
    %9531 = vmatpush1.bf16.msra.mxu0 %v8031
    %9532 = vmatprep.subr.bf16.mxu0 %v8040
    %9533 = vmatpush1.bf16.msra.mxu0 %v8039
    %9534 = vmatprep.mubr.bf16.mxu0 %v8308
    %9535 = vmatmul.mubr.bf16.gmra.mrb[0].mxu0 %v8307
    %v9536 = vpop.f32.mrb[0].mxu0
    %v9537 = vadd.f32 %v9496, %v9536
    %v9538 = vpop.f32.mrb[0].mxu0
    %v9539 = vadd.f32 %v9498, %v9538
    %v9540 = vpop.f32.mrb[0].mxu0
    %v9541 = vpop.f32.mrb[0].mxu0
    %9542 = vdwg.mxu0
    %9543 = vmatprep.subr.bf16.mxu0 %v8048
    %9544 = vmatpush1.bf16.msra.mxu0 %v8047
    %9545 = vmatprep.subr.bf16.mxu0 %v8056
    %9546 = vmatpush1.bf16.msra.mxu0 %v8055
    %9547 = vmatprep.subr.bf16.mxu0 %v8064
    %9548 = vmatpush1.bf16.msra.mxu0 %v8063
    %9549 = vmatprep.subr.bf16.mxu0 %v8072
    %9550 = vmatpush1.bf16.msra.mxu0 %v8071
    %9551 = vmatprep.subr.bf16.mxu0 %v8080
    %9552 = vmatpush1.bf16.msra.mxu0 %v8079
    %9553 = vmatprep.subr.bf16.mxu0 %v8088
    %9554 = vmatpush1.bf16.msra.mxu0 %v8087
    %9555 = vmatprep.subr.bf16.mxu0 %v8096
    %9556 = vmatpush1.bf16.msra.mxu0 %v8095
    %9557 = vmatprep.subr.bf16.mxu0 %v8104
    %9558 = vmatpush1.bf16.msra.mxu0 %v8103
    %9559 = vmatprep.subr.bf16.mxu0 %v8112
    %9560 = vmatpush1.bf16.msra.mxu0 %v8111
    %9561 = vmatprep.subr.bf16.mxu0 %v8120
    %9562 = vmatpush1.bf16.msra.mxu0 %v8119
    %9563 = vmatprep.subr.bf16.mxu0 %v8128
    %9564 = vmatpush1.bf16.msra.mxu0 %v8127
    %9565 = vmatprep.subr.bf16.mxu0 %v8136
    %9566 = vmatpush1.bf16.msra.mxu0 %v8135
    %9567 = vmatprep.subr.bf16.mxu0 %v8144
    %9568 = vmatpush1.bf16.msra.mxu0 %v8143
    %9569 = vmatprep.subr.bf16.mxu0 %v8152
    %9570 = vmatpush1.bf16.msra.mxu0 %v8151
    %9571 = vmatprep.subr.bf16.mxu0 %v8160
    %9572 = vmatpush1.bf16.msra.mxu0 %v8159
    %9573 = vmatprep.subr.bf16.mxu0 %v8168
    %9574 = vmatpush1.bf16.msra.mxu0 %v8167
    %9575 = vmatprep.mubr.bf16.mxu0 %v8310
    %9576 = vmatmul.mubr.bf16.gmra.mrb[0].mxu0 %v8309
    %v9577 = vpop.f32.mrb[0].mxu0
    %v9578 = vadd.f32 %v9537, %v9577
    %v9579 = vpop.f32.mrb[0].mxu0
    %v9580 = vadd.f32 %v9539, %v9579
    %v9581 = vpop.f32.mrb[0].mxu0
    %v9582 = vpop.f32.mrb[0].mxu0
    %9583 = vdwg.mxu0
    %9584 = vmatprep.subr.bf16.mxu0 %v8176
    %9585 = vmatpush1.bf16.msra.mxu0 %v8175
    %9586 = vmatprep.subr.bf16.mxu0 %v8184
    %9587 = vmatpush1.bf16.msra.mxu0 %v8183
    %9588 = vmatprep.subr.bf16.mxu0 %v8192
    %9589 = vmatpush1.bf16.msra.mxu0 %v8191
    %9590 = vmatprep.subr.bf16.mxu0 %v8200
    %9591 = vmatpush1.bf16.msra.mxu0 %v8199
    %9592 = vmatprep.subr.bf16.mxu0 %v8208
    %9593 = vmatpush1.bf16.msra.mxu0 %v8207
    %9594 = vmatprep.subr.bf16.mxu0 %v8216
    %9595 = vmatpush1.bf16.msra.mxu0 %v8215
    %9596 = vmatprep.subr.bf16.mxu0 %v8224
    %9597 = vmatpush1.bf16.msra.mxu0 %v8223
    %9598 = vmatprep.subr.bf16.mxu0 %v8232
    %9599 = vmatpush1.bf16.msra.mxu0 %v8231
    %9600 = vmatprep.subr.bf16.mxu0 %v8240
    %9601 = vmatpush1.bf16.msra.mxu0 %v8239
    %9602 = vmatprep.subr.bf16.mxu0 %v8248
    %9603 = vmatpush1.bf16.msra.mxu0 %v8247
    %9604 = vmatprep.subr.bf16.mxu0 %v8256
    %9605 = vmatpush1.bf16.msra.mxu0 %v8255
    %9606 = vmatprep.subr.bf16.mxu0 %v8264
    %9607 = vmatpush1.bf16.msra.mxu0 %v8263
    %9608 = vmatprep.subr.bf16.mxu0 %v8272
    %9609 = vmatpush1.bf16.msra.mxu0 %v8271
    %9610 = vmatprep.subr.bf16.mxu0 %v8280
    %9611 = vmatpush1.bf16.msra.mxu0 %v8279
    %9612 = vmatprep.subr.bf16.mxu0 %v8288
    %9613 = vmatpush1.bf16.msra.mxu0 %v8287
    %9614 = vmatprep.subr.bf16.mxu0 %v8296
    %9615 = vmatpush1.bf16.msra.mxu0 %v8295
    %9616 = vmatprep.mubr.bf16.mxu0 %v8312
    %9617 = vmatmul.mubr.bf16.gmra.mrb[0].mxu0 %v8311
    %v9618 = vpop.f32.mrb[0].mxu0
    %v9619 = vadd.f32 %v9578, %v9618
    %v9620 = vpop.f32.mrb[0].mxu0
    %v9621 = vadd.f32 %v9580, %v9620
    %v9622 = vpop.f32.mrb[0].mxu0
    %v9623 = vpop.f32.mrb[0].mxu0
    %9624 = vdwg.mxu0
    %v9625 = vld [vmem:[#allocation5 + $0x28] sm:$0xff]
    %v9627 = vlaneseq
    %v9628 = vshrl.u32 %v9627, 7
    %v9629 = vsub.s32 0, %v9628
    %v9630 = vrot.slane %v9625, %v9629
    %v9631 = vlaneseq
    %v9632 = vshrl.u32 %v9631, 7
    %v9633 = vsub.s32 1, %v9632
    %v9634 = vrot.slane %v9625, %v9633
    %v9635 = vlaneseq
    %v9636 = vshrl.u32 %v9635, 7
    %v9637 = vsub.s32 2, %v9636
    %v9638 = vrot.slane %v9625, %v9637
    %v9639 = vlaneseq
    %v9640 = vshrl.u32 %v9639, 7
    %v9641 = vsub.s32 3, %v9640
    %v9642 = vrot.slane %v9625, %v9641
    %v9643 = vlaneseq
    %v9644 = vshrl.u32 %v9643, 7
    %v9645 = vsub.s32 4, %v9644
    %v9646 = vrot.slane %v9625, %v9645
    %v9647 = vlaneseq
    %v9648 = vshrl.u32 %v9647, 7
    %v9649 = vsub.s32 5, %v9648
    %v9650 = vrot.slane %v9625, %v9649
    %v9651 = vlaneseq
    %v9652 = vshrl.u32 %v9651, 7
    %v9653 = vsub.s32 6, %v9652
    %v9654 = vrot.slane %v9625, %v9653
    %v9655 = vlaneseq
    %v9656 = vshrl.u32 %v9655, 7
    %v9657 = vsub.s32 7, %v9656
    %v9658 = vrot.slane %v9625, %v9657
    %v9667 = vmul.f32 %v8635, %v9630
    %v9668 = vmul.f32 %v8637, %v9634
    %v9669 = vmul.f32 %v8963, %v9638
    %v9670 = vmul.f32 %v8965, %v9642
    %v9671 = vmul.f32 %v9291, %v9646
    %v9672 = vmul.f32 %v9293, %v9650
    %v9673 = vmul.f32 %v9619, %v9654
    %v9674 = vmul.f32 %v9621, %v9658
    %v9675 = vld [vmem:[#allocation5 + $0x20] sm:$0xff]
    %v9677 = vlaneseq
    %v9678 = vshrl.u32 %v9677, 7
    %v9679 = vsub.s32 0, %v9678
    %v9680 = vrot.slane %v9675, %v9679
    %v9681 = vlaneseq
    %v9682 = vshrl.u32 %v9681, 7
    %v9683 = vsub.s32 1, %v9682
    %v9684 = vrot.slane %v9675, %v9683
    %v9685 = vlaneseq
    %v9686 = vshrl.u32 %v9685, 7
    %v9687 = vsub.s32 2, %v9686
    %v9688 = vrot.slane %v9675, %v9687
    %v9689 = vlaneseq
    %v9690 = vshrl.u32 %v9689, 7
    %v9691 = vsub.s32 3, %v9690
    %v9692 = vrot.slane %v9675, %v9691
    %v9693 = vlaneseq
    %v9694 = vshrl.u32 %v9693, 7
    %v9695 = vsub.s32 4, %v9694
    %v9696 = vrot.slane %v9675, %v9695
    %v9697 = vlaneseq
    %v9698 = vshrl.u32 %v9697, 7
    %v9699 = vsub.s32 5, %v9698
    %v9700 = vrot.slane %v9675, %v9699
    %v9701 = vlaneseq
    %v9702 = vshrl.u32 %v9701, 7
    %v9703 = vsub.s32 6, %v9702
    %v9704 = vrot.slane %v9675, %v9703
    %v9705 = vlaneseq
    %v9706 = vshrl.u32 %v9705, 7
    %v9707 = vsub.s32 7, %v9706
    %v9708 = vrot.slane %v9675, %v9707
    %v9717 = vadd.f32 %v9667, %v9680
    %v9718 = vadd.f32 %v9668, %v9684
    %v9719 = vadd.f32 %v9669, %v9688
    %v9720 = vadd.f32 %v9670, %v9692
    %v9721 = vadd.f32 %v9671, %v9696
    %v9722 = vadd.f32 %v9672, %v9700
    %v9723 = vadd.f32 %v9673, %v9704
    %v9724 = vadd.f32 %v9674, %v9708
    %v9725 = vrot.slane %v9717, 4
    %v9726 = vadd.f32 %v9717, %v9725
    %v9727 = vrot.slane %v9726, 2
    %v9728 = vadd.f32 %v9726, %v9727
    %v9729 = vrot.slane %v9728, 1
    %v9730 = vadd.f32 %v9728, %v9729
    %v9731 = vrot.slane %v9718, 4
    %v9732 = vadd.f32 %v9718, %v9731
    %v9733 = vrot.slane %v9732, 2
    %v9734 = vadd.f32 %v9732, %v9733
    %v9735 = vrot.slane %v9734, 1
    %v9736 = vadd.f32 %v9734, %v9735
    %v9737 = vrot.slane %v9719, 4
    %v9738 = vadd.f32 %v9719, %v9737
    %v9739 = vrot.slane %v9738, 2
    %v9740 = vadd.f32 %v9738, %v9739
    %v9741 = vrot.slane %v9740, 1
    %v9742 = vadd.f32 %v9740, %v9741
    %v9743 = vrot.slane %v9720, 4
    %v9744 = vadd.f32 %v9720, %v9743
    %v9745 = vrot.slane %v9744, 2
    %v9746 = vadd.f32 %v9744, %v9745
    %v9747 = vrot.slane %v9746, 1
    %v9748 = vadd.f32 %v9746, %v9747
    %v9749 = vrot.slane %v9721, 4
    %v9750 = vadd.f32 %v9721, %v9749
    %v9751 = vrot.slane %v9750, 2
    %v9752 = vadd.f32 %v9750, %v9751
    %v9753 = vrot.slane %v9752, 1
    %v9754 = vadd.f32 %v9752, %v9753
    %v9755 = vrot.slane %v9722, 4
    %v9756 = vadd.f32 %v9722, %v9755
    %v9757 = vrot.slane %v9756, 2
    %v9758 = vadd.f32 %v9756, %v9757
    %v9759 = vrot.slane %v9758, 1
    %v9760 = vadd.f32 %v9758, %v9759
    %v9761 = vrot.slane %v9723, 4
    %v9762 = vadd.f32 %v9723, %v9761
    %v9763 = vrot.slane %v9762, 2
    %v9764 = vadd.f32 %v9762, %v9763
    %v9765 = vrot.slane %v9764, 1
    %v9766 = vadd.f32 %v9764, %v9765
    %v9767 = vrot.slane %v9724, 4
    %v9768 = vadd.f32 %v9724, %v9767
    %v9769 = vrot.slane %v9768, 2
    %v9770 = vadd.f32 %v9768, %v9769
    %v9771 = vrot.slane %v9770, 1
    %v9772 = vadd.f32 %v9770, %v9771
    %v9773 = vrcp.pop 8.0
    %v9774 = vmul.f32 %v9730, %v9773
    %v9775 = vmul.f32 %v9736, %v9773
    %v9776 = vmul.f32 %v9742, %v9773
    %v9777 = vmul.f32 %v9748, %v9773
    %v9778 = vmul.f32 %v9754, %v9773
    %v9779 = vmul.f32 %v9760, %v9773
    %v9780 = vmul.f32 %v9766, %v9773
    %v9781 = vmul.f32 %v9772, %v9773
    %v9782 = vsub.f32 %v9717, %v9774
    %v9783 = vsub.f32 %v9718, %v9775
    %v9784 = vsub.f32 %v9719, %v9776
    %v9785 = vsub.f32 %v9720, %v9777
    %v9786 = vsub.f32 %v9721, %v9778
    %v9787 = vsub.f32 %v9722, %v9779
    %v9788 = vsub.f32 %v9723, %v9780
    %v9789 = vsub.f32 %v9724, %v9781
    %v9790 = vmul.f32 %v9782, %v9782
    %v9791 = vmul.f32 %v9783, %v9783
    %v9792 = vmul.f32 %v9784, %v9784
    %v9793 = vmul.f32 %v9785, %v9785
    %v9794 = vmul.f32 %v9786, %v9786
    %v9795 = vmul.f32 %v9787, %v9787
    %v9796 = vmul.f32 %v9788, %v9788
    %v9797 = vmul.f32 %v9789, %v9789
    %v9798 = vrot.slane %v9790, 4
    %v9799 = vadd.f32 %v9790, %v9798
    %v9800 = vrot.slane %v9799, 2
    %v9801 = vadd.f32 %v9799, %v9800
    %v9802 = vrot.slane %v9801, 1
    %v9803 = vadd.f32 %v9801, %v9802
    %v9804 = vrot.slane %v9791, 4
    %v9805 = vadd.f32 %v9791, %v9804
    %v9806 = vrot.slane %v9805, 2
    %v9807 = vadd.f32 %v9805, %v9806
    %v9808 = vrot.slane %v9807, 1
    %v9809 = vadd.f32 %v9807, %v9808
    %v9810 = vrot.slane %v9792, 4
    %v9811 = vadd.f32 %v9792, %v9810
    %v9812 = vrot.slane %v9811, 2
    %v9813 = vadd.f32 %v9811, %v9812
    %v9814 = vrot.slane %v9813, 1
    %v9815 = vadd.f32 %v9813, %v9814
    %v9816 = vrot.slane %v9793, 4
    %v9817 = vadd.f32 %v9793, %v9816
    %v9818 = vrot.slane %v9817, 2
    %v9819 = vadd.f32 %v9817, %v9818
    %v9820 = vrot.slane %v9819, 1
    %v9821 = vadd.f32 %v9819, %v9820
    %v9822 = vrot.slane %v9794, 4
    %v9823 = vadd.f32 %v9794, %v9822
    %v9824 = vrot.slane %v9823, 2
    %v9825 = vadd.f32 %v9823, %v9824
    %v9826 = vrot.slane %v9825, 1
    %v9827 = vadd.f32 %v9825, %v9826
    %v9828 = vrot.slane %v9795, 4
    %v9829 = vadd.f32 %v9795, %v9828
    %v9830 = vrot.slane %v9829, 2
    %v9831 = vadd.f32 %v9829, %v9830
    %v9832 = vrot.slane %v9831, 1
    %v9833 = vadd.f32 %v9831, %v9832
    %v9834 = vrot.slane %v9796, 4
    %v9835 = vadd.f32 %v9796, %v9834
    %v9836 = vrot.slane %v9835, 2
    %v9837 = vadd.f32 %v9835, %v9836
    %v9838 = vrot.slane %v9837, 1
    %v9839 = vadd.f32 %v9837, %v9838
    %v9840 = vrot.slane %v9797, 4
    %v9841 = vadd.f32 %v9797, %v9840
    %v9842 = vrot.slane %v9841, 2
    %v9843 = vadd.f32 %v9841, %v9842
    %v9844 = vrot.slane %v9843, 1
    %v9845 = vadd.f32 %v9843, %v9844
    %v9846 = vmul.f32 %v9803, %v9773
    %v9847 = vmul.f32 %v9809, %v9773
    %v9848 = vmul.f32 %v9815, %v9773
    %v9849 = vmul.f32 %v9821, %v9773
    %v9850 = vmul.f32 %v9827, %v9773
    %v9851 = vmul.f32 %v9833, %v9773
    %v9852 = vmul.f32 %v9839, %v9773
    %v9853 = vmul.f32 %v9845, %v9773
    %v9854 = vadd.f32 %v9846, 1e-05
    %v9855 = vadd.f32 %v9847, 1e-05
    %v9856 = vadd.f32 %v9848, 1e-05
    %v9857 = vadd.f32 %v9849, 1e-05
    %v9858 = vadd.f32 %v9850, 1e-05
    %v9859 = vadd.f32 %v9851, 1e-05
    %v9860 = vadd.f32 %v9852, 1e-05
    %v9861 = vadd.f32 %v9853, 1e-05
    %v9862 = vrsqrt.pop %v9854
    %v9863 = vrsqrt.pop %v9855
    %v9864 = vrsqrt.pop %v9856
    %v9865 = vrsqrt.pop %v9857
    %v9866 = vrsqrt.pop %v9858
    %v9867 = vrsqrt.pop %v9859
    %v9868 = vrsqrt.pop %v9860
    %v9869 = vrsqrt.pop %v9861
    %v9870 = vmul.f32 %v9782, %v9862
    %v9871 = vmul.f32 %v9783, %v9863
    %v9872 = vmul.f32 %v9784, %v9864
    %v9873 = vmul.f32 %v9785, %v9865
    %v9874 = vmul.f32 %v9786, %v9866
    %v9875 = vmul.f32 %v9787, %v9867
    %v9876 = vmul.f32 %v9788, %v9868
    %v9877 = vmul.f32 %v9789, %v9869
    %v9878 = vld [vmem:[#allocation5 + $0x30] sm:$0xff]
    %v9880 = vlaneseq
    %v9881 = vshrl.u32 %v9880, 7
    %v9882 = vsub.s32 0, %v9881
    %v9883 = vrot.slane %v9878, %v9882
    %v9884 = vlaneseq
    %v9885 = vshrl.u32 %v9884, 7
    %v9886 = vsub.s32 1, %v9885
    %v9887 = vrot.slane %v9878, %v9886
    %v9888 = vlaneseq
    %v9889 = vshrl.u32 %v9888, 7
    %v9890 = vsub.s32 2, %v9889
    %v9891 = vrot.slane %v9878, %v9890
    %v9892 = vlaneseq
    %v9893 = vshrl.u32 %v9892, 7
    %v9894 = vsub.s32 3, %v9893
    %v9895 = vrot.slane %v9878, %v9894
    %v9896 = vlaneseq
    %v9897 = vshrl.u32 %v9896, 7
    %v9898 = vsub.s32 4, %v9897
    %v9899 = vrot.slane %v9878, %v9898
    %v9900 = vlaneseq
    %v9901 = vshrl.u32 %v9900, 7
    %v9902 = vsub.s32 5, %v9901
    %v9903 = vrot.slane %v9878, %v9902
    %v9904 = vlaneseq
    %v9905 = vshrl.u32 %v9904, 7
    %v9906 = vsub.s32 6, %v9905
    %v9907 = vrot.slane %v9878, %v9906
    %v9908 = vlaneseq
    %v9909 = vshrl.u32 %v9908, 7
    %v9910 = vsub.s32 7, %v9909
    %v9911 = vrot.slane %v9878, %v9910
    %v9920 = vmul.f32 %v9870, %v9883
    %v9921 = vmul.f32 %v9871, %v9887
    %v9922 = vmul.f32 %v9872, %v9891
    %v9923 = vmul.f32 %v9873, %v9895
    %v9924 = vmul.f32 %v9874, %v9899
    %v9925 = vmul.f32 %v9875, %v9903
    %v9926 = vmul.f32 %v9876, %v9907
    %v9927 = vmul.f32 %v9877, %v9911
    %v9928 = vld [vmem:[#allocation5 + $0x38] sm:$0xff]
    %v9930 = vlaneseq
    %v9931 = vshrl.u32 %v9930, 7
    %v9932 = vsub.s32 0, %v9931
    %v9933 = vrot.slane %v9928, %v9932
    %v9934 = vlaneseq
    %v9935 = vshrl.u32 %v9934, 7
    %v9936 = vsub.s32 1, %v9935
    %v9937 = vrot.slane %v9928, %v9936
    %v9938 = vlaneseq
    %v9939 = vshrl.u32 %v9938, 7
    %v9940 = vsub.s32 2, %v9939
    %v9941 = vrot.slane %v9928, %v9940
    %v9942 = vlaneseq
    %v9943 = vshrl.u32 %v9942, 7
    %v9944 = vsub.s32 3, %v9943
    %v9945 = vrot.slane %v9928, %v9944
    %v9946 = vlaneseq
    %v9947 = vshrl.u32 %v9946, 7
    %v9948 = vsub.s32 4, %v9947
    %v9949 = vrot.slane %v9928, %v9948
    %v9950 = vlaneseq
    %v9951 = vshrl.u32 %v9950, 7
    %v9952 = vsub.s32 5, %v9951
    %v9953 = vrot.slane %v9928, %v9952
    %v9954 = vlaneseq
    %v9955 = vshrl.u32 %v9954, 7
    %v9956 = vsub.s32 6, %v9955
    %v9957 = vrot.slane %v9928, %v9956
    %v9958 = vlaneseq
    %v9959 = vshrl.u32 %v9958, 7
    %v9960 = vsub.s32 7, %v9959
    %v9961 = vrot.slane %v9928, %v9960
    %v9970 = vadd.f32 %v9920, %v9933
    %v9971 = vadd.f32 %v9921, %v9937
    %v9972 = vadd.f32 %v9922, %v9941
    %v9973 = vadd.f32 %v9923, %v9945
    %v9974 = vadd.f32 %v9924, %v9949
    %v9975 = vadd.f32 %v9925, %v9953
    %v9976 = vadd.f32 %v9926, %v9957
    %v9977 = vadd.f32 %v9927, %v9961
    %v9978 = vmax.f32 %v9970, 0.0
    %v9979 = vmax.f32 %v9971, 0.0
    %v9980 = vmax.f32 %v9972, 0.0
    %v9981 = vmax.f32 %v9973, 0.0
    %v9982 = vmax.f32 %v9974, 0.0
    %v9983 = vmax.f32 %v9975, 0.0
    %v9984 = vmax.f32 %v9976, 0.0
    %v9985 = vmax.f32 %v9977, 0.0
    %v9986 = vld [vmem:[#allocation10] sm:$0xff]
    %v9987 = vld [vmem:[#allocation10 + $0x8] sm:$0xff]
    %v9988 = vld [vmem:[#allocation10 + $0x10] sm:$0xff]
    %v9989 = vld [vmem:[#allocation10 + $0x18] sm:$0xff]
    %v9990 = vld [vmem:[#allocation10 + $0x20] sm:$0xff]
    %v9991 = vld [vmem:[#allocation10 + $0x28] sm:$0xff]
    %v9992 = vld [vmem:[#allocation10 + $0x30] sm:$0xff]
    %v9993 = vld [vmem:[#allocation10 + $0x38] sm:$0xff]
    %v9994 = vld [vmem:[#allocation10 + $0x40] sm:$0xff]
    %v9995 = vld [vmem:[#allocation10 + $0x48] sm:$0xff]
    %v9996 = vld [vmem:[#allocation10 + $0x50] sm:$0xff]
    %v9997 = vld [vmem:[#allocation10 + $0x58] sm:$0xff]
    %v9998 = vld [vmem:[#allocation10 + $0x60] sm:$0xff]
    %v9999 = vld [vmem:[#allocation10 + $0x68] sm:$0xff]
    %v10000 = vld [vmem:[#allocation10 + $0x70] sm:$0xff]
    %v10001 = vld [vmem:[#allocation10 + $0x78] sm:$0xff]
    %v10002 = vld [vmem:[#allocation10 + $0x80] sm:$0xff]
    %v10003 = vld [vmem:[#allocation10 + $0x88] sm:$0xff]
    %v10004 = vld [vmem:[#allocation10 + $0x90] sm:$0xff]
    %v10005 = vld [vmem:[#allocation10 + $0x98] sm:$0xff]
    %v10006 = vld [vmem:[#allocation10 + $0xa0] sm:$0xff]
    %v10007 = vld [vmem:[#allocation10 + $0xa8] sm:$0xff]
    %v10008 = vld [vmem:[#allocation10 + $0xb0] sm:$0xff]
    %v10009 = vld [vmem:[#allocation10 + $0xb8] sm:$0xff]
    %v10010 = vld [vmem:[#allocation10 + $0xc0] sm:$0xff]
    %v10011 = vld [vmem:[#allocation10 + $0xc8] sm:$0xff]
    %v10012 = vld [vmem:[#allocation10 + $0xd0] sm:$0xff]
    %v10013 = vld [vmem:[#allocation10 + $0xd8] sm:$0xff]
    %v10014 = vld [vmem:[#allocation10 + $0xe0] sm:$0xff]
    %v10015 = vld [vmem:[#allocation10 + $0xe8] sm:$0xff]
    %v10016 = vld [vmem:[#allocation10 + $0xf0] sm:$0xff]
    %v10017 = vld [vmem:[#allocation10 + $0xf8] sm:$0xff]
    %v10018 = vld [vmem:[#allocation10 + $0x100] sm:$0xff]
    %v10019 = vld [vmem:[#allocation10 + $0x108] sm:$0xff]
    %v10020 = vld [vmem:[#allocation10 + $0x110] sm:$0xff]
    %v10021 = vld [vmem:[#allocation10 + $0x118] sm:$0xff]
    %v10022 = vld [vmem:[#allocation10 + $0x120] sm:$0xff]
    %v10023 = vld [vmem:[#allocation10 + $0x128] sm:$0xff]
    %v10024 = vld [vmem:[#allocation10 + $0x130] sm:$0xff]
    %v10025 = vld [vmem:[#allocation10 + $0x138] sm:$0xff]
    %v10026 = vld [vmem:[#allocation10 + $0x140] sm:$0xff]
    %v10027 = vld [vmem:[#allocation10 + $0x148] sm:$0xff]
    %v10028 = vld [vmem:[#allocation10 + $0x150] sm:$0xff]
    %v10029 = vld [vmem:[#allocation10 + $0x158] sm:$0xff]
    %v10030 = vld [vmem:[#allocation10 + $0x160] sm:$0xff]
    %v10031 = vld [vmem:[#allocation10 + $0x168] sm:$0xff]
    %v10032 = vld [vmem:[#allocation10 + $0x170] sm:$0xff]
    %v10033 = vld [vmem:[#allocation10 + $0x178] sm:$0xff]
    %v10034 = vld [vmem:[#allocation10 + $0x180] sm:$0xff]
    %v10035 = vld [vmem:[#allocation10 + $0x188] sm:$0xff]
    %v10036 = vld [vmem:[#allocation10 + $0x190] sm:$0xff]
    %v10037 = vld [vmem:[#allocation10 + $0x198] sm:$0xff]
    %v10038 = vld [vmem:[#allocation10 + $0x1a0] sm:$0xff]
    %v10039 = vld [vmem:[#allocation10 + $0x1a8] sm:$0xff]
    %v10040 = vld [vmem:[#allocation10 + $0x1b0] sm:$0xff]
    %v10041 = vld [vmem:[#allocation10 + $0x1b8] sm:$0xff]
    %v10042 = vld [vmem:[#allocation10 + $0x1c0] sm:$0xff]
    %v10043 = vld [vmem:[#allocation10 + $0x1c8] sm:$0xff]
    %v10044 = vld [vmem:[#allocation10 + $0x1d0] sm:$0xff]
    %v10045 = vld [vmem:[#allocation10 + $0x1d8] sm:$0xff]
    %v10046 = vld [vmem:[#allocation10 + $0x1e0] sm:$0xff]
    %v10047 = vld [vmem:[#allocation10 + $0x1e8] sm:$0xff]
    %v10048 = vld [vmem:[#allocation10 + $0x1f0] sm:$0xff]
    %v10049 = vld [vmem:[#allocation10 + $0x1f8] sm:$0xff]
    %v10050 = vld [vmem:[#allocation10 + $0x200] sm:$0xff]
    %v10051 = vld [vmem:[#allocation10 + $0x208] sm:$0xff]
    %v10052 = vld [vmem:[#allocation10 + $0x210] sm:$0xff]
    %v10053 = vld [vmem:[#allocation10 + $0x218] sm:$0xff]
    %v10054 = vld [vmem:[#allocation10 + $0x220] sm:$0xff]
    %v10055 = vld [vmem:[#allocation10 + $0x228] sm:$0xff]
    %v10056 = vld [vmem:[#allocation10 + $0x230] sm:$0xff]
    %v10057 = vld [vmem:[#allocation10 + $0x238] sm:$0xff]
    %v10058 = vld [vmem:[#allocation10 + $0x240] sm:$0xff]
    %v10059 = vld [vmem:[#allocation10 + $0x248] sm:$0xff]
    %v10060 = vld [vmem:[#allocation10 + $0x250] sm:$0xff]
    %v10061 = vld [vmem:[#allocation10 + $0x258] sm:$0xff]
    %v10062 = vld [vmem:[#allocation10 + $0x260] sm:$0xff]
    %v10063 = vld [vmem:[#allocation10 + $0x268] sm:$0xff]
    %v10064 = vld [vmem:[#allocation10 + $0x270] sm:$0xff]
    %v10065 = vld [vmem:[#allocation10 + $0x278] sm:$0xff]
    %v10066 = vld [vmem:[#allocation10 + $0x280] sm:$0xff]
    %v10067 = vld [vmem:[#allocation10 + $0x288] sm:$0xff]
    %v10068 = vld [vmem:[#allocation10 + $0x290] sm:$0xff]
    %v10069 = vld [vmem:[#allocation10 + $0x298] sm:$0xff]
    %v10070 = vld [vmem:[#allocation10 + $0x2a0] sm:$0xff]
    %v10071 = vld [vmem:[#allocation10 + $0x2a8] sm:$0xff]
    %v10072 = vld [vmem:[#allocation10 + $0x2b0] sm:$0xff]
    %v10073 = vld [vmem:[#allocation10 + $0x2b8] sm:$0xff]
    %v10074 = vld [vmem:[#allocation10 + $0x2c0] sm:$0xff]
    %v10075 = vld [vmem:[#allocation10 + $0x2c8] sm:$0xff]
    %v10076 = vld [vmem:[#allocation10 + $0x2d0] sm:$0xff]
    %v10077 = vld [vmem:[#allocation10 + $0x2d8] sm:$0xff]
    %v10078 = vld [vmem:[#allocation10 + $0x2e0] sm:$0xff]
    %v10079 = vld [vmem:[#allocation10 + $0x2e8] sm:$0xff]
    %v10080 = vld [vmem:[#allocation10 + $0x2f0] sm:$0xff]
    %v10081 = vld [vmem:[#allocation10 + $0x2f8] sm:$0xff]
    %v10082 = vld [vmem:[#allocation10 + $0x300] sm:$0xff]
    %v10083 = vld [vmem:[#allocation10 + $0x308] sm:$0xff]
    %v10084 = vld [vmem:[#allocation10 + $0x310] sm:$0xff]
    %v10085 = vld [vmem:[#allocation10 + $0x318] sm:$0xff]
    %v10086 = vld [vmem:[#allocation10 + $0x320] sm:$0xff]
    %v10087 = vld [vmem:[#allocation10 + $0x328] sm:$0xff]
    %v10088 = vld [vmem:[#allocation10 + $0x330] sm:$0xff]
    %v10089 = vld [vmem:[#allocation10 + $0x338] sm:$0xff]
    %v10090 = vld [vmem:[#allocation10 + $0x340] sm:$0xff]
    %v10091 = vld [vmem:[#allocation10 + $0x348] sm:$0xff]
    %v10092 = vld [vmem:[#allocation10 + $0x350] sm:$0xff]
    %v10093 = vld [vmem:[#allocation10 + $0x358] sm:$0xff]
    %v10094 = vld [vmem:[#allocation10 + $0x360] sm:$0xff]
    %v10095 = vld [vmem:[#allocation10 + $0x368] sm:$0xff]
    %v10096 = vld [vmem:[#allocation10 + $0x370] sm:$0xff]
    %v10097 = vld [vmem:[#allocation10 + $0x378] sm:$0xff]
    %v10098 = vld [vmem:[#allocation10 + $0x380] sm:$0xff]
    %v10099 = vld [vmem:[#allocation10 + $0x388] sm:$0xff]
    %v10100 = vld [vmem:[#allocation10 + $0x390] sm:$0xff]
    %v10101 = vld [vmem:[#allocation10 + $0x398] sm:$0xff]
    %v10102 = vld [vmem:[#allocation10 + $0x3a0] sm:$0xff]
    %v10103 = vld [vmem:[#allocation10 + $0x3a8] sm:$0xff]
    %v10104 = vld [vmem:[#allocation10 + $0x3b0] sm:$0xff]
    %v10105 = vld [vmem:[#allocation10 + $0x3b8] sm:$0xff]
    %v10106 = vld [vmem:[#allocation10 + $0x3c0] sm:$0xff]
    %v10107 = vld [vmem:[#allocation10 + $0x3c8] sm:$0xff]
    %v10108 = vld [vmem:[#allocation10 + $0x3d0] sm:$0xff]
    %v10109 = vld [vmem:[#allocation10 + $0x3d8] sm:$0xff]
    %v10110 = vld [vmem:[#allocation10 + $0x3e0] sm:$0xff]
    %v10111 = vld [vmem:[#allocation10 + $0x3e8] sm:$0xff]
    %v10112 = vld [vmem:[#allocation10 + $0x3f0] sm:$0xff]
    %v10113 = vld [vmem:[#allocation10 + $0x3f8] sm:$0xff]
    %v10114 = vunpack.c.l.s8.bf16 %v9986
    %v10115 = vunpack.c.l.s8.bf16 %v9987
    %v10116 = vunpack.c.l.s8.bf16 %v9988
    %v10117 = vunpack.c.l.s8.bf16 %v9989
    %v10118 = vunpack.c.h.s8.bf16 %v9986
    %v10119 = vunpack.c.h.s8.bf16 %v9987
    %v10120 = vunpack.c.h.s8.bf16 %v9988
    %v10121 = vunpack.c.h.s8.bf16 %v9989
    %v10122 = vunpack.c.l.s8.bf16 %v9990
    %v10123 = vunpack.c.l.s8.bf16 %v9991
    %v10124 = vunpack.c.l.s8.bf16 %v9992
    %v10125 = vunpack.c.l.s8.bf16 %v9993
    %v10126 = vunpack.c.h.s8.bf16 %v9990
    %v10127 = vunpack.c.h.s8.bf16 %v9991
    %v10128 = vunpack.c.h.s8.bf16 %v9992
    %v10129 = vunpack.c.h.s8.bf16 %v9993
    %v10130 = vunpack.c.l.s8.bf16 %v9994
    %v10131 = vunpack.c.l.s8.bf16 %v9995
    %v10132 = vunpack.c.l.s8.bf16 %v9996
    %v10133 = vunpack.c.l.s8.bf16 %v9997
    %v10134 = vunpack.c.h.s8.bf16 %v9994
    %v10135 = vunpack.c.h.s8.bf16 %v9995
    %v10136 = vunpack.c.h.s8.bf16 %v9996
    %v10137 = vunpack.c.h.s8.bf16 %v9997
    %v10138 = vunpack.c.l.s8.bf16 %v9998
    %v10139 = vunpack.c.l.s8.bf16 %v9999
    %v10140 = vunpack.c.l.s8.bf16 %v10000
    %v10141 = vunpack.c.l.s8.bf16 %v10001
    %v10142 = vunpack.c.h.s8.bf16 %v9998
    %v10143 = vunpack.c.h.s8.bf16 %v9999
    %v10144 = vunpack.c.h.s8.bf16 %v10000
    %v10145 = vunpack.c.h.s8.bf16 %v10001
    %v10146 = vunpack.c.l.s8.bf16 %v10002
    %v10147 = vunpack.c.l.s8.bf16 %v10003
    %v10148 = vunpack.c.l.s8.bf16 %v10004
    %v10149 = vunpack.c.l.s8.bf16 %v10005
    %v10150 = vunpack.c.h.s8.bf16 %v10002
    %v10151 = vunpack.c.h.s8.bf16 %v10003
    %v10152 = vunpack.c.h.s8.bf16 %v10004
    %v10153 = vunpack.c.h.s8.bf16 %v10005
    %v10154 = vunpack.c.l.s8.bf16 %v10006
    %v10155 = vunpack.c.l.s8.bf16 %v10007
    %v10156 = vunpack.c.l.s8.bf16 %v10008
    %v10157 = vunpack.c.l.s8.bf16 %v10009
    %v10158 = vunpack.c.h.s8.bf16 %v10006
    %v10159 = vunpack.c.h.s8.bf16 %v10007
    %v10160 = vunpack.c.h.s8.bf16 %v10008
    %v10161 = vunpack.c.h.s8.bf16 %v10009
    %v10162 = vunpack.c.l.s8.bf16 %v10010
    %v10163 = vunpack.c.l.s8.bf16 %v10011
    %v10164 = vunpack.c.l.s8.bf16 %v10012
    %v10165 = vunpack.c.l.s8.bf16 %v10013
    %v10166 = vunpack.c.h.s8.bf16 %v10010
    %v10167 = vunpack.c.h.s8.bf16 %v10011
    %v10168 = vunpack.c.h.s8.bf16 %v10012
    %v10169 = vunpack.c.h.s8.bf16 %v10013
    %v10170 = vunpack.c.l.s8.bf16 %v10014
    %v10171 = vunpack.c.l.s8.bf16 %v10015
    %v10172 = vunpack.c.l.s8.bf16 %v10016
    %v10173 = vunpack.c.l.s8.bf16 %v10017
    %v10174 = vunpack.c.h.s8.bf16 %v10014
    %v10175 = vunpack.c.h.s8.bf16 %v10015
    %v10176 = vunpack.c.h.s8.bf16 %v10016
    %v10177 = vunpack.c.h.s8.bf16 %v10017
    %v10178 = vunpack.c.l.s8.bf16 %v10018
    %v10179 = vunpack.c.l.s8.bf16 %v10019
    %v10180 = vunpack.c.l.s8.bf16 %v10020
    %v10181 = vunpack.c.l.s8.bf16 %v10021
    %v10182 = vunpack.c.h.s8.bf16 %v10018
    %v10183 = vunpack.c.h.s8.bf16 %v10019
    %v10184 = vunpack.c.h.s8.bf16 %v10020
    %v10185 = vunpack.c.h.s8.bf16 %v10021
    %v10186 = vunpack.c.l.s8.bf16 %v10022
    %v10187 = vunpack.c.l.s8.bf16 %v10023
    %v10188 = vunpack.c.l.s8.bf16 %v10024
    %v10189 = vunpack.c.l.s8.bf16 %v10025
    %v10190 = vunpack.c.h.s8.bf16 %v10022
    %v10191 = vunpack.c.h.s8.bf16 %v10023
    %v10192 = vunpack.c.h.s8.bf16 %v10024
    %v10193 = vunpack.c.h.s8.bf16 %v10025
    %v10194 = vunpack.c.l.s8.bf16 %v10026
    %v10195 = vunpack.c.l.s8.bf16 %v10027
    %v10196 = vunpack.c.l.s8.bf16 %v10028
    %v10197 = vunpack.c.l.s8.bf16 %v10029
    %v10198 = vunpack.c.h.s8.bf16 %v10026
    %v10199 = vunpack.c.h.s8.bf16 %v10027
    %v10200 = vunpack.c.h.s8.bf16 %v10028
    %v10201 = vunpack.c.h.s8.bf16 %v10029
    %v10202 = vunpack.c.l.s8.bf16 %v10030
    %v10203 = vunpack.c.l.s8.bf16 %v10031
    %v10204 = vunpack.c.l.s8.bf16 %v10032
    %v10205 = vunpack.c.l.s8.bf16 %v10033
    %v10206 = vunpack.c.h.s8.bf16 %v10030
    %v10207 = vunpack.c.h.s8.bf16 %v10031
    %v10208 = vunpack.c.h.s8.bf16 %v10032
    %v10209 = vunpack.c.h.s8.bf16 %v10033
    %v10210 = vunpack.c.l.s8.bf16 %v10034
    %v10211 = vunpack.c.l.s8.bf16 %v10035
    %v10212 = vunpack.c.l.s8.bf16 %v10036
    %v10213 = vunpack.c.l.s8.bf16 %v10037
    %v10214 = vunpack.c.h.s8.bf16 %v10034
    %v10215 = vunpack.c.h.s8.bf16 %v10035
    %v10216 = vunpack.c.h.s8.bf16 %v10036
    %v10217 = vunpack.c.h.s8.bf16 %v10037
    %v10218 = vunpack.c.l.s8.bf16 %v10038
    %v10219 = vunpack.c.l.s8.bf16 %v10039
    %v10220 = vunpack.c.l.s8.bf16 %v10040
    %v10221 = vunpack.c.l.s8.bf16 %v10041
    %v10222 = vunpack.c.h.s8.bf16 %v10038
    %v10223 = vunpack.c.h.s8.bf16 %v10039
    %v10224 = vunpack.c.h.s8.bf16 %v10040
    %v10225 = vunpack.c.h.s8.bf16 %v10041
    %v10226 = vunpack.c.l.s8.bf16 %v10042
    %v10227 = vunpack.c.l.s8.bf16 %v10043
    %v10228 = vunpack.c.l.s8.bf16 %v10044
    %v10229 = vunpack.c.l.s8.bf16 %v10045
    %v10230 = vunpack.c.h.s8.bf16 %v10042
    %v10231 = vunpack.c.h.s8.bf16 %v10043
    %v10232 = vunpack.c.h.s8.bf16 %v10044
    %v10233 = vunpack.c.h.s8.bf16 %v10045
    %v10234 = vunpack.c.l.s8.bf16 %v10046
    %v10235 = vunpack.c.l.s8.bf16 %v10047
    %v10236 = vunpack.c.l.s8.bf16 %v10048
    %v10237 = vunpack.c.l.s8.bf16 %v10049
    %v10238 = vunpack.c.h.s8.bf16 %v10046
    %v10239 = vunpack.c.h.s8.bf16 %v10047
    %v10240 = vunpack.c.h.s8.bf16 %v10048
    %v10241 = vunpack.c.h.s8.bf16 %v10049
    %v10242 = vunpack.c.l.s8.bf16 %v10050
    %v10243 = vunpack.c.l.s8.bf16 %v10051
    %v10244 = vunpack.c.l.s8.bf16 %v10052
    %v10245 = vunpack.c.l.s8.bf16 %v10053
    %v10246 = vunpack.c.h.s8.bf16 %v10050
    %v10247 = vunpack.c.h.s8.bf16 %v10051
    %v10248 = vunpack.c.h.s8.bf16 %v10052
    %v10249 = vunpack.c.h.s8.bf16 %v10053
    %v10250 = vunpack.c.l.s8.bf16 %v10054
    %v10251 = vunpack.c.l.s8.bf16 %v10055
    %v10252 = vunpack.c.l.s8.bf16 %v10056
    %v10253 = vunpack.c.l.s8.bf16 %v10057
    %v10254 = vunpack.c.h.s8.bf16 %v10054
    %v10255 = vunpack.c.h.s8.bf16 %v10055
    %v10256 = vunpack.c.h.s8.bf16 %v10056
    %v10257 = vunpack.c.h.s8.bf16 %v10057
    %v10258 = vunpack.c.l.s8.bf16 %v10058
    %v10259 = vunpack.c.l.s8.bf16 %v10059
    %v10260 = vunpack.c.l.s8.bf16 %v10060
    %v10261 = vunpack.c.l.s8.bf16 %v10061
    %v10262 = vunpack.c.h.s8.bf16 %v10058
    %v10263 = vunpack.c.h.s8.bf16 %v10059
    %v10264 = vunpack.c.h.s8.bf16 %v10060
    %v10265 = vunpack.c.h.s8.bf16 %v10061
    %v10266 = vunpack.c.l.s8.bf16 %v10062
    %v10267 = vunpack.c.l.s8.bf16 %v10063
    %v10268 = vunpack.c.l.s8.bf16 %v10064
    %v10269 = vunpack.c.l.s8.bf16 %v10065
    %v10270 = vunpack.c.h.s8.bf16 %v10062
    %v10271 = vunpack.c.h.s8.bf16 %v10063
    %v10272 = vunpack.c.h.s8.bf16 %v10064
    %v10273 = vunpack.c.h.s8.bf16 %v10065
    %v10274 = vunpack.c.l.s8.bf16 %v10066
    %v10275 = vunpack.c.l.s8.bf16 %v10067
    %v10276 = vunpack.c.l.s8.bf16 %v10068
    %v10277 = vunpack.c.l.s8.bf16 %v10069
    %v10278 = vunpack.c.h.s8.bf16 %v10066
    %v10279 = vunpack.c.h.s8.bf16 %v10067
    %v10280 = vunpack.c.h.s8.bf16 %v10068
    %v10281 = vunpack.c.h.s8.bf16 %v10069
    %v10282 = vunpack.c.l.s8.bf16 %v10070
    %v10283 = vunpack.c.l.s8.bf16 %v10071
    %v10284 = vunpack.c.l.s8.bf16 %v10072
    %v10285 = vunpack.c.l.s8.bf16 %v10073
    %v10286 = vunpack.c.h.s8.bf16 %v10070
    %v10287 = vunpack.c.h.s8.bf16 %v10071
    %v10288 = vunpack.c.h.s8.bf16 %v10072
    %v10289 = vunpack.c.h.s8.bf16 %v10073
    %v10290 = vunpack.c.l.s8.bf16 %v10074
    %v10291 = vunpack.c.l.s8.bf16 %v10075
    %v10292 = vunpack.c.l.s8.bf16 %v10076
    %v10293 = vunpack.c.l.s8.bf16 %v10077
    %v10294 = vunpack.c.h.s8.bf16 %v10074
    %v10295 = vunpack.c.h.s8.bf16 %v10075
    %v10296 = vunpack.c.h.s8.bf16 %v10076
    %v10297 = vunpack.c.h.s8.bf16 %v10077
    %v10298 = vunpack.c.l.s8.bf16 %v10078
    %v10299 = vunpack.c.l.s8.bf16 %v10079
    %v10300 = vunpack.c.l.s8.bf16 %v10080
    %v10301 = vunpack.c.l.s8.bf16 %v10081
    %v10302 = vunpack.c.h.s8.bf16 %v10078
    %v10303 = vunpack.c.h.s8.bf16 %v10079
    %v10304 = vunpack.c.h.s8.bf16 %v10080
    %v10305 = vunpack.c.h.s8.bf16 %v10081
    %v10306 = vunpack.c.l.s8.bf16 %v10082
    %v10307 = vunpack.c.l.s8.bf16 %v10083
    %v10308 = vunpack.c.l.s8.bf16 %v10084
    %v10309 = vunpack.c.l.s8.bf16 %v10085
    %v10310 = vunpack.c.h.s8.bf16 %v10082
    %v10311 = vunpack.c.h.s8.bf16 %v10083
    %v10312 = vunpack.c.h.s8.bf16 %v10084
    %v10313 = vunpack.c.h.s8.bf16 %v10085
    %v10314 = vunpack.c.l.s8.bf16 %v10086
    %v10315 = vunpack.c.l.s8.bf16 %v10087
    %v10316 = vunpack.c.l.s8.bf16 %v10088
    %v10317 = vunpack.c.l.s8.bf16 %v10089
    %v10318 = vunpack.c.h.s8.bf16 %v10086
    %v10319 = vunpack.c.h.s8.bf16 %v10087
    %v10320 = vunpack.c.h.s8.bf16 %v10088
    %v10321 = vunpack.c.h.s8.bf16 %v10089
    %v10322 = vunpack.c.l.s8.bf16 %v10090
    %v10323 = vunpack.c.l.s8.bf16 %v10091
    %v10324 = vunpack.c.l.s8.bf16 %v10092
    %v10325 = vunpack.c.l.s8.bf16 %v10093
    %v10326 = vunpack.c.h.s8.bf16 %v10090
    %v10327 = vunpack.c.h.s8.bf16 %v10091
    %v10328 = vunpack.c.h.s8.bf16 %v10092
    %v10329 = vunpack.c.h.s8.bf16 %v10093
    %v10330 = vunpack.c.l.s8.bf16 %v10094
    %v10331 = vunpack.c.l.s8.bf16 %v10095
    %v10332 = vunpack.c.l.s8.bf16 %v10096
    %v10333 = vunpack.c.l.s8.bf16 %v10097
    %v10334 = vunpack.c.h.s8.bf16 %v10094
    %v10335 = vunpack.c.h.s8.bf16 %v10095
    %v10336 = vunpack.c.h.s8.bf16 %v10096
    %v10337 = vunpack.c.h.s8.bf16 %v10097
    %v10338 = vunpack.c.l.s8.bf16 %v10098
    %v10339 = vunpack.c.l.s8.bf16 %v10099
    %v10340 = vunpack.c.l.s8.bf16 %v10100
    %v10341 = vunpack.c.l.s8.bf16 %v10101
    %v10342 = vunpack.c.h.s8.bf16 %v10098
    %v10343 = vunpack.c.h.s8.bf16 %v10099
    %v10344 = vunpack.c.h.s8.bf16 %v10100
    %v10345 = vunpack.c.h.s8.bf16 %v10101
    %v10346 = vunpack.c.l.s8.bf16 %v10102
    %v10347 = vunpack.c.l.s8.bf16 %v10103
    %v10348 = vunpack.c.l.s8.bf16 %v10104
    %v10349 = vunpack.c.l.s8.bf16 %v10105
    %v10350 = vunpack.c.h.s8.bf16 %v10102
    %v10351 = vunpack.c.h.s8.bf16 %v10103
    %v10352 = vunpack.c.h.s8.bf16 %v10104
    %v10353 = vunpack.c.h.s8.bf16 %v10105
    %v10354 = vunpack.c.l.s8.bf16 %v10106
    %v10355 = vunpack.c.l.s8.bf16 %v10107
    %v10356 = vunpack.c.l.s8.bf16 %v10108
    %v10357 = vunpack.c.l.s8.bf16 %v10109
    %v10358 = vunpack.c.h.s8.bf16 %v10106
    %v10359 = vunpack.c.h.s8.bf16 %v10107
    %v10360 = vunpack.c.h.s8.bf16 %v10108
    %v10361 = vunpack.c.h.s8.bf16 %v10109
    %v10362 = vunpack.c.l.s8.bf16 %v10110
    %v10363 = vunpack.c.l.s8.bf16 %v10111
    %v10364 = vunpack.c.l.s8.bf16 %v10112
    %v10365 = vunpack.c.l.s8.bf16 %v10113
    %v10366 = vunpack.c.h.s8.bf16 %v10110
    %v10367 = vunpack.c.h.s8.bf16 %v10111
    %v10368 = vunpack.c.h.s8.bf16 %v10112
    %v10369 = vunpack.c.h.s8.bf16 %v10113
    %v10370 = vpack.c.bf16 %v9978, %v9978
    %v10371 = vpack.c.bf16 %v9979, %v9979
    %v10372 = vpack.c.bf16 %v9980, %v9980
    %v10373 = vpack.c.bf16 %v9981, %v9981
    %v10374 = vpack.c.bf16 %v9982, %v9982
    %v10375 = vpack.c.bf16 %v9983, %v9983
    %v10376 = vpack.c.bf16 %v9984, %v9984
    %v10377 = vpack.c.bf16 %v9985, %v9985
    %10378 = vmatprep.subr.bf16.mxu0 %v10115
    %10379 = vmatpush1.bf16.msra.mxu0 %v10114
    %10380 = vmatprep.subr.bf16.mxu0 %v10119
    %10381 = vmatpush1.bf16.msra.mxu0 %v10118
    %10382 = vmatprep.subr.bf16.mxu0 %v10123
    %10383 = vmatpush1.bf16.msra.mxu0 %v10122
    %10384 = vmatprep.subr.bf16.mxu0 %v10127
    %10385 = vmatpush1.bf16.msra.mxu0 %v10126
    %10386 = vmatprep.subr.bf16.mxu0 %v10131
    %10387 = vmatpush1.bf16.msra.mxu0 %v10130
    %10388 = vmatprep.subr.bf16.mxu0 %v10135
    %10389 = vmatpush1.bf16.msra.mxu0 %v10134
    %10390 = vmatprep.subr.bf16.mxu0 %v10139
    %10391 = vmatpush1.bf16.msra.mxu0 %v10138
    %10392 = vmatprep.subr.bf16.mxu0 %v10143
    %10393 = vmatpush1.bf16.msra.mxu0 %v10142
    %10394 = vmatprep.subr.bf16.mxu0 %v10147
    %10395 = vmatpush1.bf16.msra.mxu0 %v10146
    %10396 = vmatprep.subr.bf16.mxu0 %v10151
    %10397 = vmatpush1.bf16.msra.mxu0 %v10150
    %10398 = vmatprep.subr.bf16.mxu0 %v10155
    %10399 = vmatpush1.bf16.msra.mxu0 %v10154
    %10400 = vmatprep.subr.bf16.mxu0 %v10159
    %10401 = vmatpush1.bf16.msra.mxu0 %v10158
    %10402 = vmatprep.subr.bf16.mxu0 %v10163
    %10403 = vmatpush1.bf16.msra.mxu0 %v10162
    %10404 = vmatprep.subr.bf16.mxu0 %v10167
    %10405 = vmatpush1.bf16.msra.mxu0 %v10166
    %10406 = vmatprep.subr.bf16.mxu0 %v10171
    %10407 = vmatpush1.bf16.msra.mxu0 %v10170
    %10408 = vmatprep.subr.bf16.mxu0 %v10175
    %10409 = vmatpush1.bf16.msra.mxu0 %v10174
    %10410 = vmatprep.mubr.bf16.mxu0 %v10371
    %10411 = vmatmul.mubr.bf16.gmra.mrb[0].mxu0 %v10370
    %v10412 = vpop.f32.mrb[0].mxu0
    %v10413 = vadd.f32 0.0, %v10412
    %v10414 = vpop.f32.mrb[0].mxu0
    %v10415 = vadd.f32 0.0, %v10414
    %v10416 = vpop.f32.mrb[0].mxu0
    %v10417 = vpop.f32.mrb[0].mxu0
    %10418 = vdwg.mxu0
    %10419 = vmatprep.subr.bf16.mxu0 %v10179
    %10420 = vmatpush1.bf16.msra.mxu0 %v10178
    %10421 = vmatprep.subr.bf16.mxu0 %v10183
    %10422 = vmatpush1.bf16.msra.mxu0 %v10182
    %10423 = vmatprep.subr.bf16.mxu0 %v10187
    %10424 = vmatpush1.bf16.msra.mxu0 %v10186
    %10425 = vmatprep.subr.bf16.mxu0 %v10191
    %10426 = vmatpush1.bf16.msra.mxu0 %v10190
    %10427 = vmatprep.subr.bf16.mxu0 %v10195
    %10428 = vmatpush1.bf16.msra.mxu0 %v10194
    %10429 = vmatprep.subr.bf16.mxu0 %v10199
    %10430 = vmatpush1.bf16.msra.mxu0 %v10198
    %10431 = vmatprep.subr.bf16.mxu0 %v10203
    %10432 = vmatpush1.bf16.msra.mxu0 %v10202
    %10433 = vmatprep.subr.bf16.mxu0 %v10207
    %10434 = vmatpush1.bf16.msra.mxu0 %v10206
    %10435 = vmatprep.subr.bf16.mxu0 %v10211
    %10436 = vmatpush1.bf16.msra.mxu0 %v10210
    %10437 = vmatprep.subr.bf16.mxu0 %v10215
    %10438 = vmatpush1.bf16.msra.mxu0 %v10214
    %10439 = vmatprep.subr.bf16.mxu0 %v10219
    %10440 = vmatpush1.bf16.msra.mxu0 %v10218
    %10441 = vmatprep.subr.bf16.mxu0 %v10223
    %10442 = vmatpush1.bf16.msra.mxu0 %v10222
    %10443 = vmatprep.subr.bf16.mxu0 %v10227
    %10444 = vmatpush1.bf16.msra.mxu0 %v10226
    %10445 = vmatprep.subr.bf16.mxu0 %v10231
    %10446 = vmatpush1.bf16.msra.mxu0 %v10230
    %10447 = vmatprep.subr.bf16.mxu0 %v10235
    %10448 = vmatpush1.bf16.msra.mxu0 %v10234
    %10449 = vmatprep.subr.bf16.mxu0 %v10239
    %10450 = vmatpush1.bf16.msra.mxu0 %v10238
    %10451 = vmatprep.mubr.bf16.mxu0 %v10373
    %10452 = vmatmul.mubr.bf16.gmra.mrb[0].mxu0 %v10372
    %v10453 = vpop.f32.mrb[0].mxu0
    %v10454 = vadd.f32 %v10413, %v10453
    %v10455 = vpop.f32.mrb[0].mxu0
    %v10456 = vadd.f32 %v10415, %v10455
    %v10457 = vpop.f32.mrb[0].mxu0
    %v10458 = vpop.f32.mrb[0].mxu0
    %10459 = vdwg.mxu0
    %10460 = vmatprep.subr.bf16.mxu0 %v10243
    %10461 = vmatpush1.bf16.msra.mxu0 %v10242
    %10462 = vmatprep.subr.bf16.mxu0 %v10247
    %10463 = vmatpush1.bf16.msra.mxu0 %v10246
    %10464 = vmatprep.subr.bf16.mxu0 %v10251
    %10465 = vmatpush1.bf16.msra.mxu0 %v10250
    %10466 = vmatprep.subr.bf16.mxu0 %v10255
    %10467 = vmatpush1.bf16.msra.mxu0 %v10254
    %10468 = vmatprep.subr.bf16.mxu0 %v10259
    %10469 = vmatpush1.bf16.msra.mxu0 %v10258
    %10470 = vmatprep.subr.bf16.mxu0 %v10263
    %10471 = vmatpush1.bf16.msra.mxu0 %v10262
    %10472 = vmatprep.subr.bf16.mxu0 %v10267
    %10473 = vmatpush1.bf16.msra.mxu0 %v10266
    %10474 = vmatprep.subr.bf16.mxu0 %v10271
    %10475 = vmatpush1.bf16.msra.mxu0 %v10270
    %10476 = vmatprep.subr.bf16.mxu0 %v10275
    %10477 = vmatpush1.bf16.msra.mxu0 %v10274
    %10478 = vmatprep.subr.bf16.mxu0 %v10279
    %10479 = vmatpush1.bf16.msra.mxu0 %v10278
    %10480 = vmatprep.subr.bf16.mxu0 %v10283
    %10481 = vmatpush1.bf16.msra.mxu0 %v10282
    %10482 = vmatprep.subr.bf16.mxu0 %v10287
    %10483 = vmatpush1.bf16.msra.mxu0 %v10286
    %10484 = vmatprep.subr.bf16.mxu0 %v10291
    %10485 = vmatpush1.bf16.msra.mxu0 %v10290
    %10486 = vmatprep.subr.bf16.mxu0 %v10295
    %10487 = vmatpush1.bf16.msra.mxu0 %v10294
    %10488 = vmatprep.subr.bf16.mxu0 %v10299
    %10489 = vmatpush1.bf16.msra.mxu0 %v10298
    %10490 = vmatprep.subr.bf16.mxu0 %v10303
    %10491 = vmatpush1.bf16.msra.mxu0 %v10302
    %10492 = vmatprep.mubr.bf16.mxu0 %v10375
    %10493 = vmatmul.mubr.bf16.gmra.mrb[0].mxu0 %v10374
    %v10494 = vpop.f32.mrb[0].mxu0
    %v10495 = vadd.f32 %v10454, %v10494
    %v10496 = vpop.f32.mrb[0].mxu0
    %v10497 = vadd.f32 %v10456, %v10496
    %v10498 = vpop.f32.mrb[0].mxu0
    %v10499 = vpop.f32.mrb[0].mxu0
    %10500 = vdwg.mxu0
    %10501 = vmatprep.subr.bf16.mxu0 %v10307
    %10502 = vmatpush1.bf16.msra.mxu0 %v10306
    %10503 = vmatprep.subr.bf16.mxu0 %v10311
    %10504 = vmatpush1.bf16.msra.mxu0 %v10310
    %10505 = vmatprep.subr.bf16.mxu0 %v10315
    %10506 = vmatpush1.bf16.msra.mxu0 %v10314
    %10507 = vmatprep.subr.bf16.mxu0 %v10319
    %10508 = vmatpush1.bf16.msra.mxu0 %v10318
    %10509 = vmatprep.subr.bf16.mxu0 %v10323
    %10510 = vmatpush1.bf16.msra.mxu0 %v10322
    %10511 = vmatprep.subr.bf16.mxu0 %v10327
    %10512 = vmatpush1.bf16.msra.mxu0 %v10326
    %10513 = vmatprep.subr.bf16.mxu0 %v10331
    %10514 = vmatpush1.bf16.msra.mxu0 %v10330
    %10515 = vmatprep.subr.bf16.mxu0 %v10335
    %10516 = vmatpush1.bf16.msra.mxu0 %v10334
    %10517 = vmatprep.subr.bf16.mxu0 %v10339
    %10518 = vmatpush1.bf16.msra.mxu0 %v10338
    %10519 = vmatprep.subr.bf16.mxu0 %v10343
    %10520 = vmatpush1.bf16.msra.mxu0 %v10342
    %10521 = vmatprep.subr.bf16.mxu0 %v10347
    %10522 = vmatpush1.bf16.msra.mxu0 %v10346
    %10523 = vmatprep.subr.bf16.mxu0 %v10351
    %10524 = vmatpush1.bf16.msra.mxu0 %v10350
    %10525 = vmatprep.subr.bf16.mxu0 %v10355
    %10526 = vmatpush1.bf16.msra.mxu0 %v10354
    %10527 = vmatprep.subr.bf16.mxu0 %v10359
    %10528 = vmatpush1.bf16.msra.mxu0 %v10358
    %10529 = vmatprep.subr.bf16.mxu0 %v10363
    %10530 = vmatpush1.bf16.msra.mxu0 %v10362
    %10531 = vmatprep.subr.bf16.mxu0 %v10367
    %10532 = vmatpush1.bf16.msra.mxu0 %v10366
    %10533 = vmatprep.mubr.bf16.mxu0 %v10377
    %10534 = vmatmul.mubr.bf16.gmra.mrb[0].mxu0 %v10376
    %v10535 = vpop.f32.mrb[0].mxu0
    %v10536 = vadd.f32 %v10495, %v10535
    %v10537 = vpop.f32.mrb[0].mxu0
    %v10538 = vadd.f32 %v10497, %v10537
    %v10539 = vpop.f32.mrb[0].mxu0
    %v10540 = vpop.f32.mrb[0].mxu0
    %10541 = vdwg.mxu0
    %10542 = vmatprep.subr.bf16.mxu0 %v10117
    %10543 = vmatpush1.bf16.msra.mxu0 %v10116
    %10544 = vmatprep.subr.bf16.mxu0 %v10121
    %10545 = vmatpush1.bf16.msra.mxu0 %v10120
    %10546 = vmatprep.subr.bf16.mxu0 %v10125
    %10547 = vmatpush1.bf16.msra.mxu0 %v10124
    %10548 = vmatprep.subr.bf16.mxu0 %v10129
    %10549 = vmatpush1.bf16.msra.mxu0 %v10128
    %10550 = vmatprep.subr.bf16.mxu0 %v10133
    %10551 = vmatpush1.bf16.msra.mxu0 %v10132
    %10552 = vmatprep.subr.bf16.mxu0 %v10137
    %10553 = vmatpush1.bf16.msra.mxu0 %v10136
    %10554 = vmatprep.subr.bf16.mxu0 %v10141
    %10555 = vmatpush1.bf16.msra.mxu0 %v10140
    %10556 = vmatprep.subr.bf16.mxu0 %v10145
    %10557 = vmatpush1.bf16.msra.mxu0 %v10144
    %10558 = vmatprep.subr.bf16.mxu0 %v10149
    %10559 = vmatpush1.bf16.msra.mxu0 %v10148
    %10560 = vmatprep.subr.bf16.mxu0 %v10153
    %10561 = vmatpush1.bf16.msra.mxu0 %v10152
    %10562 = vmatprep.subr.bf16.mxu0 %v10157
    %10563 = vmatpush1.bf16.msra.mxu0 %v10156
    %10564 = vmatprep.subr.bf16.mxu0 %v10161
    %10565 = vmatpush1.bf16.msra.mxu0 %v10160
    %10566 = vmatprep.subr.bf16.mxu0 %v10165
    %10567 = vmatpush1.bf16.msra.mxu0 %v10164
    %10568 = vmatprep.subr.bf16.mxu0 %v10169
    %10569 = vmatpush1.bf16.msra.mxu0 %v10168
    %10570 = vmatprep.subr.bf16.mxu0 %v10173
    %10571 = vmatpush1.bf16.msra.mxu0 %v10172
    %10572 = vmatprep.subr.bf16.mxu0 %v10177
    %10573 = vmatpush1.bf16.msra.mxu0 %v10176
    %10574 = vmatprep.mubr.bf16.mxu0 %v10371
    %10575 = vmatmul.mubr.bf16.gmra.mrb[0].mxu0 %v10370
    %v10576 = vpop.f32.mrb[0].mxu0
    %v10577 = vadd.f32 0.0, %v10576
    %v10578 = vpop.f32.mrb[0].mxu0
    %v10579 = vadd.f32 0.0, %v10578
    %v10580 = vpop.f32.mrb[0].mxu0
    %v10581 = vpop.f32.mrb[0].mxu0
    %10582 = vdwg.mxu0
    %10583 = vmatprep.subr.bf16.mxu0 %v10181
    %10584 = vmatpush1.bf16.msra.mxu0 %v10180
    %10585 = vmatprep.subr.bf16.mxu0 %v10185
    %10586 = vmatpush1.bf16.msra.mxu0 %v10184
    %10587 = vmatprep.subr.bf16.mxu0 %v10189
    %10588 = vmatpush1.bf16.msra.mxu0 %v10188
    %10589 = vmatprep.subr.bf16.mxu0 %v10193
    %10590 = vmatpush1.bf16.msra.mxu0 %v10192
    %10591 = vmatprep.subr.bf16.mxu0 %v10197
    %10592 = vmatpush1.bf16.msra.mxu0 %v10196
    %10593 = vmatprep.subr.bf16.mxu0 %v10201
    %10594 = vmatpush1.bf16.msra.mxu0 %v10200
    %10595 = vmatprep.subr.bf16.mxu0 %v10205
    %10596 = vmatpush1.bf16.msra.mxu0 %v10204
    %10597 = vmatprep.subr.bf16.mxu0 %v10209
    %10598 = vmatpush1.bf16.msra.mxu0 %v10208
    %10599 = vmatprep.subr.bf16.mxu0 %v10213
    %10600 = vmatpush1.bf16.msra.mxu0 %v10212
    %10601 = vmatprep.subr.bf16.mxu0 %v10217
    %10602 = vmatpush1.bf16.msra.mxu0 %v10216
    %10603 = vmatprep.subr.bf16.mxu0 %v10221
    %10604 = vmatpush1.bf16.msra.mxu0 %v10220
    %10605 = vmatprep.subr.bf16.mxu0 %v10225
    %10606 = vmatpush1.bf16.msra.mxu0 %v10224
    %10607 = vmatprep.subr.bf16.mxu0 %v10229
    %10608 = vmatpush1.bf16.msra.mxu0 %v10228
    %10609 = vmatprep.subr.bf16.mxu0 %v10233
    %10610 = vmatpush1.bf16.msra.mxu0 %v10232
    %10611 = vmatprep.subr.bf16.mxu0 %v10237
    %10612 = vmatpush1.bf16.msra.mxu0 %v10236
    %10613 = vmatprep.subr.bf16.mxu0 %v10241
    %10614 = vmatpush1.bf16.msra.mxu0 %v10240
    %10615 = vmatprep.mubr.bf16.mxu0 %v10373
    %10616 = vmatmul.mubr.bf16.gmra.mrb[0].mxu0 %v10372
    %v10617 = vpop.f32.mrb[0].mxu0
    %v10618 = vadd.f32 %v10577, %v10617
    %v10619 = vpop.f32.mrb[0].mxu0
    %v10620 = vadd.f32 %v10579, %v10619
    %v10621 = vpop.f32.mrb[0].mxu0
    %v10622 = vpop.f32.mrb[0].mxu0
    %10623 = vdwg.mxu0
    %10624 = vmatprep.subr.bf16.mxu0 %v10245
    %10625 = vmatpush1.bf16.msra.mxu0 %v10244
    %10626 = vmatprep.subr.bf16.mxu0 %v10249
    %10627 = vmatpush1.bf16.msra.mxu0 %v10248
    %10628 = vmatprep.subr.bf16.mxu0 %v10253
    %10629 = vmatpush1.bf16.msra.mxu0 %v10252
    %10630 = vmatprep.subr.bf16.mxu0 %v10257
    %10631 = vmatpush1.bf16.msra.mxu0 %v10256
    %10632 = vmatprep.subr.bf16.mxu0 %v10261
    %10633 = vmatpush1.bf16.msra.mxu0 %v10260
    %10634 = vmatprep.subr.bf16.mxu0 %v10265
    %10635 = vmatpush1.bf16.msra.mxu0 %v10264
    %10636 = vmatprep.subr.bf16.mxu0 %v10269
    %10637 = vmatpush1.bf16.msra.mxu0 %v10268
    %10638 = vmatprep.subr.bf16.mxu0 %v10273
    %10639 = vmatpush1.bf16.msra.mxu0 %v10272
    %10640 = vmatprep.subr.bf16.mxu0 %v10277
    %10641 = vmatpush1.bf16.msra.mxu0 %v10276
    %10642 = vmatprep.subr.bf16.mxu0 %v10281
    %10643 = vmatpush1.bf16.msra.mxu0 %v10280
    %10644 = vmatprep.subr.bf16.mxu0 %v10285
    %10645 = vmatpush1.bf16.msra.mxu0 %v10284
    %10646 = vmatprep.subr.bf16.mxu0 %v10289
    %10647 = vmatpush1.bf16.msra.mxu0 %v10288
    %10648 = vmatprep.subr.bf16.mxu0 %v10293
    %10649 = vmatpush1.bf16.msra.mxu0 %v10292
    %10650 = vmatprep.subr.bf16.mxu0 %v10297
    %10651 = vmatpush1.bf16.msra.mxu0 %v10296
    %10652 = vmatprep.subr.bf16.mxu0 %v10301
    %10653 = vmatpush1.bf16.msra.mxu0 %v10300
    %10654 = vmatprep.subr.bf16.mxu0 %v10305
    %10655 = vmatpush1.bf16.msra.mxu0 %v10304
    %10656 = vmatprep.mubr.bf16.mxu0 %v10375
    %10657 = vmatmul.mubr.bf16.gmra.mrb[0].mxu0 %v10374
    %v10658 = vpop.f32.mrb[0].mxu0
    %v10659 = vadd.f32 %v10618, %v10658
    %v10660 = vpop.f32.mrb[0].mxu0
    %v10661 = vadd.f32 %v10620, %v10660
    %v10662 = vpop.f32.mrb[0].mxu0
    %v10663 = vpop.f32.mrb[0].mxu0
    %10664 = vdwg.mxu0
    %10665 = vmatprep.subr.bf16.mxu0 %v10309
    %10666 = vmatpush1.bf16.msra.mxu0 %v10308
    %10667 = vmatprep.subr.bf16.mxu0 %v10313
    %10668 = vmatpush1.bf16.msra.mxu0 %v10312
    %10669 = vmatprep.subr.bf16.mxu0 %v10317
    %10670 = vmatpush1.bf16.msra.mxu0 %v10316
    %10671 = vmatprep.subr.bf16.mxu0 %v10321
    %10672 = vmatpush1.bf16.msra.mxu0 %v10320
    %10673 = vmatprep.subr.bf16.mxu0 %v10325
    %10674 = vmatpush1.bf16.msra.mxu0 %v10324
    %10675 = vmatprep.subr.bf16.mxu0 %v10329
    %10676 = vmatpush1.bf16.msra.mxu0 %v10328
    %10677 = vmatprep.subr.bf16.mxu0 %v10333
    %10678 = vmatpush1.bf16.msra.mxu0 %v10332
    %10679 = vmatprep.subr.bf16.mxu0 %v10337
    %10680 = vmatpush1.bf16.msra.mxu0 %v10336
    %10681 = vmatprep.subr.bf16.mxu0 %v10341
    %10682 = vmatpush1.bf16.msra.mxu0 %v10340
    %10683 = vmatprep.subr.bf16.mxu0 %v10345
    %10684 = vmatpush1.bf16.msra.mxu0 %v10344
    %10685 = vmatprep.subr.bf16.mxu0 %v10349
    %10686 = vmatpush1.bf16.msra.mxu0 %v10348
    %10687 = vmatprep.subr.bf16.mxu0 %v10353
    %10688 = vmatpush1.bf16.msra.mxu0 %v10352
    %10689 = vmatprep.subr.bf16.mxu0 %v10357
    %10690 = vmatpush1.bf16.msra.mxu0 %v10356
    %10691 = vmatprep.subr.bf16.mxu0 %v10361
    %10692 = vmatpush1.bf16.msra.mxu0 %v10360
    %10693 = vmatprep.subr.bf16.mxu0 %v10365
    %10694 = vmatpush1.bf16.msra.mxu0 %v10364
    %10695 = vmatprep.subr.bf16.mxu0 %v10369
    %10696 = vmatpush1.bf16.msra.mxu0 %v10368
    %10697 = vmatprep.mubr.bf16.mxu0 %v10377
    %10698 = vmatmul.mubr.bf16.gmra.mrb[0].mxu0 %v10376
    %v10699 = vpop.f32.mrb[0].mxu0
    %v10700 = vadd.f32 %v10659, %v10699
    %v10701 = vpop.f32.mrb[0].mxu0
    %v10702 = vadd.f32 %v10661, %v10701
    %v10703 = vpop.f32.mrb[0].mxu0
    %v10704 = vpop.f32.mrb[0].mxu0
    %10705 = vdwg.mxu0
    %v10706 = vld [vmem:[#allocation5 + $0x44] sm:$0xf]
    %v10708 = vlaneseq
    %v10709 = vshrl.u32 %v10708, 7
    %v10710 = vsub.s32 0, %v10709
    %v10711 = vrot.slane %v10706, %v10710
    %v10712 = vlaneseq
    %v10713 = vshrl.u32 %v10712, 7
    %v10714 = vsub.s32 1, %v10713
    %v10715 = vrot.slane %v10706, %v10714
    %v10716 = vlaneseq
    %v10717 = vshrl.u32 %v10716, 7
    %v10718 = vsub.s32 2, %v10717
    %v10719 = vrot.slane %v10706, %v10718
    %v10720 = vlaneseq
    %v10721 = vshrl.u32 %v10720, 7
    %v10722 = vsub.s32 3, %v10721
    %v10723 = vrot.slane %v10706, %v10722
    %v10728 = vmul.f32 %v10536, %v10711
    %v10729 = vmul.f32 %v10538, %v10715
    %v10730 = vmul.f32 %v10700, %v10719
    %v10731 = vmul.f32 %v10702, %v10723
    %v10732 = vld [vmem:[#allocation5 + $0x40] sm:$0xf]
    %v10734 = vlaneseq
    %v10735 = vshrl.u32 %v10734, 7
    %v10736 = vsub.s32 0, %v10735
    %v10737 = vrot.slane %v10732, %v10736
    %v10738 = vlaneseq
    %v10739 = vshrl.u32 %v10738, 7
    %v10740 = vsub.s32 1, %v10739
    %v10741 = vrot.slane %v10732, %v10740
    %v10742 = vlaneseq
    %v10743 = vshrl.u32 %v10742, 7
    %v10744 = vsub.s32 2, %v10743
    %v10745 = vrot.slane %v10732, %v10744
    %v10746 = vlaneseq
    %v10747 = vshrl.u32 %v10746, 7
    %v10748 = vsub.s32 3, %v10747
    %v10749 = vrot.slane %v10732, %v10748
    %v10754 = vadd.f32 %v10728, %v10737
    %v10755 = vadd.f32 %v10729, %v10741
    %v10756 = vadd.f32 %v10730, %v10745
    %v10757 = vadd.f32 %v10731, %v10749
    %v10758 = vrot.slane %v10754, 4
    %v10759 = vadd.f32 %v10754, %v10758
    %v10760 = vrot.slane %v10759, 2
    %v10761 = vadd.f32 %v10759, %v10760
    %v10762 = vrot.slane %v10761, 1
    %v10763 = vadd.f32 %v10761, %v10762
    %v10764 = vrot.slane %v10755, 4
    %v10765 = vadd.f32 %v10755, %v10764
    %v10766 = vrot.slane %v10765, 2
    %v10767 = vadd.f32 %v10765, %v10766
    %v10768 = vrot.slane %v10767, 1
    %v10769 = vadd.f32 %v10767, %v10768
    %v10770 = vrot.slane %v10756, 4
    %v10771 = vadd.f32 %v10756, %v10770
    %v10772 = vrot.slane %v10771, 2
    %v10773 = vadd.f32 %v10771, %v10772
    %v10774 = vrot.slane %v10773, 1
    %v10775 = vadd.f32 %v10773, %v10774
    %v10776 = vrot.slane %v10757, 4
    %v10777 = vadd.f32 %v10757, %v10776
    %v10778 = vrot.slane %v10777, 2
    %v10779 = vadd.f32 %v10777, %v10778
    %v10780 = vrot.slane %v10779, 1
    %v10781 = vadd.f32 %v10779, %v10780
    %v10782 = vmul.f32 %v10763, %v9773
    %v10783 = vmul.f32 %v10769, %v9773
    %v10784 = vmul.f32 %v10775, %v9773
    %v10785 = vmul.f32 %v10781, %v9773
    %v10786 = vsub.f32 %v10754, %v10782
    %v10787 = vsub.f32 %v10755, %v10783
    %v10788 = vsub.f32 %v10756, %v10784
    %v10789 = vsub.f32 %v10757, %v10785
    %v10790 = vmul.f32 %v10786, %v10786
    %v10791 = vmul.f32 %v10787, %v10787
    %v10792 = vmul.f32 %v10788, %v10788
    %v10793 = vmul.f32 %v10789, %v10789
    %v10794 = vrot.slane %v10790, 4
    %v10795 = vadd.f32 %v10790, %v10794
    %v10796 = vrot.slane %v10795, 2
    %v10797 = vadd.f32 %v10795, %v10796
    %v10798 = vrot.slane %v10797, 1
    %v10799 = vadd.f32 %v10797, %v10798
    %v10800 = vrot.slane %v10791, 4
    %v10801 = vadd.f32 %v10791, %v10800
    %v10802 = vrot.slane %v10801, 2
    %v10803 = vadd.f32 %v10801, %v10802
    %v10804 = vrot.slane %v10803, 1
    %v10805 = vadd.f32 %v10803, %v10804
    %v10806 = vrot.slane %v10792, 4
    %v10807 = vadd.f32 %v10792, %v10806
    %v10808 = vrot.slane %v10807, 2
    %v10809 = vadd.f32 %v10807, %v10808
    %v10810 = vrot.slane %v10809, 1
    %v10811 = vadd.f32 %v10809, %v10810
    %v10812 = vrot.slane %v10793, 4
    %v10813 = vadd.f32 %v10793, %v10812
    %v10814 = vrot.slane %v10813, 2
    %v10815 = vadd.f32 %v10813, %v10814
    %v10816 = vrot.slane %v10815, 1
    %v10817 = vadd.f32 %v10815, %v10816
    %v10818 = vmul.f32 %v10799, %v9773
    %v10819 = vmul.f32 %v10805, %v9773
    %v10820 = vmul.f32 %v10811, %v9773
    %v10821 = vmul.f32 %v10817, %v9773
    %v10822 = vadd.f32 %v10818, 1e-05
    %v10823 = vadd.f32 %v10819, 1e-05
    %v10824 = vadd.f32 %v10820, 1e-05
    %v10825 = vadd.f32 %v10821, 1e-05
    %v10826 = vrsqrt.pop %v10822
    %v10827 = vrsqrt.pop %v10823
    %v10828 = vrsqrt.pop %v10824
    %v10829 = vrsqrt.pop %v10825
    %v10830 = vmul.f32 %v10786, %v10826
    %v10831 = vmul.f32 %v10787, %v10827
    %v10832 = vmul.f32 %v10788, %v10828
    %v10833 = vmul.f32 %v10789, %v10829
    %v10834 = vld [vmem:[#allocation5 + $0x48] sm:$0xf]
    %v10836 = vlaneseq
    %v10837 = vshrl.u32 %v10836, 7
    %v10838 = vsub.s32 0, %v10837
    %v10839 = vrot.slane %v10834, %v10838
    %v10840 = vlaneseq
    %v10841 = vshrl.u32 %v10840, 7
    %v10842 = vsub.s32 1, %v10841
    %v10843 = vrot.slane %v10834, %v10842
    %v10844 = vlaneseq
    %v10845 = vshrl.u32 %v10844, 7
    %v10846 = vsub.s32 2, %v10845
    %v10847 = vrot.slane %v10834, %v10846
    %v10848 = vlaneseq
    %v10849 = vshrl.u32 %v10848, 7
    %v10850 = vsub.s32 3, %v10849
    %v10851 = vrot.slane %v10834, %v10850
    %v10856 = vmul.f32 %v10830, %v10839
    %v10857 = vmul.f32 %v10831, %v10843
    %v10858 = vmul.f32 %v10832, %v10847
    %v10859 = vmul.f32 %v10833, %v10851
    %v10860 = vld [vmem:[#allocation5 + $0x4c] sm:$0xf]
    %v10862 = vlaneseq
    %v10863 = vshrl.u32 %v10862, 7
    %v10864 = vsub.s32 0, %v10863
    %v10865 = vrot.slane %v10860, %v10864
    %v10866 = vlaneseq
    %v10867 = vshrl.u32 %v10866, 7
    %v10868 = vsub.s32 1, %v10867
    %v10869 = vrot.slane %v10860, %v10868
    %v10870 = vlaneseq
    %v10871 = vshrl.u32 %v10870, 7
    %v10872 = vsub.s32 2, %v10871
    %v10873 = vrot.slane %v10860, %v10872
    %v10874 = vlaneseq
    %v10875 = vshrl.u32 %v10874, 7
    %v10876 = vsub.s32 3, %v10875
    %v10877 = vrot.slane %v10860, %v10876
    %v10882 = vadd.f32 %v10856, %v10865
    %v10883 = vadd.f32 %v10857, %v10869
    %v10884 = vadd.f32 %v10858, %v10873
    %v10885 = vadd.f32 %v10859, %v10877
    %v10886 = vmax.f32 %v10882, 0.0
    %v10887 = vmax.f32 %v10883, 0.0
    %v10888 = vmax.f32 %v10884, 0.0
    %v10889 = vmax.f32 %v10885, 0.0
    %v10890 = vld [vmem:[#allocation11] sm:$0xff]
    %v10891 = vld [vmem:[#allocation11 + $0x8] sm:$0xff]
    %v10892 = vld [vmem:[#allocation11 + $0x10] sm:$0xff]
    %v10893 = vld [vmem:[#allocation11 + $0x18] sm:$0xff]
    %v10894 = vld [vmem:[#allocation11 + $0x20] sm:$0xff]
    %v10895 = vld [vmem:[#allocation11 + $0x28] sm:$0xff]
    %v10896 = vld [vmem:[#allocation11 + $0x30] sm:$0xff]
    %v10897 = vld [vmem:[#allocation11 + $0x38] sm:$0xff]
    %v10898 = vld [vmem:[#allocation11 + $0x40] sm:$0xff]
    %v10899 = vld [vmem:[#allocation11 + $0x48] sm:$0xff]
    %v10900 = vld [vmem:[#allocation11 + $0x50] sm:$0xff]
    %v10901 = vld [vmem:[#allocation11 + $0x58] sm:$0xff]
    %v10902 = vld [vmem:[#allocation11 + $0x60] sm:$0xff]
    %v10903 = vld [vmem:[#allocation11 + $0x68] sm:$0xff]
    %v10904 = vld [vmem:[#allocation11 + $0x70] sm:$0xff]
    %v10905 = vld [vmem:[#allocation11 + $0x78] sm:$0xff]
    %v10906 = vld [vmem:[#allocation11 + $0x80] sm:$0xff]
    %v10907 = vld [vmem:[#allocation11 + $0x88] sm:$0xff]
    %v10908 = vld [vmem:[#allocation11 + $0x90] sm:$0xff]
    %v10909 = vld [vmem:[#allocation11 + $0x98] sm:$0xff]
    %v10910 = vld [vmem:[#allocation11 + $0xa0] sm:$0xff]
    %v10911 = vld [vmem:[#allocation11 + $0xa8] sm:$0xff]
    %v10912 = vld [vmem:[#allocation11 + $0xb0] sm:$0xff]
    %v10913 = vld [vmem:[#allocation11 + $0xb8] sm:$0xff]
    %v10914 = vld [vmem:[#allocation11 + $0xc0] sm:$0xff]
    %v10915 = vld [vmem:[#allocation11 + $0xc8] sm:$0xff]
    %v10916 = vld [vmem:[#allocation11 + $0xd0] sm:$0xff]
    %v10917 = vld [vmem:[#allocation11 + $0xd8] sm:$0xff]
    %v10918 = vld [vmem:[#allocation11 + $0xe0] sm:$0xff]
    %v10919 = vld [vmem:[#allocation11 + $0xe8] sm:$0xff]
    %v10920 = vld [vmem:[#allocation11 + $0xf0] sm:$0xff]
    %v10921 = vld [vmem:[#allocation11 + $0xf8] sm:$0xff]
    %v10922 = vunpack.c.l.s8.bf16 %v10890
    %v10923 = vunpack.c.l.s8.bf16 %v10891
    %v10924 = vunpack.c.h.s8.bf16 %v10890
    %v10925 = vunpack.c.h.s8.bf16 %v10891
    %v10926 = vunpack.c.l.s8.bf16 %v10892
    %v10927 = vunpack.c.l.s8.bf16 %v10893
    %v10928 = vunpack.c.h.s8.bf16 %v10892
    %v10929 = vunpack.c.h.s8.bf16 %v10893
    %v10930 = vunpack.c.l.s8.bf16 %v10894
    %v10931 = vunpack.c.l.s8.bf16 %v10895
    %v10932 = vunpack.c.h.s8.bf16 %v10894
    %v10933 = vunpack.c.h.s8.bf16 %v10895
    %v10934 = vunpack.c.l.s8.bf16 %v10896
    %v10935 = vunpack.c.l.s8.bf16 %v10897
    %v10936 = vunpack.c.h.s8.bf16 %v10896
    %v10937 = vunpack.c.h.s8.bf16 %v10897
    %v10938 = vunpack.c.l.s8.bf16 %v10898
    %v10939 = vunpack.c.l.s8.bf16 %v10899
    %v10940 = vunpack.c.h.s8.bf16 %v10898
    %v10941 = vunpack.c.h.s8.bf16 %v10899
    %v10942 = vunpack.c.l.s8.bf16 %v10900
    %v10943 = vunpack.c.l.s8.bf16 %v10901
    %v10944 = vunpack.c.h.s8.bf16 %v10900
    %v10945 = vunpack.c.h.s8.bf16 %v10901
    %v10946 = vunpack.c.l.s8.bf16 %v10902
    %v10947 = vunpack.c.l.s8.bf16 %v10903
    %v10948 = vunpack.c.h.s8.bf16 %v10902
    %v10949 = vunpack.c.h.s8.bf16 %v10903
    %v10950 = vunpack.c.l.s8.bf16 %v10904
    %v10951 = vunpack.c.l.s8.bf16 %v10905
    %v10952 = vunpack.c.h.s8.bf16 %v10904
    %v10953 = vunpack.c.h.s8.bf16 %v10905
    %v10954 = vunpack.c.l.s8.bf16 %v10906
    %v10955 = vunpack.c.l.s8.bf16 %v10907
    %v10956 = vunpack.c.h.s8.bf16 %v10906
    %v10957 = vunpack.c.h.s8.bf16 %v10907
    %v10958 = vunpack.c.l.s8.bf16 %v10908
    %v10959 = vunpack.c.l.s8.bf16 %v10909
    %v10960 = vunpack.c.h.s8.bf16 %v10908
    %v10961 = vunpack.c.h.s8.bf16 %v10909
    %v10962 = vunpack.c.l.s8.bf16 %v10910
    %v10963 = vunpack.c.l.s8.bf16 %v10911
    %v10964 = vunpack.c.h.s8.bf16 %v10910
    %v10965 = vunpack.c.h.s8.bf16 %v10911
    %v10966 = vunpack.c.l.s8.bf16 %v10912
    %v10967 = vunpack.c.l.s8.bf16 %v10913
    %v10968 = vunpack.c.h.s8.bf16 %v10912
    %v10969 = vunpack.c.h.s8.bf16 %v10913
    %v10970 = vunpack.c.l.s8.bf16 %v10914
    %v10971 = vunpack.c.l.s8.bf16 %v10915
    %v10972 = vunpack.c.h.s8.bf16 %v10914
    %v10973 = vunpack.c.h.s8.bf16 %v10915
    %v10974 = vunpack.c.l.s8.bf16 %v10916
    %v10975 = vunpack.c.l.s8.bf16 %v10917
    %v10976 = vunpack.c.h.s8.bf16 %v10916
    %v10977 = vunpack.c.h.s8.bf16 %v10917
    %v10978 = vunpack.c.l.s8.bf16 %v10918
    %v10979 = vunpack.c.l.s8.bf16 %v10919
    %v10980 = vunpack.c.h.s8.bf16 %v10918
    %v10981 = vunpack.c.h.s8.bf16 %v10919
    %v10982 = vunpack.c.l.s8.bf16 %v10920
    %v10983 = vunpack.c.l.s8.bf16 %v10921
    %v10984 = vunpack.c.h.s8.bf16 %v10920
    %v10985 = vunpack.c.h.s8.bf16 %v10921
    %v10986 = vpack.c.bf16 %v10886, %v10886
    %v10987 = vpack.c.bf16 %v10887, %v10887
    %v10988 = vpack.c.bf16 %v10888, %v10888
    %v10989 = vpack.c.bf16 %v10889, %v10889
    %10990 = vmatprep.subr.bf16.mxu0 %v10923
    %10991 = vmatpush1.bf16.msra.mxu0 %v10922
    %10992 = vmatprep.subr.bf16.mxu0 %v10925
    %10993 = vmatpush1.bf16.msra.mxu0 %v10924
    %10994 = vmatprep.subr.bf16.mxu0 %v10927
    %10995 = vmatpush1.bf16.msra.mxu0 %v10926
    %10996 = vmatprep.subr.bf16.mxu0 %v10929
    %10997 = vmatpush1.bf16.msra.mxu0 %v10928
    %10998 = vmatprep.subr.bf16.mxu0 %v10931
    %10999 = vmatpush1.bf16.msra.mxu0 %v10930
    %11000 = vmatprep.subr.bf16.mxu0 %v10933
    %11001 = vmatpush1.bf16.msra.mxu0 %v10932
    %11002 = vmatprep.subr.bf16.mxu0 %v10935
    %11003 = vmatpush1.bf16.msra.mxu0 %v10934
    %11004 = vmatprep.subr.bf16.mxu0 %v10937
    %11005 = vmatpush1.bf16.msra.mxu0 %v10936
    %11006 = vmatprep.subr.bf16.mxu0 %v10939
    %11007 = vmatpush1.bf16.msra.mxu0 %v10938
    %11008 = vmatprep.subr.bf16.mxu0 %v10941
    %11009 = vmatpush1.bf16.msra.mxu0 %v10940
    %11010 = vmatprep.subr.bf16.mxu0 %v10943
    %11011 = vmatpush1.bf16.msra.mxu0 %v10942
    %11012 = vmatprep.subr.bf16.mxu0 %v10945
    %11013 = vmatpush1.bf16.msra.mxu0 %v10944
    %11014 = vmatprep.subr.bf16.mxu0 %v10947
    %11015 = vmatpush1.bf16.msra.mxu0 %v10946
    %11016 = vmatprep.subr.bf16.mxu0 %v10949
    %11017 = vmatpush1.bf16.msra.mxu0 %v10948
    %11018 = vmatprep.subr.bf16.mxu0 %v10951
    %11019 = vmatpush1.bf16.msra.mxu0 %v10950
    %11020 = vmatprep.subr.bf16.mxu0 %v10953
    %11021 = vmatpush1.bf16.msra.mxu0 %v10952
    %11022 = vmatprep.mubr.bf16.mxu0 %v10987
    %11023 = vmatmul.mubr.bf16.gmra.mrb[0].mxu0 %v10986
    %v11024 = vpop.f32.mrb[0].mxu0
    %v11025 = vadd.f32 0.0, %v11024
    %v11026 = vpop.f32.mrb[0].mxu0
    %v11027 = vadd.f32 0.0, %v11026
    %v11028 = vpop.f32.mrb[0].mxu0
    %v11029 = vpop.f32.mrb[0].mxu0
    %11030 = vdwg.mxu0
    %11031 = vmatprep.subr.bf16.mxu0 %v10955
    %11032 = vmatpush1.bf16.msra.mxu0 %v10954
    %11033 = vmatprep.subr.bf16.mxu0 %v10957
    %11034 = vmatpush1.bf16.msra.mxu0 %v10956
    %11035 = vmatprep.subr.bf16.mxu0 %v10959
    %11036 = vmatpush1.bf16.msra.mxu0 %v10958
    %11037 = vmatprep.subr.bf16.mxu0 %v10961
    %11038 = vmatpush1.bf16.msra.mxu0 %v10960
    %11039 = vmatprep.subr.bf16.mxu0 %v10963
    %11040 = vmatpush1.bf16.msra.mxu0 %v10962
    %11041 = vmatprep.subr.bf16.mxu0 %v10965
    %11042 = vmatpush1.bf16.msra.mxu0 %v10964
    %11043 = vmatprep.subr.bf16.mxu0 %v10967
    %11044 = vmatpush1.bf16.msra.mxu0 %v10966
    %11045 = vmatprep.subr.bf16.mxu0 %v10969
    %11046 = vmatpush1.bf16.msra.mxu0 %v10968
    %11047 = vmatprep.subr.bf16.mxu0 %v10971
    %11048 = vmatpush1.bf16.msra.mxu0 %v10970
    %11049 = vmatprep.subr.bf16.mxu0 %v10973
    %11050 = vmatpush1.bf16.msra.mxu0 %v10972
    %11051 = vmatprep.subr.bf16.mxu0 %v10975
    %11052 = vmatpush1.bf16.msra.mxu0 %v10974
    %11053 = vmatprep.subr.bf16.mxu0 %v10977
    %11054 = vmatpush1.bf16.msra.mxu0 %v10976
    %11055 = vmatprep.subr.bf16.mxu0 %v10979
    %11056 = vmatpush1.bf16.msra.mxu0 %v10978
    %11057 = vmatprep.subr.bf16.mxu0 %v10981
    %11058 = vmatpush1.bf16.msra.mxu0 %v10980
    %11059 = vmatprep.subr.bf16.mxu0 %v10983
    %11060 = vmatpush1.bf16.msra.mxu0 %v10982
    %11061 = vmatprep.subr.bf16.mxu0 %v10985
    %11062 = vmatpush1.bf16.msra.mxu0 %v10984
    %11063 = vmatprep.mubr.bf16.mxu0 %v10989
    %11064 = vmatmul.mubr.bf16.gmra.mrb[0].mxu0 %v10988
    %v11065 = vpop.f32.mrb[0].mxu0
    %v11066 = vadd.f32 %v11025, %v11065
    %v11067 = vpop.f32.mrb[0].mxu0
    %v11068 = vadd.f32 %v11027, %v11067
    %v11069 = vpop.f32.mrb[0].mxu0
    %v11070 = vpop.f32.mrb[0].mxu0
    %11071 = vdwg.mxu0
    %v11072 = vld [vmem:[#allocation5 + $0x52] sm:$0x3]
    %v11074 = vlaneseq
    %v11075 = vshrl.u32 %v11074, 7
    %v11076 = vsub.s32 0, %v11075
    %v11077 = vrot.slane %v11072, %v11076
    %v11078 = vlaneseq
    %v11079 = vshrl.u32 %v11078, 7
    %v11080 = vsub.s32 1, %v11079
    %v11081 = vrot.slane %v11072, %v11080
    %v11084 = vmul.f32 %v11066, %v11077
    %v11085 = vmul.f32 %v11068, %v11081
    %v11086 = vld [vmem:[#allocation5 + $0x50] sm:$0x3]
    %v11088 = vlaneseq
    %v11089 = vshrl.u32 %v11088, 7
    %v11090 = vsub.s32 0, %v11089
    %v11091 = vrot.slane %v11086, %v11090
    %v11092 = vlaneseq
    %v11093 = vshrl.u32 %v11092, 7
    %v11094 = vsub.s32 1, %v11093
    %v11095 = vrot.slane %v11086, %v11094
    %v11098 = vadd.f32 %v11084, %v11091
    %v11099 = vadd.f32 %v11085, %v11095
    %v11100 = vrot.slane %v11098, 4
    %v11101 = vadd.f32 %v11098, %v11100
    %v11102 = vrot.slane %v11101, 2
    %v11103 = vadd.f32 %v11101, %v11102
    %v11104 = vrot.slane %v11103, 1
    %v11105 = vadd.f32 %v11103, %v11104
    %v11106 = vrot.slane %v11099, 4
    %v11107 = vadd.f32 %v11099, %v11106
    %v11108 = vrot.slane %v11107, 2
    %v11109 = vadd.f32 %v11107, %v11108
    %v11110 = vrot.slane %v11109, 1
    %v11111 = vadd.f32 %v11109, %v11110
    %v11112 = vmul.f32 %v11105, %v9773
    %v11113 = vmul.f32 %v11111, %v9773
    %v11114 = vsub.f32 %v11098, %v11112
    %v11115 = vsub.f32 %v11099, %v11113
    %v11116 = vmul.f32 %v11114, %v11114
    %v11117 = vmul.f32 %v11115, %v11115
    %v11118 = vrot.slane %v11116, 4
    %v11119 = vadd.f32 %v11116, %v11118
    %v11120 = vrot.slane %v11119, 2
    %v11121 = vadd.f32 %v11119, %v11120
    %v11122 = vrot.slane %v11121, 1
    %v11123 = vadd.f32 %v11121, %v11122
    %v11124 = vrot.slane %v11117, 4
    %v11125 = vadd.f32 %v11117, %v11124
    %v11126 = vrot.slane %v11125, 2
    %v11127 = vadd.f32 %v11125, %v11126
    %v11128 = vrot.slane %v11127, 1
    %v11129 = vadd.f32 %v11127, %v11128
    %v11130 = vmul.f32 %v11123, %v9773
    %v11131 = vmul.f32 %v11129, %v9773
    %v11132 = vadd.f32 %v11130, 1e-05
    %v11133 = vadd.f32 %v11131, 1e-05
    %v11134 = vrsqrt.pop %v11132
    %v11135 = vrsqrt.pop %v11133
    %v11136 = vmul.f32 %v11114, %v11134
    %v11137 = vmul.f32 %v11115, %v11135
    %v11138 = vld [vmem:[#allocation5 + $0x54] sm:$0x3]
    %v11140 = vlaneseq
    %v11141 = vshrl.u32 %v11140, 7
    %v11142 = vsub.s32 0, %v11141
    %v11143 = vrot.slane %v11138, %v11142
    %v11144 = vlaneseq
    %v11145 = vshrl.u32 %v11144, 7
    %v11146 = vsub.s32 1, %v11145
    %v11147 = vrot.slane %v11138, %v11146
    %v11150 = vmul.f32 %v11136, %v11143
    %v11151 = vmul.f32 %v11137, %v11147
    %v11152 = vld [vmem:[#allocation5 + $0x56] sm:$0x3]
    %v11154 = vlaneseq
    %v11155 = vshrl.u32 %v11154, 7
    %v11156 = vsub.s32 0, %v11155
    %v11157 = vrot.slane %v11152, %v11156
    %v11158 = vlaneseq
    %v11159 = vshrl.u32 %v11158, 7
    %v11160 = vsub.s32 1, %v11159
    %v11161 = vrot.slane %v11152, %v11160
    %v11164 = vadd.f32 %v11150, %v11157
    %v11165 = vadd.f32 %v11151, %v11161
    %v11166 = vmax.f32 %v11164, 0.0
    %v11167 = vmax.f32 %v11165, 0.0
    %v11168 = vld [vmem:[#allocation13] sm:$0xff]
    %v11169 = vld [vmem:[#allocation13 + $0x8] sm:$0xff]
    %v11170 = vld [vmem:[#allocation13 + $0x10] sm:$0xff]
    %v11171 = vld [vmem:[#allocation13 + $0x18] sm:$0xff]
    %v11172 = vld [vmem:[#allocation13 + $0x20] sm:$0xff]
    %v11173 = vld [vmem:[#allocation13 + $0x28] sm:$0xff]
    %v11174 = vld [vmem:[#allocation13 + $0x30] sm:$0xff]
    %v11175 = vld [vmem:[#allocation13 + $0x38] sm:$0xff]
    %v11176 = vunpack.c.l.s8.bf16 %v11168
    %v11177 = vunpack.c.h.s8.bf16 %v11168
    %v11178 = vunpack.c.l.s8.bf16 %v11169
    %v11179 = vunpack.c.h.s8.bf16 %v11169
    %v11180 = vunpack.c.l.s8.bf16 %v11170
    %v11181 = vunpack.c.h.s8.bf16 %v11170
    %v11182 = vunpack.c.l.s8.bf16 %v11171
    %v11183 = vunpack.c.h.s8.bf16 %v11171
    %v11184 = vunpack.c.l.s8.bf16 %v11172
    %v11185 = vunpack.c.h.s8.bf16 %v11172
    %v11186 = vunpack.c.l.s8.bf16 %v11173
    %v11187 = vunpack.c.h.s8.bf16 %v11173
    %v11188 = vunpack.c.l.s8.bf16 %v11174
    %v11189 = vunpack.c.h.s8.bf16 %v11174
    %v11190 = vunpack.c.l.s8.bf16 %v11175
    %v11191 = vunpack.c.h.s8.bf16 %v11175
    %v11192 = vpack.c.bf16 %v11166, %v11166
    %v11193 = vpack.c.bf16 %v11167, %v11167
    %11194 = vmatprep.subr.bf16.mxu0 0
    %11195 = vmatpush1.bf16.msra.mxu0 %v11176
    %11196 = vmatprep.subr.bf16.mxu0 0
    %11197 = vmatpush1.bf16.msra.mxu0 %v11177
    %11198 = vmatprep.subr.bf16.mxu0 0
    %11199 = vmatpush1.bf16.msra.mxu0 %v11178
    %11200 = vmatprep.subr.bf16.mxu0 0
    %11201 = vmatpush1.bf16.msra.mxu0 %v11179
    %11202 = vmatprep.subr.bf16.mxu0 0
    %11203 = vmatpush1.bf16.msra.mxu0 %v11180
    %11204 = vmatprep.subr.bf16.mxu0 0
    %11205 = vmatpush1.bf16.msra.mxu0 %v11181
    %11206 = vmatprep.subr.bf16.mxu0 0
    %11207 = vmatpush1.bf16.msra.mxu0 %v11182
    %11208 = vmatprep.subr.bf16.mxu0 0
    %11209 = vmatpush1.bf16.msra.mxu0 %v11183
    %11210 = vmatprep.subr.bf16.mxu0 0
    %11211 = vmatpush1.bf16.msra.mxu0 %v11184
    %11212 = vmatprep.subr.bf16.mxu0 0
    %11213 = vmatpush1.bf16.msra.mxu0 %v11185
    %11214 = vmatprep.subr.bf16.mxu0 0
    %11215 = vmatpush1.bf16.msra.mxu0 %v11186
    %11216 = vmatprep.subr.bf16.mxu0 0
    %11217 = vmatpush1.bf16.msra.mxu0 %v11187
    %11218 = vmatprep.subr.bf16.mxu0 0
    %11219 = vmatpush1.bf16.msra.mxu0 %v11188
    %11220 = vmatprep.subr.bf16.mxu0 0
    %11221 = vmatpush1.bf16.msra.mxu0 %v11189
    %11222 = vmatprep.subr.bf16.mxu0 0
    %11223 = vmatpush1.bf16.msra.mxu0 %v11190
    %11224 = vmatprep.subr.bf16.mxu0 0
    %11225 = vmatpush1.bf16.msra.mxu0 %v11191
    %11226 = vmatprep.mubr.bf16.mxu0 %v11193
    %11227 = vmatmul.mubr.bf16.gmra.mrb[0].mxu0 %v11192
    %v11228 = vpop.f32.mrb[0].mxu0
    %v11229 = vadd.f32 0.0, %v11228
    %v11230 = vpop.f32.mrb[0].mxu0
    %v11231 = vpop.f32.mrb[0].mxu0
    %v11232 = vpop.f32.mrb[0].mxu0
    %11233 = vdwg.mxu0
    %v11234 = vld [vmem:[#allocation5 + $0x59] sm:$0x1]
    %v11236 = vlaneseq
    %v11237 = vshrl.u32 %v11236, 7
    %v11238 = vsub.s32 0, %v11237
    %v11239 = vrot.slane %v11234, %v11238
    %v11241 = vmul.f32 %v11229, %v11239
    %v11242 = vld [vmem:[#allocation5 + $0x58] sm:$0x1]
    %v11244 = vlaneseq
    %v11245 = vshrl.u32 %v11244, 7
    %v11246 = vsub.s32 0, %v11245
    %v11247 = vrot.slane %v11242, %v11246
    %v11249 = vadd.f32 %v11241, %v11247
    %v11250 = vlaneseq
    %v11251 = vand.u32 %v11250, 127
    %vm11252 = vcmp.lt.s32.totalorder %v11251, 10
    %v11253 = vsel %vm11252, %v11249, -1e+30
    %11254 = vmax.xlane.f32.xlu0 %v11253
    %v11255 = vpop.xlane.xlu0 %11254
    %v11256 = vsub.f32 %v11253, %v11255
    %v11257 = vmul.f32 %v11256, 1.442695
    %v11258 = vpow.pop %v11257
    %11259 = vadd.xlane.f32.xlu0 %v11258
    %v11260 = vpop.xlane.xlu0 %11259
    %v11261 = vlog2.pop %v11260
    %v11262 = vmul.f32 %v11261, 0.6931472
    %v11263 = vsub.f32 %v11256, %v11262
    %11264 = vst [vmem:[#allocation14] sm:$0xff] %v11263
    // Predicated region
    $region58: #{mnist_forward.1} parent=1 // pred_check
      _
    $region59: #{mnist_forward.1} parent=1 // pred_check_branch
      %11266 = sbr.rel (0) target = $region61
    $region60: #{mnist_forward.1} parent=1 // pred_region
      %s11268 = ssub.s32 128, 128
      %11269 = vsyncadd [#allocation4], %s11268
      %s11271 = sshll.u32 [#allocation14], 4
      %s11272 = int_to_ptr.vmem [resolvable:$true] %s11271
      %11274 = dma.vmem_to_hbm [thread:$0]  %s11272, 128, %s7, [#allocation4]
    $region61: #{mnist_forward.1} parent=1 // pred_fallthru
      _
    // Predicated region
    $region62: #{mnist_forward.1} parent=1 // pred_check
      _
    $region63: #{mnist_forward.1} parent=1 // pred_check_branch
      %11276 = sbr.rel (0) target = $region65
    $region64: #{mnist_forward.1} parent=1 // pred_region
      %11277 = dma.done [#allocation4], 128
    $region65: #{mnist_forward.1} parent=1 // pred_fallthru
      _
    %11278 = vsyncpa [#allocation3], 1
    %11279 = vsyncpa [#allocation6], 1
    %11280 = vsyncpa [#allocation9], 1
    %11281 = vsyncpa [#allocation12], 1
    %11282 = vsyncpa [#allocation4], 1

</llo_original>
